<compile_context>
chip_gen: v5e
topology: v5e:2x2
jax: 0.10.0
libtpu: 0.0.40
codegen_flags: <defaults>
</compile_context>

<pallas_src>
import functools
import math

import numpy as np
import jax
import jax.numpy as jnp
from jax.experimental import pallas as pl
from jax.experimental.pallas import tpu as pltpu


# ----------------------------------------------------------------------------
# Cheap bounded-range sine (degree-9 odd polynomial, fitted at import time)
# ----------------------------------------------------------------------------
_TWO_PI = float(2.0 * np.pi)
_INV_TWO_PI = float(1.0 / (2.0 * np.pi))
_HALF_PI = float(0.5 * np.pi)

# Fit sin(pi*u), u in [-1,1], on Chebyshev-spaced nodes with odd monomials up to u^9,
# then rescale the coefficients to the r = pi*u variable (r in [-pi, pi]).
_u = np.cos(np.linspace(0.0, np.pi, 4001))
_A = np.stack([_u ** (2 * i + 1) for i in range(5)], axis=1)
_cu = np.linalg.lstsq(_A, np.sin(np.pi * _u), rcond=None)[0]
_SIN_C = tuple(float(_cu[i] / np.pi ** (2 * i + 1)) for i in range(5))

# import-time sanity check of the approximation (pure numpy, deterministic)
_chk = np.linspace(-np.pi, np.pi, 10001)
_err = np.max(np.abs(sum(_SIN_C[i] * _chk ** (2 * i + 1) for i in range(5)) - np.sin(_chk)))
assert _err < 1e-4, f"sine polynomial fit too loose: {_err}"


def _sin_bounded(r):
    """sin(r) for r in [-pi, pi] via Horner on r^2 (4 FMA + 2 mul)."""
    r2 = r * r
    p = _SIN_C[4]
    p = p * r2 + _SIN_C[3]
    p = p * r2 + _SIN_C[2]
    p = p * r2 + _SIN_C[1]
    p = p * r2 + _SIN_C[0]
    return r * p


def _sin_approx(x):
    """sin(x) for arbitrary x: reduce to [-pi, pi] then bounded polynomial."""
    k = jnp.floor(x * _INV_TWO_PI + 0.5)
    r = x - k * _TWO_PI
    return _sin_bounded(r)


# ----------------------------------------------------------------------------
# Pallas kernel
# ----------------------------------------------------------------------------
def _ednn_kernel(xT_ref, scale_ref, offset_ref, *refs,
                 n_layers, sinusoidal, space_dim):
    """refs = (W0, b0, W1, b1, ..., W_{L-1}, b_{L-1}, out_ref, emb_scratch).

    Transposed ("points on lanes") layout:
      xT_ref      : (space_dim, tile_n)   one tile of x^T
      scale/offset: (space_dim, 1)        pi * affine normalization (folded host-side)
      W_i         : (fan_out_i, fan_in_i) torch nn.Linear layout (no transpose needed)
                    W0/b0 already carry the 1.5/2^(k-1) gains and the omega=30 factor
      b_i         : (fan_out_i, 1)        float32
      out_ref     : (dim_out, tile_n)
      emb_scratch : (2*sinusoidal*space_dim, tile_n) VMEM, embedding slab
    """
    wb = refs[:2 * n_layers]
    out_ref = refs[2 * n_layers]
    emb_ref = refs[2 * n_layers + 1]

    # base = pi * x_norm  (pi is folded into scale/offset host-side), in [-pi, pi]
    base = xT_ref[...].astype(jnp.float32) * scale_ref[...] + offset_ref[...]

    # Build the whole sinusoidal embedding argument slab by sublane stacking, then run
    # the sine polynomial ONCE over it.  cos(a) = sin(a + pi/2) on the reduced path.
    for k in range(sinusoidal):
        a = base if k == 0 else float(2 ** k) * base
        r0 = 2 * k * space_dim
        emb_ref[r0:r0 + space_dim, :] = a                                # sin rows
        emb_ref[r0 + space_dim:r0 + 2 * space_dim, :] = a + _HALF_PI     # cos rows
    feats = _sin_approx(emb_ref[...])              # (2*sinusoidal*space_dim, tile_n)

    # --- layer 0: single K = 2*sinusoidal*space_dim matmul (gains/omega pre-folded)
    w0 = wb[0][...]
    b0 = wb[1][...]
    h = jnp.dot(w0, feats.astype(w0.dtype), preferred_element_type=jnp.float32) + b0
    if n_layers > 1:
        h = _sin_approx(h)                         # SIREN first layer (omega folded)

    # --- remaining layers: h <- W @ h + b, sin on all but the last (omega = 1)
    for i in range(1, n_layers):
        w = wb[2 * i][...]
        b = wb[2 * i + 1][...]
        h = jnp.dot(w, h.astype(w.dtype), preferred_element_type=jnp.float32) + b
        if i < n_layers - 1:
            h = _sin_approx(h)

    out_ref[...] = h.astype(out_ref.dtype)


# ----------------------------------------------------------------------------
# Wrapper helpers
# ----------------------------------------------------------------------------
def _round_up(v, m):
    return -(-v // m) * m


def _choose_tile(N, tile_n):
    """Lane-dense tile over points; prefer >=2 tiles and an even tile count (v7x)."""
    tile_n = max(128, min(_round_up(tile_n, 128), _round_up(N, 128)))
    if N > 128:
        tile_n = min(tile_n, _round_up(pl.cdiv(N, 2), 128))
    n_tiles = pl.cdiv(N, tile_n)
    if n_tiles > 1 and n_tiles % 2 == 1:
        cand = _round_up(pl.cdiv(N, n_tiles + 1), 128)
        if pl.cdiv(N, cand) % 2 == 0:
            tile_n, n_tiles = cand, pl.cdiv(N, cand)
    return tile_n, n_tiles


def _prep_params(weights, biases, sinusoidal, space_dim, weight_dtype):
    """Fold 1.5/2^(k-1) embedding gains and SIREN omega=30 into layer-0 params."""
    n_layers = len(weights)
    ws = [jnp.asarray(w, jnp.float32) for w in weights]
    bs = [jnp.asarray(b, jnp.float32).reshape(-1, 1) for b in biases]

    gains = np.concatenate(
        [np.full(2 * space_dim, 1.5 / (2.0 ** k), dtype=np.float32)
         for k in range(sinusoidal)])
    w0 = ws[0] * jnp.asarray(gains)[None, :]
    b0 = bs[0]
    if n_layers > 1:                                # first layer has sin(omega * .)
        w0 = 30.0 * w0
        b0 = 30.0 * b0
    ws[0], bs[0] = w0, b0

    # keep layer 0 in f32 (omega=30 amplifies rounding); cast the rest if requested
    ws = [ws[0]] + [w.astype(weight_dtype) for w in ws[1:]]
    return ws, bs


# ----------------------------------------------------------------------------
# Wrapper
# ----------------------------------------------------------------------------
def ednn_forward(x, x_range, weights, biases, *, sinusoidal=1, tile_n=8192,
                 weight_dtype=jnp.float32, x_is_transposed=False):
    """EDNN forward pass.

    x       : (N, space_dim) sampling points, or (space_dim, N) if x_is_transposed
    x_range : (space_dim, 2) [lo, hi] per coordinate
    weights : list of (fan_out_i, fan_in_i)  (torch nn.Linear layout)
    biases  : list of (fan_out_i,)
    Returns (N, dim_out) float32.
    """
    if x_is_transposed:
        space_dim, N = x.shape
        xT = jnp.asarray(x, jnp.float32)
    else:
        N, space_dim = x.shape
        xT = jnp.asarray(x, jnp.float32).T          # (space_dim, N)

    n_layers = len(weights)
    dim_out = weights[-1].shape[0]
    dim_emb = 2 * sinusoidal * space_dim
    assert weights[0].shape[1] == dim_emb

    tile_n, n_tiles = _choose_tile(N, tile_n)
    n_pad = n_tiles * tile_n
    if n_pad != N:
        xT = jnp.pad(xT, ((0, 0), (0, n_pad - N)))

    # Fold pi * (2*(x-lo)/(hi-lo) - 1) into one multiply-add: base = x*scale + offset.
    x_range = jnp.asarray(x_range, jnp.float32)
    lo = x_range[:, 0:1]                            # (space_dim, 1)
    hi = x_range[:, 1:2]
    scale = (2.0 * math.pi) / (hi - lo)
    offset = math.pi * (-2.0 * lo / (hi - lo) - 1.0)

    ws, bs = _prep_params(weights, biases, sinusoidal, space_dim, weight_dtype)

    in_specs = [
        pl.BlockSpec((space_dim, tile_n), lambda i: (0, i)),   # x^T: tiled over points
        pl.BlockSpec((space_dim, 1), lambda i: (0, 0)),        # scale (whole array)
        pl.BlockSpec((space_dim, 1), lambda i: (0, 0)),        # offset (whole array)
    ]
    args = [xT, scale, offset]
    for w, b in zip(ws, bs):
        in_specs.append(pl.BlockSpec(w.shape, lambda i: (0, 0)))
        in_specs.append(pl.BlockSpec(b.shape, lambda i: (0, 0)))
        args.append(w)
        args.append(b)

    kernel = functools.partial(_ednn_kernel, n_layers=n_layers,
                               sinusoidal=sinusoidal, space_dim=space_dim)

    outT = pl.pallas_call(
        kernel,
        out_shape=jax.ShapeDtypeStruct((dim_out, n_pad), jnp.float32),
        grid_spec=pltpu.PrefetchScalarGridSpec(
            num_scalar_prefetch=0,
            grid=(n_tiles,),
            in_specs=in_specs,
            out_specs=pl.BlockSpec((dim_out, tile_n), lambda i: (0, i)),
            scratch_shapes=[pltpu.VMEM((dim_emb, tile_n), jnp.float32)],
        ),
        compiler_params=pltpu.CompilerParams(
            dimension_semantics=("parallel",),
        ),
    )(*args)

    if dim_out == 1:
        return outT.reshape(n_pad, 1)[:N]           # free reshape + cheap row slice
    return outT[:, :N].T                            # back to (N, dim_out)


# ----------------------------------------------------------------------------
# Pure-JAX reference (mirrors the PyTorch forward exactly, for verification)
# ----------------------------------------------------------------------------
def ednn_reference(x, x_range, weights, biases, sinusoidal=1):
    x = jnp.asarray(x, jnp.float32)
    lo = x_range[None, :, 0]
    hi = x_range[None, :, 1]
    x_norm = 2.0 * (x - lo) / (hi - lo) - 1.0
    feats = []
    for k in range(1, sinusoidal + 1):
        s = float(2 ** (k - 1))
        feats.append(1.5 * jnp.sin(jnp.pi * s * x_norm) / s)
        feats.append(1.5 * jnp.cos(jnp.pi * s * x_norm) / s)
    h = jnp.concatenate(feats, axis=-1)
    for i, (w, b) in enumerate(zip(weights, biases)):
        h = h @ w.T + b                             # torch nn.functional.linear
        if i < len(weights) - 1:
            omega = 30.0 if i == 0 else 1.0
            h = jnp.sin(omega * h)
    return h


# ----------------------------------------------------------------------------
# Deterministic parameter init (xavier_normal, gain=1.0 since
# calculate_gain('sin') raises in torch).  Biases are made nonzero here so the
# +b broadcast path is actually exercised by the self-test.
# ----------------------------------------------------------------------------
def init_params(key, units):
    weights, biases = [], []
    for i in range(len(units) - 1):
        fan_in, fan_out = units[i], units[i + 1]
        key, kw, kb = jax.random.split(key, 3)
        std = 1.0 * math.sqrt(2.0 / (fan_in + fan_out))
        w = jax.random.normal(kw, (fan_out, fan_in), jnp.float32) * std
        b = 0.1 * jax.random.normal(kb, (fan_out,), jnp.float32)
        weights.append(w)
        biases.append(b)
    return weights, biases


if __name__ == "__main__":
    # EDNN config: 2-D space, scalar state, 3 hidden layers of width 32.
    space_dim = 2
    state_dim = 1
    dim_hidden = 32
    num_layers = 3
    sinusoidal = 1                      # default promotion (periodic boundary)
    dim_in = space_dim * 2 * sinusoidal
    units = [dim_in] + [dim_hidden] * num_layers + [state_dim]

    key = jax.random.PRNGKey(0)
    k_x, k_p = jax.random.split(key)

    # N deliberately NOT a multiple of tile_n -> exercises the pad/remainder path and
    # the even-tile-count selection (2 tiles of 3968 points on v7x).
    N = 7777
    x_range = jnp.array([[0.0, 1.0], [0.0, 2.0]], dtype=jnp.float32)   # (space_dim, 2)
    # random sampling points inside x_range (mirrors get_random_sampling_points)
    u01 = jax.random.uniform(k_x, (N, space_dim), jnp.float32)
    x = u01 * (x_range[:, 1] - x_range[:, 0]) + x_range[:, 0]

    weights, biases = init_params(k_p, units)

    out = ednn_forward(x, x_range, weights, biases,
                       sinusoidal=sinusoidal, tile_n=8192)
    out = jax.block_until_ready(out)

    ref = ednn_reference(x, x_range, weights, biases, sinusoidal=sinusoidal)
    assert out.shape == (N, state_dim)
    assert jnp.allclose(out, ref, atol=1e-3, rtol=1e-3), \
        "Pallas output mismatch vs JAX reference"

    print("KERNEL_OK")
</pallas_src>

<mosaic_0001>
module attributes {stable_mosaic.version = 11 : i64} {
  func.func @_ednn_kernel(%arg0: i32, %arg1: memref<2x3968xf32, #tpu.memory_space<vmem>>, %arg2: memref<2x1xf32, #tpu.memory_space<vmem>>, %arg3: memref<2x1xf32, #tpu.memory_space<vmem>>, %arg4: memref<32x4xf32, #tpu.memory_space<vmem>>, %arg5: memref<32x1xf32, #tpu.memory_space<vmem>>, %arg6: memref<32x32xf32, #tpu.memory_space<vmem>>, %arg7: memref<32x1xf32, #tpu.memory_space<vmem>>, %arg8: memref<32x32xf32, #tpu.memory_space<vmem>>, %arg9: memref<32x1xf32, #tpu.memory_space<vmem>>, %arg10: memref<1x32xf32, #tpu.memory_space<vmem>>, %arg11: memref<1x1xf32, #tpu.memory_space<vmem>>, %arg12: memref<1x3968xf32, #tpu.memory_space<vmem>>, %arg13: memref<4x3968xf32, #tpu.memory_space<vmem>>) attributes {dimension_semantics = [#tpu.dimension_semantics<parallel>], iteration_bounds = array<i64: 2>, scalar_prefetch = 0 : i64, scratch_operands = 1 : i64, tpu.core_type = #tpu.core_type<tc>, window_params = [{transform_indices = @transform_0, window_bounds = array<i64: 2, 3968>}, {pipeline_mode = #tpu.pipeline_mode<synchronous>, transform_indices = @transform_1, window_bounds = array<i64: 2, 1>}, {pipeline_mode = #tpu.pipeline_mode<synchronous>, transform_indices = @transform_2, window_bounds = array<i64: 2, 1>}, {pipeline_mode = #tpu.pipeline_mode<synchronous>, transform_indices = @transform_3, window_bounds = array<i64: 32, 4>}, {pipeline_mode = #tpu.pipeline_mode<synchronous>, transform_indices = @transform_4, window_bounds = array<i64: 32, 1>}, {pipeline_mode = #tpu.pipeline_mode<synchronous>, transform_indices = @transform_5, window_bounds = array<i64: 32, 32>}, {pipeline_mode = #tpu.pipeline_mode<synchronous>, transform_indices = @transform_6, window_bounds = array<i64: 32, 1>}, {pipeline_mode = #tpu.pipeline_mode<synchronous>, transform_indices = @transform_7, window_bounds = array<i64: 32, 32>}, {pipeline_mode = #tpu.pipeline_mode<synchronous>, transform_indices = @transform_8, window_bounds = array<i64: 32, 1>}, {pipeline_mode = #tpu.pipeline_mode<synchronous>, transform_indices = @transform_9, window_bounds = array<i64: 1, 32>}, {pipeline_mode = #tpu.pipeline_mode<synchronous>, transform_indices = @transform_10, window_bounds = array<i64: 1, 1>}, {transform_indices = @transform_11, window_bounds = array<i64: 1, 3968>}]} {
    %c0 = arith.constant 0 : index
    %c0_0 = arith.constant 0 : index
    %0 = vector.load %arg1[%c0, %c0_0] : memref<2x3968xf32, #tpu.memory_space<vmem>>, vector<2x3968xf32>
    %c0_1 = arith.constant 0 : index
    %c0_2 = arith.constant 0 : index
    %1 = vector.load %arg2[%c0_1, %c0_2] : memref<2x1xf32, #tpu.memory_space<vmem>>, vector<2x1xf32>
    %2 = vector.broadcast %1 : vector<2x1xf32> to vector<2x3968xf32>
    %3 = arith.mulf %0, %2 : vector<2x3968xf32>
    %c0_3 = arith.constant 0 : index
    %c0_4 = arith.constant 0 : index
    %4 = vector.load %arg3[%c0_3, %c0_4] : memref<2x1xf32, #tpu.memory_space<vmem>>, vector<2x1xf32>
    %5 = vector.broadcast %4 : vector<2x1xf32> to vector<2x3968xf32>
    %6 = arith.addf %3, %5 : vector<2x3968xf32>
    %c0_5 = arith.constant 0 : index
    %c0_6 = arith.constant 0 : index
    %7 = vector.load %arg13[%c0_5, %c0_6] : memref<4x3968xf32, #tpu.memory_space<vmem>>, vector<2x3968xf32>
    tpu.vector_store %arg13[%c0_5, %c0_6], %6 {strides = array<i32>} : memref<4x3968xf32, #tpu.memory_space<vmem>>, vector<2x3968xf32>,
    %cst = arith.constant 1.57079637 : f32
    %8 = vector.broadcast %cst : f32 to vector<2x3968xf32>
    %9 = arith.addf %6, %8 : vector<2x3968xf32>
    %c2 = arith.constant 2 : index
    %c0_7 = arith.constant 0 : index
    %10 = vector.load %arg13[%c2, %c0_7] : memref<4x3968xf32, #tpu.memory_space<vmem>>, vector<2x3968xf32>
    tpu.vector_store %arg13[%c2, %c0_7], %9 {strides = array<i32>} : memref<4x3968xf32, #tpu.memory_space<vmem>>, vector<2x3968xf32>,
    %c0_8 = arith.constant 0 : index
    %c0_9 = arith.constant 0 : index
    %11 = vector.load %arg13[%c0_8, %c0_9] : memref<4x3968xf32, #tpu.memory_space<vmem>>, vector<4x3968xf32>
    %cst_10 = arith.constant 0.159154937 : f32
    %12 = vector.broadcast %cst_10 : f32 to vector<4x3968xf32>
    %13 = arith.mulf %11, %12 : vector<4x3968xf32>
    %cst_11 = arith.constant 5.000000e-01 : f32
    %14 = vector.broadcast %cst_11 : f32 to vector<4x3968xf32>
    %15 = arith.addf %13, %14 : vector<4x3968xf32>
    %16 = math.floor %15 : vector<4x3968xf32>
    %cst_12 = arith.constant 6.28318548 : f32
    %17 = vector.broadcast %cst_12 : f32 to vector<4x3968xf32>
    %18 = arith.mulf %16, %17 : vector<4x3968xf32>
    %19 = arith.subf %11, %18 : vector<4x3968xf32>
    %20 = arith.mulf %19, %19 : vector<4x3968xf32>
    %cst_13 = arith.constant 2.14702982E-6 : f32
    %21 = vector.broadcast %cst_13 : f32 to vector<4x3968xf32>
    %22 = arith.mulf %21, %20 : vector<4x3968xf32>
    %cst_14 = arith.constant -1.92631313E-4 : f32
    %23 = vector.broadcast %cst_14 : f32 to vector<4x3968xf32>
    %24 = arith.addf %22, %23 : vector<4x3968xf32>
    %25 = arith.mulf %24, %20 : vector<4x3968xf32>
    %cst_15 = arith.constant 0.00830884743 : f32
    %26 = vector.broadcast %cst_15 : f32 to vector<4x3968xf32>
    %27 = arith.addf %25, %26 : vector<4x3968xf32>
    %28 = arith.mulf %27, %20 : vector<4x3968xf32>
    %cst_16 = arith.constant -0.16662401 : f32
    %29 = vector.broadcast %cst_16 : f32 to vector<4x3968xf32>
    %30 = arith.addf %28, %29 : vector<4x3968xf32>
    %31 = arith.mulf %30, %20 : vector<4x3968xf32>
    %cst_17 = arith.constant 0.999979138 : f32
    %32 = vector.broadcast %cst_17 : f32 to vector<4x3968xf32>
    %33 = arith.addf %31, %32 : vector<4x3968xf32>
    %34 = arith.mulf %19, %33 : vector<4x3968xf32>
    %c0_18 = arith.constant 0 : index
    %c0_19 = arith.constant 0 : index
    %35 = vector.load %arg4[%c0_18, %c0_19] : memref<32x4xf32, #tpu.memory_space<vmem>>, vector<32x4xf32>
    %c0_20 = arith.constant 0 : index
    %c0_21 = arith.constant 0 : index
    %36 = vector.load %arg5[%c0_20, %c0_21] : memref<32x1xf32, #tpu.memory_space<vmem>>, vector<32x1xf32>
    %cst_22 = arith.constant dense<0.000000e+00> : vector<32x3968xf32>
    %37 = tpu.matmul %35, %34, %cst_22 {dimension_numbers = #tpu.dot_dimension_numbers<[1], [0], [0], [1], [0, 0, 1, 1], [], []>} : vector<32x4xf32>, vector<4x3968xf32>, vector<32x3968xf32> -> vector<32x3968xf32>
    %38 = vector.broadcast %36 : vector<32x1xf32> to vector<32x3968xf32>
    %39 = arith.addf %37, %38 : vector<32x3968xf32>
    %cst_23 = arith.constant 0.159154937 : f32
    %40 = vector.broadcast %cst_23 : f32 to vector<32x3968xf32>
    %41 = arith.mulf %39, %40 : vector<32x3968xf32>
    %cst_24 = arith.constant 5.000000e-01 : f32
    %42 = vector.broadcast %cst_24 : f32 to vector<32x3968xf32>
    %43 = arith.addf %41, %42 : vector<32x3968xf32>
    %44 = math.floor %43 : vector<32x3968xf32>
    %cst_25 = arith.constant 6.28318548 : f32
    %45 = vector.broadcast %cst_25 : f32 to vector<32x3968xf32>
    %46 = arith.mulf %44, %45 : vector<32x3968xf32>
    %47 = arith.subf %39, %46 : vector<32x3968xf32>
    %48 = arith.mulf %47, %47 : vector<32x3968xf32>
    %cst_26 = arith.constant 2.14702982E-6 : f32
    %49 = vector.broadcast %cst_26 : f32 to vector<32x3968xf32>
    %50 = arith.mulf %49, %48 : vector<32x3968xf32>
    %cst_27 = arith.constant -1.92631313E-4 : f32
    %51 = vector.broadcast %cst_27 : f32 to vector<32x3968xf32>
    %52 = arith.addf %50, %51 : vector<32x3968xf32>
    %53 = arith.mulf %52, %48 : vector<32x3968xf32>
    %cst_28 = arith.constant 0.00830884743 : f32
    %54 = vector.broadcast %cst_28 : f32 to vector<32x3968xf32>
    %55 = arith.addf %53, %54 : vector<32x3968xf32>
    %56 = arith.mulf %55, %48 : vector<32x3968xf32>
    %cst_29 = arith.constant -0.16662401 : f32
    %57 = vector.broadcast %cst_29 : f32 to vector<32x3968xf32>
    %58 = arith.addf %56, %57 : vector<32x3968xf32>
    %59 = arith.mulf %58, %48 : vector<32x3968xf32>
    %cst_30 = arith.constant 0.999979138 : f32
    %60 = vector.broadcast %cst_30 : f32 to vector<32x3968xf32>
    %61 = arith.addf %59, %60 : vector<32x3968xf32>
    %62 = arith.mulf %47, %61 : vector<32x3968xf32>
    %c0_31 = arith.constant 0 : index
    %c0_32 = arith.constant 0 : index
    %63 = vector.load %arg6[%c0_31, %c0_32] : memref<32x32xf32, #tpu.memory_space<vmem>>, vector<32x32xf32>
    %c0_33 = arith.constant 0 : index
    %c0_34 = arith.constant 0 : index
    %64 = vector.load %arg7[%c0_33, %c0_34] : memref<32x1xf32, #tpu.memory_space<vmem>>, vector<32x1xf32>
    %cst_35 = arith.constant dense<0.000000e+00> : vector<32x3968xf32>
    %65 = tpu.matmul %63, %62, %cst_35 {dimension_numbers = #tpu.dot_dimension_numbers<[1], [0], [0], [1], [0, 0, 1, 1], [], []>} : vector<32x32xf32>, vector<32x3968xf32>, vector<32x3968xf32> -> vector<32x3968xf32>
    %66 = vector.broadcast %64 : vector<32x1xf32> to vector<32x3968xf32>
    %67 = arith.addf %65, %66 : vector<32x3968xf32>
    %cst_36 = arith.constant 0.159154937 : f32
    %68 = vector.broadcast %cst_36 : f32 to vector<32x3968xf32>
    %69 = arith.mulf %67, %68 : vector<32x3968xf32>
    %cst_37 = arith.constant 5.000000e-01 : f32
    %70 = vector.broadcast %cst_37 : f32 to vector<32x3968xf32>
    %71 = arith.addf %69, %70 : vector<32x3968xf32>
    %72 = math.floor %71 : vector<32x3968xf32>
    %cst_38 = arith.constant 6.28318548 : f32
    %73 = vector.broadcast %cst_38 : f32 to vector<32x3968xf32>
    %74 = arith.mulf %72, %73 : vector<32x3968xf32>
    %75 = arith.subf %67, %74 : vector<32x3968xf32>
    %76 = arith.mulf %75, %75 : vector<32x3968xf32>
    %cst_39 = arith.constant 2.14702982E-6 : f32
    %77 = vector.broadcast %cst_39 : f32 to vector<32x3968xf32>
    %78 = arith.mulf %77, %76 : vector<32x3968xf32>
    %cst_40 = arith.constant -1.92631313E-4 : f32
    %79 = vector.broadcast %cst_40 : f32 to vector<32x3968xf32>
    %80 = arith.addf %78, %79 : vector<32x3968xf32>
    %81 = arith.mulf %80, %76 : vector<32x3968xf32>
    %cst_41 = arith.constant 0.00830884743 : f32
    %82 = vector.broadcast %cst_41 : f32 to vector<32x3968xf32>
    %83 = arith.addf %81, %82 : vector<32x3968xf32>
    %84 = arith.mulf %83, %76 : vector<32x3968xf32>
    %cst_42 = arith.constant -0.16662401 : f32
    %85 = vector.broadcast %cst_42 : f32 to vector<32x3968xf32>
    %86 = arith.addf %84, %85 : vector<32x3968xf32>
    %87 = arith.mulf %86, %76 : vector<32x3968xf32>
    %cst_43 = arith.constant 0.999979138 : f32
    %88 = vector.broadcast %cst_43 : f32 to vector<32x3968xf32>
    %89 = arith.addf %87, %88 : vector<32x3968xf32>
    %90 = arith.mulf %75, %89 : vector<32x3968xf32>
    %c0_44 = arith.constant 0 : index
    %c0_45 = arith.constant 0 : index
    %91 = vector.load %arg8[%c0_44, %c0_45] : memref<32x32xf32, #tpu.memory_space<vmem>>, vector<32x32xf32>
    %c0_46 = arith.constant 0 : index
    %c0_47 = arith.constant 0 : index
    %92 = vector.load %arg9[%c0_46, %c0_47] : memref<32x1xf32, #tpu.memory_space<vmem>>, vector<32x1xf32>
    %cst_48 = arith.constant dense<0.000000e+00> : vector<32x3968xf32>
    %93 = tpu.matmul %91, %90, %cst_48 {dimension_numbers = #tpu.dot_dimension_numbers<[1], [0], [0], [1], [0, 0, 1, 1], [], []>} : vector<32x32xf32>, vector<32x3968xf32>, vector<32x3968xf32> -> vector<32x3968xf32>
    %94 = vector.broadcast %92 : vector<32x1xf32> to vector<32x3968xf32>
    %95 = arith.addf %93, %94 : vector<32x3968xf32>
    %cst_49 = arith.constant 0.159154937 : f32
    %96 = vector.broadcast %cst_49 : f32 to vector<32x3968xf32>
    %97 = arith.mulf %95, %96 : vector<32x3968xf32>
    %cst_50 = arith.constant 5.000000e-01 : f32
    %98 = vector.broadcast %cst_50 : f32 to vector<32x3968xf32>
    %99 = arith.addf %97, %98 : vector<32x3968xf32>
    %100 = math.floor %99 : vector<32x3968xf32>
    %cst_51 = arith.constant 6.28318548 : f32
    %101 = vector.broadcast %cst_51 : f32 to vector<32x3968xf32>
    %102 = arith.mulf %100, %101 : vector<32x3968xf32>
    %103 = arith.subf %95, %102 : vector<32x3968xf32>
    %104 = arith.mulf %103, %103 : vector<32x3968xf32>
    %cst_52 = arith.constant 2.14702982E-6 : f32
    %105 = vector.broadcast %cst_52 : f32 to vector<32x3968xf32>
    %106 = arith.mulf %105, %104 : vector<32x3968xf32>
    %cst_53 = arith.constant -1.92631313E-4 : f32
    %107 = vector.broadcast %cst_53 : f32 to vector<32x3968xf32>
    %108 = arith.addf %106, %107 : vector<32x3968xf32>
    %109 = arith.mulf %108, %104 : vector<32x3968xf32>
    %cst_54 = arith.constant 0.00830884743 : f32
    %110 = vector.broadcast %cst_54 : f32 to vector<32x3968xf32>
    %111 = arith.addf %109, %110 : vector<32x3968xf32>
    %112 = arith.mulf %111, %104 : vector<32x3968xf32>
    %cst_55 = arith.constant -0.16662401 : f32
    %113 = vector.broadcast %cst_55 : f32 to vector<32x3968xf32>
    %114 = arith.addf %112, %113 : vector<32x3968xf32>
    %115 = arith.mulf %114, %104 : vector<32x3968xf32>
    %cst_56 = arith.constant 0.999979138 : f32
    %116 = vector.broadcast %cst_56 : f32 to vector<32x3968xf32>
    %117 = arith.addf %115, %116 : vector<32x3968xf32>
    %118 = arith.mulf %103, %117 : vector<32x3968xf32>
    %c0_57 = arith.constant 0 : index
    %c0_58 = arith.constant 0 : index
    %119 = vector.load %arg10[%c0_57, %c0_58] : memref<1x32xf32, #tpu.memory_space<vmem>>, vector<1x32xf32>
    %c0_59 = arith.constant 0 : index
    %c0_60 = arith.constant 0 : index
    %120 = vector.load %arg11[%c0_59, %c0_60] : memref<1x1xf32, #tpu.memory_space<vmem>>, vector<1x1xf32>
    %cst_61 = arith.constant dense<0.000000e+00> : vector<1x3968xf32>
    %121 = tpu.matmul %119, %118, %cst_61 {dimension_numbers = #tpu.dot_dimension_numbers<[1], [0], [0], [1], [0, 0, 1, 1], [], []>} : vector<1x32xf32>, vector<32x3968xf32>, vector<1x3968xf32> -> vector<1x3968xf32>
    %122 = vector.broadcast %120 : vector<1x1xf32> to vector<1x3968xf32>
    %123 = arith.addf %121, %122 : vector<1x3968xf32>
    %c0_62 = arith.constant 0 : index
    %c0_63 = arith.constant 0 : index
    %124 = vector.load %arg12[%c0_62, %c0_63] : memref<1x3968xf32, #tpu.memory_space<vmem>>, vector<1x3968xf32>
    tpu.vector_store %arg12[%c0_62, %c0_63], %123 {strides = array<i32>} : memref<1x3968xf32, #tpu.memory_space<vmem>>, vector<1x3968xf32>,
    return
  }
  func.func @transform_0(%arg0: i32) -> (i32, i32) {
    %c0_i32 = arith.constant 0 : i32
    %c0_i32_0 = arith.constant 0 : i32
    return %c0_i32, %arg0 : i32, i32
  }
  func.func @transform_1(%arg0: i32) -> (i32, i32) {
    %c0_i32 = arith.constant 0 : i32
    %c0_i32_0 = arith.constant 0 : i32
    %c0_i32_1 = arith.constant 0 : i32
    return %c0_i32, %c0_i32_0 : i32, i32
  }
  func.func @transform_2(%arg0: i32) -> (i32, i32) {
    %c0_i32 = arith.constant 0 : i32
    %c0_i32_0 = arith.constant 0 : i32
    %c0_i32_1 = arith.constant 0 : i32
    return %c0_i32, %c0_i32_0 : i32, i32
  }
  func.func @transform_3(%arg0: i32) -> (i32, i32) {
    %c0_i32 = arith.constant 0 : i32
    %c0_i32_0 = arith.constant 0 : i32
    %c0_i32_1 = arith.constant 0 : i32
    return %c0_i32, %c0_i32_0 : i32, i32
  }
  func.func @transform_4(%arg0: i32) -> (i32, i32) {
    %c0_i32 = arith.constant 0 : i32
    %c0_i32_0 = arith.constant 0 : i32
    %c0_i32_1 = arith.constant 0 : i32
    return %c0_i32, %c0_i32_0 : i32, i32
  }
  func.func @transform_5(%arg0: i32) -> (i32, i32) {
    %c0_i32 = arith.constant 0 : i32
    %c0_i32_0 = arith.constant 0 : i32
    %c0_i32_1 = arith.constant 0 : i32
    return %c0_i32, %c0_i32_0 : i32, i32
  }
  func.func @transform_6(%arg0: i32) -> (i32, i32) {
    %c0_i32 = arith.constant 0 : i32
    %c0_i32_0 = arith.constant 0 : i32
    %c0_i32_1 = arith.constant 0 : i32
    return %c0_i32, %c0_i32_0 : i32, i32
  }
  func.func @transform_7(%arg0: i32) -> (i32, i32) {
    %c0_i32 = arith.constant 0 : i32
    %c0_i32_0 = arith.constant 0 : i32
    %c0_i32_1 = arith.constant 0 : i32
    return %c0_i32, %c0_i32_0 : i32, i32
  }
  func.func @transform_8(%arg0: i32) -> (i32, i32) {
    %c0_i32 = arith.constant 0 : i32
    %c0_i32_0 = arith.constant 0 : i32
    %c0_i32_1 = arith.constant 0 : i32
    return %c0_i32, %c0_i32_0 : i32, i32
  }
  func.func @transform_9(%arg0: i32) -> (i32, i32) {
    %c0_i32 = arith.constant 0 : i32
    %c0_i32_0 = arith.constant 0 : i32
    %c0_i32_1 = arith.constant 0 : i32
    return %c0_i32, %c0_i32_0 : i32, i32
  }
  func.func @transform_10(%arg0: i32) -> (i32, i32) {
    %c0_i32 = arith.constant 0 : i32
    %c0_i32_0 = arith.constant 0 : i32
    %c0_i32_1 = arith.constant 0 : i32
    return %c0_i32, %c0_i32_0 : i32, i32
  }
  func.func @transform_11(%arg0: i32) -> (i32, i32) {
    %c0_i32 = arith.constant 0 : i32
    %c0_i32_0 = arith.constant 0 : i32
    return %c0_i32, %arg0 : i32, i32
  }
}

</mosaic_0001>

<llo_original>
// kernel: tpu_custom_call.1
$region0: #{tpu_custom_call.1}
  #allocation0 [shape = 'u32[]', space=smem, size = 0x4, offset = 0x4, fixed_abs, tag = 'smem constant byte address 0x4 - core index']
  #allocation1 [shape = 'u32[72,128]{1,0:T(1,128)}', space=vmem, size = 0x9000, scoped, tag = 'internal scratch']
  #allocation2 [shape = 'f32[4,3968]{1,0:T(4,128)}', space=vmem, size = 0xf800, scoped, tag = 'scratch operand']
  #allocation3 [shape = 'f32[1,1]{1,0:T(1,128)S(1)}', space=vmem, size = 0x200, scoped, tag = 'scoped memory for tpu_custom_call.1']
  %s0 = inlined_call_operand.hbm [shape: f32[2,7936], index: 0, kind: input, shape index: {}]
  %s1 = inlined_call_operand.vmem [shape: f32[2,1], index: 1, kind: input, shape index: {}]
  %s2 = inlined_call_operand.vmem [shape: f32[2,1], index: 2, kind: input, shape index: {}]
  %s3 = inlined_call_operand.vmem [shape: f32[32,4], index: 3, kind: input, shape index: {}]
  %s4 = inlined_call_operand.vmem [shape: f32[32,1], index: 4, kind: input, shape index: {}]
  %s5 = inlined_call_operand.vmem [shape: f32[32,32], index: 5, kind: input, shape index: {}]
  %s6 = inlined_call_operand.vmem [shape: f32[32,1], index: 6, kind: input, shape index: {}]
  %s7 = inlined_call_operand.vmem [shape: f32[32,32], index: 7, kind: input, shape index: {}]
  %s8 = inlined_call_operand.vmem [shape: f32[32,1], index: 8, kind: input, shape index: {}]
  %s9 = inlined_call_operand.vmem [shape: f32[1,32], index: 9, kind: input, shape index: {}]
  %s10 = inlined_call_operand.<no memory space> [shape: f32[1,1], index: 10, kind: input, shape index: {}]
  %s11 = inlined_call_operand.hbm [shape: f32[1,7936], index: 11, kind: output, shape index: {}]
  %s12 = sld [smem:[#allocation0]]
  $region81: #{tpu_custom_call.1} parent=0
    _
  %s14 = ssub.s32 1, %s12
  %s15 = scalar_select 0, %s14, %s12
  %v16 = vstv %s10
  %17 = vst [vmem:[#allocation3] sm:$0x1] %v16
  $region1: #{tpu_custom_call.1} parent=0
    #allocation4 [shape = 'u8[63488]{0}', space=vmem, size = 0xf800, scoped, tag = 'input window, operand 0']
    #allocation5 [shape = 's32[2]{0}', space=sflag, size = 0x8, scoped, tag = 'scoped memory for tpu_custom_call.1']
    #allocation6 [shape = 's32[2]{0}', space=sflag, size = 0x8, scoped, tag = 'scoped memory for tpu_custom_call.1']
    #allocation7 [shape = 'u8[31744]{0}', space=vmem, size = 0x7c00, scoped, tag = 'output window, operand 0']
    %18 = vsyncpa [#allocation5], 0
    %s19 = scalar_lea.sflag [#allocation5], 1
    %20 = vsyncpa %s19, 0
    %21 = vsyncpa [#allocation6], 0
    %s22 = scalar_lea.sflag [#allocation6], 1
    %23 = vsyncpa %s22, 0
    loop: start=0, step=1, limit=4
    $region2: #{tpu_custom_call.1} parent=1 // loop_pre_header
      _
    $region3: #{tpu_custom_call.1} parent=1 // loop_header
      %s25 = sphi 0, %s29
      %p26 = scmp.ge.s32.totalorder %s25, 4
      %s35 = sphi 0, %s37
      %s38 = sphi 0, %s35
      %s39 = sphi 0, %s38
      %s55 = sphi 0, %s39
      %s59 = sphi 0, %s59
      %s61 = sphi 0, %s59
      %s62 = sphi 0, %s61
      %s76 = sphi 0, %s62
      %s80 = sphi 0, %s80
      %s82 = sphi 0, %s80
      %s83 = sphi 0, %s82
      %s97 = sphi 0, %s83
      %s101 = sphi 0, %s101
      %s103 = sphi 0, %s101
      %s104 = sphi 0, %s103
      %s118 = sphi 0, %s104
      %s122 = sphi 0, %s122
      %s124 = sphi 0, %s122
      %s125 = sphi 0, %s124
      %s139 = sphi 0, %s125
      %s143 = sphi 0, %s143
      %s145 = sphi 0, %s143
      %s146 = sphi 0, %s145
      %s160 = sphi 0, %s146
      %s164 = sphi 0, %s164
      %s166 = sphi 0, %s164
      %s167 = sphi 0, %s166
      %s181 = sphi 0, %s167
      %s185 = sphi 0, %s185
      %s187 = sphi 0, %s185
      %s188 = sphi 0, %s187
      %s202 = sphi 0, %s188
      %s206 = sphi 0, %s206
      %s208 = sphi 0, %s206
      %s209 = sphi 0, %s208
      %s223 = sphi 0, %s209
      %s227 = sphi 0, %s227
      %s229 = sphi 0, %s227
      %s230 = sphi 0, %s229
      %s244 = sphi 0, %s230
      %s248 = sphi 0, %s248
      %s250 = sphi 0, %s248
      %s251 = sphi 0, %s250
      %s265 = sphi 0, %s251
      %s271 = sphi 0, %s273
      %s274 = sphi 0, %s271
      %s275 = sphi 0, %s274
      %s291 = sphi 0, %s275
    $region4: #{tpu_custom_call.1} parent=1 // loop_header_branch
      %28 = sbr.rel (%p26) target = $region8
    $region5: #{tpu_custom_call.1} parent=1 // loop_body
      %s30 = ssub.s32 %s25, 1
      %s31 = ssub.s32 %s25, 2
      %s32 = sadd.s32 %s25, 1
      %s33 = ssub.s32 %s25, %s32
      %p34 = scmp.eq.s32.totalorder %s33, 0
      %s36 = sadd.s32 %s35, 1
      %s37 = scalar_select %p34, %s35, %s36
      %p40 = pneg %p34
      %p41 = scmp.eq.s32.totalorder %s25, 1
      %p42 = por %p40, %p41
      %p43 = scmp.ne.s32.totalorder %s35, %s38
      %p44 = scmp.eq.s32.totalorder %s25, 0
      %p45 = por %p43, %p44
      %p46 = scmp.ne.s32.totalorder %s35, %s38
      %p47 = scmp.eq.s32.totalorder %s30, 1
      %p48 = por %p46, %p47
      %p49 = scmp.ne.s32.totalorder %s38, %s39
      %p50 = scmp.eq.s32.totalorder %s30, 0
      %p51 = por %p49, %p50
      %p52 = scmp.ne.s32.totalorder %s38, %s39
      %p53 = scmp.eq.s32.totalorder %s31, 1
      %p54 = por %p52, %p53
      %p56 = scmp.ne.s32.totalorder %s39, %s55
      %p57 = scmp.eq.s32.totalorder %s31, 0
      %p58 = por %p56, %p57
      %s60 = sadd.s32 %s59, 1
      %p63 = scmp.eq.s32.totalorder %s25, 1
      %p64 = scmp.ne.s32.totalorder %s59, %s61
      %p65 = scmp.eq.s32.totalorder %s25, 0
      %p66 = por %p64, %p65
      %p67 = scmp.ne.s32.totalorder %s59, %s61
      %p68 = scmp.eq.s32.totalorder %s30, 1
      %p69 = por %p67, %p68
      %p70 = scmp.ne.s32.totalorder %s61, %s62
      %p71 = scmp.eq.s32.totalorder %s30, 0
      %p72 = por %p70, %p71
      %p73 = scmp.ne.s32.totalorder %s61, %s62
      %p74 = scmp.eq.s32.totalorder %s31, 1
      %p75 = por %p73, %p74
      %p77 = scmp.ne.s32.totalorder %s62, %s76
      %p78 = scmp.eq.s32.totalorder %s31, 0
      %p79 = por %p77, %p78
      %s81 = sadd.s32 %s80, 1
      %p84 = scmp.eq.s32.totalorder %s25, 1
      %p85 = scmp.ne.s32.totalorder %s80, %s82
      %p86 = scmp.eq.s32.totalorder %s25, 0
      %p87 = por %p85, %p86
      %p88 = scmp.ne.s32.totalorder %s80, %s82
      %p89 = scmp.eq.s32.totalorder %s30, 1
      %p90 = por %p88, %p89
      %p91 = scmp.ne.s32.totalorder %s82, %s83
      %p92 = scmp.eq.s32.totalorder %s30, 0
      %p93 = por %p91, %p92
      %p94 = scmp.ne.s32.totalorder %s82, %s83
      %p95 = scmp.eq.s32.totalorder %s31, 1
      %p96 = por %p94, %p95
      %p98 = scmp.ne.s32.totalorder %s83, %s97
      %p99 = scmp.eq.s32.totalorder %s31, 0
      %p100 = por %p98, %p99
      %s102 = sadd.s32 %s101, 1
      %p105 = scmp.eq.s32.totalorder %s25, 1
      %p106 = scmp.ne.s32.totalorder %s101, %s103
      %p107 = scmp.eq.s32.totalorder %s25, 0
      %p108 = por %p106, %p107
      %p109 = scmp.ne.s32.totalorder %s101, %s103
      %p110 = scmp.eq.s32.totalorder %s30, 1
      %p111 = por %p109, %p110
      %p112 = scmp.ne.s32.totalorder %s103, %s104
      %p113 = scmp.eq.s32.totalorder %s30, 0
      %p114 = por %p112, %p113
      %p115 = scmp.ne.s32.totalorder %s103, %s104
      %p116 = scmp.eq.s32.totalorder %s31, 1
      %p117 = por %p115, %p116
      %p119 = scmp.ne.s32.totalorder %s104, %s118
      %p120 = scmp.eq.s32.totalorder %s31, 0
      %p121 = por %p119, %p120
      %s123 = sadd.s32 %s122, 1
      %p126 = scmp.eq.s32.totalorder %s25, 1
      %p127 = scmp.ne.s32.totalorder %s122, %s124
      %p128 = scmp.eq.s32.totalorder %s25, 0
      %p129 = por %p127, %p128
      %p130 = scmp.ne.s32.totalorder %s122, %s124
      %p131 = scmp.eq.s32.totalorder %s30, 1
      %p132 = por %p130, %p131
      %p133 = scmp.ne.s32.totalorder %s124, %s125
      %p134 = scmp.eq.s32.totalorder %s30, 0
      %p135 = por %p133, %p134
      %p136 = scmp.ne.s32.totalorder %s124, %s125
      %p137 = scmp.eq.s32.totalorder %s31, 1
      %p138 = por %p136, %p137
      %p140 = scmp.ne.s32.totalorder %s125, %s139
      %p141 = scmp.eq.s32.totalorder %s31, 0
      %p142 = por %p140, %p141
      %s144 = sadd.s32 %s143, 1
      %p147 = scmp.eq.s32.totalorder %s25, 1
      %p148 = scmp.ne.s32.totalorder %s143, %s145
      %p149 = scmp.eq.s32.totalorder %s25, 0
      %p150 = por %p148, %p149
      %p151 = scmp.ne.s32.totalorder %s143, %s145
      %p152 = scmp.eq.s32.totalorder %s30, 1
      %p153 = por %p151, %p152
      %p154 = scmp.ne.s32.totalorder %s145, %s146
      %p155 = scmp.eq.s32.totalorder %s30, 0
      %p156 = por %p154, %p155
      %p157 = scmp.ne.s32.totalorder %s145, %s146
      %p158 = scmp.eq.s32.totalorder %s31, 1
      %p159 = por %p157, %p158
      %p161 = scmp.ne.s32.totalorder %s146, %s160
      %p162 = scmp.eq.s32.totalorder %s31, 0
      %p163 = por %p161, %p162
      %s165 = sadd.s32 %s164, 1
      %p168 = scmp.eq.s32.totalorder %s25, 1
      %p169 = scmp.ne.s32.totalorder %s164, %s166
      %p170 = scmp.eq.s32.totalorder %s25, 0
      %p171 = por %p169, %p170
      %p172 = scmp.ne.s32.totalorder %s164, %s166
      %p173 = scmp.eq.s32.totalorder %s30, 1
      %p174 = por %p172, %p173
      %p175 = scmp.ne.s32.totalorder %s166, %s167
      %p176 = scmp.eq.s32.totalorder %s30, 0
      %p177 = por %p175, %p176
      %p178 = scmp.ne.s32.totalorder %s166, %s167
      %p179 = scmp.eq.s32.totalorder %s31, 1
      %p180 = por %p178, %p179
      %p182 = scmp.ne.s32.totalorder %s167, %s181
      %p183 = scmp.eq.s32.totalorder %s31, 0
      %p184 = por %p182, %p183
      %s186 = sadd.s32 %s185, 1
      %p189 = scmp.eq.s32.totalorder %s25, 1
      %p190 = scmp.ne.s32.totalorder %s185, %s187
      %p191 = scmp.eq.s32.totalorder %s25, 0
      %p192 = por %p190, %p191
      %p193 = scmp.ne.s32.totalorder %s185, %s187
      %p194 = scmp.eq.s32.totalorder %s30, 1
      %p195 = por %p193, %p194
      %p196 = scmp.ne.s32.totalorder %s187, %s188
      %p197 = scmp.eq.s32.totalorder %s30, 0
      %p198 = por %p196, %p197
      %p199 = scmp.ne.s32.totalorder %s187, %s188
      %p200 = scmp.eq.s32.totalorder %s31, 1
      %p201 = por %p199, %p200
      %p203 = scmp.ne.s32.totalorder %s188, %s202
      %p204 = scmp.eq.s32.totalorder %s31, 0
      %p205 = por %p203, %p204
      %s207 = sadd.s32 %s206, 1
      %p210 = scmp.eq.s32.totalorder %s25, 1
      %p211 = scmp.ne.s32.totalorder %s206, %s208
      %p212 = scmp.eq.s32.totalorder %s25, 0
      %p213 = por %p211, %p212
      %p214 = scmp.ne.s32.totalorder %s206, %s208
      %p215 = scmp.eq.s32.totalorder %s30, 1
      %p216 = por %p214, %p215
      %p217 = scmp.ne.s32.totalorder %s208, %s209
      %p218 = scmp.eq.s32.totalorder %s30, 0
      %p219 = por %p217, %p218
      %p220 = scmp.ne.s32.totalorder %s208, %s209
      %p221 = scmp.eq.s32.totalorder %s31, 1
      %p222 = por %p220, %p221
      %p224 = scmp.ne.s32.totalorder %s209, %s223
      %p225 = scmp.eq.s32.totalorder %s31, 0
      %p226 = por %p224, %p225
      %s228 = sadd.s32 %s227, 1
      %p231 = scmp.eq.s32.totalorder %s25, 1
      %p232 = scmp.ne.s32.totalorder %s227, %s229
      %p233 = scmp.eq.s32.totalorder %s25, 0
      %p234 = por %p232, %p233
      %p235 = scmp.ne.s32.totalorder %s227, %s229
      %p236 = scmp.eq.s32.totalorder %s30, 1
      %p237 = por %p235, %p236
      %p238 = scmp.ne.s32.totalorder %s229, %s230
      %p239 = scmp.eq.s32.totalorder %s30, 0
      %p240 = por %p238, %p239
      %p241 = scmp.ne.s32.totalorder %s229, %s230
      %p242 = scmp.eq.s32.totalorder %s31, 1
      %p243 = por %p241, %p242
      %p245 = scmp.ne.s32.totalorder %s230, %s244
      %p246 = scmp.eq.s32.totalorder %s31, 0
      %p247 = por %p245, %p246
      %s249 = sadd.s32 %s248, 1
      %p252 = scmp.eq.s32.totalorder %s25, 1
      %p253 = scmp.ne.s32.totalorder %s248, %s250
      %p254 = scmp.eq.s32.totalorder %s25, 0
      %p255 = por %p253, %p254
      %p256 = scmp.ne.s32.totalorder %s248, %s250
      %p257 = scmp.eq.s32.totalorder %s30, 1
      %p258 = por %p256, %p257
      %p259 = scmp.ne.s32.totalorder %s250, %s251
      %p260 = scmp.eq.s32.totalorder %s30, 0
      %p261 = por %p259, %p260
      %p262 = scmp.ne.s32.totalorder %s250, %s251
      %p263 = scmp.eq.s32.totalorder %s31, 1
      %p264 = por %p262, %p263
      %p266 = scmp.ne.s32.totalorder %s251, %s265
      %p267 = scmp.eq.s32.totalorder %s31, 0
      %p268 = por %p266, %p267
      %s269 = ssub.s32 %s25, %s32
      %p270 = scmp.eq.s32.totalorder %s269, 0
      %s272 = sadd.s32 %s271, 1
      %s273 = scalar_select %p270, %s271, %s272
      %p276 = pneg %p270
      %p277 = scmp.eq.s32.totalorder %s25, 1
      %p278 = por %p276, %p277
      %p279 = scmp.ne.s32.totalorder %s271, %s274
      %p280 = scmp.eq.s32.totalorder %s25, 0
      %p281 = por %p279, %p280
      %p282 = scmp.ne.s32.totalorder %s271, %s274
      %p283 = scmp.eq.s32.totalorder %s30, 1
      %p284 = por %p282, %p283
      %p285 = scmp.ne.s32.totalorder %s274, %s275
      %p286 = scmp.eq.s32.totalorder %s30, 0
      %p287 = por %p285, %p286
      %p288 = scmp.ne.s32.totalorder %s274, %s275
      %p289 = scmp.eq.s32.totalorder %s31, 1
      %p290 = por %p288, %p289
      %p292 = scmp.ne.s32.totalorder %s275, %s291
      %p293 = scmp.eq.s32.totalorder %s31, 0
      %p294 = por %p292, %p293
      %p295 = scmp.le.s32.totalorder 1, %s25
      %p296 = scmp.lt.s32.totalorder %s25, 3
      %p297 = pnand %p295, %p296
      %p298 = pneg %p297
      // Predicated region
      $region9: #{tpu_custom_call.1} parent=5 // pred_check
        _
      $region10: #{tpu_custom_call.1} parent=5 // pred_check_branch
        %300 = sbr.rel (%p297) target = $region12
      $region11: #{tpu_custom_call.1} parent=5 // pred_region
        %s301 = ssub.s32 %s25, 1
        // Predicated region
        $region13: #{tpu_custom_call.1} parent=11 // pred_check
          %p302 = pneg %p72
        $region14: #{tpu_custom_call.1} parent=11 // pred_check_branch
          %304 = sbr.rel (%p302) target = $region16
        $region15: #{tpu_custom_call.1} parent=11 // pred_region
          _
        $region16: #{tpu_custom_call.1} parent=11 // pred_fallthru
          _
        // Predicated region
        $region17: #{tpu_custom_call.1} parent=11 // pred_check
          %p305 = pneg %p93
        $region18: #{tpu_custom_call.1} parent=11 // pred_check_branch
          %307 = sbr.rel (%p305) target = $region20
        $region19: #{tpu_custom_call.1} parent=11 // pred_region
          _
        $region20: #{tpu_custom_call.1} parent=11 // pred_fallthru
          _
        // Predicated region
        $region21: #{tpu_custom_call.1} parent=11 // pred_check
          %p308 = pneg %p114
        $region22: #{tpu_custom_call.1} parent=11 // pred_check_branch
          %310 = sbr.rel (%p308) target = $region24
        $region23: #{tpu_custom_call.1} parent=11 // pred_region
          _
        $region24: #{tpu_custom_call.1} parent=11 // pred_fallthru
          _
        // Predicated region
        $region25: #{tpu_custom_call.1} parent=11 // pred_check
          %p311 = pneg %p135
        $region26: #{tpu_custom_call.1} parent=11 // pred_check_branch
          %313 = sbr.rel (%p311) target = $region28
        $region27: #{tpu_custom_call.1} parent=11 // pred_region
          _
        $region28: #{tpu_custom_call.1} parent=11 // pred_fallthru
          _
        // Predicated region
        $region29: #{tpu_custom_call.1} parent=11 // pred_check
          %p314 = pneg %p156
        $region30: #{tpu_custom_call.1} parent=11 // pred_check_branch
          %316 = sbr.rel (%p314) target = $region32
        $region31: #{tpu_custom_call.1} parent=11 // pred_region
          _
        $region32: #{tpu_custom_call.1} parent=11 // pred_fallthru
          _
        // Predicated region
        $region33: #{tpu_custom_call.1} parent=11 // pred_check
          %p317 = pneg %p177
        $region34: #{tpu_custom_call.1} parent=11 // pred_check_branch
          %319 = sbr.rel (%p317) target = $region36
        $region35: #{tpu_custom_call.1} parent=11 // pred_region
          _
        $region36: #{tpu_custom_call.1} parent=11 // pred_fallthru
          _
        // Predicated region
        $region37: #{tpu_custom_call.1} parent=11 // pred_check
          %p320 = pneg %p198
        $region38: #{tpu_custom_call.1} parent=11 // pred_check_branch
          %322 = sbr.rel (%p320) target = $region40
        $region39: #{tpu_custom_call.1} parent=11 // pred_region
          _
        $region40: #{tpu_custom_call.1} parent=11 // pred_fallthru
          _
        // Predicated region
        $region41: #{tpu_custom_call.1} parent=11 // pred_check
          %p323 = pneg %p219
        $region42: #{tpu_custom_call.1} parent=11 // pred_check_branch
          %325 = sbr.rel (%p323) target = $region44
        $region43: #{tpu_custom_call.1} parent=11 // pred_region
          _
        $region44: #{tpu_custom_call.1} parent=11 // pred_fallthru
          _
        // Predicated region
        $region45: #{tpu_custom_call.1} parent=11 // pred_check
          %p326 = pneg %p240
        $region46: #{tpu_custom_call.1} parent=11 // pred_check_branch
          %328 = sbr.rel (%p326) target = $region48
        $region47: #{tpu_custom_call.1} parent=11 // pred_region
          _
        $region48: #{tpu_custom_call.1} parent=11 // pred_fallthru
          _
        // Predicated region
        $region49: #{tpu_custom_call.1} parent=11 // pred_check
          %p329 = pneg %p261
        $region50: #{tpu_custom_call.1} parent=11 // pred_check_branch
          %331 = sbr.rel (%p329) target = $region52
        $region51: #{tpu_custom_call.1} parent=11 // pred_region
          _
        $region52: #{tpu_custom_call.1} parent=11 // pred_fallthru
          _
      $region12: #{tpu_custom_call.1} parent=5 // pred_fallthru
        _
      %p332 = scmp.lt.s32.totalorder %s25, 2
      // Predicated region
      $region53: #{tpu_custom_call.1} parent=5 // pred_check
        %p333 = pneg %p332
      $region54: #{tpu_custom_call.1} parent=5 // pred_check_branch
        %335 = sbr.rel (%p333) target = $region56
      $region55: #{tpu_custom_call.1} parent=5 // pred_region
        // Predicated region
        $region57: #{tpu_custom_call.1} parent=55 // pred_check
          %p336 = pneg %p45
        $region58: #{tpu_custom_call.1} parent=55 // pred_check_branch
          %338 = sbr.rel (%p336) target = $region60
        $region59: #{tpu_custom_call.1} parent=55 // pred_region
          %s339 = sand.u32 %s35, 1
          %s340 = scalar_lea.sflag [#allocation5], %s339
          %s341 = sand.u32 %s35, 1
          %s342 = smul.addr %s341, 62
          %s343 = scalar_lea.vmem [#allocation4], %s342
          %s344 = smul.u32 31, %s25
          %346 = vsyncadd %s340, 0
          %s347 = smul.addr %s344, 2
          %s348 = scalar_lea.hbm %s0, %s347
          %s350 = sshll.u32 %s348, 4
          %s351 = int_to_ptr.hbm [resolvable:$true] %s350
          %s352 = sshll.u32 %s343, 4
          %s353 = int_to_ptr.vmem [resolvable:$true] %s352
          %355 = dma.hbm_to_vmem [thread:$0]  %s351, 992, %s353, %s340
        $region60: #{tpu_custom_call.1} parent=55 // pred_fallthru
          _
      $region56: #{tpu_custom_call.1} parent=5 // pred_fallthru
        _
      %p356 = scmp.le.s32.totalorder 1, %s25
      %p357 = scmp.lt.s32.totalorder %s25, 3
      %p358 = pnand %p356, %p357
      %p359 = pneg %p358
      // Predicated region
      $region61: #{tpu_custom_call.1} parent=5 // pred_check
        _
      $region62: #{tpu_custom_call.1} parent=5 // pred_check_branch
        %361 = sbr.rel (%p358) target = $region64
      $region63: #{tpu_custom_call.1} parent=5 // pred_region
        %s362 = ssub.s32 %s25, 1
        %s363 = sand.u32 %s38, 1
        %s364 = scalar_lea.sflag [#allocation5], %s363
        %s365 = sand.u32 %s38, 1
        %s366 = smul.addr %s365, 62
        %s367 = scalar_lea.vmem [#allocation4], %s366
        // Predicated region
        $region65: #{tpu_custom_call.1} parent=63 // pred_check
          %p368 = pneg %p51
        $region66: #{tpu_custom_call.1} parent=63 // pred_check_branch
          %370 = sbr.rel (%p368) target = $region68
        $region67: #{tpu_custom_call.1} parent=63 // pred_region
          %372 = dma.done %s364, 992
        $region68: #{tpu_custom_call.1} parent=63 // pred_fallthru
          _
        %s373 = sand.u32 %s38, 1
        %s374 = scalar_lea.sflag [#allocation5], %s373
        %s375 = sand.u32 %s38, 1
        %s376 = smul.addr %s375, 62
        %s377 = scalar_lea.vmem [#allocation4], %s376
        %p378 = pneg %p51
        %p379 = pneg %p48
        %p380 = pneg %p72
        %p381 = pneg %p69
        %p382 = pneg %p93
        %p383 = pneg %p90
        %p384 = pneg %p114
        %p385 = pneg %p111
        %p386 = pneg %p135
        %p387 = pneg %p132
        %p388 = pneg %p156
        %p389 = pneg %p153
        %p390 = pneg %p177
        %p391 = pneg %p174
        %p392 = pneg %p198
        %p393 = pneg %p195
        %p394 = pneg %p219
        %p395 = pneg %p216
        %p396 = pneg %p240
        %p397 = pneg %p237
        %p398 = pneg %p261
        %p399 = pneg %p258
        %p400 = pneg %p287
        %p401 = pneg %p284
        %s402 = sand.u32 %s274, 1
        %s403 = scalar_lea.sflag [#allocation6], %s402
        %s404 = sand.u32 %s274, 1
        %s405 = smul.addr %s404, 31
        %s406 = scalar_lea.vmem [#allocation7], %s405
        %s407 = smul.u32 31, %s30
        %s408 = smul.u32 31, %s30
        %v409 = vld [vmem:[%s367] sm:$0xff]
        %v410 = vld [vmem:[%s367 + $0x8] sm:$0xff]
        %v411 = vld [vmem:[%s367 + $0x10] sm:$0xff]
        %v412 = vld [vmem:[%s367 + $0x18] sm:$0xff]
        %v413 = vld [vmem:[%s367 + $0x20] sm:$0xff]
        %v414 = vld [vmem:[%s367 + $0x28] sm:$0xff]
        %v415 = vld [vmem:[%s367 + $0x30] sm:$0xff]
        %v416 = vld [vmem:[%s367 + $0x38] sm:$0x3f]
        %v417 = vld [vmem:[%s1] sm:$0x3]
        %419 = vset.pattern.permute.xlu0 0
        %420 = vperm.xlu0 %419, %v417
        %v421 = vpop.permute.xlu0 %420
        %v423 = vunpack.c.l.s4 269488144
        %v424 = vunpack.c.0.s8 %v423
        %v425 = vperm.slane %v421, %v424
        %v427 = vmul.f32 %v409, %v425
        %v428 = vmul.f32 %v410, %v425
        %v429 = vmul.f32 %v411, %v425
        %v430 = vmul.f32 %v412, %v425
        %v431 = vmul.f32 %v413, %v425
        %v432 = vmul.f32 %v414, %v425
        %v433 = vmul.f32 %v415, %v425
        %v434 = vmul.f32 %v416, %v425
        %v435 = vld [vmem:[%s2] sm:$0x3]
        %437 = vset.pattern.permute.xlu0 0
        %438 = vperm.xlu0 %437, %v435
        %v439 = vpop.permute.xlu0 %438
        %v441 = vunpack.c.l.s4 269488144
        %v442 = vunpack.c.0.s8 %v441
        %v443 = vperm.slane %v439, %v442
        %v445 = vadd.f32 %v427, %v443
        %v446 = vadd.f32 %v428, %v443
        %v447 = vadd.f32 %v429, %v443
        %v448 = vadd.f32 %v430, %v443
        %v449 = vadd.f32 %v431, %v443
        %v450 = vadd.f32 %v432, %v443
        %v451 = vadd.f32 %v433, %v443
        %v452 = vadd.f32 %v434, %v443
        %461 = vst [vmem:[#allocation1] ss:$2 sm:$0xff] %v445
        %s462 = scalar_lea.vmem [#allocation1], 16
        %463 = vst [vmem:[%s462] ss:$2 sm:$0xff] %v446
        %s464 = scalar_lea.vmem [#allocation1], 32
        %465 = vst [vmem:[%s464] ss:$2 sm:$0xff] %v447
        %s466 = scalar_lea.vmem [#allocation1], 48
        %467 = vst [vmem:[%s466] ss:$2 sm:$0xff] %v448
        %v468 = vld.sshfl [vmem:[#allocation1] sm:$0xff pattern:$0x75643120]
        %v469 = vld.sshfl [vmem:[#allocation1 + $0x8] sm:$0xff pattern:$0x75643120]
        %v470 = vld.sshfl [vmem:[#allocation1 + $0x10] sm:$0xff pattern:$0x75643120]
        %v471 = vld.sshfl [vmem:[#allocation1 + $0x18] sm:$0xff pattern:$0x75643120]
        %v472 = vld.sshfl [vmem:[#allocation1 + $0x20] sm:$0xff pattern:$0x75643120]
        %v473 = vld.sshfl [vmem:[#allocation1 + $0x28] sm:$0xff pattern:$0x75643120]
        %v474 = vld.sshfl [vmem:[#allocation1 + $0x30] sm:$0xff pattern:$0x75643120]
        %v475 = vld.sshfl [vmem:[#allocation1 + $0x38] sm:$0xff pattern:$0x75643120]
        %476 = vst [vmem:[#allocation1] ss:$2 sm:$0xff] %v449
        %477 = vst [vmem:[%s462] ss:$2 sm:$0xff] %v450
        %478 = vst [vmem:[%s464] ss:$2 sm:$0xff] %v451
        %479 = vst [vmem:[%s466] ss:$2 sm:$0xff] %v452
        %v480 = vld.sshfl [vmem:[#allocation1] sm:$0xff pattern:$0x75643120]
        %v481 = vld.sshfl [vmem:[#allocation1 + $0x8] sm:$0xff pattern:$0x75643120]
        %v482 = vld.sshfl [vmem:[#allocation1 + $0x10] sm:$0xff pattern:$0x75643120]
        %v483 = vld.sshfl [vmem:[#allocation1 + $0x18] sm:$0xff pattern:$0x75643120]
        %v484 = vld.sshfl [vmem:[#allocation1 + $0x20] sm:$0xff pattern:$0x75643120]
        %v485 = vld.sshfl [vmem:[#allocation1 + $0x28] sm:$0xff pattern:$0x75643120]
        %v486 = vld.sshfl [vmem:[#allocation1 + $0x30] sm:$0xff pattern:$0x75643120]
        %v487 = vld.sshfl [vmem:[#allocation1 + $0x38] sm:$0xff pattern:$0x75643120]
        %504 = vst [vmem:[#allocation2] sm:$0x33] %v468
        %505 = vst [vmem:[#allocation2 + $0x8] sm:$0x33] %v469
        %506 = vst [vmem:[#allocation2 + $0x10] sm:$0x33] %v470
        %507 = vst [vmem:[#allocation2 + $0x18] sm:$0x33] %v471
        %508 = vst [vmem:[#allocation2 + $0x20] sm:$0x33] %v472
        %509 = vst [vmem:[#allocation2 + $0x28] sm:$0x33] %v473
        %510 = vst [vmem:[#allocation2 + $0x30] sm:$0x33] %v474
        %511 = vst [vmem:[#allocation2 + $0x38] sm:$0x33] %v475
        %512 = vst [vmem:[#allocation2 + $0x40] sm:$0x33] %v480
        %513 = vst [vmem:[#allocation2 + $0x48] sm:$0x33] %v481
        %514 = vst [vmem:[#allocation2 + $0x50] sm:$0x33] %v482
        %515 = vst [vmem:[#allocation2 + $0x58] sm:$0x33] %v483
        %516 = vst [vmem:[#allocation2 + $0x60] sm:$0x33] %v484
        %517 = vst [vmem:[#allocation2 + $0x68] sm:$0x33] %v485
        %518 = vst [vmem:[#allocation2 + $0x70] sm:$0x33] %v486
        %519 = vst [vmem:[#allocation2 + $0x78] sm:$0x3] %v487
        %v520 = vadd.f32 %v445, 1.5707964
        %v521 = vadd.f32 %v446, 1.5707964
        %v522 = vadd.f32 %v447, 1.5707964
        %v523 = vadd.f32 %v448, 1.5707964
        %v524 = vadd.f32 %v449, 1.5707964
        %v525 = vadd.f32 %v450, 1.5707964
        %v526 = vadd.f32 %v451, 1.5707964
        %v527 = vadd.f32 %v452, 1.5707964
        %s536 = scalar_lea.vmem [#allocation1], 1
        %537 = vst [vmem:[%s536] ss:$2 sm:$0xff] %v520
        %s538 = scalar_lea.vmem [#allocation1], 17
        %539 = vst [vmem:[%s538] ss:$2 sm:$0xff] %v521
        %s540 = scalar_lea.vmem [#allocation1], 33
        %541 = vst [vmem:[%s540] ss:$2 sm:$0xff] %v522
        %s542 = scalar_lea.vmem [#allocation1], 49
        %543 = vst [vmem:[%s542] ss:$2 sm:$0xff] %v523
        %v544 = vld.sshfl [vmem:[#allocation1] sm:$0xff pattern:$0x75643120]
        %v545 = vld.sshfl [vmem:[#allocation1 + $0x8] sm:$0xff pattern:$0x75643120]
        %v546 = vld.sshfl [vmem:[#allocation1 + $0x10] sm:$0xff pattern:$0x75643120]
        %v547 = vld.sshfl [vmem:[#allocation1 + $0x18] sm:$0xff pattern:$0x75643120]
        %v548 = vld.sshfl [vmem:[#allocation1 + $0x20] sm:$0xff pattern:$0x75643120]
        %v549 = vld.sshfl [vmem:[#allocation1 + $0x28] sm:$0xff pattern:$0x75643120]
        %v550 = vld.sshfl [vmem:[#allocation1 + $0x30] sm:$0xff pattern:$0x75643120]
        %v551 = vld.sshfl [vmem:[#allocation1 + $0x38] sm:$0xff pattern:$0x75643120]
        %552 = vst [vmem:[%s536] ss:$2 sm:$0xff] %v524
        %553 = vst [vmem:[%s538] ss:$2 sm:$0xff] %v525
        %554 = vst [vmem:[%s540] ss:$2 sm:$0xff] %v526
        %555 = vst [vmem:[%s542] ss:$2 sm:$0xff] %v527
        %v556 = vld.sshfl [vmem:[#allocation1] sm:$0xff pattern:$0x75643120]
        %v557 = vld.sshfl [vmem:[#allocation1 + $0x8] sm:$0xff pattern:$0x75643120]
        %v558 = vld.sshfl [vmem:[#allocation1 + $0x10] sm:$0xff pattern:$0x75643120]
        %v559 = vld.sshfl [vmem:[#allocation1 + $0x18] sm:$0xff pattern:$0x75643120]
        %v560 = vld.sshfl [vmem:[#allocation1 + $0x20] sm:$0xff pattern:$0x75643120]
        %v561 = vld.sshfl [vmem:[#allocation1 + $0x28] sm:$0xff pattern:$0x75643120]
        %v562 = vld.sshfl [vmem:[#allocation1 + $0x30] sm:$0xff pattern:$0x75643120]
        %v563 = vld.sshfl [vmem:[#allocation1 + $0x38] sm:$0xff pattern:$0x75643120]
        %580 = vst [vmem:[#allocation2] sm:$0xcc] %v544
        %581 = vst [vmem:[#allocation2 + $0x8] sm:$0xcc] %v545
        %582 = vst [vmem:[#allocation2 + $0x10] sm:$0xcc] %v546
        %583 = vst [vmem:[#allocation2 + $0x18] sm:$0xcc] %v547
        %584 = vst [vmem:[#allocation2 + $0x20] sm:$0xcc] %v548
        %585 = vst [vmem:[#allocation2 + $0x28] sm:$0xcc] %v549
        %586 = vst [vmem:[#allocation2 + $0x30] sm:$0xcc] %v550
        %587 = vst [vmem:[#allocation2 + $0x38] sm:$0xcc] %v551
        %588 = vst [vmem:[#allocation2 + $0x40] sm:$0xcc] %v556
        %589 = vst [vmem:[#allocation2 + $0x48] sm:$0xcc] %v557
        %590 = vst [vmem:[#allocation2 + $0x50] sm:$0xcc] %v558
        %591 = vst [vmem:[#allocation2 + $0x58] sm:$0xcc] %v559
        %592 = vst [vmem:[#allocation2 + $0x60] sm:$0xcc] %v560
        %593 = vst [vmem:[#allocation2 + $0x68] sm:$0xcc] %v561
        %594 = vst [vmem:[#allocation2 + $0x70] sm:$0xcc] %v562
        %595 = vst [vmem:[#allocation2 + $0x78] sm:$0xc] %v563
        %v596 = vld [vmem:[#allocation2] sm:$0xff]
        %v597 = vld [vmem:[#allocation2 + $0x8] sm:$0xff]
        %v598 = vld [vmem:[#allocation2 + $0x10] sm:$0xff]
        %v599 = vld [vmem:[#allocation2 + $0x18] sm:$0xff]
        %v600 = vld [vmem:[#allocation2 + $0x20] sm:$0xff]
        %v601 = vld [vmem:[#allocation2 + $0x28] sm:$0xff]
        %v602 = vld [vmem:[#allocation2 + $0x30] sm:$0xff]
        %v603 = vld [vmem:[#allocation2 + $0x38] sm:$0xff]
        %v604 = vld [vmem:[#allocation2 + $0x40] sm:$0xff]
        %v605 = vld [vmem:[#allocation2 + $0x48] sm:$0xff]
        %v606 = vld [vmem:[#allocation2 + $0x50] sm:$0xff]
        %v607 = vld [vmem:[#allocation2 + $0x58] sm:$0xff]
        %v608 = vld [vmem:[#allocation2 + $0x60] sm:$0xff]
        %v609 = vld [vmem:[#allocation2 + $0x68] sm:$0xff]
        %v610 = vld [vmem:[#allocation2 + $0x70] sm:$0xff]
        %v611 = vld [vmem:[#allocation2 + $0x78] sm:$0xf]
        %v612 = vmul.f32 %v596, 0.15915494
        %v613 = vmul.f32 %v597, 0.15915494
        %v614 = vmul.f32 %v598, 0.15915494
        %v615 = vmul.f32 %v599, 0.15915494
        %v616 = vmul.f32 %v600, 0.15915494
        %v617 = vmul.f32 %v601, 0.15915494
        %v618 = vmul.f32 %v602, 0.15915494
        %v619 = vmul.f32 %v603, 0.15915494
        %v620 = vmul.f32 %v604, 0.15915494
        %v621 = vmul.f32 %v605, 0.15915494
        %v622 = vmul.f32 %v606, 0.15915494
        %v623 = vmul.f32 %v607, 0.15915494
        %v624 = vmul.f32 %v608, 0.15915494
        %v625 = vmul.f32 %v609, 0.15915494
        %v626 = vmul.f32 %v610, 0.15915494
        %v627 = vmul.f32 %v611, 0.15915494
        %v628 = vadd.f32 %v612, 0.5
        %v629 = vadd.f32 %v613, 0.5
        %v630 = vadd.f32 %v614, 0.5
        %v631 = vadd.f32 %v615, 0.5
        %v632 = vadd.f32 %v616, 0.5
        %v633 = vadd.f32 %v617, 0.5
        %v634 = vadd.f32 %v618, 0.5
        %v635 = vadd.f32 %v619, 0.5
        %v636 = vadd.f32 %v620, 0.5
        %v637 = vadd.f32 %v621, 0.5
        %v638 = vadd.f32 %v622, 0.5
        %v639 = vadd.f32 %v623, 0.5
        %v640 = vadd.f32 %v624, 0.5
        %v641 = vadd.f32 %v625, 0.5
        %v642 = vadd.f32 %v626, 0.5
        %v643 = vadd.f32 %v627, 0.5
        %v644 = vfloor.f32 %v628
        %v645 = vfloor.f32 %v629
        %v646 = vfloor.f32 %v630
        %v647 = vfloor.f32 %v631
        %v648 = vfloor.f32 %v632
        %v649 = vfloor.f32 %v633
        %v650 = vfloor.f32 %v634
        %v651 = vfloor.f32 %v635
        %v652 = vfloor.f32 %v636
        %v653 = vfloor.f32 %v637
        %v654 = vfloor.f32 %v638
        %v655 = vfloor.f32 %v639
        %v656 = vfloor.f32 %v640
        %v657 = vfloor.f32 %v641
        %v658 = vfloor.f32 %v642
        %v659 = vfloor.f32 %v643
        %v660 = vmul.f32 %v644, 6.2831855
        %v661 = vmul.f32 %v645, 6.2831855
        %v662 = vmul.f32 %v646, 6.2831855
        %v663 = vmul.f32 %v647, 6.2831855
        %v664 = vmul.f32 %v648, 6.2831855
        %v665 = vmul.f32 %v649, 6.2831855
        %v666 = vmul.f32 %v650, 6.2831855
        %v667 = vmul.f32 %v651, 6.2831855
        %v668 = vmul.f32 %v652, 6.2831855
        %v669 = vmul.f32 %v653, 6.2831855
        %v670 = vmul.f32 %v654, 6.2831855
        %v671 = vmul.f32 %v655, 6.2831855
        %v672 = vmul.f32 %v656, 6.2831855
        %v673 = vmul.f32 %v657, 6.2831855
        %v674 = vmul.f32 %v658, 6.2831855
        %v675 = vmul.f32 %v659, 6.2831855
        %v676 = vsub.f32 %v596, %v660
        %v677 = vsub.f32 %v597, %v661
        %v678 = vsub.f32 %v598, %v662
        %v679 = vsub.f32 %v599, %v663
        %v680 = vsub.f32 %v600, %v664
        %v681 = vsub.f32 %v601, %v665
        %v682 = vsub.f32 %v602, %v666
        %v683 = vsub.f32 %v603, %v667
        %v684 = vsub.f32 %v604, %v668
        %v685 = vsub.f32 %v605, %v669
        %v686 = vsub.f32 %v606, %v670
        %v687 = vsub.f32 %v607, %v671
        %v688 = vsub.f32 %v608, %v672
        %v689 = vsub.f32 %v609, %v673
        %v690 = vsub.f32 %v610, %v674
        %v691 = vsub.f32 %v611, %v675
        %v692 = vmul.f32 %v676, %v676
        %v693 = vmul.f32 %v677, %v677
        %v694 = vmul.f32 %v678, %v678
        %v695 = vmul.f32 %v679, %v679
        %v696 = vmul.f32 %v680, %v680
        %v697 = vmul.f32 %v681, %v681
        %v698 = vmul.f32 %v682, %v682
        %v699 = vmul.f32 %v683, %v683
        %v700 = vmul.f32 %v684, %v684
        %v701 = vmul.f32 %v685, %v685
        %v702 = vmul.f32 %v686, %v686
        %v703 = vmul.f32 %v687, %v687
        %v704 = vmul.f32 %v688, %v688
        %v705 = vmul.f32 %v689, %v689
        %v706 = vmul.f32 %v690, %v690
        %v707 = vmul.f32 %v691, %v691
        %v708 = vmul.f32 %v692, 2.1470298e-06
        %v709 = vmul.f32 %v693, 2.1470298e-06
        %v710 = vmul.f32 %v694, 2.1470298e-06
        %v711 = vmul.f32 %v695, 2.1470298e-06
        %v712 = vmul.f32 %v696, 2.1470298e-06
        %v713 = vmul.f32 %v697, 2.1470298e-06
        %v714 = vmul.f32 %v698, 2.1470298e-06
        %v715 = vmul.f32 %v699, 2.1470298e-06
        %v716 = vmul.f32 %v700, 2.1470298e-06
        %v717 = vmul.f32 %v701, 2.1470298e-06
        %v718 = vmul.f32 %v702, 2.1470298e-06
        %v719 = vmul.f32 %v703, 2.1470298e-06
        %v720 = vmul.f32 %v704, 2.1470298e-06
        %v721 = vmul.f32 %v705, 2.1470298e-06
        %v722 = vmul.f32 %v706, 2.1470298e-06
        %v723 = vmul.f32 %v707, 2.1470298e-06
        %v724 = vadd.f32 %v708, -0.00019263131
        %v725 = vadd.f32 %v709, -0.00019263131
        %v726 = vadd.f32 %v710, -0.00019263131
        %v727 = vadd.f32 %v711, -0.00019263131
        %v728 = vadd.f32 %v712, -0.00019263131
        %v729 = vadd.f32 %v713, -0.00019263131
        %v730 = vadd.f32 %v714, -0.00019263131
        %v731 = vadd.f32 %v715, -0.00019263131
        %v732 = vadd.f32 %v716, -0.00019263131
        %v733 = vadd.f32 %v717, -0.00019263131
        %v734 = vadd.f32 %v718, -0.00019263131
        %v735 = vadd.f32 %v719, -0.00019263131
        %v736 = vadd.f32 %v720, -0.00019263131
        %v737 = vadd.f32 %v721, -0.00019263131
        %v738 = vadd.f32 %v722, -0.00019263131
        %v739 = vadd.f32 %v723, -0.00019263131
        %v740 = vmul.f32 %v724, %v692
        %v741 = vmul.f32 %v725, %v693
        %v742 = vmul.f32 %v726, %v694
        %v743 = vmul.f32 %v727, %v695
        %v744 = vmul.f32 %v728, %v696
        %v745 = vmul.f32 %v729, %v697
        %v746 = vmul.f32 %v730, %v698
        %v747 = vmul.f32 %v731, %v699
        %v748 = vmul.f32 %v732, %v700
        %v749 = vmul.f32 %v733, %v701
        %v750 = vmul.f32 %v734, %v702
        %v751 = vmul.f32 %v735, %v703
        %v752 = vmul.f32 %v736, %v704
        %v753 = vmul.f32 %v737, %v705
        %v754 = vmul.f32 %v738, %v706
        %v755 = vmul.f32 %v739, %v707
        %v756 = vadd.f32 %v740, 0.008308847
        %v757 = vadd.f32 %v741, 0.008308847
        %v758 = vadd.f32 %v742, 0.008308847
        %v759 = vadd.f32 %v743, 0.008308847
        %v760 = vadd.f32 %v744, 0.008308847
        %v761 = vadd.f32 %v745, 0.008308847
        %v762 = vadd.f32 %v746, 0.008308847
        %v763 = vadd.f32 %v747, 0.008308847
        %v764 = vadd.f32 %v748, 0.008308847
        %v765 = vadd.f32 %v749, 0.008308847
        %v766 = vadd.f32 %v750, 0.008308847
        %v767 = vadd.f32 %v751, 0.008308847
        %v768 = vadd.f32 %v752, 0.008308847
        %v769 = vadd.f32 %v753, 0.008308847
        %v770 = vadd.f32 %v754, 0.008308847
        %v771 = vadd.f32 %v755, 0.008308847
        %v772 = vmul.f32 %v756, %v692
        %v773 = vmul.f32 %v757, %v693
        %v774 = vmul.f32 %v758, %v694
        %v775 = vmul.f32 %v759, %v695
        %v776 = vmul.f32 %v760, %v696
        %v777 = vmul.f32 %v761, %v697
        %v778 = vmul.f32 %v762, %v698
        %v779 = vmul.f32 %v763, %v699
        %v780 = vmul.f32 %v764, %v700
        %v781 = vmul.f32 %v765, %v701
        %v782 = vmul.f32 %v766, %v702
        %v783 = vmul.f32 %v767, %v703
        %v784 = vmul.f32 %v768, %v704
        %v785 = vmul.f32 %v769, %v705
        %v786 = vmul.f32 %v770, %v706
        %v787 = vmul.f32 %v771, %v707
        %v788 = vadd.f32 %v772, -0.16662401
        %v789 = vadd.f32 %v773, -0.16662401
        %v790 = vadd.f32 %v774, -0.16662401
        %v791 = vadd.f32 %v775, -0.16662401
        %v792 = vadd.f32 %v776, -0.16662401
        %v793 = vadd.f32 %v777, -0.16662401
        %v794 = vadd.f32 %v778, -0.16662401
        %v795 = vadd.f32 %v779, -0.16662401
        %v796 = vadd.f32 %v780, -0.16662401
        %v797 = vadd.f32 %v781, -0.16662401
        %v798 = vadd.f32 %v782, -0.16662401
        %v799 = vadd.f32 %v783, -0.16662401
        %v800 = vadd.f32 %v784, -0.16662401
        %v801 = vadd.f32 %v785, -0.16662401
        %v802 = vadd.f32 %v786, -0.16662401
        %v803 = vadd.f32 %v787, -0.16662401
        %v804 = vmul.f32 %v788, %v692
        %v805 = vmul.f32 %v789, %v693
        %v806 = vmul.f32 %v790, %v694
        %v807 = vmul.f32 %v791, %v695
        %v808 = vmul.f32 %v792, %v696
        %v809 = vmul.f32 %v793, %v697
        %v810 = vmul.f32 %v794, %v698
        %v811 = vmul.f32 %v795, %v699
        %v812 = vmul.f32 %v796, %v700
        %v813 = vmul.f32 %v797, %v701
        %v814 = vmul.f32 %v798, %v702
        %v815 = vmul.f32 %v799, %v703
        %v816 = vmul.f32 %v800, %v704
        %v817 = vmul.f32 %v801, %v705
        %v818 = vmul.f32 %v802, %v706
        %v819 = vmul.f32 %v803, %v707
        %v820 = vadd.f32 %v804, 0.99997914
        %v821 = vadd.f32 %v805, 0.99997914
        %v822 = vadd.f32 %v806, 0.99997914
        %v823 = vadd.f32 %v807, 0.99997914
        %v824 = vadd.f32 %v808, 0.99997914
        %v825 = vadd.f32 %v809, 0.99997914
        %v826 = vadd.f32 %v810, 0.99997914
        %v827 = vadd.f32 %v811, 0.99997914
        %v828 = vadd.f32 %v812, 0.99997914
        %v829 = vadd.f32 %v813, 0.99997914
        %v830 = vadd.f32 %v814, 0.99997914
        %v831 = vadd.f32 %v815, 0.99997914
        %v832 = vadd.f32 %v816, 0.99997914
        %v833 = vadd.f32 %v817, 0.99997914
        %v834 = vadd.f32 %v818, 0.99997914
        %v835 = vadd.f32 %v819, 0.99997914
        %v836 = vmul.f32 %v676, %v820
        %v837 = vmul.f32 %v677, %v821
        %v838 = vmul.f32 %v678, %v822
        %v839 = vmul.f32 %v679, %v823
        %v840 = vmul.f32 %v680, %v824
        %v841 = vmul.f32 %v681, %v825
        %v842 = vmul.f32 %v682, %v826
        %v843 = vmul.f32 %v683, %v827
        %v844 = vmul.f32 %v684, %v828
        %v845 = vmul.f32 %v685, %v829
        %v846 = vmul.f32 %v686, %v830
        %v847 = vmul.f32 %v687, %v831
        %v848 = vmul.f32 %v688, %v832
        %v849 = vmul.f32 %v689, %v833
        %v850 = vmul.f32 %v690, %v834
        %v851 = vmul.f32 %v691, %v835
        %v852 = vld [vmem:[%s3] sm:$0xff]
        %v853 = vld [vmem:[%s3 + $0x8] sm:$0xff]
        %v854 = vld [vmem:[%s3 + $0x10] sm:$0xff]
        %v855 = vld [vmem:[%s3 + $0x18] sm:$0xff]
        %v856 = vld [vmem:[%s4] sm:$0xff]
        %v857 = vld [vmem:[%s4 + $0x8] sm:$0xff]
        %v858 = vld [vmem:[%s4 + $0x10] sm:$0xff]
        %v859 = vld [vmem:[%s4 + $0x18] sm:$0xff]
        %861 = vset.pattern.permute.xlu0 0
        %862 = vperm.xlu0 %861, %v856
        %v863 = vpop.permute.xlu0 %862
        %866 = vset.pattern.permute.xlu0 0
        %867 = vperm.xlu0 %866, %v857
        %v868 = vpop.permute.xlu0 %867
        %871 = vset.pattern.permute.xlu0 0
        %872 = vperm.xlu0 %871, %v858
        %v873 = vpop.permute.xlu0 %872
        %876 = vset.pattern.permute.xlu0 0
        %877 = vperm.xlu0 %876, %v859
        %v878 = vpop.permute.xlu0 %877
        %896 = vst [vmem:[#allocation1] ss:$2 sm:$0xff] %v836
        %s897 = scalar_lea.vmem [#allocation1], 16
        %898 = vst [vmem:[%s897] ss:$2 sm:$0xff] %v837
        %s899 = scalar_lea.vmem [#allocation1], 32
        %900 = vst [vmem:[%s899] ss:$2 sm:$0xff] %v838
        %s901 = scalar_lea.vmem [#allocation1], 48
        %902 = vst [vmem:[%s901] ss:$2 sm:$0xff] %v839
        %v903 = vld.sshfl [vmem:[#allocation1] sm:$0xff pattern:$0x75316420]
        %v904 = vld.sshfl [vmem:[#allocation1 + $0x8] sm:$0xff pattern:$0x75316420]
        %v905 = vld.sshfl [vmem:[#allocation1 + $0x10] sm:$0xff pattern:$0x75316420]
        %v906 = vld.sshfl [vmem:[#allocation1 + $0x18] sm:$0xff pattern:$0x75316420]
        %v907 = vld.sshfl [vmem:[#allocation1 + $0x20] sm:$0xff pattern:$0x75316420]
        %v908 = vld.sshfl [vmem:[#allocation1 + $0x28] sm:$0xff pattern:$0x75316420]
        %v909 = vld.sshfl [vmem:[#allocation1 + $0x30] sm:$0xff pattern:$0x75316420]
        %v910 = vld.sshfl [vmem:[#allocation1 + $0x38] sm:$0xff pattern:$0x75316420]
        %911 = vst [vmem:[#allocation1] ss:$2 sm:$0xff] %v840
        %912 = vst [vmem:[%s897] ss:$2 sm:$0xff] %v841
        %913 = vst [vmem:[%s899] ss:$2 sm:$0xff] %v842
        %914 = vst [vmem:[%s901] ss:$2 sm:$0xff] %v843
        %v915 = vld.sshfl [vmem:[#allocation1] sm:$0xff pattern:$0x75316420]
        %v916 = vld.sshfl [vmem:[#allocation1 + $0x8] sm:$0xff pattern:$0x75316420]
        %v917 = vld.sshfl [vmem:[#allocation1 + $0x10] sm:$0xff pattern:$0x75316420]
        %v918 = vld.sshfl [vmem:[#allocation1 + $0x18] sm:$0xff pattern:$0x75316420]
        %v919 = vld.sshfl [vmem:[#allocation1 + $0x20] sm:$0xff pattern:$0x75316420]
        %v920 = vld.sshfl [vmem:[#allocation1 + $0x28] sm:$0xff pattern:$0x75316420]
        %v921 = vld.sshfl [vmem:[#allocation1 + $0x30] sm:$0xff pattern:$0x75316420]
        %v922 = vld.sshfl [vmem:[#allocation1 + $0x38] sm:$0xff pattern:$0x75316420]
        %923 = vst [vmem:[#allocation1] ss:$2 sm:$0xff] %v844
        %924 = vst [vmem:[%s897] ss:$2 sm:$0xff] %v845
        %925 = vst [vmem:[%s899] ss:$2 sm:$0xff] %v846
        %926 = vst [vmem:[%s901] ss:$2 sm:$0xff] %v847
        %v927 = vld.sshfl [vmem:[#allocation1] sm:$0xff pattern:$0x75316420]
        %v928 = vld.sshfl [vmem:[#allocation1 + $0x8] sm:$0xff pattern:$0x75316420]
        %v929 = vld.sshfl [vmem:[#allocation1 + $0x10] sm:$0xff pattern:$0x75316420]
        %v930 = vld.sshfl [vmem:[#allocation1 + $0x18] sm:$0xff pattern:$0x75316420]
        %v931 = vld.sshfl [vmem:[#allocation1 + $0x20] sm:$0xff pattern:$0x75316420]
        %v932 = vld.sshfl [vmem:[#allocation1 + $0x28] sm:$0xff pattern:$0x75316420]
        %v933 = vld.sshfl [vmem:[#allocation1 + $0x30] sm:$0xff pattern:$0x75316420]
        %v934 = vld.sshfl [vmem:[#allocation1 + $0x38] sm:$0xff pattern:$0x75316420]
        %935 = vst [vmem:[#allocation1] ss:$2 sm:$0xff] %v848
        %936 = vst [vmem:[%s897] ss:$2 sm:$0xff] %v849
        %937 = vst [vmem:[%s899] ss:$2 sm:$0xff] %v850
        %938 = vst [vmem:[%s901] ss:$2 sm:$0xff] %v851
        %v939 = vld.sshfl [vmem:[#allocation1] sm:$0xff pattern:$0x75316420]
        %v940 = vld.sshfl [vmem:[#allocation1 + $0x8] sm:$0xff pattern:$0x75316420]
        %v941 = vld.sshfl [vmem:[#allocation1 + $0x10] sm:$0xff pattern:$0x75316420]
        %v942 = vld.sshfl [vmem:[#allocation1 + $0x18] sm:$0xff pattern:$0x75316420]
        %v943 = vld.sshfl [vmem:[#allocation1 + $0x20] sm:$0xff pattern:$0x75316420]
        %v944 = vld.sshfl [vmem:[#allocation1 + $0x28] sm:$0xff pattern:$0x75316420]
        %v945 = vld.sshfl [vmem:[#allocation1 + $0x30] sm:$0xff pattern:$0x75316420]
        %vm946 = vcmask 31744
        %v948 = vsel %vm946, %v852, 0
        %v951 = vsel %vm946, %v853, 0
        %v954 = vsel %vm946, %v854, 0
        %v957 = vsel %vm946, %v855, 0
        %vm959 = vcmask 1043456
        %v960 = vsel %vm959, %v903, 0
        %v962 = vsel %vm959, %v904, 0
        %v964 = vsel %vm959, %v905, 0
        %v966 = vsel %vm959, %v906, 0
        %v968 = vsel %vm959, %v907, 0
        %v970 = vsel %vm959, %v908, 0
        %v972 = vsel %vm959, %v909, 0
        %v974 = vsel %vm959, %v910, 0
        %v976 = vsel %vm959, %v915, 0
        %v978 = vsel %vm959, %v916, 0
        %v980 = vsel %vm959, %v917, 0
        %v982 = vsel %vm959, %v918, 0
        %v984 = vsel %vm959, %v919, 0
        %v986 = vsel %vm959, %v920, 0
        %v988 = vsel %vm959, %v921, 0
        %v990 = vsel %vm959, %v922, 0
        %v992 = vsel %vm959, %v927, 0
        %v994 = vsel %vm959, %v928, 0
        %v996 = vsel %vm959, %v929, 0
        %v998 = vsel %vm959, %v930, 0
        %v1000 = vsel %vm959, %v931, 0
        %v1002 = vsel %vm959, %v932, 0
        %v1004 = vsel %vm959, %v933, 0
        %v1006 = vsel %vm959, %v934, 0
        %v1008 = vsel %vm959, %v939, 0
        %v1010 = vsel %vm959, %v940, 0
        %v1012 = vsel %vm959, %v941, 0
        %v1014 = vsel %vm959, %v942, 0
        %v1016 = vsel %vm959, %v943, 0
        %v1018 = vsel %vm959, %v944, 0
        %v1020 = vsel %vm959, %v945, 0
        %1022 = vmatpush.msra.mxu0 0.0
        %1023 = vmatpush.msra.mxu0 0.0
        %1024 = vmatpush.msra.mxu0 0.0
        %1025 = vmatpush.msra.mxu0 0.0
        %1026 = vmatpush.msra.mxu0 0.0
        %1027 = vmatpush.msra.mxu0 0.0
        %1028 = vmatpush.msra.mxu0 0.0
        %1029 = vmatpush.msra.mxu0 0.0
        %1030 = vmatpush.msra.mxu0 0.0
        %1031 = vmatpush.msra.mxu0 0.0
        %1032 = vmatpush.msra.mxu0 0.0
        %1033 = vmatpush.msra.mxu0 0.0
        %1034 = vmatpush.msra.mxu0 0.0
        %1035 = vmatpush.msra.mxu0 0.0
        %1036 = vmatpush.msra.mxu0 0.0
        %1037 = vmatpush.msra.mxu0 %v960
        %1038 = vmatmul.f32.gmra.mxu0 %v948
        %v1039 = vpop.f32.mrf.mxu0
        %v1040 = vadd.f32 %v863, %v1039
        %1041 = vmatmul.f32.gmra.mxu0 %v951
        %v1042 = vpop.f32.mrf.mxu0
        %v1043 = vadd.f32 %v868, %v1042
        %1044 = vmatmul.f32.gmra.mxu0 %v954
        %v1045 = vpop.f32.mrf.mxu0
        %v1046 = vadd.f32 %v873, %v1045
        %1047 = vmatmul.f32.gmra.mxu0 %v957
        %v1048 = vpop.f32.mrf.mxu0
        %v1049 = vadd.f32 %v878, %v1048
        %1050 = vdwg.mxu0
        %1051 = vmatpush.msra.mxu0 0.0
        %1052 = vmatpush.msra.mxu0 0.0
        %1053 = vmatpush.msra.mxu0 0.0
        %1054 = vmatpush.msra.mxu0 0.0
        %1055 = vmatpush.msra.mxu0 0.0
        %1056 = vmatpush.msra.mxu0 0.0
        %1057 = vmatpush.msra.mxu0 0.0
        %1058 = vmatpush.msra.mxu0 0.0
        %1059 = vmatpush.msra.mxu0 0.0
        %1060 = vmatpush.msra.mxu0 0.0
        %1061 = vmatpush.msra.mxu0 0.0
        %1062 = vmatpush.msra.mxu0 0.0
        %1063 = vmatpush.msra.mxu0 0.0
        %1064 = vmatpush.msra.mxu0 0.0
        %1065 = vmatpush.msra.mxu0 0.0
        %1066 = vmatpush.msra.mxu0 %v962
        %1067 = vmatmul.f32.gmra.mxu0 %v948
        %v1068 = vpop.f32.mrf.mxu0
        %v1069 = vadd.f32 %v863, %v1068
        %1070 = vmatmul.f32.gmra.mxu0 %v951
        %v1071 = vpop.f32.mrf.mxu0
        %v1072 = vadd.f32 %v868, %v1071
        %1073 = vmatmul.f32.gmra.mxu0 %v954
        %v1074 = vpop.f32.mrf.mxu0
        %v1075 = vadd.f32 %v873, %v1074
        %1076 = vmatmul.f32.gmra.mxu0 %v957
        %v1077 = vpop.f32.mrf.mxu0
        %v1078 = vadd.f32 %v878, %v1077
        %1079 = vdwg.mxu0
        %1080 = vmatpush.msra.mxu0 0.0
        %1081 = vmatpush.msra.mxu0 0.0
        %1082 = vmatpush.msra.mxu0 0.0
        %1083 = vmatpush.msra.mxu0 0.0
        %1084 = vmatpush.msra.mxu0 0.0
        %1085 = vmatpush.msra.mxu0 0.0
        %1086 = vmatpush.msra.mxu0 0.0
        %1087 = vmatpush.msra.mxu0 0.0
        %1088 = vmatpush.msra.mxu0 0.0
        %1089 = vmatpush.msra.mxu0 0.0
        %1090 = vmatpush.msra.mxu0 0.0
        %1091 = vmatpush.msra.mxu0 0.0
        %1092 = vmatpush.msra.mxu0 0.0
        %1093 = vmatpush.msra.mxu0 0.0
        %1094 = vmatpush.msra.mxu0 0.0
        %1095 = vmatpush.msra.mxu0 %v964
        %1096 = vmatmul.f32.gmra.mxu0 %v948
        %v1097 = vpop.f32.mrf.mxu0
        %v1098 = vadd.f32 %v863, %v1097
        %1099 = vmatmul.f32.gmra.mxu0 %v951
        %v1100 = vpop.f32.mrf.mxu0
        %v1101 = vadd.f32 %v868, %v1100
        %1102 = vmatmul.f32.gmra.mxu0 %v954
        %v1103 = vpop.f32.mrf.mxu0
        %v1104 = vadd.f32 %v873, %v1103
        %1105 = vmatmul.f32.gmra.mxu0 %v957
        %v1106 = vpop.f32.mrf.mxu0
        %v1107 = vadd.f32 %v878, %v1106
        %1108 = vdwg.mxu0
        %1109 = vmatpush.msra.mxu0 0.0
        %1110 = vmatpush.msra.mxu0 0.0
        %1111 = vmatpush.msra.mxu0 0.0
        %1112 = vmatpush.msra.mxu0 0.0
        %1113 = vmatpush.msra.mxu0 0.0
        %1114 = vmatpush.msra.mxu0 0.0
        %1115 = vmatpush.msra.mxu0 0.0
        %1116 = vmatpush.msra.mxu0 0.0
        %1117 = vmatpush.msra.mxu0 0.0
        %1118 = vmatpush.msra.mxu0 0.0
        %1119 = vmatpush.msra.mxu0 0.0
        %1120 = vmatpush.msra.mxu0 0.0
        %1121 = vmatpush.msra.mxu0 0.0
        %1122 = vmatpush.msra.mxu0 0.0
        %1123 = vmatpush.msra.mxu0 0.0
        %1124 = vmatpush.msra.mxu0 %v966
        %1125 = vmatmul.f32.gmra.mxu0 %v948
        %v1126 = vpop.f32.mrf.mxu0
        %v1127 = vadd.f32 %v863, %v1126
        %1128 = vmatmul.f32.gmra.mxu0 %v951
        %v1129 = vpop.f32.mrf.mxu0
        %v1130 = vadd.f32 %v868, %v1129
        %1131 = vmatmul.f32.gmra.mxu0 %v954
        %v1132 = vpop.f32.mrf.mxu0
        %v1133 = vadd.f32 %v873, %v1132
        %1134 = vmatmul.f32.gmra.mxu0 %v957
        %v1135 = vpop.f32.mrf.mxu0
        %v1136 = vadd.f32 %v878, %v1135
        %1137 = vdwg.mxu0
        %1138 = vmatpush.msra.mxu0 0.0
        %1139 = vmatpush.msra.mxu0 0.0
        %1140 = vmatpush.msra.mxu0 0.0
        %1141 = vmatpush.msra.mxu0 0.0
        %1142 = vmatpush.msra.mxu0 0.0
        %1143 = vmatpush.msra.mxu0 0.0
        %1144 = vmatpush.msra.mxu0 0.0
        %1145 = vmatpush.msra.mxu0 0.0
        %1146 = vmatpush.msra.mxu0 0.0
        %1147 = vmatpush.msra.mxu0 0.0
        %1148 = vmatpush.msra.mxu0 0.0
        %1149 = vmatpush.msra.mxu0 0.0
        %1150 = vmatpush.msra.mxu0 0.0
        %1151 = vmatpush.msra.mxu0 0.0
        %1152 = vmatpush.msra.mxu0 0.0
        %1153 = vmatpush.msra.mxu0 %v968
        %1154 = vmatmul.f32.gmra.mxu0 %v948
        %v1155 = vpop.f32.mrf.mxu0
        %v1156 = vadd.f32 %v863, %v1155
        %1157 = vmatmul.f32.gmra.mxu0 %v951
        %v1158 = vpop.f32.mrf.mxu0
        %v1159 = vadd.f32 %v868, %v1158
        %1160 = vmatmul.f32.gmra.mxu0 %v954
        %v1161 = vpop.f32.mrf.mxu0
        %v1162 = vadd.f32 %v873, %v1161
        %1163 = vmatmul.f32.gmra.mxu0 %v957
        %v1164 = vpop.f32.mrf.mxu0
        %v1165 = vadd.f32 %v878, %v1164
        %1166 = vdwg.mxu0
        %1167 = vmatpush.msra.mxu0 0.0
        %1168 = vmatpush.msra.mxu0 0.0
        %1169 = vmatpush.msra.mxu0 0.0
        %1170 = vmatpush.msra.mxu0 0.0
        %1171 = vmatpush.msra.mxu0 0.0
        %1172 = vmatpush.msra.mxu0 0.0
        %1173 = vmatpush.msra.mxu0 0.0
        %1174 = vmatpush.msra.mxu0 0.0
        %1175 = vmatpush.msra.mxu0 0.0
        %1176 = vmatpush.msra.mxu0 0.0
        %1177 = vmatpush.msra.mxu0 0.0
        %1178 = vmatpush.msra.mxu0 0.0
        %1179 = vmatpush.msra.mxu0 0.0
        %1180 = vmatpush.msra.mxu0 0.0
        %1181 = vmatpush.msra.mxu0 0.0
        %1182 = vmatpush.msra.mxu0 %v970
        %1183 = vmatmul.f32.gmra.mxu0 %v948
        %v1184 = vpop.f32.mrf.mxu0
        %v1185 = vadd.f32 %v863, %v1184
        %1186 = vmatmul.f32.gmra.mxu0 %v951
        %v1187 = vpop.f32.mrf.mxu0
        %v1188 = vadd.f32 %v868, %v1187
        %1189 = vmatmul.f32.gmra.mxu0 %v954
        %v1190 = vpop.f32.mrf.mxu0
        %v1191 = vadd.f32 %v873, %v1190
        %1192 = vmatmul.f32.gmra.mxu0 %v957
        %v1193 = vpop.f32.mrf.mxu0
        %v1194 = vadd.f32 %v878, %v1193
        %1195 = vdwg.mxu0
        %1196 = vmatpush.msra.mxu0 0.0
        %1197 = vmatpush.msra.mxu0 0.0
        %1198 = vmatpush.msra.mxu0 0.0
        %1199 = vmatpush.msra.mxu0 0.0
        %1200 = vmatpush.msra.mxu0 0.0
        %1201 = vmatpush.msra.mxu0 0.0
        %1202 = vmatpush.msra.mxu0 0.0
        %1203 = vmatpush.msra.mxu0 0.0
        %1204 = vmatpush.msra.mxu0 0.0
        %1205 = vmatpush.msra.mxu0 0.0
        %1206 = vmatpush.msra.mxu0 0.0
        %1207 = vmatpush.msra.mxu0 0.0
        %1208 = vmatpush.msra.mxu0 0.0
        %1209 = vmatpush.msra.mxu0 0.0
        %1210 = vmatpush.msra.mxu0 0.0
        %1211 = vmatpush.msra.mxu0 %v972
        %1212 = vmatmul.f32.gmra.mxu0 %v948
        %v1213 = vpop.f32.mrf.mxu0
        %v1214 = vadd.f32 %v863, %v1213
        %1215 = vmatmul.f32.gmra.mxu0 %v951
        %v1216 = vpop.f32.mrf.mxu0
        %v1217 = vadd.f32 %v868, %v1216
        %1218 = vmatmul.f32.gmra.mxu0 %v954
        %v1219 = vpop.f32.mrf.mxu0
        %v1220 = vadd.f32 %v873, %v1219
        %1221 = vmatmul.f32.gmra.mxu0 %v957
        %v1222 = vpop.f32.mrf.mxu0
        %v1223 = vadd.f32 %v878, %v1222
        %1224 = vdwg.mxu0
        %1225 = vmatpush.msra.mxu0 0.0
        %1226 = vmatpush.msra.mxu0 0.0
        %1227 = vmatpush.msra.mxu0 0.0
        %1228 = vmatpush.msra.mxu0 0.0
        %1229 = vmatpush.msra.mxu0 0.0
        %1230 = vmatpush.msra.mxu0 0.0
        %1231 = vmatpush.msra.mxu0 0.0
        %1232 = vmatpush.msra.mxu0 0.0
        %1233 = vmatpush.msra.mxu0 0.0
        %1234 = vmatpush.msra.mxu0 0.0
        %1235 = vmatpush.msra.mxu0 0.0
        %1236 = vmatpush.msra.mxu0 0.0
        %1237 = vmatpush.msra.mxu0 0.0
        %1238 = vmatpush.msra.mxu0 0.0
        %1239 = vmatpush.msra.mxu0 0.0
        %1240 = vmatpush.msra.mxu0 %v974
        %1241 = vmatmul.f32.gmra.mxu0 %v948
        %v1242 = vpop.f32.mrf.mxu0
        %v1243 = vadd.f32 %v863, %v1242
        %1244 = vmatmul.f32.gmra.mxu0 %v951
        %v1245 = vpop.f32.mrf.mxu0
        %v1246 = vadd.f32 %v868, %v1245
        %1247 = vmatmul.f32.gmra.mxu0 %v954
        %v1248 = vpop.f32.mrf.mxu0
        %v1249 = vadd.f32 %v873, %v1248
        %1250 = vmatmul.f32.gmra.mxu0 %v957
        %v1251 = vpop.f32.mrf.mxu0
        %v1252 = vadd.f32 %v878, %v1251
        %1253 = vdwg.mxu0
        %1254 = vmatpush.msra.mxu0 0.0
        %1255 = vmatpush.msra.mxu0 0.0
        %1256 = vmatpush.msra.mxu0 0.0
        %1257 = vmatpush.msra.mxu0 0.0
        %1258 = vmatpush.msra.mxu0 0.0
        %1259 = vmatpush.msra.mxu0 0.0
        %1260 = vmatpush.msra.mxu0 0.0
        %1261 = vmatpush.msra.mxu0 0.0
        %1262 = vmatpush.msra.mxu0 0.0
        %1263 = vmatpush.msra.mxu0 0.0
        %1264 = vmatpush.msra.mxu0 0.0
        %1265 = vmatpush.msra.mxu0 0.0
        %1266 = vmatpush.msra.mxu0 0.0
        %1267 = vmatpush.msra.mxu0 0.0
        %1268 = vmatpush.msra.mxu0 0.0
        %1269 = vmatpush.msra.mxu0 %v976
        %1270 = vmatmul.f32.gmra.mxu0 %v948
        %v1271 = vpop.f32.mrf.mxu0
        %v1272 = vadd.f32 %v863, %v1271
        %1273 = vmatmul.f32.gmra.mxu0 %v951
        %v1274 = vpop.f32.mrf.mxu0
        %v1275 = vadd.f32 %v868, %v1274
        %1276 = vmatmul.f32.gmra.mxu0 %v954
        %v1277 = vpop.f32.mrf.mxu0
        %v1278 = vadd.f32 %v873, %v1277
        %1279 = vmatmul.f32.gmra.mxu0 %v957
        %v1280 = vpop.f32.mrf.mxu0
        %v1281 = vadd.f32 %v878, %v1280
        %1282 = vdwg.mxu0
        %1283 = vmatpush.msra.mxu0 0.0
        %1284 = vmatpush.msra.mxu0 0.0
        %1285 = vmatpush.msra.mxu0 0.0
        %1286 = vmatpush.msra.mxu0 0.0
        %1287 = vmatpush.msra.mxu0 0.0
        %1288 = vmatpush.msra.mxu0 0.0
        %1289 = vmatpush.msra.mxu0 0.0
        %1290 = vmatpush.msra.mxu0 0.0
        %1291 = vmatpush.msra.mxu0 0.0
        %1292 = vmatpush.msra.mxu0 0.0
        %1293 = vmatpush.msra.mxu0 0.0
        %1294 = vmatpush.msra.mxu0 0.0
        %1295 = vmatpush.msra.mxu0 0.0
        %1296 = vmatpush.msra.mxu0 0.0
        %1297 = vmatpush.msra.mxu0 0.0
        %1298 = vmatpush.msra.mxu0 %v978
        %1299 = vmatmul.f32.gmra.mxu0 %v948
        %v1300 = vpop.f32.mrf.mxu0
        %v1301 = vadd.f32 %v863, %v1300
        %1302 = vmatmul.f32.gmra.mxu0 %v951
        %v1303 = vpop.f32.mrf.mxu0
        %v1304 = vadd.f32 %v868, %v1303
        %1305 = vmatmul.f32.gmra.mxu0 %v954
        %v1306 = vpop.f32.mrf.mxu0
        %v1307 = vadd.f32 %v873, %v1306
        %1308 = vmatmul.f32.gmra.mxu0 %v957
        %v1309 = vpop.f32.mrf.mxu0
        %v1310 = vadd.f32 %v878, %v1309
        %1311 = vdwg.mxu0
        %1312 = vmatpush.msra.mxu0 0.0
        %1313 = vmatpush.msra.mxu0 0.0
        %1314 = vmatpush.msra.mxu0 0.0
        %1315 = vmatpush.msra.mxu0 0.0
        %1316 = vmatpush.msra.mxu0 0.0
        %1317 = vmatpush.msra.mxu0 0.0
        %1318 = vmatpush.msra.mxu0 0.0
        %1319 = vmatpush.msra.mxu0 0.0
        %1320 = vmatpush.msra.mxu0 0.0
        %1321 = vmatpush.msra.mxu0 0.0
        %1322 = vmatpush.msra.mxu0 0.0
        %1323 = vmatpush.msra.mxu0 0.0
        %1324 = vmatpush.msra.mxu0 0.0
        %1325 = vmatpush.msra.mxu0 0.0
        %1326 = vmatpush.msra.mxu0 0.0
        %1327 = vmatpush.msra.mxu0 %v980
        %1328 = vmatmul.f32.gmra.mxu0 %v948
        %v1329 = vpop.f32.mrf.mxu0
        %v1330 = vadd.f32 %v863, %v1329
        %1331 = vmatmul.f32.gmra.mxu0 %v951
        %v1332 = vpop.f32.mrf.mxu0
        %v1333 = vadd.f32 %v868, %v1332
        %1334 = vmatmul.f32.gmra.mxu0 %v954
        %v1335 = vpop.f32.mrf.mxu0
        %v1336 = vadd.f32 %v873, %v1335
        %1337 = vmatmul.f32.gmra.mxu0 %v957
        %v1338 = vpop.f32.mrf.mxu0
        %v1339 = vadd.f32 %v878, %v1338
        %1340 = vdwg.mxu0
        %1341 = vmatpush.msra.mxu0 0.0
        %1342 = vmatpush.msra.mxu0 0.0
        %1343 = vmatpush.msra.mxu0 0.0
        %1344 = vmatpush.msra.mxu0 0.0
        %1345 = vmatpush.msra.mxu0 0.0
        %1346 = vmatpush.msra.mxu0 0.0
        %1347 = vmatpush.msra.mxu0 0.0
        %1348 = vmatpush.msra.mxu0 0.0
        %1349 = vmatpush.msra.mxu0 0.0
        %1350 = vmatpush.msra.mxu0 0.0
        %1351 = vmatpush.msra.mxu0 0.0
        %1352 = vmatpush.msra.mxu0 0.0
        %1353 = vmatpush.msra.mxu0 0.0
        %1354 = vmatpush.msra.mxu0 0.0
        %1355 = vmatpush.msra.mxu0 0.0
        %1356 = vmatpush.msra.mxu0 %v982
        %1357 = vmatmul.f32.gmra.mxu0 %v948
        %v1358 = vpop.f32.mrf.mxu0
        %v1359 = vadd.f32 %v863, %v1358
        %1360 = vmatmul.f32.gmra.mxu0 %v951
        %v1361 = vpop.f32.mrf.mxu0
        %v1362 = vadd.f32 %v868, %v1361
        %1363 = vmatmul.f32.gmra.mxu0 %v954
        %v1364 = vpop.f32.mrf.mxu0
        %v1365 = vadd.f32 %v873, %v1364
        %1366 = vmatmul.f32.gmra.mxu0 %v957
        %v1367 = vpop.f32.mrf.mxu0
        %v1368 = vadd.f32 %v878, %v1367
        %1369 = vdwg.mxu0
        %1370 = vmatpush.msra.mxu0 0.0
        %1371 = vmatpush.msra.mxu0 0.0
        %1372 = vmatpush.msra.mxu0 0.0
        %1373 = vmatpush.msra.mxu0 0.0
        %1374 = vmatpush.msra.mxu0 0.0
        %1375 = vmatpush.msra.mxu0 0.0
        %1376 = vmatpush.msra.mxu0 0.0
        %1377 = vmatpush.msra.mxu0 0.0
        %1378 = vmatpush.msra.mxu0 0.0
        %1379 = vmatpush.msra.mxu0 0.0
        %1380 = vmatpush.msra.mxu0 0.0
        %1381 = vmatpush.msra.mxu0 0.0
        %1382 = vmatpush.msra.mxu0 0.0
        %1383 = vmatpush.msra.mxu0 0.0
        %1384 = vmatpush.msra.mxu0 0.0
        %1385 = vmatpush.msra.mxu0 %v984
        %1386 = vmatmul.f32.gmra.mxu0 %v948
        %v1387 = vpop.f32.mrf.mxu0
        %v1388 = vadd.f32 %v863, %v1387
        %1389 = vmatmul.f32.gmra.mxu0 %v951
        %v1390 = vpop.f32.mrf.mxu0
        %v1391 = vadd.f32 %v868, %v1390
        %1392 = vmatmul.f32.gmra.mxu0 %v954
        %v1393 = vpop.f32.mrf.mxu0
        %v1394 = vadd.f32 %v873, %v1393
        %1395 = vmatmul.f32.gmra.mxu0 %v957
        %v1396 = vpop.f32.mrf.mxu0
        %v1397 = vadd.f32 %v878, %v1396
        %1398 = vdwg.mxu0
        %1399 = vmatpush.msra.mxu0 0.0
        %1400 = vmatpush.msra.mxu0 0.0
        %1401 = vmatpush.msra.mxu0 0.0
        %1402 = vmatpush.msra.mxu0 0.0
        %1403 = vmatpush.msra.mxu0 0.0
        %1404 = vmatpush.msra.mxu0 0.0
        %1405 = vmatpush.msra.mxu0 0.0
        %1406 = vmatpush.msra.mxu0 0.0
        %1407 = vmatpush.msra.mxu0 0.0
        %1408 = vmatpush.msra.mxu0 0.0
        %1409 = vmatpush.msra.mxu0 0.0
        %1410 = vmatpush.msra.mxu0 0.0
        %1411 = vmatpush.msra.mxu0 0.0
        %1412 = vmatpush.msra.mxu0 0.0
        %1413 = vmatpush.msra.mxu0 0.0
        %1414 = vmatpush.msra.mxu0 %v986
        %1415 = vmatmul.f32.gmra.mxu0 %v948
        %v1416 = vpop.f32.mrf.mxu0
        %v1417 = vadd.f32 %v863, %v1416
        %1418 = vmatmul.f32.gmra.mxu0 %v951
        %v1419 = vpop.f32.mrf.mxu0
        %v1420 = vadd.f32 %v868, %v1419
        %1421 = vmatmul.f32.gmra.mxu0 %v954
        %v1422 = vpop.f32.mrf.mxu0
        %v1423 = vadd.f32 %v873, %v1422
        %1424 = vmatmul.f32.gmra.mxu0 %v957
        %v1425 = vpop.f32.mrf.mxu0
        %v1426 = vadd.f32 %v878, %v1425
        %1427 = vdwg.mxu0
        %1428 = vmatpush.msra.mxu0 0.0
        %1429 = vmatpush.msra.mxu0 0.0
        %1430 = vmatpush.msra.mxu0 0.0
        %1431 = vmatpush.msra.mxu0 0.0
        %1432 = vmatpush.msra.mxu0 0.0
        %1433 = vmatpush.msra.mxu0 0.0
        %1434 = vmatpush.msra.mxu0 0.0
        %1435 = vmatpush.msra.mxu0 0.0
        %1436 = vmatpush.msra.mxu0 0.0
        %1437 = vmatpush.msra.mxu0 0.0
        %1438 = vmatpush.msra.mxu0 0.0
        %1439 = vmatpush.msra.mxu0 0.0
        %1440 = vmatpush.msra.mxu0 0.0
        %1441 = vmatpush.msra.mxu0 0.0
        %1442 = vmatpush.msra.mxu0 0.0
        %1443 = vmatpush.msra.mxu0 %v988
        %1444 = vmatmul.f32.gmra.mxu0 %v948
        %v1445 = vpop.f32.mrf.mxu0
        %v1446 = vadd.f32 %v863, %v1445
        %1447 = vmatmul.f32.gmra.mxu0 %v951
        %v1448 = vpop.f32.mrf.mxu0
        %v1449 = vadd.f32 %v868, %v1448
        %1450 = vmatmul.f32.gmra.mxu0 %v954
        %v1451 = vpop.f32.mrf.mxu0
        %v1452 = vadd.f32 %v873, %v1451
        %1453 = vmatmul.f32.gmra.mxu0 %v957
        %v1454 = vpop.f32.mrf.mxu0
        %v1455 = vadd.f32 %v878, %v1454
        %1456 = vdwg.mxu0
        %1457 = vmatpush.msra.mxu0 0.0
        %1458 = vmatpush.msra.mxu0 0.0
        %1459 = vmatpush.msra.mxu0 0.0
        %1460 = vmatpush.msra.mxu0 0.0
        %1461 = vmatpush.msra.mxu0 0.0
        %1462 = vmatpush.msra.mxu0 0.0
        %1463 = vmatpush.msra.mxu0 0.0
        %1464 = vmatpush.msra.mxu0 0.0
        %1465 = vmatpush.msra.mxu0 0.0
        %1466 = vmatpush.msra.mxu0 0.0
        %1467 = vmatpush.msra.mxu0 0.0
        %1468 = vmatpush.msra.mxu0 0.0
        %1469 = vmatpush.msra.mxu0 0.0
        %1470 = vmatpush.msra.mxu0 0.0
        %1471 = vmatpush.msra.mxu0 0.0
        %1472 = vmatpush.msra.mxu0 %v990
        %1473 = vmatmul.f32.gmra.mxu0 %v948
        %v1474 = vpop.f32.mrf.mxu0
        %v1475 = vadd.f32 %v863, %v1474
        %1476 = vmatmul.f32.gmra.mxu0 %v951
        %v1477 = vpop.f32.mrf.mxu0
        %v1478 = vadd.f32 %v868, %v1477
        %1479 = vmatmul.f32.gmra.mxu0 %v954
        %v1480 = vpop.f32.mrf.mxu0
        %v1481 = vadd.f32 %v873, %v1480
        %1482 = vmatmul.f32.gmra.mxu0 %v957
        %v1483 = vpop.f32.mrf.mxu0
        %v1484 = vadd.f32 %v878, %v1483
        %1485 = vdwg.mxu0
        %1486 = vmatpush.msra.mxu0 0.0
        %1487 = vmatpush.msra.mxu0 0.0
        %1488 = vmatpush.msra.mxu0 0.0
        %1489 = vmatpush.msra.mxu0 0.0
        %1490 = vmatpush.msra.mxu0 0.0
        %1491 = vmatpush.msra.mxu0 0.0
        %1492 = vmatpush.msra.mxu0 0.0
        %1493 = vmatpush.msra.mxu0 0.0
        %1494 = vmatpush.msra.mxu0 0.0
        %1495 = vmatpush.msra.mxu0 0.0
        %1496 = vmatpush.msra.mxu0 0.0
        %1497 = vmatpush.msra.mxu0 0.0
        %1498 = vmatpush.msra.mxu0 0.0
        %1499 = vmatpush.msra.mxu0 0.0
        %1500 = vmatpush.msra.mxu0 0.0
        %1501 = vmatpush.msra.mxu0 %v992
        %1502 = vmatmul.f32.gmra.mxu0 %v948
        %v1503 = vpop.f32.mrf.mxu0
        %v1504 = vadd.f32 %v863, %v1503
        %1505 = vmatmul.f32.gmra.mxu0 %v951
        %v1506 = vpop.f32.mrf.mxu0
        %v1507 = vadd.f32 %v868, %v1506
        %1508 = vmatmul.f32.gmra.mxu0 %v954
        %v1509 = vpop.f32.mrf.mxu0
        %v1510 = vadd.f32 %v873, %v1509
        %1511 = vmatmul.f32.gmra.mxu0 %v957
        %v1512 = vpop.f32.mrf.mxu0
        %v1513 = vadd.f32 %v878, %v1512
        %1514 = vdwg.mxu0
        %1515 = vmatpush.msra.mxu0 0.0
        %1516 = vmatpush.msra.mxu0 0.0
        %1517 = vmatpush.msra.mxu0 0.0
        %1518 = vmatpush.msra.mxu0 0.0
        %1519 = vmatpush.msra.mxu0 0.0
        %1520 = vmatpush.msra.mxu0 0.0
        %1521 = vmatpush.msra.mxu0 0.0
        %1522 = vmatpush.msra.mxu0 0.0
        %1523 = vmatpush.msra.mxu0 0.0
        %1524 = vmatpush.msra.mxu0 0.0
        %1525 = vmatpush.msra.mxu0 0.0
        %1526 = vmatpush.msra.mxu0 0.0
        %1527 = vmatpush.msra.mxu0 0.0
        %1528 = vmatpush.msra.mxu0 0.0
        %1529 = vmatpush.msra.mxu0 0.0
        %1530 = vmatpush.msra.mxu0 %v994
        %1531 = vmatmul.f32.gmra.mxu0 %v948
        %v1532 = vpop.f32.mrf.mxu0
        %v1533 = vadd.f32 %v863, %v1532
        %1534 = vmatmul.f32.gmra.mxu0 %v951
        %v1535 = vpop.f32.mrf.mxu0
        %v1536 = vadd.f32 %v868, %v1535
        %1537 = vmatmul.f32.gmra.mxu0 %v954
        %v1538 = vpop.f32.mrf.mxu0
        %v1539 = vadd.f32 %v873, %v1538
        %1540 = vmatmul.f32.gmra.mxu0 %v957
        %v1541 = vpop.f32.mrf.mxu0
        %v1542 = vadd.f32 %v878, %v1541
        %1543 = vdwg.mxu0
        %1544 = vmatpush.msra.mxu0 0.0
        %1545 = vmatpush.msra.mxu0 0.0
        %1546 = vmatpush.msra.mxu0 0.0
        %1547 = vmatpush.msra.mxu0 0.0
        %1548 = vmatpush.msra.mxu0 0.0
        %1549 = vmatpush.msra.mxu0 0.0
        %1550 = vmatpush.msra.mxu0 0.0
        %1551 = vmatpush.msra.mxu0 0.0
        %1552 = vmatpush.msra.mxu0 0.0
        %1553 = vmatpush.msra.mxu0 0.0
        %1554 = vmatpush.msra.mxu0 0.0
        %1555 = vmatpush.msra.mxu0 0.0
        %1556 = vmatpush.msra.mxu0 0.0
        %1557 = vmatpush.msra.mxu0 0.0
        %1558 = vmatpush.msra.mxu0 0.0
        %1559 = vmatpush.msra.mxu0 %v996
        %1560 = vmatmul.f32.gmra.mxu0 %v948
        %v1561 = vpop.f32.mrf.mxu0
        %v1562 = vadd.f32 %v863, %v1561
        %1563 = vmatmul.f32.gmra.mxu0 %v951
        %v1564 = vpop.f32.mrf.mxu0
        %v1565 = vadd.f32 %v868, %v1564
        %1566 = vmatmul.f32.gmra.mxu0 %v954
        %v1567 = vpop.f32.mrf.mxu0
        %v1568 = vadd.f32 %v873, %v1567
        %1569 = vmatmul.f32.gmra.mxu0 %v957
        %v1570 = vpop.f32.mrf.mxu0
        %v1571 = vadd.f32 %v878, %v1570
        %1572 = vdwg.mxu0
        %1573 = vmatpush.msra.mxu0 0.0
        %1574 = vmatpush.msra.mxu0 0.0
        %1575 = vmatpush.msra.mxu0 0.0
        %1576 = vmatpush.msra.mxu0 0.0
        %1577 = vmatpush.msra.mxu0 0.0
        %1578 = vmatpush.msra.mxu0 0.0
        %1579 = vmatpush.msra.mxu0 0.0
        %1580 = vmatpush.msra.mxu0 0.0
        %1581 = vmatpush.msra.mxu0 0.0
        %1582 = vmatpush.msra.mxu0 0.0
        %1583 = vmatpush.msra.mxu0 0.0
        %1584 = vmatpush.msra.mxu0 0.0
        %1585 = vmatpush.msra.mxu0 0.0
        %1586 = vmatpush.msra.mxu0 0.0
        %1587 = vmatpush.msra.mxu0 0.0
        %1588 = vmatpush.msra.mxu0 %v998
        %1589 = vmatmul.f32.gmra.mxu0 %v948
        %v1590 = vpop.f32.mrf.mxu0
        %v1591 = vadd.f32 %v863, %v1590
        %1592 = vmatmul.f32.gmra.mxu0 %v951
        %v1593 = vpop.f32.mrf.mxu0
        %v1594 = vadd.f32 %v868, %v1593
        %1595 = vmatmul.f32.gmra.mxu0 %v954
        %v1596 = vpop.f32.mrf.mxu0
        %v1597 = vadd.f32 %v873, %v1596
        %1598 = vmatmul.f32.gmra.mxu0 %v957
        %v1599 = vpop.f32.mrf.mxu0
        %v1600 = vadd.f32 %v878, %v1599
        %1601 = vdwg.mxu0
        %1602 = vmatpush.msra.mxu0 0.0
        %1603 = vmatpush.msra.mxu0 0.0
        %1604 = vmatpush.msra.mxu0 0.0
        %1605 = vmatpush.msra.mxu0 0.0
        %1606 = vmatpush.msra.mxu0 0.0
        %1607 = vmatpush.msra.mxu0 0.0
        %1608 = vmatpush.msra.mxu0 0.0
        %1609 = vmatpush.msra.mxu0 0.0
        %1610 = vmatpush.msra.mxu0 0.0
        %1611 = vmatpush.msra.mxu0 0.0
        %1612 = vmatpush.msra.mxu0 0.0
        %1613 = vmatpush.msra.mxu0 0.0
        %1614 = vmatpush.msra.mxu0 0.0
        %1615 = vmatpush.msra.mxu0 0.0
        %1616 = vmatpush.msra.mxu0 0.0
        %1617 = vmatpush.msra.mxu0 %v1000
        %1618 = vmatmul.f32.gmra.mxu0 %v948
        %v1619 = vpop.f32.mrf.mxu0
        %v1620 = vadd.f32 %v863, %v1619
        %1621 = vmatmul.f32.gmra.mxu0 %v951
        %v1622 = vpop.f32.mrf.mxu0
        %v1623 = vadd.f32 %v868, %v1622
        %1624 = vmatmul.f32.gmra.mxu0 %v954
        %v1625 = vpop.f32.mrf.mxu0
        %v1626 = vadd.f32 %v873, %v1625
        %1627 = vmatmul.f32.gmra.mxu0 %v957
        %v1628 = vpop.f32.mrf.mxu0
        %v1629 = vadd.f32 %v878, %v1628
        %1630 = vdwg.mxu0
        %1631 = vmatpush.msra.mxu0 0.0
        %1632 = vmatpush.msra.mxu0 0.0
        %1633 = vmatpush.msra.mxu0 0.0
        %1634 = vmatpush.msra.mxu0 0.0
        %1635 = vmatpush.msra.mxu0 0.0
        %1636 = vmatpush.msra.mxu0 0.0
        %1637 = vmatpush.msra.mxu0 0.0
        %1638 = vmatpush.msra.mxu0 0.0
        %1639 = vmatpush.msra.mxu0 0.0
        %1640 = vmatpush.msra.mxu0 0.0
        %1641 = vmatpush.msra.mxu0 0.0
        %1642 = vmatpush.msra.mxu0 0.0
        %1643 = vmatpush.msra.mxu0 0.0
        %1644 = vmatpush.msra.mxu0 0.0
        %1645 = vmatpush.msra.mxu0 0.0
        %1646 = vmatpush.msra.mxu0 %v1002
        %1647 = vmatmul.f32.gmra.mxu0 %v948
        %v1648 = vpop.f32.mrf.mxu0
        %v1649 = vadd.f32 %v863, %v1648
        %1650 = vmatmul.f32.gmra.mxu0 %v951
        %v1651 = vpop.f32.mrf.mxu0
        %v1652 = vadd.f32 %v868, %v1651
        %1653 = vmatmul.f32.gmra.mxu0 %v954
        %v1654 = vpop.f32.mrf.mxu0
        %v1655 = vadd.f32 %v873, %v1654
        %1656 = vmatmul.f32.gmra.mxu0 %v957
        %v1657 = vpop.f32.mrf.mxu0
        %v1658 = vadd.f32 %v878, %v1657
        %1659 = vdwg.mxu0
        %1660 = vmatpush.msra.mxu0 0.0
        %1661 = vmatpush.msra.mxu0 0.0
        %1662 = vmatpush.msra.mxu0 0.0
        %1663 = vmatpush.msra.mxu0 0.0
        %1664 = vmatpush.msra.mxu0 0.0
        %1665 = vmatpush.msra.mxu0 0.0
        %1666 = vmatpush.msra.mxu0 0.0
        %1667 = vmatpush.msra.mxu0 0.0
        %1668 = vmatpush.msra.mxu0 0.0
        %1669 = vmatpush.msra.mxu0 0.0
        %1670 = vmatpush.msra.mxu0 0.0
        %1671 = vmatpush.msra.mxu0 0.0
        %1672 = vmatpush.msra.mxu0 0.0
        %1673 = vmatpush.msra.mxu0 0.0
        %1674 = vmatpush.msra.mxu0 0.0
        %1675 = vmatpush.msra.mxu0 %v1004
        %1676 = vmatmul.f32.gmra.mxu0 %v948
        %v1677 = vpop.f32.mrf.mxu0
        %v1678 = vadd.f32 %v863, %v1677
        %1679 = vmatmul.f32.gmra.mxu0 %v951
        %v1680 = vpop.f32.mrf.mxu0
        %v1681 = vadd.f32 %v868, %v1680
        %1682 = vmatmul.f32.gmra.mxu0 %v954
        %v1683 = vpop.f32.mrf.mxu0
        %v1684 = vadd.f32 %v873, %v1683
        %1685 = vmatmul.f32.gmra.mxu0 %v957
        %v1686 = vpop.f32.mrf.mxu0
        %v1687 = vadd.f32 %v878, %v1686
        %1688 = vdwg.mxu0
        %1689 = vmatpush.msra.mxu0 0.0
        %1690 = vmatpush.msra.mxu0 0.0
        %1691 = vmatpush.msra.mxu0 0.0
        %1692 = vmatpush.msra.mxu0 0.0
        %1693 = vmatpush.msra.mxu0 0.0
        %1694 = vmatpush.msra.mxu0 0.0
        %1695 = vmatpush.msra.mxu0 0.0
        %1696 = vmatpush.msra.mxu0 0.0
        %1697 = vmatpush.msra.mxu0 0.0
        %1698 = vmatpush.msra.mxu0 0.0
        %1699 = vmatpush.msra.mxu0 0.0
        %1700 = vmatpush.msra.mxu0 0.0
        %1701 = vmatpush.msra.mxu0 0.0
        %1702 = vmatpush.msra.mxu0 0.0
        %1703 = vmatpush.msra.mxu0 0.0
        %1704 = vmatpush.msra.mxu0 %v1006
        %1705 = vmatmul.f32.gmra.mxu0 %v948
        %v1706 = vpop.f32.mrf.mxu0
        %v1707 = vadd.f32 %v863, %v1706
        %1708 = vmatmul.f32.gmra.mxu0 %v951
        %v1709 = vpop.f32.mrf.mxu0
        %v1710 = vadd.f32 %v868, %v1709
        %1711 = vmatmul.f32.gmra.mxu0 %v954
        %v1712 = vpop.f32.mrf.mxu0
        %v1713 = vadd.f32 %v873, %v1712
        %1714 = vmatmul.f32.gmra.mxu0 %v957
        %v1715 = vpop.f32.mrf.mxu0
        %v1716 = vadd.f32 %v878, %v1715
        %1717 = vdwg.mxu0
        %1718 = vmatpush.msra.mxu0 0.0
        %1719 = vmatpush.msra.mxu0 0.0
        %1720 = vmatpush.msra.mxu0 0.0
        %1721 = vmatpush.msra.mxu0 0.0
        %1722 = vmatpush.msra.mxu0 0.0
        %1723 = vmatpush.msra.mxu0 0.0
        %1724 = vmatpush.msra.mxu0 0.0
        %1725 = vmatpush.msra.mxu0 0.0
        %1726 = vmatpush.msra.mxu0 0.0
        %1727 = vmatpush.msra.mxu0 0.0
        %1728 = vmatpush.msra.mxu0 0.0
        %1729 = vmatpush.msra.mxu0 0.0
        %1730 = vmatpush.msra.mxu0 0.0
        %1731 = vmatpush.msra.mxu0 0.0
        %1732 = vmatpush.msra.mxu0 0.0
        %1733 = vmatpush.msra.mxu0 %v1008
        %1734 = vmatmul.f32.gmra.mxu0 %v948
        %v1735 = vpop.f32.mrf.mxu0
        %v1736 = vadd.f32 %v863, %v1735
        %1737 = vmatmul.f32.gmra.mxu0 %v951
        %v1738 = vpop.f32.mrf.mxu0
        %v1739 = vadd.f32 %v868, %v1738
        %1740 = vmatmul.f32.gmra.mxu0 %v954
        %v1741 = vpop.f32.mrf.mxu0
        %v1742 = vadd.f32 %v873, %v1741
        %1743 = vmatmul.f32.gmra.mxu0 %v957
        %v1744 = vpop.f32.mrf.mxu0
        %v1745 = vadd.f32 %v878, %v1744
        %1746 = vdwg.mxu0
        %1747 = vmatpush.msra.mxu0 0.0
        %1748 = vmatpush.msra.mxu0 0.0
        %1749 = vmatpush.msra.mxu0 0.0
        %1750 = vmatpush.msra.mxu0 0.0
        %1751 = vmatpush.msra.mxu0 0.0
        %1752 = vmatpush.msra.mxu0 0.0
        %1753 = vmatpush.msra.mxu0 0.0
        %1754 = vmatpush.msra.mxu0 0.0
        %1755 = vmatpush.msra.mxu0 0.0
        %1756 = vmatpush.msra.mxu0 0.0
        %1757 = vmatpush.msra.mxu0 0.0
        %1758 = vmatpush.msra.mxu0 0.0
        %1759 = vmatpush.msra.mxu0 0.0
        %1760 = vmatpush.msra.mxu0 0.0
        %1761 = vmatpush.msra.mxu0 0.0
        %1762 = vmatpush.msra.mxu0 %v1010
        %1763 = vmatmul.f32.gmra.mxu0 %v948
        %v1764 = vpop.f32.mrf.mxu0
        %v1765 = vadd.f32 %v863, %v1764
        %1766 = vmatmul.f32.gmra.mxu0 %v951
        %v1767 = vpop.f32.mrf.mxu0
        %v1768 = vadd.f32 %v868, %v1767
        %1769 = vmatmul.f32.gmra.mxu0 %v954
        %v1770 = vpop.f32.mrf.mxu0
        %v1771 = vadd.f32 %v873, %v1770
        %1772 = vmatmul.f32.gmra.mxu0 %v957
        %v1773 = vpop.f32.mrf.mxu0
        %v1774 = vadd.f32 %v878, %v1773
        %1775 = vdwg.mxu0
        %1776 = vmatpush.msra.mxu0 0.0
        %1777 = vmatpush.msra.mxu0 0.0
        %1778 = vmatpush.msra.mxu0 0.0
        %1779 = vmatpush.msra.mxu0 0.0
        %1780 = vmatpush.msra.mxu0 0.0
        %1781 = vmatpush.msra.mxu0 0.0
        %1782 = vmatpush.msra.mxu0 0.0
        %1783 = vmatpush.msra.mxu0 0.0
        %1784 = vmatpush.msra.mxu0 0.0
        %1785 = vmatpush.msra.mxu0 0.0
        %1786 = vmatpush.msra.mxu0 0.0
        %1787 = vmatpush.msra.mxu0 0.0
        %1788 = vmatpush.msra.mxu0 0.0
        %1789 = vmatpush.msra.mxu0 0.0
        %1790 = vmatpush.msra.mxu0 0.0
        %1791 = vmatpush.msra.mxu0 %v1012
        %1792 = vmatmul.f32.gmra.mxu0 %v948
        %v1793 = vpop.f32.mrf.mxu0
        %v1794 = vadd.f32 %v863, %v1793
        %1795 = vmatmul.f32.gmra.mxu0 %v951
        %v1796 = vpop.f32.mrf.mxu0
        %v1797 = vadd.f32 %v868, %v1796
        %1798 = vmatmul.f32.gmra.mxu0 %v954
        %v1799 = vpop.f32.mrf.mxu0
        %v1800 = vadd.f32 %v873, %v1799
        %1801 = vmatmul.f32.gmra.mxu0 %v957
        %v1802 = vpop.f32.mrf.mxu0
        %v1803 = vadd.f32 %v878, %v1802
        %1804 = vdwg.mxu0
        %1805 = vmatpush.msra.mxu0 0.0
        %1806 = vmatpush.msra.mxu0 0.0
        %1807 = vmatpush.msra.mxu0 0.0
        %1808 = vmatpush.msra.mxu0 0.0
        %1809 = vmatpush.msra.mxu0 0.0
        %1810 = vmatpush.msra.mxu0 0.0
        %1811 = vmatpush.msra.mxu0 0.0
        %1812 = vmatpush.msra.mxu0 0.0
        %1813 = vmatpush.msra.mxu0 0.0
        %1814 = vmatpush.msra.mxu0 0.0
        %1815 = vmatpush.msra.mxu0 0.0
        %1816 = vmatpush.msra.mxu0 0.0
        %1817 = vmatpush.msra.mxu0 0.0
        %1818 = vmatpush.msra.mxu0 0.0
        %1819 = vmatpush.msra.mxu0 0.0
        %1820 = vmatpush.msra.mxu0 %v1014
        %1821 = vmatmul.f32.gmra.mxu0 %v948
        %v1822 = vpop.f32.mrf.mxu0
        %v1823 = vadd.f32 %v863, %v1822
        %1824 = vmatmul.f32.gmra.mxu0 %v951
        %v1825 = vpop.f32.mrf.mxu0
        %v1826 = vadd.f32 %v868, %v1825
        %1827 = vmatmul.f32.gmra.mxu0 %v954
        %v1828 = vpop.f32.mrf.mxu0
        %v1829 = vadd.f32 %v873, %v1828
        %1830 = vmatmul.f32.gmra.mxu0 %v957
        %v1831 = vpop.f32.mrf.mxu0
        %v1832 = vadd.f32 %v878, %v1831
        %1833 = vdwg.mxu0
        %1834 = vmatpush.msra.mxu0 0.0
        %1835 = vmatpush.msra.mxu0 0.0
        %1836 = vmatpush.msra.mxu0 0.0
        %1837 = vmatpush.msra.mxu0 0.0
        %1838 = vmatpush.msra.mxu0 0.0
        %1839 = vmatpush.msra.mxu0 0.0
        %1840 = vmatpush.msra.mxu0 0.0
        %1841 = vmatpush.msra.mxu0 0.0
        %1842 = vmatpush.msra.mxu0 0.0
        %1843 = vmatpush.msra.mxu0 0.0
        %1844 = vmatpush.msra.mxu0 0.0
        %1845 = vmatpush.msra.mxu0 0.0
        %1846 = vmatpush.msra.mxu0 0.0
        %1847 = vmatpush.msra.mxu0 0.0
        %1848 = vmatpush.msra.mxu0 0.0
        %1849 = vmatpush.msra.mxu0 %v1016
        %1850 = vmatmul.f32.gmra.mxu0 %v948
        %v1851 = vpop.f32.mrf.mxu0
        %v1852 = vadd.f32 %v863, %v1851
        %1853 = vmatmul.f32.gmra.mxu0 %v951
        %v1854 = vpop.f32.mrf.mxu0
        %v1855 = vadd.f32 %v868, %v1854
        %1856 = vmatmul.f32.gmra.mxu0 %v954
        %v1857 = vpop.f32.mrf.mxu0
        %v1858 = vadd.f32 %v873, %v1857
        %1859 = vmatmul.f32.gmra.mxu0 %v957
        %v1860 = vpop.f32.mrf.mxu0
        %v1861 = vadd.f32 %v878, %v1860
        %1862 = vdwg.mxu0
        %1863 = vmatpush.msra.mxu0 0.0
        %1864 = vmatpush.msra.mxu0 0.0
        %1865 = vmatpush.msra.mxu0 0.0
        %1866 = vmatpush.msra.mxu0 0.0
        %1867 = vmatpush.msra.mxu0 0.0
        %1868 = vmatpush.msra.mxu0 0.0
        %1869 = vmatpush.msra.mxu0 0.0
        %1870 = vmatpush.msra.mxu0 0.0
        %1871 = vmatpush.msra.mxu0 0.0
        %1872 = vmatpush.msra.mxu0 0.0
        %1873 = vmatpush.msra.mxu0 0.0
        %1874 = vmatpush.msra.mxu0 0.0
        %1875 = vmatpush.msra.mxu0 0.0
        %1876 = vmatpush.msra.mxu0 0.0
        %1877 = vmatpush.msra.mxu0 0.0
        %1878 = vmatpush.msra.mxu0 %v1018
        %1879 = vmatmul.f32.gmra.mxu0 %v948
        %v1880 = vpop.f32.mrf.mxu0
        %v1881 = vadd.f32 %v863, %v1880
        %1882 = vmatmul.f32.gmra.mxu0 %v951
        %v1883 = vpop.f32.mrf.mxu0
        %v1884 = vadd.f32 %v868, %v1883
        %1885 = vmatmul.f32.gmra.mxu0 %v954
        %v1886 = vpop.f32.mrf.mxu0
        %v1887 = vadd.f32 %v873, %v1886
        %1888 = vmatmul.f32.gmra.mxu0 %v957
        %v1889 = vpop.f32.mrf.mxu0
        %v1890 = vadd.f32 %v878, %v1889
        %1891 = vdwg.mxu0
        %1892 = vmatpush.msra.mxu0 0.0
        %1893 = vmatpush.msra.mxu0 0.0
        %1894 = vmatpush.msra.mxu0 0.0
        %1895 = vmatpush.msra.mxu0 0.0
        %1896 = vmatpush.msra.mxu0 0.0
        %1897 = vmatpush.msra.mxu0 0.0
        %1898 = vmatpush.msra.mxu0 0.0
        %1899 = vmatpush.msra.mxu0 0.0
        %1900 = vmatpush.msra.mxu0 0.0
        %1901 = vmatpush.msra.mxu0 0.0
        %1902 = vmatpush.msra.mxu0 0.0
        %1903 = vmatpush.msra.mxu0 0.0
        %1904 = vmatpush.msra.mxu0 0.0
        %1905 = vmatpush.msra.mxu0 0.0
        %1906 = vmatpush.msra.mxu0 0.0
        %1907 = vmatpush.msra.mxu0 %v1020
        %1908 = vmatmul.f32.gmra.mxu0 %v948
        %v1909 = vpop.f32.mrf.mxu0
        %v1910 = vadd.f32 %v863, %v1909
        %1911 = vmatmul.f32.gmra.mxu0 %v951
        %v1912 = vpop.f32.mrf.mxu0
        %v1913 = vadd.f32 %v868, %v1912
        %1914 = vmatmul.f32.gmra.mxu0 %v954
        %v1915 = vpop.f32.mrf.mxu0
        %v1916 = vadd.f32 %v873, %v1915
        %1917 = vmatmul.f32.gmra.mxu0 %v957
        %v1918 = vpop.f32.mrf.mxu0
        %v1919 = vadd.f32 %v878, %v1918
        %1920 = vdwg.mxu0
        %v1921 = vmul.f32 %v1040, 0.15915494
        %v1922 = vmul.f32 %v1069, 0.15915494
        %v1923 = vmul.f32 %v1098, 0.15915494
        %v1924 = vmul.f32 %v1127, 0.15915494
        %v1925 = vmul.f32 %v1156, 0.15915494
        %v1926 = vmul.f32 %v1185, 0.15915494
        %v1927 = vmul.f32 %v1214, 0.15915494
        %v1928 = vmul.f32 %v1243, 0.15915494
        %v1929 = vmul.f32 %v1272, 0.15915494
        %v1930 = vmul.f32 %v1301, 0.15915494
        %v1931 = vmul.f32 %v1330, 0.15915494
        %v1932 = vmul.f32 %v1359, 0.15915494
        %v1933 = vmul.f32 %v1388, 0.15915494
        %v1934 = vmul.f32 %v1417, 0.15915494
        %v1935 = vmul.f32 %v1446, 0.15915494
        %v1936 = vmul.f32 %v1475, 0.15915494
        %v1937 = vmul.f32 %v1504, 0.15915494
        %v1938 = vmul.f32 %v1533, 0.15915494
        %v1939 = vmul.f32 %v1562, 0.15915494
        %v1940 = vmul.f32 %v1591, 0.15915494
        %v1941 = vmul.f32 %v1620, 0.15915494
        %v1942 = vmul.f32 %v1649, 0.15915494
        %v1943 = vmul.f32 %v1678, 0.15915494
        %v1944 = vmul.f32 %v1707, 0.15915494
        %v1945 = vmul.f32 %v1736, 0.15915494
        %v1946 = vmul.f32 %v1765, 0.15915494
        %v1947 = vmul.f32 %v1794, 0.15915494
        %v1948 = vmul.f32 %v1823, 0.15915494
        %v1949 = vmul.f32 %v1852, 0.15915494
        %v1950 = vmul.f32 %v1881, 0.15915494
        %v1951 = vmul.f32 %v1910, 0.15915494
        %v1952 = vmul.f32 %v1043, 0.15915494
        %v1953 = vmul.f32 %v1072, 0.15915494
        %v1954 = vmul.f32 %v1101, 0.15915494
        %v1955 = vmul.f32 %v1130, 0.15915494
        %v1956 = vmul.f32 %v1159, 0.15915494
        %v1957 = vmul.f32 %v1188, 0.15915494
        %v1958 = vmul.f32 %v1217, 0.15915494
        %v1959 = vmul.f32 %v1246, 0.15915494
        %v1960 = vmul.f32 %v1275, 0.15915494
        %v1961 = vmul.f32 %v1304, 0.15915494
        %v1962 = vmul.f32 %v1333, 0.15915494
        %v1963 = vmul.f32 %v1362, 0.15915494
        %v1964 = vmul.f32 %v1391, 0.15915494
        %v1965 = vmul.f32 %v1420, 0.15915494
        %v1966 = vmul.f32 %v1449, 0.15915494
        %v1967 = vmul.f32 %v1478, 0.15915494
        %v1968 = vmul.f32 %v1507, 0.15915494
        %v1969 = vmul.f32 %v1536, 0.15915494
        %v1970 = vmul.f32 %v1565, 0.15915494
        %v1971 = vmul.f32 %v1594, 0.15915494
        %v1972 = vmul.f32 %v1623, 0.15915494
        %v1973 = vmul.f32 %v1652, 0.15915494
        %v1974 = vmul.f32 %v1681, 0.15915494
        %v1975 = vmul.f32 %v1710, 0.15915494
        %v1976 = vmul.f32 %v1739, 0.15915494
        %v1977 = vmul.f32 %v1768, 0.15915494
        %v1978 = vmul.f32 %v1797, 0.15915494
        %v1979 = vmul.f32 %v1826, 0.15915494
        %v1980 = vmul.f32 %v1855, 0.15915494
        %v1981 = vmul.f32 %v1884, 0.15915494
        %v1982 = vmul.f32 %v1913, 0.15915494
        %v1983 = vmul.f32 %v1046, 0.15915494
        %v1984 = vmul.f32 %v1075, 0.15915494
        %v1985 = vmul.f32 %v1104, 0.15915494
        %v1986 = vmul.f32 %v1133, 0.15915494
        %v1987 = vmul.f32 %v1162, 0.15915494
        %v1988 = vmul.f32 %v1191, 0.15915494
        %v1989 = vmul.f32 %v1220, 0.15915494
        %v1990 = vmul.f32 %v1249, 0.15915494
        %v1991 = vmul.f32 %v1278, 0.15915494
        %v1992 = vmul.f32 %v1307, 0.15915494
        %v1993 = vmul.f32 %v1336, 0.15915494
        %v1994 = vmul.f32 %v1365, 0.15915494
        %v1995 = vmul.f32 %v1394, 0.15915494
        %v1996 = vmul.f32 %v1423, 0.15915494
        %v1997 = vmul.f32 %v1452, 0.15915494
        %v1998 = vmul.f32 %v1481, 0.15915494
        %v1999 = vmul.f32 %v1510, 0.15915494
        %v2000 = vmul.f32 %v1539, 0.15915494
        %v2001 = vmul.f32 %v1568, 0.15915494
        %v2002 = vmul.f32 %v1597, 0.15915494
        %v2003 = vmul.f32 %v1626, 0.15915494
        %v2004 = vmul.f32 %v1655, 0.15915494
        %v2005 = vmul.f32 %v1684, 0.15915494
        %v2006 = vmul.f32 %v1713, 0.15915494
        %v2007 = vmul.f32 %v1742, 0.15915494
        %v2008 = vmul.f32 %v1771, 0.15915494
        %v2009 = vmul.f32 %v1800, 0.15915494
        %v2010 = vmul.f32 %v1829, 0.15915494
        %v2011 = vmul.f32 %v1858, 0.15915494
        %v2012 = vmul.f32 %v1887, 0.15915494
        %v2013 = vmul.f32 %v1916, 0.15915494
        %v2014 = vmul.f32 %v1049, 0.15915494
        %v2015 = vmul.f32 %v1078, 0.15915494
        %v2016 = vmul.f32 %v1107, 0.15915494
        %v2017 = vmul.f32 %v1136, 0.15915494
        %v2018 = vmul.f32 %v1165, 0.15915494
        %v2019 = vmul.f32 %v1194, 0.15915494
        %v2020 = vmul.f32 %v1223, 0.15915494
        %v2021 = vmul.f32 %v1252, 0.15915494
        %v2022 = vmul.f32 %v1281, 0.15915494
        %v2023 = vmul.f32 %v1310, 0.15915494
        %v2024 = vmul.f32 %v1339, 0.15915494
        %v2025 = vmul.f32 %v1368, 0.15915494
        %v2026 = vmul.f32 %v1397, 0.15915494
        %v2027 = vmul.f32 %v1426, 0.15915494
        %v2028 = vmul.f32 %v1455, 0.15915494
        %v2029 = vmul.f32 %v1484, 0.15915494
        %v2030 = vmul.f32 %v1513, 0.15915494
        %v2031 = vmul.f32 %v1542, 0.15915494
        %v2032 = vmul.f32 %v1571, 0.15915494
        %v2033 = vmul.f32 %v1600, 0.15915494
        %v2034 = vmul.f32 %v1629, 0.15915494
        %v2035 = vmul.f32 %v1658, 0.15915494
        %v2036 = vmul.f32 %v1687, 0.15915494
        %v2037 = vmul.f32 %v1716, 0.15915494
        %v2038 = vmul.f32 %v1745, 0.15915494
        %v2039 = vmul.f32 %v1774, 0.15915494
        %v2040 = vmul.f32 %v1803, 0.15915494
        %v2041 = vmul.f32 %v1832, 0.15915494
        %v2042 = vmul.f32 %v1861, 0.15915494
        %v2043 = vmul.f32 %v1890, 0.15915494
        %v2044 = vmul.f32 %v1919, 0.15915494
        %v2045 = vadd.f32 %v1921, 0.5
        %v2046 = vadd.f32 %v1922, 0.5
        %v2047 = vadd.f32 %v1923, 0.5
        %v2048 = vadd.f32 %v1924, 0.5
        %v2049 = vadd.f32 %v1925, 0.5
        %v2050 = vadd.f32 %v1926, 0.5
        %v2051 = vadd.f32 %v1927, 0.5
        %v2052 = vadd.f32 %v1928, 0.5
        %v2053 = vadd.f32 %v1929, 0.5
        %v2054 = vadd.f32 %v1930, 0.5
        %v2055 = vadd.f32 %v1931, 0.5
        %v2056 = vadd.f32 %v1932, 0.5
        %v2057 = vadd.f32 %v1933, 0.5
        %v2058 = vadd.f32 %v1934, 0.5
        %v2059 = vadd.f32 %v1935, 0.5
        %v2060 = vadd.f32 %v1936, 0.5
        %v2061 = vadd.f32 %v1937, 0.5
        %v2062 = vadd.f32 %v1938, 0.5
        %v2063 = vadd.f32 %v1939, 0.5
        %v2064 = vadd.f32 %v1940, 0.5
        %v2065 = vadd.f32 %v1941, 0.5
        %v2066 = vadd.f32 %v1942, 0.5
        %v2067 = vadd.f32 %v1943, 0.5
        %v2068 = vadd.f32 %v1944, 0.5
        %v2069 = vadd.f32 %v1945, 0.5
        %v2070 = vadd.f32 %v1946, 0.5
        %v2071 = vadd.f32 %v1947, 0.5
        %v2072 = vadd.f32 %v1948, 0.5
        %v2073 = vadd.f32 %v1949, 0.5
        %v2074 = vadd.f32 %v1950, 0.5
        %v2075 = vadd.f32 %v1951, 0.5
        %v2076 = vadd.f32 %v1952, 0.5
        %v2077 = vadd.f32 %v1953, 0.5
        %v2078 = vadd.f32 %v1954, 0.5
        %v2079 = vadd.f32 %v1955, 0.5
        %v2080 = vadd.f32 %v1956, 0.5
        %v2081 = vadd.f32 %v1957, 0.5
        %v2082 = vadd.f32 %v1958, 0.5
        %v2083 = vadd.f32 %v1959, 0.5
        %v2084 = vadd.f32 %v1960, 0.5
        %v2085 = vadd.f32 %v1961, 0.5
        %v2086 = vadd.f32 %v1962, 0.5
        %v2087 = vadd.f32 %v1963, 0.5
        %v2088 = vadd.f32 %v1964, 0.5
        %v2089 = vadd.f32 %v1965, 0.5
        %v2090 = vadd.f32 %v1966, 0.5
        %v2091 = vadd.f32 %v1967, 0.5
        %v2092 = vadd.f32 %v1968, 0.5
        %v2093 = vadd.f32 %v1969, 0.5
        %v2094 = vadd.f32 %v1970, 0.5
        %v2095 = vadd.f32 %v1971, 0.5
        %v2096 = vadd.f32 %v1972, 0.5
        %v2097 = vadd.f32 %v1973, 0.5
        %v2098 = vadd.f32 %v1974, 0.5
        %v2099 = vadd.f32 %v1975, 0.5
        %v2100 = vadd.f32 %v1976, 0.5
        %v2101 = vadd.f32 %v1977, 0.5
        %v2102 = vadd.f32 %v1978, 0.5
        %v2103 = vadd.f32 %v1979, 0.5
        %v2104 = vadd.f32 %v1980, 0.5
        %v2105 = vadd.f32 %v1981, 0.5
        %v2106 = vadd.f32 %v1982, 0.5
        %v2107 = vadd.f32 %v1983, 0.5
        %v2108 = vadd.f32 %v1984, 0.5
        %v2109 = vadd.f32 %v1985, 0.5
        %v2110 = vadd.f32 %v1986, 0.5
        %v2111 = vadd.f32 %v1987, 0.5
        %v2112 = vadd.f32 %v1988, 0.5
        %v2113 = vadd.f32 %v1989, 0.5
        %v2114 = vadd.f32 %v1990, 0.5
        %v2115 = vadd.f32 %v1991, 0.5
        %v2116 = vadd.f32 %v1992, 0.5
        %v2117 = vadd.f32 %v1993, 0.5
        %v2118 = vadd.f32 %v1994, 0.5
        %v2119 = vadd.f32 %v1995, 0.5
        %v2120 = vadd.f32 %v1996, 0.5
        %v2121 = vadd.f32 %v1997, 0.5
        %v2122 = vadd.f32 %v1998, 0.5
        %v2123 = vadd.f32 %v1999, 0.5
        %v2124 = vadd.f32 %v2000, 0.5
        %v2125 = vadd.f32 %v2001, 0.5
        %v2126 = vadd.f32 %v2002, 0.5
        %v2127 = vadd.f32 %v2003, 0.5
        %v2128 = vadd.f32 %v2004, 0.5
        %v2129 = vadd.f32 %v2005, 0.5
        %v2130 = vadd.f32 %v2006, 0.5
        %v2131 = vadd.f32 %v2007, 0.5
        %v2132 = vadd.f32 %v2008, 0.5
        %v2133 = vadd.f32 %v2009, 0.5
        %v2134 = vadd.f32 %v2010, 0.5
        %v2135 = vadd.f32 %v2011, 0.5
        %v2136 = vadd.f32 %v2012, 0.5
        %v2137 = vadd.f32 %v2013, 0.5
        %v2138 = vadd.f32 %v2014, 0.5
        %v2139 = vadd.f32 %v2015, 0.5
        %v2140 = vadd.f32 %v2016, 0.5
        %v2141 = vadd.f32 %v2017, 0.5
        %v2142 = vadd.f32 %v2018, 0.5
        %v2143 = vadd.f32 %v2019, 0.5
        %v2144 = vadd.f32 %v2020, 0.5
        %v2145 = vadd.f32 %v2021, 0.5
        %v2146 = vadd.f32 %v2022, 0.5
        %v2147 = vadd.f32 %v2023, 0.5
        %v2148 = vadd.f32 %v2024, 0.5
        %v2149 = vadd.f32 %v2025, 0.5
        %v2150 = vadd.f32 %v2026, 0.5
        %v2151 = vadd.f32 %v2027, 0.5
        %v2152 = vadd.f32 %v2028, 0.5
        %v2153 = vadd.f32 %v2029, 0.5
        %v2154 = vadd.f32 %v2030, 0.5
        %v2155 = vadd.f32 %v2031, 0.5
        %v2156 = vadd.f32 %v2032, 0.5
        %v2157 = vadd.f32 %v2033, 0.5
        %v2158 = vadd.f32 %v2034, 0.5
        %v2159 = vadd.f32 %v2035, 0.5
        %v2160 = vadd.f32 %v2036, 0.5
        %v2161 = vadd.f32 %v2037, 0.5
        %v2162 = vadd.f32 %v2038, 0.5
        %v2163 = vadd.f32 %v2039, 0.5
        %v2164 = vadd.f32 %v2040, 0.5
        %v2165 = vadd.f32 %v2041, 0.5
        %v2166 = vadd.f32 %v2042, 0.5
        %v2167 = vadd.f32 %v2043, 0.5
        %v2168 = vadd.f32 %v2044, 0.5
        %v2169 = vfloor.f32 %v2045
        %v2170 = vfloor.f32 %v2046
        %v2171 = vfloor.f32 %v2047
        %v2172 = vfloor.f32 %v2048
        %v2173 = vfloor.f32 %v2049
        %v2174 = vfloor.f32 %v2050
        %v2175 = vfloor.f32 %v2051
        %v2176 = vfloor.f32 %v2052
        %v2177 = vfloor.f32 %v2053
        %v2178 = vfloor.f32 %v2054
        %v2179 = vfloor.f32 %v2055
        %v2180 = vfloor.f32 %v2056
        %v2181 = vfloor.f32 %v2057
        %v2182 = vfloor.f32 %v2058
        %v2183 = vfloor.f32 %v2059
        %v2184 = vfloor.f32 %v2060
        %v2185 = vfloor.f32 %v2061
        %v2186 = vfloor.f32 %v2062
        %v2187 = vfloor.f32 %v2063
        %v2188 = vfloor.f32 %v2064
        %v2189 = vfloor.f32 %v2065
        %v2190 = vfloor.f32 %v2066
        %v2191 = vfloor.f32 %v2067
        %v2192 = vfloor.f32 %v2068
        %v2193 = vfloor.f32 %v2069
        %v2194 = vfloor.f32 %v2070
        %v2195 = vfloor.f32 %v2071
        %v2196 = vfloor.f32 %v2072
        %v2197 = vfloor.f32 %v2073
        %v2198 = vfloor.f32 %v2074
        %v2199 = vfloor.f32 %v2075
        %v2200 = vfloor.f32 %v2076
        %v2201 = vfloor.f32 %v2077
        %v2202 = vfloor.f32 %v2078
        %v2203 = vfloor.f32 %v2079
        %v2204 = vfloor.f32 %v2080
        %v2205 = vfloor.f32 %v2081
        %v2206 = vfloor.f32 %v2082
        %v2207 = vfloor.f32 %v2083
        %v2208 = vfloor.f32 %v2084
        %v2209 = vfloor.f32 %v2085
        %v2210 = vfloor.f32 %v2086
        %v2211 = vfloor.f32 %v2087
        %v2212 = vfloor.f32 %v2088
        %v2213 = vfloor.f32 %v2089
        %v2214 = vfloor.f32 %v2090
        %v2215 = vfloor.f32 %v2091
        %v2216 = vfloor.f32 %v2092
        %v2217 = vfloor.f32 %v2093
        %v2218 = vfloor.f32 %v2094
        %v2219 = vfloor.f32 %v2095
        %v2220 = vfloor.f32 %v2096
        %v2221 = vfloor.f32 %v2097
        %v2222 = vfloor.f32 %v2098
        %v2223 = vfloor.f32 %v2099
        %v2224 = vfloor.f32 %v2100
        %v2225 = vfloor.f32 %v2101
        %v2226 = vfloor.f32 %v2102
        %v2227 = vfloor.f32 %v2103
        %v2228 = vfloor.f32 %v2104
        %v2229 = vfloor.f32 %v2105
        %v2230 = vfloor.f32 %v2106
        %v2231 = vfloor.f32 %v2107
        %v2232 = vfloor.f32 %v2108
        %v2233 = vfloor.f32 %v2109
        %v2234 = vfloor.f32 %v2110
        %v2235 = vfloor.f32 %v2111
        %v2236 = vfloor.f32 %v2112
        %v2237 = vfloor.f32 %v2113
        %v2238 = vfloor.f32 %v2114
        %v2239 = vfloor.f32 %v2115
        %v2240 = vfloor.f32 %v2116
        %v2241 = vfloor.f32 %v2117
        %v2242 = vfloor.f32 %v2118
        %v2243 = vfloor.f32 %v2119
        %v2244 = vfloor.f32 %v2120
        %v2245 = vfloor.f32 %v2121
        %v2246 = vfloor.f32 %v2122
        %v2247 = vfloor.f32 %v2123
        %v2248 = vfloor.f32 %v2124
        %v2249 = vfloor.f32 %v2125
        %v2250 = vfloor.f32 %v2126
        %v2251 = vfloor.f32 %v2127
        %v2252 = vfloor.f32 %v2128
        %v2253 = vfloor.f32 %v2129
        %v2254 = vfloor.f32 %v2130
        %v2255 = vfloor.f32 %v2131
        %v2256 = vfloor.f32 %v2132
        %v2257 = vfloor.f32 %v2133
        %v2258 = vfloor.f32 %v2134
        %v2259 = vfloor.f32 %v2135
        %v2260 = vfloor.f32 %v2136
        %v2261 = vfloor.f32 %v2137
        %v2262 = vfloor.f32 %v2138
        %v2263 = vfloor.f32 %v2139
        %v2264 = vfloor.f32 %v2140
        %v2265 = vfloor.f32 %v2141
        %v2266 = vfloor.f32 %v2142
        %v2267 = vfloor.f32 %v2143
        %v2268 = vfloor.f32 %v2144
        %v2269 = vfloor.f32 %v2145
        %v2270 = vfloor.f32 %v2146
        %v2271 = vfloor.f32 %v2147
        %v2272 = vfloor.f32 %v2148
        %v2273 = vfloor.f32 %v2149
        %v2274 = vfloor.f32 %v2150
        %v2275 = vfloor.f32 %v2151
        %v2276 = vfloor.f32 %v2152
        %v2277 = vfloor.f32 %v2153
        %v2278 = vfloor.f32 %v2154
        %v2279 = vfloor.f32 %v2155
        %v2280 = vfloor.f32 %v2156
        %v2281 = vfloor.f32 %v2157
        %v2282 = vfloor.f32 %v2158
        %v2283 = vfloor.f32 %v2159
        %v2284 = vfloor.f32 %v2160
        %v2285 = vfloor.f32 %v2161
        %v2286 = vfloor.f32 %v2162
        %v2287 = vfloor.f32 %v2163
        %v2288 = vfloor.f32 %v2164
        %v2289 = vfloor.f32 %v2165
        %v2290 = vfloor.f32 %v2166
        %v2291 = vfloor.f32 %v2167
        %v2292 = vfloor.f32 %v2168
        %v2293 = vmul.f32 %v2169, 6.2831855
        %v2294 = vmul.f32 %v2170, 6.2831855
        %v2295 = vmul.f32 %v2171, 6.2831855
        %v2296 = vmul.f32 %v2172, 6.2831855
        %v2297 = vmul.f32 %v2173, 6.2831855
        %v2298 = vmul.f32 %v2174, 6.2831855
        %v2299 = vmul.f32 %v2175, 6.2831855
        %v2300 = vmul.f32 %v2176, 6.2831855
        %v2301 = vmul.f32 %v2177, 6.2831855
        %v2302 = vmul.f32 %v2178, 6.2831855
        %v2303 = vmul.f32 %v2179, 6.2831855
        %v2304 = vmul.f32 %v2180, 6.2831855
        %v2305 = vmul.f32 %v2181, 6.2831855
        %v2306 = vmul.f32 %v2182, 6.2831855
        %v2307 = vmul.f32 %v2183, 6.2831855
        %v2308 = vmul.f32 %v2184, 6.2831855
        %v2309 = vmul.f32 %v2185, 6.2831855
        %v2310 = vmul.f32 %v2186, 6.2831855
        %v2311 = vmul.f32 %v2187, 6.2831855
        %v2312 = vmul.f32 %v2188, 6.2831855
        %v2313 = vmul.f32 %v2189, 6.2831855
        %v2314 = vmul.f32 %v2190, 6.2831855
        %v2315 = vmul.f32 %v2191, 6.2831855
        %v2316 = vmul.f32 %v2192, 6.2831855
        %v2317 = vmul.f32 %v2193, 6.2831855
        %v2318 = vmul.f32 %v2194, 6.2831855
        %v2319 = vmul.f32 %v2195, 6.2831855
        %v2320 = vmul.f32 %v2196, 6.2831855
        %v2321 = vmul.f32 %v2197, 6.2831855
        %v2322 = vmul.f32 %v2198, 6.2831855
        %v2323 = vmul.f32 %v2199, 6.2831855
        %v2324 = vmul.f32 %v2200, 6.2831855
        %v2325 = vmul.f32 %v2201, 6.2831855
        %v2326 = vmul.f32 %v2202, 6.2831855
        %v2327 = vmul.f32 %v2203, 6.2831855
        %v2328 = vmul.f32 %v2204, 6.2831855
        %v2329 = vmul.f32 %v2205, 6.2831855
        %v2330 = vmul.f32 %v2206, 6.2831855
        %v2331 = vmul.f32 %v2207, 6.2831855
        %v2332 = vmul.f32 %v2208, 6.2831855
        %v2333 = vmul.f32 %v2209, 6.2831855
        %v2334 = vmul.f32 %v2210, 6.2831855
        %v2335 = vmul.f32 %v2211, 6.2831855
        %v2336 = vmul.f32 %v2212, 6.2831855
        %v2337 = vmul.f32 %v2213, 6.2831855
        %v2338 = vmul.f32 %v2214, 6.2831855
        %v2339 = vmul.f32 %v2215, 6.2831855
        %v2340 = vmul.f32 %v2216, 6.2831855
        %v2341 = vmul.f32 %v2217, 6.2831855
        %v2342 = vmul.f32 %v2218, 6.2831855
        %v2343 = vmul.f32 %v2219, 6.2831855
        %v2344 = vmul.f32 %v2220, 6.2831855
        %v2345 = vmul.f32 %v2221, 6.2831855
        %v2346 = vmul.f32 %v2222, 6.2831855
        %v2347 = vmul.f32 %v2223, 6.2831855
        %v2348 = vmul.f32 %v2224, 6.2831855
        %v2349 = vmul.f32 %v2225, 6.2831855
        %v2350 = vmul.f32 %v2226, 6.2831855
        %v2351 = vmul.f32 %v2227, 6.2831855
        %v2352 = vmul.f32 %v2228, 6.2831855
        %v2353 = vmul.f32 %v2229, 6.2831855
        %v2354 = vmul.f32 %v2230, 6.2831855
        %v2355 = vmul.f32 %v2231, 6.2831855
        %v2356 = vmul.f32 %v2232, 6.2831855
        %v2357 = vmul.f32 %v2233, 6.2831855
        %v2358 = vmul.f32 %v2234, 6.2831855
        %v2359 = vmul.f32 %v2235, 6.2831855
        %v2360 = vmul.f32 %v2236, 6.2831855
        %v2361 = vmul.f32 %v2237, 6.2831855
        %v2362 = vmul.f32 %v2238, 6.2831855
        %v2363 = vmul.f32 %v2239, 6.2831855
        %v2364 = vmul.f32 %v2240, 6.2831855
        %v2365 = vmul.f32 %v2241, 6.2831855
        %v2366 = vmul.f32 %v2242, 6.2831855
        %v2367 = vmul.f32 %v2243, 6.2831855
        %v2368 = vmul.f32 %v2244, 6.2831855
        %v2369 = vmul.f32 %v2245, 6.2831855
        %v2370 = vmul.f32 %v2246, 6.2831855
        %v2371 = vmul.f32 %v2247, 6.2831855
        %v2372 = vmul.f32 %v2248, 6.2831855
        %v2373 = vmul.f32 %v2249, 6.2831855
        %v2374 = vmul.f32 %v2250, 6.2831855
        %v2375 = vmul.f32 %v2251, 6.2831855
        %v2376 = vmul.f32 %v2252, 6.2831855
        %v2377 = vmul.f32 %v2253, 6.2831855
        %v2378 = vmul.f32 %v2254, 6.2831855
        %v2379 = vmul.f32 %v2255, 6.2831855
        %v2380 = vmul.f32 %v2256, 6.2831855
        %v2381 = vmul.f32 %v2257, 6.2831855
        %v2382 = vmul.f32 %v2258, 6.2831855
        %v2383 = vmul.f32 %v2259, 6.2831855
        %v2384 = vmul.f32 %v2260, 6.2831855
        %v2385 = vmul.f32 %v2261, 6.2831855
        %v2386 = vmul.f32 %v2262, 6.2831855
        %v2387 = vmul.f32 %v2263, 6.2831855
        %v2388 = vmul.f32 %v2264, 6.2831855
        %v2389 = vmul.f32 %v2265, 6.2831855
        %v2390 = vmul.f32 %v2266, 6.2831855
        %v2391 = vmul.f32 %v2267, 6.2831855
        %v2392 = vmul.f32 %v2268, 6.2831855
        %v2393 = vmul.f32 %v2269, 6.2831855
        %v2394 = vmul.f32 %v2270, 6.2831855
        %v2395 = vmul.f32 %v2271, 6.2831855
        %v2396 = vmul.f32 %v2272, 6.2831855
        %v2397 = vmul.f32 %v2273, 6.2831855
        %v2398 = vmul.f32 %v2274, 6.2831855
        %v2399 = vmul.f32 %v2275, 6.2831855
        %v2400 = vmul.f32 %v2276, 6.2831855
        %v2401 = vmul.f32 %v2277, 6.2831855
        %v2402 = vmul.f32 %v2278, 6.2831855
        %v2403 = vmul.f32 %v2279, 6.2831855
        %v2404 = vmul.f32 %v2280, 6.2831855
        %v2405 = vmul.f32 %v2281, 6.2831855
        %v2406 = vmul.f32 %v2282, 6.2831855
        %v2407 = vmul.f32 %v2283, 6.2831855
        %v2408 = vmul.f32 %v2284, 6.2831855
        %v2409 = vmul.f32 %v2285, 6.2831855
        %v2410 = vmul.f32 %v2286, 6.2831855
        %v2411 = vmul.f32 %v2287, 6.2831855
        %v2412 = vmul.f32 %v2288, 6.2831855
        %v2413 = vmul.f32 %v2289, 6.2831855
        %v2414 = vmul.f32 %v2290, 6.2831855
        %v2415 = vmul.f32 %v2291, 6.2831855
        %v2416 = vmul.f32 %v2292, 6.2831855
        %v2417 = vsub.f32 %v1040, %v2293
        %v2418 = vsub.f32 %v1069, %v2294
        %v2419 = vsub.f32 %v1098, %v2295
        %v2420 = vsub.f32 %v1127, %v2296
        %v2421 = vsub.f32 %v1156, %v2297
        %v2422 = vsub.f32 %v1185, %v2298
        %v2423 = vsub.f32 %v1214, %v2299
        %v2424 = vsub.f32 %v1243, %v2300
        %v2425 = vsub.f32 %v1272, %v2301
        %v2426 = vsub.f32 %v1301, %v2302
        %v2427 = vsub.f32 %v1330, %v2303
        %v2428 = vsub.f32 %v1359, %v2304
        %v2429 = vsub.f32 %v1388, %v2305
        %v2430 = vsub.f32 %v1417, %v2306
        %v2431 = vsub.f32 %v1446, %v2307
        %v2432 = vsub.f32 %v1475, %v2308
        %v2433 = vsub.f32 %v1504, %v2309
        %v2434 = vsub.f32 %v1533, %v2310
        %v2435 = vsub.f32 %v1562, %v2311
        %v2436 = vsub.f32 %v1591, %v2312
        %v2437 = vsub.f32 %v1620, %v2313
        %v2438 = vsub.f32 %v1649, %v2314
        %v2439 = vsub.f32 %v1678, %v2315
        %v2440 = vsub.f32 %v1707, %v2316
        %v2441 = vsub.f32 %v1736, %v2317
        %v2442 = vsub.f32 %v1765, %v2318
        %v2443 = vsub.f32 %v1794, %v2319
        %v2444 = vsub.f32 %v1823, %v2320
        %v2445 = vsub.f32 %v1852, %v2321
        %v2446 = vsub.f32 %v1881, %v2322
        %v2447 = vsub.f32 %v1910, %v2323
        %v2448 = vsub.f32 %v1043, %v2324
        %v2449 = vsub.f32 %v1072, %v2325
        %v2450 = vsub.f32 %v1101, %v2326
        %v2451 = vsub.f32 %v1130, %v2327
        %v2452 = vsub.f32 %v1159, %v2328
        %v2453 = vsub.f32 %v1188, %v2329
        %v2454 = vsub.f32 %v1217, %v2330
        %v2455 = vsub.f32 %v1246, %v2331
        %v2456 = vsub.f32 %v1275, %v2332
        %v2457 = vsub.f32 %v1304, %v2333
        %v2458 = vsub.f32 %v1333, %v2334
        %v2459 = vsub.f32 %v1362, %v2335
        %v2460 = vsub.f32 %v1391, %v2336
        %v2461 = vsub.f32 %v1420, %v2337
        %v2462 = vsub.f32 %v1449, %v2338
        %v2463 = vsub.f32 %v1478, %v2339
        %v2464 = vsub.f32 %v1507, %v2340
        %v2465 = vsub.f32 %v1536, %v2341
        %v2466 = vsub.f32 %v1565, %v2342
        %v2467 = vsub.f32 %v1594, %v2343
        %v2468 = vsub.f32 %v1623, %v2344
        %v2469 = vsub.f32 %v1652, %v2345
        %v2470 = vsub.f32 %v1681, %v2346
        %v2471 = vsub.f32 %v1710, %v2347
        %v2472 = vsub.f32 %v1739, %v2348
        %v2473 = vsub.f32 %v1768, %v2349
        %v2474 = vsub.f32 %v1797, %v2350
        %v2475 = vsub.f32 %v1826, %v2351
        %v2476 = vsub.f32 %v1855, %v2352
        %v2477 = vsub.f32 %v1884, %v2353
        %v2478 = vsub.f32 %v1913, %v2354
        %v2479 = vsub.f32 %v1046, %v2355
        %v2480 = vsub.f32 %v1075, %v2356
        %v2481 = vsub.f32 %v1104, %v2357
        %v2482 = vsub.f32 %v1133, %v2358
        %v2483 = vsub.f32 %v1162, %v2359
        %v2484 = vsub.f32 %v1191, %v2360
        %v2485 = vsub.f32 %v1220, %v2361
        %v2486 = vsub.f32 %v1249, %v2362
        %v2487 = vsub.f32 %v1278, %v2363
        %v2488 = vsub.f32 %v1307, %v2364
        %v2489 = vsub.f32 %v1336, %v2365
        %v2490 = vsub.f32 %v1365, %v2366
        %v2491 = vsub.f32 %v1394, %v2367
        %v2492 = vsub.f32 %v1423, %v2368
        %v2493 = vsub.f32 %v1452, %v2369
        %v2494 = vsub.f32 %v1481, %v2370
        %v2495 = vsub.f32 %v1510, %v2371
        %v2496 = vsub.f32 %v1539, %v2372
        %v2497 = vsub.f32 %v1568, %v2373
        %v2498 = vsub.f32 %v1597, %v2374
        %v2499 = vsub.f32 %v1626, %v2375
        %v2500 = vsub.f32 %v1655, %v2376
        %v2501 = vsub.f32 %v1684, %v2377
        %v2502 = vsub.f32 %v1713, %v2378
        %v2503 = vsub.f32 %v1742, %v2379
        %v2504 = vsub.f32 %v1771, %v2380
        %v2505 = vsub.f32 %v1800, %v2381
        %v2506 = vsub.f32 %v1829, %v2382
        %v2507 = vsub.f32 %v1858, %v2383
        %v2508 = vsub.f32 %v1887, %v2384
        %v2509 = vsub.f32 %v1916, %v2385
        %v2510 = vsub.f32 %v1049, %v2386
        %v2511 = vsub.f32 %v1078, %v2387
        %v2512 = vsub.f32 %v1107, %v2388
        %v2513 = vsub.f32 %v1136, %v2389
        %v2514 = vsub.f32 %v1165, %v2390
        %v2515 = vsub.f32 %v1194, %v2391
        %v2516 = vsub.f32 %v1223, %v2392
        %v2517 = vsub.f32 %v1252, %v2393
        %v2518 = vsub.f32 %v1281, %v2394
        %v2519 = vsub.f32 %v1310, %v2395
        %v2520 = vsub.f32 %v1339, %v2396
        %v2521 = vsub.f32 %v1368, %v2397
        %v2522 = vsub.f32 %v1397, %v2398
        %v2523 = vsub.f32 %v1426, %v2399
        %v2524 = vsub.f32 %v1455, %v2400
        %v2525 = vsub.f32 %v1484, %v2401
        %v2526 = vsub.f32 %v1513, %v2402
        %v2527 = vsub.f32 %v1542, %v2403
        %v2528 = vsub.f32 %v1571, %v2404
        %v2529 = vsub.f32 %v1600, %v2405
        %v2530 = vsub.f32 %v1629, %v2406
        %v2531 = vsub.f32 %v1658, %v2407
        %v2532 = vsub.f32 %v1687, %v2408
        %v2533 = vsub.f32 %v1716, %v2409
        %v2534 = vsub.f32 %v1745, %v2410
        %v2535 = vsub.f32 %v1774, %v2411
        %v2536 = vsub.f32 %v1803, %v2412
        %v2537 = vsub.f32 %v1832, %v2413
        %v2538 = vsub.f32 %v1861, %v2414
        %v2539 = vsub.f32 %v1890, %v2415
        %v2540 = vsub.f32 %v1919, %v2416
        %v2541 = vmul.f32 %v2417, %v2417
        %v2542 = vmul.f32 %v2418, %v2418
        %v2543 = vmul.f32 %v2419, %v2419
        %v2544 = vmul.f32 %v2420, %v2420
        %v2545 = vmul.f32 %v2421, %v2421
        %v2546 = vmul.f32 %v2422, %v2422
        %v2547 = vmul.f32 %v2423, %v2423
        %v2548 = vmul.f32 %v2424, %v2424
        %v2549 = vmul.f32 %v2425, %v2425
        %v2550 = vmul.f32 %v2426, %v2426
        %v2551 = vmul.f32 %v2427, %v2427
        %v2552 = vmul.f32 %v2428, %v2428
        %v2553 = vmul.f32 %v2429, %v2429
        %v2554 = vmul.f32 %v2430, %v2430
        %v2555 = vmul.f32 %v2431, %v2431
        %v2556 = vmul.f32 %v2432, %v2432
        %v2557 = vmul.f32 %v2433, %v2433
        %v2558 = vmul.f32 %v2434, %v2434
        %v2559 = vmul.f32 %v2435, %v2435
        %v2560 = vmul.f32 %v2436, %v2436
        %v2561 = vmul.f32 %v2437, %v2437
        %v2562 = vmul.f32 %v2438, %v2438
        %v2563 = vmul.f32 %v2439, %v2439
        %v2564 = vmul.f32 %v2440, %v2440
        %v2565 = vmul.f32 %v2441, %v2441
        %v2566 = vmul.f32 %v2442, %v2442
        %v2567 = vmul.f32 %v2443, %v2443
        %v2568 = vmul.f32 %v2444, %v2444
        %v2569 = vmul.f32 %v2445, %v2445
        %v2570 = vmul.f32 %v2446, %v2446
        %v2571 = vmul.f32 %v2447, %v2447
        %v2572 = vmul.f32 %v2448, %v2448
        %v2573 = vmul.f32 %v2449, %v2449
        %v2574 = vmul.f32 %v2450, %v2450
        %v2575 = vmul.f32 %v2451, %v2451
        %v2576 = vmul.f32 %v2452, %v2452
        %v2577 = vmul.f32 %v2453, %v2453
        %v2578 = vmul.f32 %v2454, %v2454
        %v2579 = vmul.f32 %v2455, %v2455
        %v2580 = vmul.f32 %v2456, %v2456
        %v2581 = vmul.f32 %v2457, %v2457
        %v2582 = vmul.f32 %v2458, %v2458
        %v2583 = vmul.f32 %v2459, %v2459
        %v2584 = vmul.f32 %v2460, %v2460
        %v2585 = vmul.f32 %v2461, %v2461
        %v2586 = vmul.f32 %v2462, %v2462
        %v2587 = vmul.f32 %v2463, %v2463
        %v2588 = vmul.f32 %v2464, %v2464
        %v2589 = vmul.f32 %v2465, %v2465
        %v2590 = vmul.f32 %v2466, %v2466
        %v2591 = vmul.f32 %v2467, %v2467
        %v2592 = vmul.f32 %v2468, %v2468
        %v2593 = vmul.f32 %v2469, %v2469
        %v2594 = vmul.f32 %v2470, %v2470
        %v2595 = vmul.f32 %v2471, %v2471
        %v2596 = vmul.f32 %v2472, %v2472
        %v2597 = vmul.f32 %v2473, %v2473
        %v2598 = vmul.f32 %v2474, %v2474
        %v2599 = vmul.f32 %v2475, %v2475
        %v2600 = vmul.f32 %v2476, %v2476
        %v2601 = vmul.f32 %v2477, %v2477
        %v2602 = vmul.f32 %v2478, %v2478
        %v2603 = vmul.f32 %v2479, %v2479
        %v2604 = vmul.f32 %v2480, %v2480
        %v2605 = vmul.f32 %v2481, %v2481
        %v2606 = vmul.f32 %v2482, %v2482
        %v2607 = vmul.f32 %v2483, %v2483
        %v2608 = vmul.f32 %v2484, %v2484
        %v2609 = vmul.f32 %v2485, %v2485
        %v2610 = vmul.f32 %v2486, %v2486
        %v2611 = vmul.f32 %v2487, %v2487
        %v2612 = vmul.f32 %v2488, %v2488
        %v2613 = vmul.f32 %v2489, %v2489
        %v2614 = vmul.f32 %v2490, %v2490
        %v2615 = vmul.f32 %v2491, %v2491
        %v2616 = vmul.f32 %v2492, %v2492
        %v2617 = vmul.f32 %v2493, %v2493
        %v2618 = vmul.f32 %v2494, %v2494
        %v2619 = vmul.f32 %v2495, %v2495
        %v2620 = vmul.f32 %v2496, %v2496
        %v2621 = vmul.f32 %v2497, %v2497
        %v2622 = vmul.f32 %v2498, %v2498
        %v2623 = vmul.f32 %v2499, %v2499
        %v2624 = vmul.f32 %v2500, %v2500
        %v2625 = vmul.f32 %v2501, %v2501
        %v2626 = vmul.f32 %v2502, %v2502
        %v2627 = vmul.f32 %v2503, %v2503
        %v2628 = vmul.f32 %v2504, %v2504
        %v2629 = vmul.f32 %v2505, %v2505
        %v2630 = vmul.f32 %v2506, %v2506
        %v2631 = vmul.f32 %v2507, %v2507
        %v2632 = vmul.f32 %v2508, %v2508
        %v2633 = vmul.f32 %v2509, %v2509
        %v2634 = vmul.f32 %v2510, %v2510
        %v2635 = vmul.f32 %v2511, %v2511
        %v2636 = vmul.f32 %v2512, %v2512
        %v2637 = vmul.f32 %v2513, %v2513
        %v2638 = vmul.f32 %v2514, %v2514
        %v2639 = vmul.f32 %v2515, %v2515
        %v2640 = vmul.f32 %v2516, %v2516
        %v2641 = vmul.f32 %v2517, %v2517
        %v2642 = vmul.f32 %v2518, %v2518
        %v2643 = vmul.f32 %v2519, %v2519
        %v2644 = vmul.f32 %v2520, %v2520
        %v2645 = vmul.f32 %v2521, %v2521
        %v2646 = vmul.f32 %v2522, %v2522
        %v2647 = vmul.f32 %v2523, %v2523
        %v2648 = vmul.f32 %v2524, %v2524
        %v2649 = vmul.f32 %v2525, %v2525
        %v2650 = vmul.f32 %v2526, %v2526
        %v2651 = vmul.f32 %v2527, %v2527
        %v2652 = vmul.f32 %v2528, %v2528
        %v2653 = vmul.f32 %v2529, %v2529
        %v2654 = vmul.f32 %v2530, %v2530
        %v2655 = vmul.f32 %v2531, %v2531
        %v2656 = vmul.f32 %v2532, %v2532
        %v2657 = vmul.f32 %v2533, %v2533
        %v2658 = vmul.f32 %v2534, %v2534
        %v2659 = vmul.f32 %v2535, %v2535
        %v2660 = vmul.f32 %v2536, %v2536
        %v2661 = vmul.f32 %v2537, %v2537
        %v2662 = vmul.f32 %v2538, %v2538
        %v2663 = vmul.f32 %v2539, %v2539
        %v2664 = vmul.f32 %v2540, %v2540
        %v2665 = vmul.f32 %v2541, 2.1470298e-06
        %v2666 = vmul.f32 %v2542, 2.1470298e-06
        %v2667 = vmul.f32 %v2543, 2.1470298e-06
        %v2668 = vmul.f32 %v2544, 2.1470298e-06
        %v2669 = vmul.f32 %v2545, 2.1470298e-06
        %v2670 = vmul.f32 %v2546, 2.1470298e-06
        %v2671 = vmul.f32 %v2547, 2.1470298e-06
        %v2672 = vmul.f32 %v2548, 2.1470298e-06
        %v2673 = vmul.f32 %v2549, 2.1470298e-06
        %v2674 = vmul.f32 %v2550, 2.1470298e-06
        %v2675 = vmul.f32 %v2551, 2.1470298e-06
        %v2676 = vmul.f32 %v2552, 2.1470298e-06
        %v2677 = vmul.f32 %v2553, 2.1470298e-06
        %v2678 = vmul.f32 %v2554, 2.1470298e-06
        %v2679 = vmul.f32 %v2555, 2.1470298e-06
        %v2680 = vmul.f32 %v2556, 2.1470298e-06
        %v2681 = vmul.f32 %v2557, 2.1470298e-06
        %v2682 = vmul.f32 %v2558, 2.1470298e-06
        %v2683 = vmul.f32 %v2559, 2.1470298e-06
        %v2684 = vmul.f32 %v2560, 2.1470298e-06
        %v2685 = vmul.f32 %v2561, 2.1470298e-06
        %v2686 = vmul.f32 %v2562, 2.1470298e-06
        %v2687 = vmul.f32 %v2563, 2.1470298e-06
        %v2688 = vmul.f32 %v2564, 2.1470298e-06
        %v2689 = vmul.f32 %v2565, 2.1470298e-06
        %v2690 = vmul.f32 %v2566, 2.1470298e-06
        %v2691 = vmul.f32 %v2567, 2.1470298e-06
        %v2692 = vmul.f32 %v2568, 2.1470298e-06
        %v2693 = vmul.f32 %v2569, 2.1470298e-06
        %v2694 = vmul.f32 %v2570, 2.1470298e-06
        %v2695 = vmul.f32 %v2571, 2.1470298e-06
        %v2696 = vmul.f32 %v2572, 2.1470298e-06
        %v2697 = vmul.f32 %v2573, 2.1470298e-06
        %v2698 = vmul.f32 %v2574, 2.1470298e-06
        %v2699 = vmul.f32 %v2575, 2.1470298e-06
        %v2700 = vmul.f32 %v2576, 2.1470298e-06
        %v2701 = vmul.f32 %v2577, 2.1470298e-06
        %v2702 = vmul.f32 %v2578, 2.1470298e-06
        %v2703 = vmul.f32 %v2579, 2.1470298e-06
        %v2704 = vmul.f32 %v2580, 2.1470298e-06
        %v2705 = vmul.f32 %v2581, 2.1470298e-06
        %v2706 = vmul.f32 %v2582, 2.1470298e-06
        %v2707 = vmul.f32 %v2583, 2.1470298e-06
        %v2708 = vmul.f32 %v2584, 2.1470298e-06
        %v2709 = vmul.f32 %v2585, 2.1470298e-06
        %v2710 = vmul.f32 %v2586, 2.1470298e-06
        %v2711 = vmul.f32 %v2587, 2.1470298e-06
        %v2712 = vmul.f32 %v2588, 2.1470298e-06
        %v2713 = vmul.f32 %v2589, 2.1470298e-06
        %v2714 = vmul.f32 %v2590, 2.1470298e-06
        %v2715 = vmul.f32 %v2591, 2.1470298e-06
        %v2716 = vmul.f32 %v2592, 2.1470298e-06
        %v2717 = vmul.f32 %v2593, 2.1470298e-06
        %v2718 = vmul.f32 %v2594, 2.1470298e-06
        %v2719 = vmul.f32 %v2595, 2.1470298e-06
        %v2720 = vmul.f32 %v2596, 2.1470298e-06
        %v2721 = vmul.f32 %v2597, 2.1470298e-06
        %v2722 = vmul.f32 %v2598, 2.1470298e-06
        %v2723 = vmul.f32 %v2599, 2.1470298e-06
        %v2724 = vmul.f32 %v2600, 2.1470298e-06
        %v2725 = vmul.f32 %v2601, 2.1470298e-06
        %v2726 = vmul.f32 %v2602, 2.1470298e-06
        %v2727 = vmul.f32 %v2603, 2.1470298e-06
        %v2728 = vmul.f32 %v2604, 2.1470298e-06
        %v2729 = vmul.f32 %v2605, 2.1470298e-06
        %v2730 = vmul.f32 %v2606, 2.1470298e-06
        %v2731 = vmul.f32 %v2607, 2.1470298e-06
        %v2732 = vmul.f32 %v2608, 2.1470298e-06
        %v2733 = vmul.f32 %v2609, 2.1470298e-06
        %v2734 = vmul.f32 %v2610, 2.1470298e-06
        %v2735 = vmul.f32 %v2611, 2.1470298e-06
        %v2736 = vmul.f32 %v2612, 2.1470298e-06
        %v2737 = vmul.f32 %v2613, 2.1470298e-06
        %v2738 = vmul.f32 %v2614, 2.1470298e-06
        %v2739 = vmul.f32 %v2615, 2.1470298e-06
        %v2740 = vmul.f32 %v2616, 2.1470298e-06
        %v2741 = vmul.f32 %v2617, 2.1470298e-06
        %v2742 = vmul.f32 %v2618, 2.1470298e-06
        %v2743 = vmul.f32 %v2619, 2.1470298e-06
        %v2744 = vmul.f32 %v2620, 2.1470298e-06
        %v2745 = vmul.f32 %v2621, 2.1470298e-06
        %v2746 = vmul.f32 %v2622, 2.1470298e-06
        %v2747 = vmul.f32 %v2623, 2.1470298e-06
        %v2748 = vmul.f32 %v2624, 2.1470298e-06
        %v2749 = vmul.f32 %v2625, 2.1470298e-06
        %v2750 = vmul.f32 %v2626, 2.1470298e-06
        %v2751 = vmul.f32 %v2627, 2.1470298e-06
        %v2752 = vmul.f32 %v2628, 2.1470298e-06
        %v2753 = vmul.f32 %v2629, 2.1470298e-06
        %v2754 = vmul.f32 %v2630, 2.1470298e-06
        %v2755 = vmul.f32 %v2631, 2.1470298e-06
        %v2756 = vmul.f32 %v2632, 2.1470298e-06
        %v2757 = vmul.f32 %v2633, 2.1470298e-06
        %v2758 = vmul.f32 %v2634, 2.1470298e-06
        %v2759 = vmul.f32 %v2635, 2.1470298e-06
        %v2760 = vmul.f32 %v2636, 2.1470298e-06
        %v2761 = vmul.f32 %v2637, 2.1470298e-06
        %v2762 = vmul.f32 %v2638, 2.1470298e-06
        %v2763 = vmul.f32 %v2639, 2.1470298e-06
        %v2764 = vmul.f32 %v2640, 2.1470298e-06
        %v2765 = vmul.f32 %v2641, 2.1470298e-06
        %v2766 = vmul.f32 %v2642, 2.1470298e-06
        %v2767 = vmul.f32 %v2643, 2.1470298e-06
        %v2768 = vmul.f32 %v2644, 2.1470298e-06
        %v2769 = vmul.f32 %v2645, 2.1470298e-06
        %v2770 = vmul.f32 %v2646, 2.1470298e-06
        %v2771 = vmul.f32 %v2647, 2.1470298e-06
        %v2772 = vmul.f32 %v2648, 2.1470298e-06
        %v2773 = vmul.f32 %v2649, 2.1470298e-06
        %v2774 = vmul.f32 %v2650, 2.1470298e-06
        %v2775 = vmul.f32 %v2651, 2.1470298e-06
        %v2776 = vmul.f32 %v2652, 2.1470298e-06
        %v2777 = vmul.f32 %v2653, 2.1470298e-06
        %v2778 = vmul.f32 %v2654, 2.1470298e-06
        %v2779 = vmul.f32 %v2655, 2.1470298e-06
        %v2780 = vmul.f32 %v2656, 2.1470298e-06
        %v2781 = vmul.f32 %v2657, 2.1470298e-06
        %v2782 = vmul.f32 %v2658, 2.1470298e-06
        %v2783 = vmul.f32 %v2659, 2.1470298e-06
        %v2784 = vmul.f32 %v2660, 2.1470298e-06
        %v2785 = vmul.f32 %v2661, 2.1470298e-06
        %v2786 = vmul.f32 %v2662, 2.1470298e-06
        %v2787 = vmul.f32 %v2663, 2.1470298e-06
        %v2788 = vmul.f32 %v2664, 2.1470298e-06
        %v2789 = vadd.f32 %v2665, -0.00019263131
        %v2790 = vadd.f32 %v2666, -0.00019263131
        %v2791 = vadd.f32 %v2667, -0.00019263131
        %v2792 = vadd.f32 %v2668, -0.00019263131
        %v2793 = vadd.f32 %v2669, -0.00019263131
        %v2794 = vadd.f32 %v2670, -0.00019263131
        %v2795 = vadd.f32 %v2671, -0.00019263131
        %v2796 = vadd.f32 %v2672, -0.00019263131
        %v2797 = vadd.f32 %v2673, -0.00019263131
        %v2798 = vadd.f32 %v2674, -0.00019263131
        %v2799 = vadd.f32 %v2675, -0.00019263131
        %v2800 = vadd.f32 %v2676, -0.00019263131
        %v2801 = vadd.f32 %v2677, -0.00019263131
        %v2802 = vadd.f32 %v2678, -0.00019263131
        %v2803 = vadd.f32 %v2679, -0.00019263131
        %v2804 = vadd.f32 %v2680, -0.00019263131
        %v2805 = vadd.f32 %v2681, -0.00019263131
        %v2806 = vadd.f32 %v2682, -0.00019263131
        %v2807 = vadd.f32 %v2683, -0.00019263131
        %v2808 = vadd.f32 %v2684, -0.00019263131
        %v2809 = vadd.f32 %v2685, -0.00019263131
        %v2810 = vadd.f32 %v2686, -0.00019263131
        %v2811 = vadd.f32 %v2687, -0.00019263131
        %v2812 = vadd.f32 %v2688, -0.00019263131
        %v2813 = vadd.f32 %v2689, -0.00019263131
        %v2814 = vadd.f32 %v2690, -0.00019263131
        %v2815 = vadd.f32 %v2691, -0.00019263131
        %v2816 = vadd.f32 %v2692, -0.00019263131
        %v2817 = vadd.f32 %v2693, -0.00019263131
        %v2818 = vadd.f32 %v2694, -0.00019263131
        %v2819 = vadd.f32 %v2695, -0.00019263131
        %v2820 = vadd.f32 %v2696, -0.00019263131
        %v2821 = vadd.f32 %v2697, -0.00019263131
        %v2822 = vadd.f32 %v2698, -0.00019263131
        %v2823 = vadd.f32 %v2699, -0.00019263131
        %v2824 = vadd.f32 %v2700, -0.00019263131
        %v2825 = vadd.f32 %v2701, -0.00019263131
        %v2826 = vadd.f32 %v2702, -0.00019263131
        %v2827 = vadd.f32 %v2703, -0.00019263131
        %v2828 = vadd.f32 %v2704, -0.00019263131
        %v2829 = vadd.f32 %v2705, -0.00019263131
        %v2830 = vadd.f32 %v2706, -0.00019263131
        %v2831 = vadd.f32 %v2707, -0.00019263131
        %v2832 = vadd.f32 %v2708, -0.00019263131
        %v2833 = vadd.f32 %v2709, -0.00019263131
        %v2834 = vadd.f32 %v2710, -0.00019263131
        %v2835 = vadd.f32 %v2711, -0.00019263131
        %v2836 = vadd.f32 %v2712, -0.00019263131
        %v2837 = vadd.f32 %v2713, -0.00019263131
        %v2838 = vadd.f32 %v2714, -0.00019263131
        %v2839 = vadd.f32 %v2715, -0.00019263131
        %v2840 = vadd.f32 %v2716, -0.00019263131
        %v2841 = vadd.f32 %v2717, -0.00019263131
        %v2842 = vadd.f32 %v2718, -0.00019263131
        %v2843 = vadd.f32 %v2719, -0.00019263131
        %v2844 = vadd.f32 %v2720, -0.00019263131
        %v2845 = vadd.f32 %v2721, -0.00019263131
        %v2846 = vadd.f32 %v2722, -0.00019263131
        %v2847 = vadd.f32 %v2723, -0.00019263131
        %v2848 = vadd.f32 %v2724, -0.00019263131
        %v2849 = vadd.f32 %v2725, -0.00019263131
        %v2850 = vadd.f32 %v2726, -0.00019263131
        %v2851 = vadd.f32 %v2727, -0.00019263131
        %v2852 = vadd.f32 %v2728, -0.00019263131
        %v2853 = vadd.f32 %v2729, -0.00019263131
        %v2854 = vadd.f32 %v2730, -0.00019263131
        %v2855 = vadd.f32 %v2731, -0.00019263131
        %v2856 = vadd.f32 %v2732, -0.00019263131
        %v2857 = vadd.f32 %v2733, -0.00019263131
        %v2858 = vadd.f32 %v2734, -0.00019263131
        %v2859 = vadd.f32 %v2735, -0.00019263131
        %v2860 = vadd.f32 %v2736, -0.00019263131
        %v2861 = vadd.f32 %v2737, -0.00019263131
        %v2862 = vadd.f32 %v2738, -0.00019263131
        %v2863 = vadd.f32 %v2739, -0.00019263131
        %v2864 = vadd.f32 %v2740, -0.00019263131
        %v2865 = vadd.f32 %v2741, -0.00019263131
        %v2866 = vadd.f32 %v2742, -0.00019263131
        %v2867 = vadd.f32 %v2743, -0.00019263131
        %v2868 = vadd.f32 %v2744, -0.00019263131
        %v2869 = vadd.f32 %v2745, -0.00019263131
        %v2870 = vadd.f32 %v2746, -0.00019263131
        %v2871 = vadd.f32 %v2747, -0.00019263131
        %v2872 = vadd.f32 %v2748, -0.00019263131
        %v2873 = vadd.f32 %v2749, -0.00019263131
        %v2874 = vadd.f32 %v2750, -0.00019263131
        %v2875 = vadd.f32 %v2751, -0.00019263131
        %v2876 = vadd.f32 %v2752, -0.00019263131
        %v2877 = vadd.f32 %v2753, -0.00019263131
        %v2878 = vadd.f32 %v2754, -0.00019263131
        %v2879 = vadd.f32 %v2755, -0.00019263131
        %v2880 = vadd.f32 %v2756, -0.00019263131
        %v2881 = vadd.f32 %v2757, -0.00019263131
        %v2882 = vadd.f32 %v2758, -0.00019263131
        %v2883 = vadd.f32 %v2759, -0.00019263131
        %v2884 = vadd.f32 %v2760, -0.00019263131
        %v2885 = vadd.f32 %v2761, -0.00019263131
        %v2886 = vadd.f32 %v2762, -0.00019263131
        %v2887 = vadd.f32 %v2763, -0.00019263131
        %v2888 = vadd.f32 %v2764, -0.00019263131
        %v2889 = vadd.f32 %v2765, -0.00019263131
        %v2890 = vadd.f32 %v2766, -0.00019263131
        %v2891 = vadd.f32 %v2767, -0.00019263131
        %v2892 = vadd.f32 %v2768, -0.00019263131
        %v2893 = vadd.f32 %v2769, -0.00019263131
        %v2894 = vadd.f32 %v2770, -0.00019263131
        %v2895 = vadd.f32 %v2771, -0.00019263131
        %v2896 = vadd.f32 %v2772, -0.00019263131
        %v2897 = vadd.f32 %v2773, -0.00019263131
        %v2898 = vadd.f32 %v2774, -0.00019263131
        %v2899 = vadd.f32 %v2775, -0.00019263131
        %v2900 = vadd.f32 %v2776, -0.00019263131
        %v2901 = vadd.f32 %v2777, -0.00019263131
        %v2902 = vadd.f32 %v2778, -0.00019263131
        %v2903 = vadd.f32 %v2779, -0.00019263131
        %v2904 = vadd.f32 %v2780, -0.00019263131
        %v2905 = vadd.f32 %v2781, -0.00019263131
        %v2906 = vadd.f32 %v2782, -0.00019263131
        %v2907 = vadd.f32 %v2783, -0.00019263131
        %v2908 = vadd.f32 %v2784, -0.00019263131
        %v2909 = vadd.f32 %v2785, -0.00019263131
        %v2910 = vadd.f32 %v2786, -0.00019263131
        %v2911 = vadd.f32 %v2787, -0.00019263131
        %v2912 = vadd.f32 %v2788, -0.00019263131
        %v2913 = vmul.f32 %v2789, %v2541
        %v2914 = vmul.f32 %v2790, %v2542
        %v2915 = vmul.f32 %v2791, %v2543
        %v2916 = vmul.f32 %v2792, %v2544
        %v2917 = vmul.f32 %v2793, %v2545
        %v2918 = vmul.f32 %v2794, %v2546
        %v2919 = vmul.f32 %v2795, %v2547
        %v2920 = vmul.f32 %v2796, %v2548
        %v2921 = vmul.f32 %v2797, %v2549
        %v2922 = vmul.f32 %v2798, %v2550
        %v2923 = vmul.f32 %v2799, %v2551
        %v2924 = vmul.f32 %v2800, %v2552
        %v2925 = vmul.f32 %v2801, %v2553
        %v2926 = vmul.f32 %v2802, %v2554
        %v2927 = vmul.f32 %v2803, %v2555
        %v2928 = vmul.f32 %v2804, %v2556
        %v2929 = vmul.f32 %v2805, %v2557
        %v2930 = vmul.f32 %v2806, %v2558
        %v2931 = vmul.f32 %v2807, %v2559
        %v2932 = vmul.f32 %v2808, %v2560
        %v2933 = vmul.f32 %v2809, %v2561
        %v2934 = vmul.f32 %v2810, %v2562
        %v2935 = vmul.f32 %v2811, %v2563
        %v2936 = vmul.f32 %v2812, %v2564
        %v2937 = vmul.f32 %v2813, %v2565
        %v2938 = vmul.f32 %v2814, %v2566
        %v2939 = vmul.f32 %v2815, %v2567
        %v2940 = vmul.f32 %v2816, %v2568
        %v2941 = vmul.f32 %v2817, %v2569
        %v2942 = vmul.f32 %v2818, %v2570
        %v2943 = vmul.f32 %v2819, %v2571
        %v2944 = vmul.f32 %v2820, %v2572
        %v2945 = vmul.f32 %v2821, %v2573
        %v2946 = vmul.f32 %v2822, %v2574
        %v2947 = vmul.f32 %v2823, %v2575
        %v2948 = vmul.f32 %v2824, %v2576
        %v2949 = vmul.f32 %v2825, %v2577
        %v2950 = vmul.f32 %v2826, %v2578
        %v2951 = vmul.f32 %v2827, %v2579
        %v2952 = vmul.f32 %v2828, %v2580
        %v2953 = vmul.f32 %v2829, %v2581
        %v2954 = vmul.f32 %v2830, %v2582
        %v2955 = vmul.f32 %v2831, %v2583
        %v2956 = vmul.f32 %v2832, %v2584
        %v2957 = vmul.f32 %v2833, %v2585
        %v2958 = vmul.f32 %v2834, %v2586
        %v2959 = vmul.f32 %v2835, %v2587
        %v2960 = vmul.f32 %v2836, %v2588
        %v2961 = vmul.f32 %v2837, %v2589
        %v2962 = vmul.f32 %v2838, %v2590
        %v2963 = vmul.f32 %v2839, %v2591
        %v2964 = vmul.f32 %v2840, %v2592
        %v2965 = vmul.f32 %v2841, %v2593
        %v2966 = vmul.f32 %v2842, %v2594
        %v2967 = vmul.f32 %v2843, %v2595
        %v2968 = vmul.f32 %v2844, %v2596
        %v2969 = vmul.f32 %v2845, %v2597
        %v2970 = vmul.f32 %v2846, %v2598
        %v2971 = vmul.f32 %v2847, %v2599
        %v2972 = vmul.f32 %v2848, %v2600
        %v2973 = vmul.f32 %v2849, %v2601
        %v2974 = vmul.f32 %v2850, %v2602
        %v2975 = vmul.f32 %v2851, %v2603
        %v2976 = vmul.f32 %v2852, %v2604
        %v2977 = vmul.f32 %v2853, %v2605
        %v2978 = vmul.f32 %v2854, %v2606
        %v2979 = vmul.f32 %v2855, %v2607
        %v2980 = vmul.f32 %v2856, %v2608
        %v2981 = vmul.f32 %v2857, %v2609
        %v2982 = vmul.f32 %v2858, %v2610
        %v2983 = vmul.f32 %v2859, %v2611
        %v2984 = vmul.f32 %v2860, %v2612
        %v2985 = vmul.f32 %v2861, %v2613
        %v2986 = vmul.f32 %v2862, %v2614
        %v2987 = vmul.f32 %v2863, %v2615
        %v2988 = vmul.f32 %v2864, %v2616
        %v2989 = vmul.f32 %v2865, %v2617
        %v2990 = vmul.f32 %v2866, %v2618
        %v2991 = vmul.f32 %v2867, %v2619
        %v2992 = vmul.f32 %v2868, %v2620
        %v2993 = vmul.f32 %v2869, %v2621
        %v2994 = vmul.f32 %v2870, %v2622
        %v2995 = vmul.f32 %v2871, %v2623
        %v2996 = vmul.f32 %v2872, %v2624
        %v2997 = vmul.f32 %v2873, %v2625
        %v2998 = vmul.f32 %v2874, %v2626
        %v2999 = vmul.f32 %v2875, %v2627
        %v3000 = vmul.f32 %v2876, %v2628
        %v3001 = vmul.f32 %v2877, %v2629
        %v3002 = vmul.f32 %v2878, %v2630
        %v3003 = vmul.f32 %v2879, %v2631
        %v3004 = vmul.f32 %v2880, %v2632
        %v3005 = vmul.f32 %v2881, %v2633
        %v3006 = vmul.f32 %v2882, %v2634
        %v3007 = vmul.f32 %v2883, %v2635
        %v3008 = vmul.f32 %v2884, %v2636
        %v3009 = vmul.f32 %v2885, %v2637
        %v3010 = vmul.f32 %v2886, %v2638
        %v3011 = vmul.f32 %v2887, %v2639
        %v3012 = vmul.f32 %v2888, %v2640
        %v3013 = vmul.f32 %v2889, %v2641
        %v3014 = vmul.f32 %v2890, %v2642
        %v3015 = vmul.f32 %v2891, %v2643
        %v3016 = vmul.f32 %v2892, %v2644
        %v3017 = vmul.f32 %v2893, %v2645
        %v3018 = vmul.f32 %v2894, %v2646
        %v3019 = vmul.f32 %v2895, %v2647
        %v3020 = vmul.f32 %v2896, %v2648
        %v3021 = vmul.f32 %v2897, %v2649
        %v3022 = vmul.f32 %v2898, %v2650
        %v3023 = vmul.f32 %v2899, %v2651
        %v3024 = vmul.f32 %v2900, %v2652
        %v3025 = vmul.f32 %v2901, %v2653
        %v3026 = vmul.f32 %v2902, %v2654
        %v3027 = vmul.f32 %v2903, %v2655
        %v3028 = vmul.f32 %v2904, %v2656
        %v3029 = vmul.f32 %v2905, %v2657
        %v3030 = vmul.f32 %v2906, %v2658
        %v3031 = vmul.f32 %v2907, %v2659
        %v3032 = vmul.f32 %v2908, %v2660
        %v3033 = vmul.f32 %v2909, %v2661
        %v3034 = vmul.f32 %v2910, %v2662
        %v3035 = vmul.f32 %v2911, %v2663
        %v3036 = vmul.f32 %v2912, %v2664
        %v3037 = vadd.f32 %v2913, 0.008308847
        %v3038 = vadd.f32 %v2914, 0.008308847
        %v3039 = vadd.f32 %v2915, 0.008308847
        %v3040 = vadd.f32 %v2916, 0.008308847
        %v3041 = vadd.f32 %v2917, 0.008308847
        %v3042 = vadd.f32 %v2918, 0.008308847
        %v3043 = vadd.f32 %v2919, 0.008308847
        %v3044 = vadd.f32 %v2920, 0.008308847
        %v3045 = vadd.f32 %v2921, 0.008308847
        %v3046 = vadd.f32 %v2922, 0.008308847
        %v3047 = vadd.f32 %v2923, 0.008308847
        %v3048 = vadd.f32 %v2924, 0.008308847
        %v3049 = vadd.f32 %v2925, 0.008308847
        %v3050 = vadd.f32 %v2926, 0.008308847
        %v3051 = vadd.f32 %v2927, 0.008308847
        %v3052 = vadd.f32 %v2928, 0.008308847
        %v3053 = vadd.f32 %v2929, 0.008308847
        %v3054 = vadd.f32 %v2930, 0.008308847
        %v3055 = vadd.f32 %v2931, 0.008308847
        %v3056 = vadd.f32 %v2932, 0.008308847
        %v3057 = vadd.f32 %v2933, 0.008308847
        %v3058 = vadd.f32 %v2934, 0.008308847
        %v3059 = vadd.f32 %v2935, 0.008308847
        %v3060 = vadd.f32 %v2936, 0.008308847
        %v3061 = vadd.f32 %v2937, 0.008308847
        %v3062 = vadd.f32 %v2938, 0.008308847
        %v3063 = vadd.f32 %v2939, 0.008308847
        %v3064 = vadd.f32 %v2940, 0.008308847
        %v3065 = vadd.f32 %v2941, 0.008308847
        %v3066 = vadd.f32 %v2942, 0.008308847
        %v3067 = vadd.f32 %v2943, 0.008308847
        %v3068 = vadd.f32 %v2944, 0.008308847
        %v3069 = vadd.f32 %v2945, 0.008308847
        %v3070 = vadd.f32 %v2946, 0.008308847
        %v3071 = vadd.f32 %v2947, 0.008308847
        %v3072 = vadd.f32 %v2948, 0.008308847
        %v3073 = vadd.f32 %v2949, 0.008308847
        %v3074 = vadd.f32 %v2950, 0.008308847
        %v3075 = vadd.f32 %v2951, 0.008308847
        %v3076 = vadd.f32 %v2952, 0.008308847
        %v3077 = vadd.f32 %v2953, 0.008308847
        %v3078 = vadd.f32 %v2954, 0.008308847
        %v3079 = vadd.f32 %v2955, 0.008308847
        %v3080 = vadd.f32 %v2956, 0.008308847
        %v3081 = vadd.f32 %v2957, 0.008308847
        %v3082 = vadd.f32 %v2958, 0.008308847
        %v3083 = vadd.f32 %v2959, 0.008308847
        %v3084 = vadd.f32 %v2960, 0.008308847
        %v3085 = vadd.f32 %v2961, 0.008308847
        %v3086 = vadd.f32 %v2962, 0.008308847
        %v3087 = vadd.f32 %v2963, 0.008308847
        %v3088 = vadd.f32 %v2964, 0.008308847
        %v3089 = vadd.f32 %v2965, 0.008308847
        %v3090 = vadd.f32 %v2966, 0.008308847
        %v3091 = vadd.f32 %v2967, 0.008308847
        %v3092 = vadd.f32 %v2968, 0.008308847
        %v3093 = vadd.f32 %v2969, 0.008308847
        %v3094 = vadd.f32 %v2970, 0.008308847
        %v3095 = vadd.f32 %v2971, 0.008308847
        %v3096 = vadd.f32 %v2972, 0.008308847
        %v3097 = vadd.f32 %v2973, 0.008308847
        %v3098 = vadd.f32 %v2974, 0.008308847
        %v3099 = vadd.f32 %v2975, 0.008308847
        %v3100 = vadd.f32 %v2976, 0.008308847
        %v3101 = vadd.f32 %v2977, 0.008308847
        %v3102 = vadd.f32 %v2978, 0.008308847
        %v3103 = vadd.f32 %v2979, 0.008308847
        %v3104 = vadd.f32 %v2980, 0.008308847
        %v3105 = vadd.f32 %v2981, 0.008308847
        %v3106 = vadd.f32 %v2982, 0.008308847
        %v3107 = vadd.f32 %v2983, 0.008308847
        %v3108 = vadd.f32 %v2984, 0.008308847
        %v3109 = vadd.f32 %v2985, 0.008308847
        %v3110 = vadd.f32 %v2986, 0.008308847
        %v3111 = vadd.f32 %v2987, 0.008308847
        %v3112 = vadd.f32 %v2988, 0.008308847
        %v3113 = vadd.f32 %v2989, 0.008308847
        %v3114 = vadd.f32 %v2990, 0.008308847
        %v3115 = vadd.f32 %v2991, 0.008308847
        %v3116 = vadd.f32 %v2992, 0.008308847
        %v3117 = vadd.f32 %v2993, 0.008308847
        %v3118 = vadd.f32 %v2994, 0.008308847
        %v3119 = vadd.f32 %v2995, 0.008308847
        %v3120 = vadd.f32 %v2996, 0.008308847
        %v3121 = vadd.f32 %v2997, 0.008308847
        %v3122 = vadd.f32 %v2998, 0.008308847
        %v3123 = vadd.f32 %v2999, 0.008308847
        %v3124 = vadd.f32 %v3000, 0.008308847
        %v3125 = vadd.f32 %v3001, 0.008308847
        %v3126 = vadd.f32 %v3002, 0.008308847
        %v3127 = vadd.f32 %v3003, 0.008308847
        %v3128 = vadd.f32 %v3004, 0.008308847
        %v3129 = vadd.f32 %v3005, 0.008308847
        %v3130 = vadd.f32 %v3006, 0.008308847
        %v3131 = vadd.f32 %v3007, 0.008308847
        %v3132 = vadd.f32 %v3008, 0.008308847
        %v3133 = vadd.f32 %v3009, 0.008308847
        %v3134 = vadd.f32 %v3010, 0.008308847
        %v3135 = vadd.f32 %v3011, 0.008308847
        %v3136 = vadd.f32 %v3012, 0.008308847
        %v3137 = vadd.f32 %v3013, 0.008308847
        %v3138 = vadd.f32 %v3014, 0.008308847
        %v3139 = vadd.f32 %v3015, 0.008308847
        %v3140 = vadd.f32 %v3016, 0.008308847
        %v3141 = vadd.f32 %v3017, 0.008308847
        %v3142 = vadd.f32 %v3018, 0.008308847
        %v3143 = vadd.f32 %v3019, 0.008308847
        %v3144 = vadd.f32 %v3020, 0.008308847
        %v3145 = vadd.f32 %v3021, 0.008308847
        %v3146 = vadd.f32 %v3022, 0.008308847
        %v3147 = vadd.f32 %v3023, 0.008308847
        %v3148 = vadd.f32 %v3024, 0.008308847
        %v3149 = vadd.f32 %v3025, 0.008308847
        %v3150 = vadd.f32 %v3026, 0.008308847
        %v3151 = vadd.f32 %v3027, 0.008308847
        %v3152 = vadd.f32 %v3028, 0.008308847
        %v3153 = vadd.f32 %v3029, 0.008308847
        %v3154 = vadd.f32 %v3030, 0.008308847
        %v3155 = vadd.f32 %v3031, 0.008308847
        %v3156 = vadd.f32 %v3032, 0.008308847
        %v3157 = vadd.f32 %v3033, 0.008308847
        %v3158 = vadd.f32 %v3034, 0.008308847
        %v3159 = vadd.f32 %v3035, 0.008308847
        %v3160 = vadd.f32 %v3036, 0.008308847
        %v3161 = vmul.f32 %v3037, %v2541
        %v3162 = vmul.f32 %v3038, %v2542
        %v3163 = vmul.f32 %v3039, %v2543
        %v3164 = vmul.f32 %v3040, %v2544
        %v3165 = vmul.f32 %v3041, %v2545
        %v3166 = vmul.f32 %v3042, %v2546
        %v3167 = vmul.f32 %v3043, %v2547
        %v3168 = vmul.f32 %v3044, %v2548
        %v3169 = vmul.f32 %v3045, %v2549
        %v3170 = vmul.f32 %v3046, %v2550
        %v3171 = vmul.f32 %v3047, %v2551
        %v3172 = vmul.f32 %v3048, %v2552
        %v3173 = vmul.f32 %v3049, %v2553
        %v3174 = vmul.f32 %v3050, %v2554
        %v3175 = vmul.f32 %v3051, %v2555
        %v3176 = vmul.f32 %v3052, %v2556
        %v3177 = vmul.f32 %v3053, %v2557
        %v3178 = vmul.f32 %v3054, %v2558
        %v3179 = vmul.f32 %v3055, %v2559
        %v3180 = vmul.f32 %v3056, %v2560
        %v3181 = vmul.f32 %v3057, %v2561
        %v3182 = vmul.f32 %v3058, %v2562
        %v3183 = vmul.f32 %v3059, %v2563
        %v3184 = vmul.f32 %v3060, %v2564
        %v3185 = vmul.f32 %v3061, %v2565
        %v3186 = vmul.f32 %v3062, %v2566
        %v3187 = vmul.f32 %v3063, %v2567
        %v3188 = vmul.f32 %v3064, %v2568
        %v3189 = vmul.f32 %v3065, %v2569
        %v3190 = vmul.f32 %v3066, %v2570
        %v3191 = vmul.f32 %v3067, %v2571
        %v3192 = vmul.f32 %v3068, %v2572
        %v3193 = vmul.f32 %v3069, %v2573
        %v3194 = vmul.f32 %v3070, %v2574
        %v3195 = vmul.f32 %v3071, %v2575
        %v3196 = vmul.f32 %v3072, %v2576
        %v3197 = vmul.f32 %v3073, %v2577
        %v3198 = vmul.f32 %v3074, %v2578
        %v3199 = vmul.f32 %v3075, %v2579
        %v3200 = vmul.f32 %v3076, %v2580
        %v3201 = vmul.f32 %v3077, %v2581
        %v3202 = vmul.f32 %v3078, %v2582
        %v3203 = vmul.f32 %v3079, %v2583
        %v3204 = vmul.f32 %v3080, %v2584
        %v3205 = vmul.f32 %v3081, %v2585
        %v3206 = vmul.f32 %v3082, %v2586
        %v3207 = vmul.f32 %v3083, %v2587
        %v3208 = vmul.f32 %v3084, %v2588
        %v3209 = vmul.f32 %v3085, %v2589
        %v3210 = vmul.f32 %v3086, %v2590
        %v3211 = vmul.f32 %v3087, %v2591
        %v3212 = vmul.f32 %v3088, %v2592
        %v3213 = vmul.f32 %v3089, %v2593
        %v3214 = vmul.f32 %v3090, %v2594
        %v3215 = vmul.f32 %v3091, %v2595
        %v3216 = vmul.f32 %v3092, %v2596
        %v3217 = vmul.f32 %v3093, %v2597
        %v3218 = vmul.f32 %v3094, %v2598
        %v3219 = vmul.f32 %v3095, %v2599
        %v3220 = vmul.f32 %v3096, %v2600
        %v3221 = vmul.f32 %v3097, %v2601
        %v3222 = vmul.f32 %v3098, %v2602
        %v3223 = vmul.f32 %v3099, %v2603
        %v3224 = vmul.f32 %v3100, %v2604
        %v3225 = vmul.f32 %v3101, %v2605
        %v3226 = vmul.f32 %v3102, %v2606
        %v3227 = vmul.f32 %v3103, %v2607
        %v3228 = vmul.f32 %v3104, %v2608
        %v3229 = vmul.f32 %v3105, %v2609
        %v3230 = vmul.f32 %v3106, %v2610
        %v3231 = vmul.f32 %v3107, %v2611
        %v3232 = vmul.f32 %v3108, %v2612
        %v3233 = vmul.f32 %v3109, %v2613
        %v3234 = vmul.f32 %v3110, %v2614
        %v3235 = vmul.f32 %v3111, %v2615
        %v3236 = vmul.f32 %v3112, %v2616
        %v3237 = vmul.f32 %v3113, %v2617
        %v3238 = vmul.f32 %v3114, %v2618
        %v3239 = vmul.f32 %v3115, %v2619
        %v3240 = vmul.f32 %v3116, %v2620
        %v3241 = vmul.f32 %v3117, %v2621
        %v3242 = vmul.f32 %v3118, %v2622
        %v3243 = vmul.f32 %v3119, %v2623
        %v3244 = vmul.f32 %v3120, %v2624
        %v3245 = vmul.f32 %v3121, %v2625
        %v3246 = vmul.f32 %v3122, %v2626
        %v3247 = vmul.f32 %v3123, %v2627
        %v3248 = vmul.f32 %v3124, %v2628
        %v3249 = vmul.f32 %v3125, %v2629
        %v3250 = vmul.f32 %v3126, %v2630
        %v3251 = vmul.f32 %v3127, %v2631
        %v3252 = vmul.f32 %v3128, %v2632
        %v3253 = vmul.f32 %v3129, %v2633
        %v3254 = vmul.f32 %v3130, %v2634
        %v3255 = vmul.f32 %v3131, %v2635
        %v3256 = vmul.f32 %v3132, %v2636
        %v3257 = vmul.f32 %v3133, %v2637
        %v3258 = vmul.f32 %v3134, %v2638
        %v3259 = vmul.f32 %v3135, %v2639
        %v3260 = vmul.f32 %v3136, %v2640
        %v3261 = vmul.f32 %v3137, %v2641
        %v3262 = vmul.f32 %v3138, %v2642
        %v3263 = vmul.f32 %v3139, %v2643
        %v3264 = vmul.f32 %v3140, %v2644
        %v3265 = vmul.f32 %v3141, %v2645
        %v3266 = vmul.f32 %v3142, %v2646
        %v3267 = vmul.f32 %v3143, %v2647
        %v3268 = vmul.f32 %v3144, %v2648
        %v3269 = vmul.f32 %v3145, %v2649
        %v3270 = vmul.f32 %v3146, %v2650
        %v3271 = vmul.f32 %v3147, %v2651
        %v3272 = vmul.f32 %v3148, %v2652
        %v3273 = vmul.f32 %v3149, %v2653
        %v3274 = vmul.f32 %v3150, %v2654
        %v3275 = vmul.f32 %v3151, %v2655
        %v3276 = vmul.f32 %v3152, %v2656
        %v3277 = vmul.f32 %v3153, %v2657
        %v3278 = vmul.f32 %v3154, %v2658
        %v3279 = vmul.f32 %v3155, %v2659
        %v3280 = vmul.f32 %v3156, %v2660
        %v3281 = vmul.f32 %v3157, %v2661
        %v3282 = vmul.f32 %v3158, %v2662
        %v3283 = vmul.f32 %v3159, %v2663
        %v3284 = vmul.f32 %v3160, %v2664
        %v3285 = vadd.f32 %v3161, -0.16662401
        %v3286 = vadd.f32 %v3162, -0.16662401
        %v3287 = vadd.f32 %v3163, -0.16662401
        %v3288 = vadd.f32 %v3164, -0.16662401
        %v3289 = vadd.f32 %v3165, -0.16662401
        %v3290 = vadd.f32 %v3166, -0.16662401
        %v3291 = vadd.f32 %v3167, -0.16662401
        %v3292 = vadd.f32 %v3168, -0.16662401
        %v3293 = vadd.f32 %v3169, -0.16662401
        %v3294 = vadd.f32 %v3170, -0.16662401
        %v3295 = vadd.f32 %v3171, -0.16662401
        %v3296 = vadd.f32 %v3172, -0.16662401
        %v3297 = vadd.f32 %v3173, -0.16662401
        %v3298 = vadd.f32 %v3174, -0.16662401
        %v3299 = vadd.f32 %v3175, -0.16662401
        %v3300 = vadd.f32 %v3176, -0.16662401
        %v3301 = vadd.f32 %v3177, -0.16662401
        %v3302 = vadd.f32 %v3178, -0.16662401
        %v3303 = vadd.f32 %v3179, -0.16662401
        %v3304 = vadd.f32 %v3180, -0.16662401
        %v3305 = vadd.f32 %v3181, -0.16662401
        %v3306 = vadd.f32 %v3182, -0.16662401
        %v3307 = vadd.f32 %v3183, -0.16662401
        %v3308 = vadd.f32 %v3184, -0.16662401
        %v3309 = vadd.f32 %v3185, -0.16662401
        %v3310 = vadd.f32 %v3186, -0.16662401
        %v3311 = vadd.f32 %v3187, -0.16662401
        %v3312 = vadd.f32 %v3188, -0.16662401
        %v3313 = vadd.f32 %v3189, -0.16662401
        %v3314 = vadd.f32 %v3190, -0.16662401
        %v3315 = vadd.f32 %v3191, -0.16662401
        %v3316 = vadd.f32 %v3192, -0.16662401
        %v3317 = vadd.f32 %v3193, -0.16662401
        %v3318 = vadd.f32 %v3194, -0.16662401
        %v3319 = vadd.f32 %v3195, -0.16662401
        %v3320 = vadd.f32 %v3196, -0.16662401
        %v3321 = vadd.f32 %v3197, -0.16662401
        %v3322 = vadd.f32 %v3198, -0.16662401
        %v3323 = vadd.f32 %v3199, -0.16662401
        %v3324 = vadd.f32 %v3200, -0.16662401
        %v3325 = vadd.f32 %v3201, -0.16662401
        %v3326 = vadd.f32 %v3202, -0.16662401
        %v3327 = vadd.f32 %v3203, -0.16662401
        %v3328 = vadd.f32 %v3204, -0.16662401
        %v3329 = vadd.f32 %v3205, -0.16662401
        %v3330 = vadd.f32 %v3206, -0.16662401
        %v3331 = vadd.f32 %v3207, -0.16662401
        %v3332 = vadd.f32 %v3208, -0.16662401
        %v3333 = vadd.f32 %v3209, -0.16662401
        %v3334 = vadd.f32 %v3210, -0.16662401
        %v3335 = vadd.f32 %v3211, -0.16662401
        %v3336 = vadd.f32 %v3212, -0.16662401
        %v3337 = vadd.f32 %v3213, -0.16662401
        %v3338 = vadd.f32 %v3214, -0.16662401
        %v3339 = vadd.f32 %v3215, -0.16662401
        %v3340 = vadd.f32 %v3216, -0.16662401
        %v3341 = vadd.f32 %v3217, -0.16662401
        %v3342 = vadd.f32 %v3218, -0.16662401
        %v3343 = vadd.f32 %v3219, -0.16662401
        %v3344 = vadd.f32 %v3220, -0.16662401
        %v3345 = vadd.f32 %v3221, -0.16662401
        %v3346 = vadd.f32 %v3222, -0.16662401
        %v3347 = vadd.f32 %v3223, -0.16662401
        %v3348 = vadd.f32 %v3224, -0.16662401
        %v3349 = vadd.f32 %v3225, -0.16662401
        %v3350 = vadd.f32 %v3226, -0.16662401
        %v3351 = vadd.f32 %v3227, -0.16662401
        %v3352 = vadd.f32 %v3228, -0.16662401
        %v3353 = vadd.f32 %v3229, -0.16662401
        %v3354 = vadd.f32 %v3230, -0.16662401
        %v3355 = vadd.f32 %v3231, -0.16662401
        %v3356 = vadd.f32 %v3232, -0.16662401
        %v3357 = vadd.f32 %v3233, -0.16662401
        %v3358 = vadd.f32 %v3234, -0.16662401
        %v3359 = vadd.f32 %v3235, -0.16662401
        %v3360 = vadd.f32 %v3236, -0.16662401
        %v3361 = vadd.f32 %v3237, -0.16662401
        %v3362 = vadd.f32 %v3238, -0.16662401
        %v3363 = vadd.f32 %v3239, -0.16662401
        %v3364 = vadd.f32 %v3240, -0.16662401
        %v3365 = vadd.f32 %v3241, -0.16662401
        %v3366 = vadd.f32 %v3242, -0.16662401
        %v3367 = vadd.f32 %v3243, -0.16662401
        %v3368 = vadd.f32 %v3244, -0.16662401
        %v3369 = vadd.f32 %v3245, -0.16662401
        %v3370 = vadd.f32 %v3246, -0.16662401
        %v3371 = vadd.f32 %v3247, -0.16662401
        %v3372 = vadd.f32 %v3248, -0.16662401
        %v3373 = vadd.f32 %v3249, -0.16662401
        %v3374 = vadd.f32 %v3250, -0.16662401
        %v3375 = vadd.f32 %v3251, -0.16662401
        %v3376 = vadd.f32 %v3252, -0.16662401
        %v3377 = vadd.f32 %v3253, -0.16662401
        %v3378 = vadd.f32 %v3254, -0.16662401
        %v3379 = vadd.f32 %v3255, -0.16662401
        %v3380 = vadd.f32 %v3256, -0.16662401
        %v3381 = vadd.f32 %v3257, -0.16662401
        %v3382 = vadd.f32 %v3258, -0.16662401
        %v3383 = vadd.f32 %v3259, -0.16662401
        %v3384 = vadd.f32 %v3260, -0.16662401
        %v3385 = vadd.f32 %v3261, -0.16662401
        %v3386 = vadd.f32 %v3262, -0.16662401
        %v3387 = vadd.f32 %v3263, -0.16662401
        %v3388 = vadd.f32 %v3264, -0.16662401
        %v3389 = vadd.f32 %v3265, -0.16662401
        %v3390 = vadd.f32 %v3266, -0.16662401
        %v3391 = vadd.f32 %v3267, -0.16662401
        %v3392 = vadd.f32 %v3268, -0.16662401
        %v3393 = vadd.f32 %v3269, -0.16662401
        %v3394 = vadd.f32 %v3270, -0.16662401
        %v3395 = vadd.f32 %v3271, -0.16662401
        %v3396 = vadd.f32 %v3272, -0.16662401
        %v3397 = vadd.f32 %v3273, -0.16662401
        %v3398 = vadd.f32 %v3274, -0.16662401
        %v3399 = vadd.f32 %v3275, -0.16662401
        %v3400 = vadd.f32 %v3276, -0.16662401
        %v3401 = vadd.f32 %v3277, -0.16662401
        %v3402 = vadd.f32 %v3278, -0.16662401
        %v3403 = vadd.f32 %v3279, -0.16662401
        %v3404 = vadd.f32 %v3280, -0.16662401
        %v3405 = vadd.f32 %v3281, -0.16662401
        %v3406 = vadd.f32 %v3282, -0.16662401
        %v3407 = vadd.f32 %v3283, -0.16662401
        %v3408 = vadd.f32 %v3284, -0.16662401
        %v3409 = vmul.f32 %v3285, %v2541
        %v3410 = vmul.f32 %v3286, %v2542
        %v3411 = vmul.f32 %v3287, %v2543
        %v3412 = vmul.f32 %v3288, %v2544
        %v3413 = vmul.f32 %v3289, %v2545
        %v3414 = vmul.f32 %v3290, %v2546
        %v3415 = vmul.f32 %v3291, %v2547
        %v3416 = vmul.f32 %v3292, %v2548
        %v3417 = vmul.f32 %v3293, %v2549
        %v3418 = vmul.f32 %v3294, %v2550
        %v3419 = vmul.f32 %v3295, %v2551
        %v3420 = vmul.f32 %v3296, %v2552
        %v3421 = vmul.f32 %v3297, %v2553
        %v3422 = vmul.f32 %v3298, %v2554
        %v3423 = vmul.f32 %v3299, %v2555
        %v3424 = vmul.f32 %v3300, %v2556
        %v3425 = vmul.f32 %v3301, %v2557
        %v3426 = vmul.f32 %v3302, %v2558
        %v3427 = vmul.f32 %v3303, %v2559
        %v3428 = vmul.f32 %v3304, %v2560
        %v3429 = vmul.f32 %v3305, %v2561
        %v3430 = vmul.f32 %v3306, %v2562
        %v3431 = vmul.f32 %v3307, %v2563
        %v3432 = vmul.f32 %v3308, %v2564
        %v3433 = vmul.f32 %v3309, %v2565
        %v3434 = vmul.f32 %v3310, %v2566
        %v3435 = vmul.f32 %v3311, %v2567
        %v3436 = vmul.f32 %v3312, %v2568
        %v3437 = vmul.f32 %v3313, %v2569
        %v3438 = vmul.f32 %v3314, %v2570
        %v3439 = vmul.f32 %v3315, %v2571
        %v3440 = vmul.f32 %v3316, %v2572
        %v3441 = vmul.f32 %v3317, %v2573
        %v3442 = vmul.f32 %v3318, %v2574
        %v3443 = vmul.f32 %v3319, %v2575
        %v3444 = vmul.f32 %v3320, %v2576
        %v3445 = vmul.f32 %v3321, %v2577
        %v3446 = vmul.f32 %v3322, %v2578
        %v3447 = vmul.f32 %v3323, %v2579
        %v3448 = vmul.f32 %v3324, %v2580
        %v3449 = vmul.f32 %v3325, %v2581
        %v3450 = vmul.f32 %v3326, %v2582
        %v3451 = vmul.f32 %v3327, %v2583
        %v3452 = vmul.f32 %v3328, %v2584
        %v3453 = vmul.f32 %v3329, %v2585
        %v3454 = vmul.f32 %v3330, %v2586
        %v3455 = vmul.f32 %v3331, %v2587
        %v3456 = vmul.f32 %v3332, %v2588
        %v3457 = vmul.f32 %v3333, %v2589
        %v3458 = vmul.f32 %v3334, %v2590
        %v3459 = vmul.f32 %v3335, %v2591
        %v3460 = vmul.f32 %v3336, %v2592
        %v3461 = vmul.f32 %v3337, %v2593
        %v3462 = vmul.f32 %v3338, %v2594
        %v3463 = vmul.f32 %v3339, %v2595
        %v3464 = vmul.f32 %v3340, %v2596
        %v3465 = vmul.f32 %v3341, %v2597
        %v3466 = vmul.f32 %v3342, %v2598
        %v3467 = vmul.f32 %v3343, %v2599
        %v3468 = vmul.f32 %v3344, %v2600
        %v3469 = vmul.f32 %v3345, %v2601
        %v3470 = vmul.f32 %v3346, %v2602
        %v3471 = vmul.f32 %v3347, %v2603
        %v3472 = vmul.f32 %v3348, %v2604
        %v3473 = vmul.f32 %v3349, %v2605
        %v3474 = vmul.f32 %v3350, %v2606
        %v3475 = vmul.f32 %v3351, %v2607
        %v3476 = vmul.f32 %v3352, %v2608
        %v3477 = vmul.f32 %v3353, %v2609
        %v3478 = vmul.f32 %v3354, %v2610
        %v3479 = vmul.f32 %v3355, %v2611
        %v3480 = vmul.f32 %v3356, %v2612
        %v3481 = vmul.f32 %v3357, %v2613
        %v3482 = vmul.f32 %v3358, %v2614
        %v3483 = vmul.f32 %v3359, %v2615
        %v3484 = vmul.f32 %v3360, %v2616
        %v3485 = vmul.f32 %v3361, %v2617
        %v3486 = vmul.f32 %v3362, %v2618
        %v3487 = vmul.f32 %v3363, %v2619
        %v3488 = vmul.f32 %v3364, %v2620
        %v3489 = vmul.f32 %v3365, %v2621
        %v3490 = vmul.f32 %v3366, %v2622
        %v3491 = vmul.f32 %v3367, %v2623
        %v3492 = vmul.f32 %v3368, %v2624
        %v3493 = vmul.f32 %v3369, %v2625
        %v3494 = vmul.f32 %v3370, %v2626
        %v3495 = vmul.f32 %v3371, %v2627
        %v3496 = vmul.f32 %v3372, %v2628
        %v3497 = vmul.f32 %v3373, %v2629
        %v3498 = vmul.f32 %v3374, %v2630
        %v3499 = vmul.f32 %v3375, %v2631
        %v3500 = vmul.f32 %v3376, %v2632
        %v3501 = vmul.f32 %v3377, %v2633
        %v3502 = vmul.f32 %v3378, %v2634
        %v3503 = vmul.f32 %v3379, %v2635
        %v3504 = vmul.f32 %v3380, %v2636
        %v3505 = vmul.f32 %v3381, %v2637
        %v3506 = vmul.f32 %v3382, %v2638
        %v3507 = vmul.f32 %v3383, %v2639
        %v3508 = vmul.f32 %v3384, %v2640
        %v3509 = vmul.f32 %v3385, %v2641
        %v3510 = vmul.f32 %v3386, %v2642
        %v3511 = vmul.f32 %v3387, %v2643
        %v3512 = vmul.f32 %v3388, %v2644
        %v3513 = vmul.f32 %v3389, %v2645
        %v3514 = vmul.f32 %v3390, %v2646
        %v3515 = vmul.f32 %v3391, %v2647
        %v3516 = vmul.f32 %v3392, %v2648
        %v3517 = vmul.f32 %v3393, %v2649
        %v3518 = vmul.f32 %v3394, %v2650
        %v3519 = vmul.f32 %v3395, %v2651
        %v3520 = vmul.f32 %v3396, %v2652
        %v3521 = vmul.f32 %v3397, %v2653
        %v3522 = vmul.f32 %v3398, %v2654
        %v3523 = vmul.f32 %v3399, %v2655
        %v3524 = vmul.f32 %v3400, %v2656
        %v3525 = vmul.f32 %v3401, %v2657
        %v3526 = vmul.f32 %v3402, %v2658
        %v3527 = vmul.f32 %v3403, %v2659
        %v3528 = vmul.f32 %v3404, %v2660
        %v3529 = vmul.f32 %v3405, %v2661
        %v3530 = vmul.f32 %v3406, %v2662
        %v3531 = vmul.f32 %v3407, %v2663
        %v3532 = vmul.f32 %v3408, %v2664
        %v3533 = vadd.f32 %v3409, 0.99997914
        %v3534 = vadd.f32 %v3410, 0.99997914
        %v3535 = vadd.f32 %v3411, 0.99997914
        %v3536 = vadd.f32 %v3412, 0.99997914
        %v3537 = vadd.f32 %v3413, 0.99997914
        %v3538 = vadd.f32 %v3414, 0.99997914
        %v3539 = vadd.f32 %v3415, 0.99997914
        %v3540 = vadd.f32 %v3416, 0.99997914
        %v3541 = vadd.f32 %v3417, 0.99997914
        %v3542 = vadd.f32 %v3418, 0.99997914
        %v3543 = vadd.f32 %v3419, 0.99997914
        %v3544 = vadd.f32 %v3420, 0.99997914
        %v3545 = vadd.f32 %v3421, 0.99997914
        %v3546 = vadd.f32 %v3422, 0.99997914
        %v3547 = vadd.f32 %v3423, 0.99997914
        %v3548 = vadd.f32 %v3424, 0.99997914
        %v3549 = vadd.f32 %v3425, 0.99997914
        %v3550 = vadd.f32 %v3426, 0.99997914
        %v3551 = vadd.f32 %v3427, 0.99997914
        %v3552 = vadd.f32 %v3428, 0.99997914
        %v3553 = vadd.f32 %v3429, 0.99997914
        %v3554 = vadd.f32 %v3430, 0.99997914
        %v3555 = vadd.f32 %v3431, 0.99997914
        %v3556 = vadd.f32 %v3432, 0.99997914
        %v3557 = vadd.f32 %v3433, 0.99997914
        %v3558 = vadd.f32 %v3434, 0.99997914
        %v3559 = vadd.f32 %v3435, 0.99997914
        %v3560 = vadd.f32 %v3436, 0.99997914
        %v3561 = vadd.f32 %v3437, 0.99997914
        %v3562 = vadd.f32 %v3438, 0.99997914
        %v3563 = vadd.f32 %v3439, 0.99997914
        %v3564 = vadd.f32 %v3440, 0.99997914
        %v3565 = vadd.f32 %v3441, 0.99997914
        %v3566 = vadd.f32 %v3442, 0.99997914
        %v3567 = vadd.f32 %v3443, 0.99997914
        %v3568 = vadd.f32 %v3444, 0.99997914
        %v3569 = vadd.f32 %v3445, 0.99997914
        %v3570 = vadd.f32 %v3446, 0.99997914
        %v3571 = vadd.f32 %v3447, 0.99997914
        %v3572 = vadd.f32 %v3448, 0.99997914
        %v3573 = vadd.f32 %v3449, 0.99997914
        %v3574 = vadd.f32 %v3450, 0.99997914
        %v3575 = vadd.f32 %v3451, 0.99997914
        %v3576 = vadd.f32 %v3452, 0.99997914
        %v3577 = vadd.f32 %v3453, 0.99997914
        %v3578 = vadd.f32 %v3454, 0.99997914
        %v3579 = vadd.f32 %v3455, 0.99997914
        %v3580 = vadd.f32 %v3456, 0.99997914
        %v3581 = vadd.f32 %v3457, 0.99997914
        %v3582 = vadd.f32 %v3458, 0.99997914
        %v3583 = vadd.f32 %v3459, 0.99997914
        %v3584 = vadd.f32 %v3460, 0.99997914
        %v3585 = vadd.f32 %v3461, 0.99997914
        %v3586 = vadd.f32 %v3462, 0.99997914
        %v3587 = vadd.f32 %v3463, 0.99997914
        %v3588 = vadd.f32 %v3464, 0.99997914
        %v3589 = vadd.f32 %v3465, 0.99997914
        %v3590 = vadd.f32 %v3466, 0.99997914
        %v3591 = vadd.f32 %v3467, 0.99997914
        %v3592 = vadd.f32 %v3468, 0.99997914
        %v3593 = vadd.f32 %v3469, 0.99997914
        %v3594 = vadd.f32 %v3470, 0.99997914
        %v3595 = vadd.f32 %v3471, 0.99997914
        %v3596 = vadd.f32 %v3472, 0.99997914
        %v3597 = vadd.f32 %v3473, 0.99997914
        %v3598 = vadd.f32 %v3474, 0.99997914
        %v3599 = vadd.f32 %v3475, 0.99997914
        %v3600 = vadd.f32 %v3476, 0.99997914
        %v3601 = vadd.f32 %v3477, 0.99997914
        %v3602 = vadd.f32 %v3478, 0.99997914
        %v3603 = vadd.f32 %v3479, 0.99997914
        %v3604 = vadd.f32 %v3480, 0.99997914
        %v3605 = vadd.f32 %v3481, 0.99997914
        %v3606 = vadd.f32 %v3482, 0.99997914
        %v3607 = vadd.f32 %v3483, 0.99997914
        %v3608 = vadd.f32 %v3484, 0.99997914
        %v3609 = vadd.f32 %v3485, 0.99997914
        %v3610 = vadd.f32 %v3486, 0.99997914
        %v3611 = vadd.f32 %v3487, 0.99997914
        %v3612 = vadd.f32 %v3488, 0.99997914
        %v3613 = vadd.f32 %v3489, 0.99997914
        %v3614 = vadd.f32 %v3490, 0.99997914
        %v3615 = vadd.f32 %v3491, 0.99997914
        %v3616 = vadd.f32 %v3492, 0.99997914
        %v3617 = vadd.f32 %v3493, 0.99997914
        %v3618 = vadd.f32 %v3494, 0.99997914
        %v3619 = vadd.f32 %v3495, 0.99997914
        %v3620 = vadd.f32 %v3496, 0.99997914
        %v3621 = vadd.f32 %v3497, 0.99997914
        %v3622 = vadd.f32 %v3498, 0.99997914
        %v3623 = vadd.f32 %v3499, 0.99997914
        %v3624 = vadd.f32 %v3500, 0.99997914
        %v3625 = vadd.f32 %v3501, 0.99997914
        %v3626 = vadd.f32 %v3502, 0.99997914
        %v3627 = vadd.f32 %v3503, 0.99997914
        %v3628 = vadd.f32 %v3504, 0.99997914
        %v3629 = vadd.f32 %v3505, 0.99997914
        %v3630 = vadd.f32 %v3506, 0.99997914
        %v3631 = vadd.f32 %v3507, 0.99997914
        %v3632 = vadd.f32 %v3508, 0.99997914
        %v3633 = vadd.f32 %v3509, 0.99997914
        %v3634 = vadd.f32 %v3510, 0.99997914
        %v3635 = vadd.f32 %v3511, 0.99997914
        %v3636 = vadd.f32 %v3512, 0.99997914
        %v3637 = vadd.f32 %v3513, 0.99997914
        %v3638 = vadd.f32 %v3514, 0.99997914
        %v3639 = vadd.f32 %v3515, 0.99997914
        %v3640 = vadd.f32 %v3516, 0.99997914
        %v3641 = vadd.f32 %v3517, 0.99997914
        %v3642 = vadd.f32 %v3518, 0.99997914
        %v3643 = vadd.f32 %v3519, 0.99997914
        %v3644 = vadd.f32 %v3520, 0.99997914
        %v3645 = vadd.f32 %v3521, 0.99997914
        %v3646 = vadd.f32 %v3522, 0.99997914
        %v3647 = vadd.f32 %v3523, 0.99997914
        %v3648 = vadd.f32 %v3524, 0.99997914
        %v3649 = vadd.f32 %v3525, 0.99997914
        %v3650 = vadd.f32 %v3526, 0.99997914
        %v3651 = vadd.f32 %v3527, 0.99997914
        %v3652 = vadd.f32 %v3528, 0.99997914
        %v3653 = vadd.f32 %v3529, 0.99997914
        %v3654 = vadd.f32 %v3530, 0.99997914
        %v3655 = vadd.f32 %v3531, 0.99997914
        %v3656 = vadd.f32 %v3532, 0.99997914
        %v3657 = vmul.f32 %v2417, %v3533
        %v3658 = vmul.f32 %v2418, %v3534
        %v3659 = vmul.f32 %v2419, %v3535
        %v3660 = vmul.f32 %v2420, %v3536
        %v3661 = vmul.f32 %v2421, %v3537
        %v3662 = vmul.f32 %v2422, %v3538
        %v3663 = vmul.f32 %v2423, %v3539
        %v3664 = vmul.f32 %v2424, %v3540
        %v3665 = vmul.f32 %v2425, %v3541
        %v3666 = vmul.f32 %v2426, %v3542
        %v3667 = vmul.f32 %v2427, %v3543
        %v3668 = vmul.f32 %v2428, %v3544
        %v3669 = vmul.f32 %v2429, %v3545
        %v3670 = vmul.f32 %v2430, %v3546
        %v3671 = vmul.f32 %v2431, %v3547
        %v3672 = vmul.f32 %v2432, %v3548
        %v3673 = vmul.f32 %v2433, %v3549
        %v3674 = vmul.f32 %v2434, %v3550
        %v3675 = vmul.f32 %v2435, %v3551
        %v3676 = vmul.f32 %v2436, %v3552
        %v3677 = vmul.f32 %v2437, %v3553
        %v3678 = vmul.f32 %v2438, %v3554
        %v3679 = vmul.f32 %v2439, %v3555
        %v3680 = vmul.f32 %v2440, %v3556
        %v3681 = vmul.f32 %v2441, %v3557
        %v3682 = vmul.f32 %v2442, %v3558
        %v3683 = vmul.f32 %v2443, %v3559
        %v3684 = vmul.f32 %v2444, %v3560
        %v3685 = vmul.f32 %v2445, %v3561
        %v3686 = vmul.f32 %v2446, %v3562
        %v3687 = vmul.f32 %v2447, %v3563
        %v3688 = vmul.f32 %v2448, %v3564
        %v3689 = vmul.f32 %v2449, %v3565
        %v3690 = vmul.f32 %v2450, %v3566
        %v3691 = vmul.f32 %v2451, %v3567
        %v3692 = vmul.f32 %v2452, %v3568
        %v3693 = vmul.f32 %v2453, %v3569
        %v3694 = vmul.f32 %v2454, %v3570
        %v3695 = vmul.f32 %v2455, %v3571
        %v3696 = vmul.f32 %v2456, %v3572
        %v3697 = vmul.f32 %v2457, %v3573
        %v3698 = vmul.f32 %v2458, %v3574
        %v3699 = vmul.f32 %v2459, %v3575
        %v3700 = vmul.f32 %v2460, %v3576
        %v3701 = vmul.f32 %v2461, %v3577
        %v3702 = vmul.f32 %v2462, %v3578
        %v3703 = vmul.f32 %v2463, %v3579
        %v3704 = vmul.f32 %v2464, %v3580
        %v3705 = vmul.f32 %v2465, %v3581
        %v3706 = vmul.f32 %v2466, %v3582
        %v3707 = vmul.f32 %v2467, %v3583
        %v3708 = vmul.f32 %v2468, %v3584
        %v3709 = vmul.f32 %v2469, %v3585
        %v3710 = vmul.f32 %v2470, %v3586
        %v3711 = vmul.f32 %v2471, %v3587
        %v3712 = vmul.f32 %v2472, %v3588
        %v3713 = vmul.f32 %v2473, %v3589
        %v3714 = vmul.f32 %v2474, %v3590
        %v3715 = vmul.f32 %v2475, %v3591
        %v3716 = vmul.f32 %v2476, %v3592
        %v3717 = vmul.f32 %v2477, %v3593
        %v3718 = vmul.f32 %v2478, %v3594
        %v3719 = vmul.f32 %v2479, %v3595
        %v3720 = vmul.f32 %v2480, %v3596
        %v3721 = vmul.f32 %v2481, %v3597
        %v3722 = vmul.f32 %v2482, %v3598
        %v3723 = vmul.f32 %v2483, %v3599
        %v3724 = vmul.f32 %v2484, %v3600
        %v3725 = vmul.f32 %v2485, %v3601
        %v3726 = vmul.f32 %v2486, %v3602
        %v3727 = vmul.f32 %v2487, %v3603
        %v3728 = vmul.f32 %v2488, %v3604
        %v3729 = vmul.f32 %v2489, %v3605
        %v3730 = vmul.f32 %v2490, %v3606
        %v3731 = vmul.f32 %v2491, %v3607
        %v3732 = vmul.f32 %v2492, %v3608
        %v3733 = vmul.f32 %v2493, %v3609
        %v3734 = vmul.f32 %v2494, %v3610
        %v3735 = vmul.f32 %v2495, %v3611
        %v3736 = vmul.f32 %v2496, %v3612
        %v3737 = vmul.f32 %v2497, %v3613
        %v3738 = vmul.f32 %v2498, %v3614
        %v3739 = vmul.f32 %v2499, %v3615
        %v3740 = vmul.f32 %v2500, %v3616
        %v3741 = vmul.f32 %v2501, %v3617
        %v3742 = vmul.f32 %v2502, %v3618
        %v3743 = vmul.f32 %v2503, %v3619
        %v3744 = vmul.f32 %v2504, %v3620
        %v3745 = vmul.f32 %v2505, %v3621
        %v3746 = vmul.f32 %v2506, %v3622
        %v3747 = vmul.f32 %v2507, %v3623
        %v3748 = vmul.f32 %v2508, %v3624
        %v3749 = vmul.f32 %v2509, %v3625
        %v3750 = vmul.f32 %v2510, %v3626
        %v3751 = vmul.f32 %v2511, %v3627
        %v3752 = vmul.f32 %v2512, %v3628
        %v3753 = vmul.f32 %v2513, %v3629
        %v3754 = vmul.f32 %v2514, %v3630
        %v3755 = vmul.f32 %v2515, %v3631
        %v3756 = vmul.f32 %v2516, %v3632
        %v3757 = vmul.f32 %v2517, %v3633
        %v3758 = vmul.f32 %v2518, %v3634
        %v3759 = vmul.f32 %v2519, %v3635
        %v3760 = vmul.f32 %v2520, %v3636
        %v3761 = vmul.f32 %v2521, %v3637
        %v3762 = vmul.f32 %v2522, %v3638
        %v3763 = vmul.f32 %v2523, %v3639
        %v3764 = vmul.f32 %v2524, %v3640
        %v3765 = vmul.f32 %v2525, %v3641
        %v3766 = vmul.f32 %v2526, %v3642
        %v3767 = vmul.f32 %v2527, %v3643
        %v3768 = vmul.f32 %v2528, %v3644
        %v3769 = vmul.f32 %v2529, %v3645
        %v3770 = vmul.f32 %v2530, %v3646
        %v3771 = vmul.f32 %v2531, %v3647
        %v3772 = vmul.f32 %v2532, %v3648
        %v3773 = vmul.f32 %v2533, %v3649
        %v3774 = vmul.f32 %v2534, %v3650
        %v3775 = vmul.f32 %v2535, %v3651
        %v3776 = vmul.f32 %v2536, %v3652
        %v3777 = vmul.f32 %v2537, %v3653
        %v3778 = vmul.f32 %v2538, %v3654
        %v3779 = vmul.f32 %v2539, %v3655
        %v3780 = vmul.f32 %v2540, %v3656
        %v3781 = vld [vmem:[%s5] sm:$0xff]
        %v3782 = vld [vmem:[%s5 + $0x8] sm:$0xff]
        %v3783 = vld [vmem:[%s5 + $0x10] sm:$0xff]
        %v3784 = vld [vmem:[%s5 + $0x18] sm:$0xff]
        %v3785 = vld [vmem:[%s6] sm:$0xff]
        %v3786 = vld [vmem:[%s6 + $0x8] sm:$0xff]
        %v3787 = vld [vmem:[%s6 + $0x10] sm:$0xff]
        %v3788 = vld [vmem:[%s6 + $0x18] sm:$0xff]
        %3790 = vset.pattern.permute.xlu0 0
        %3791 = vperm.xlu0 %3790, %v3785
        %v3792 = vpop.permute.xlu0 %3791
        %3795 = vset.pattern.permute.xlu0 0
        %3796 = vperm.xlu0 %3795, %v3786
        %v3797 = vpop.permute.xlu0 %3796
        %3800 = vset.pattern.permute.xlu0 0
        %3801 = vperm.xlu0 %3800, %v3787
        %v3802 = vpop.permute.xlu0 %3801
        %3805 = vset.pattern.permute.xlu0 0
        %3806 = vperm.xlu0 %3805, %v3788
        %v3807 = vpop.permute.xlu0 %3806
        %vm3809 = vcmask 261120
        %v3811 = vsel %vm3809, %v3781, 0
        %v3814 = vsel %vm3809, %v3782, 0
        %v3817 = vsel %vm3809, %v3783, 0
        %v3820 = vsel %vm3809, %v3784, 0
        %3822 = vmatpush.msra.mxu0 0.0
        %3823 = vmatpush.msra.mxu0 0.0
        %3824 = vmatpush.msra.mxu0 0.0
        %3825 = vmatpush.msra.mxu0 0.0
        %3826 = vmatpush.msra.mxu0 0.0
        %3827 = vmatpush.msra.mxu0 0.0
        %3828 = vmatpush.msra.mxu0 0.0
        %3829 = vmatpush.msra.mxu0 0.0
        %3830 = vmatpush.msra.mxu0 0.0
        %3831 = vmatpush.msra.mxu0 0.0
        %3832 = vmatpush.msra.mxu0 0.0
        %3833 = vmatpush.msra.mxu0 0.0
        %3834 = vmatpush.msra.mxu0 %v3750
        %3835 = vmatpush.msra.mxu0 %v3719
        %3836 = vmatpush.msra.mxu0 %v3688
        %3837 = vmatpush.msra.mxu0 %v3657
        %3838 = vmatmul.f32.gmra.mxu0 %v3811
        %v3839 = vpop.f32.mrf.mxu0
        %v3840 = vadd.f32 %v3792, %v3839
        %3841 = vmatmul.f32.gmra.mxu0 %v3814
        %v3842 = vpop.f32.mrf.mxu0
        %v3843 = vadd.f32 %v3797, %v3842
        %3844 = vmatmul.f32.gmra.mxu0 %v3817
        %v3845 = vpop.f32.mrf.mxu0
        %v3846 = vadd.f32 %v3802, %v3845
        %3847 = vmatmul.f32.gmra.mxu0 %v3820
        %v3848 = vpop.f32.mrf.mxu0
        %v3849 = vadd.f32 %v3807, %v3848
        %3850 = vdwg.mxu0
        %3851 = vmatpush.msra.mxu0 0.0
        %3852 = vmatpush.msra.mxu0 0.0
        %3853 = vmatpush.msra.mxu0 0.0
        %3854 = vmatpush.msra.mxu0 0.0
        %3855 = vmatpush.msra.mxu0 0.0
        %3856 = vmatpush.msra.mxu0 0.0
        %3857 = vmatpush.msra.mxu0 0.0
        %3858 = vmatpush.msra.mxu0 0.0
        %3859 = vmatpush.msra.mxu0 0.0
        %3860 = vmatpush.msra.mxu0 0.0
        %3861 = vmatpush.msra.mxu0 0.0
        %3862 = vmatpush.msra.mxu0 0.0
        %3863 = vmatpush.msra.mxu0 %v3751
        %3864 = vmatpush.msra.mxu0 %v3720
        %3865 = vmatpush.msra.mxu0 %v3689
        %3866 = vmatpush.msra.mxu0 %v3658
        %3867 = vmatmul.f32.gmra.mxu0 %v3811
        %v3868 = vpop.f32.mrf.mxu0
        %v3869 = vadd.f32 %v3792, %v3868
        %3870 = vmatmul.f32.gmra.mxu0 %v3814
        %v3871 = vpop.f32.mrf.mxu0
        %v3872 = vadd.f32 %v3797, %v3871
        %3873 = vmatmul.f32.gmra.mxu0 %v3817
        %v3874 = vpop.f32.mrf.mxu0
        %v3875 = vadd.f32 %v3802, %v3874
        %3876 = vmatmul.f32.gmra.mxu0 %v3820
        %v3877 = vpop.f32.mrf.mxu0
        %v3878 = vadd.f32 %v3807, %v3877
        %3879 = vdwg.mxu0
        %3880 = vmatpush.msra.mxu0 0.0
        %3881 = vmatpush.msra.mxu0 0.0
        %3882 = vmatpush.msra.mxu0 0.0
        %3883 = vmatpush.msra.mxu0 0.0
        %3884 = vmatpush.msra.mxu0 0.0
        %3885 = vmatpush.msra.mxu0 0.0
        %3886 = vmatpush.msra.mxu0 0.0
        %3887 = vmatpush.msra.mxu0 0.0
        %3888 = vmatpush.msra.mxu0 0.0
        %3889 = vmatpush.msra.mxu0 0.0
        %3890 = vmatpush.msra.mxu0 0.0
        %3891 = vmatpush.msra.mxu0 0.0
        %3892 = vmatpush.msra.mxu0 %v3752
        %3893 = vmatpush.msra.mxu0 %v3721
        %3894 = vmatpush.msra.mxu0 %v3690
        %3895 = vmatpush.msra.mxu0 %v3659
        %3896 = vmatmul.f32.gmra.mxu0 %v3811
        %v3897 = vpop.f32.mrf.mxu0
        %v3898 = vadd.f32 %v3792, %v3897
        %3899 = vmatmul.f32.gmra.mxu0 %v3814
        %v3900 = vpop.f32.mrf.mxu0
        %v3901 = vadd.f32 %v3797, %v3900
        %3902 = vmatmul.f32.gmra.mxu0 %v3817
        %v3903 = vpop.f32.mrf.mxu0
        %v3904 = vadd.f32 %v3802, %v3903
        %3905 = vmatmul.f32.gmra.mxu0 %v3820
        %v3906 = vpop.f32.mrf.mxu0
        %v3907 = vadd.f32 %v3807, %v3906
        %3908 = vdwg.mxu0
        %3909 = vmatpush.msra.mxu0 0.0
        %3910 = vmatpush.msra.mxu0 0.0
        %3911 = vmatpush.msra.mxu0 0.0
        %3912 = vmatpush.msra.mxu0 0.0
        %3913 = vmatpush.msra.mxu0 0.0
        %3914 = vmatpush.msra.mxu0 0.0
        %3915 = vmatpush.msra.mxu0 0.0
        %3916 = vmatpush.msra.mxu0 0.0
        %3917 = vmatpush.msra.mxu0 0.0
        %3918 = vmatpush.msra.mxu0 0.0
        %3919 = vmatpush.msra.mxu0 0.0
        %3920 = vmatpush.msra.mxu0 0.0
        %3921 = vmatpush.msra.mxu0 %v3753
        %3922 = vmatpush.msra.mxu0 %v3722
        %3923 = vmatpush.msra.mxu0 %v3691
        %3924 = vmatpush.msra.mxu0 %v3660
        %3925 = vmatmul.f32.gmra.mxu0 %v3811
        %v3926 = vpop.f32.mrf.mxu0
        %v3927 = vadd.f32 %v3792, %v3926
        %3928 = vmatmul.f32.gmra.mxu0 %v3814
        %v3929 = vpop.f32.mrf.mxu0
        %v3930 = vadd.f32 %v3797, %v3929
        %3931 = vmatmul.f32.gmra.mxu0 %v3817
        %v3932 = vpop.f32.mrf.mxu0
        %v3933 = vadd.f32 %v3802, %v3932
        %3934 = vmatmul.f32.gmra.mxu0 %v3820
        %v3935 = vpop.f32.mrf.mxu0
        %v3936 = vadd.f32 %v3807, %v3935
        %3937 = vdwg.mxu0
        %3938 = vmatpush.msra.mxu0 0.0
        %3939 = vmatpush.msra.mxu0 0.0
        %3940 = vmatpush.msra.mxu0 0.0
        %3941 = vmatpush.msra.mxu0 0.0
        %3942 = vmatpush.msra.mxu0 0.0
        %3943 = vmatpush.msra.mxu0 0.0
        %3944 = vmatpush.msra.mxu0 0.0
        %3945 = vmatpush.msra.mxu0 0.0
        %3946 = vmatpush.msra.mxu0 0.0
        %3947 = vmatpush.msra.mxu0 0.0
        %3948 = vmatpush.msra.mxu0 0.0
        %3949 = vmatpush.msra.mxu0 0.0
        %3950 = vmatpush.msra.mxu0 %v3754
        %3951 = vmatpush.msra.mxu0 %v3723
        %3952 = vmatpush.msra.mxu0 %v3692
        %3953 = vmatpush.msra.mxu0 %v3661
        %3954 = vmatmul.f32.gmra.mxu0 %v3811
        %v3955 = vpop.f32.mrf.mxu0
        %v3956 = vadd.f32 %v3792, %v3955
        %3957 = vmatmul.f32.gmra.mxu0 %v3814
        %v3958 = vpop.f32.mrf.mxu0
        %v3959 = vadd.f32 %v3797, %v3958
        %3960 = vmatmul.f32.gmra.mxu0 %v3817
        %v3961 = vpop.f32.mrf.mxu0
        %v3962 = vadd.f32 %v3802, %v3961
        %3963 = vmatmul.f32.gmra.mxu0 %v3820
        %v3964 = vpop.f32.mrf.mxu0
        %v3965 = vadd.f32 %v3807, %v3964
        %3966 = vdwg.mxu0
        %3967 = vmatpush.msra.mxu0 0.0
        %3968 = vmatpush.msra.mxu0 0.0
        %3969 = vmatpush.msra.mxu0 0.0
        %3970 = vmatpush.msra.mxu0 0.0
        %3971 = vmatpush.msra.mxu0 0.0
        %3972 = vmatpush.msra.mxu0 0.0
        %3973 = vmatpush.msra.mxu0 0.0
        %3974 = vmatpush.msra.mxu0 0.0
        %3975 = vmatpush.msra.mxu0 0.0
        %3976 = vmatpush.msra.mxu0 0.0
        %3977 = vmatpush.msra.mxu0 0.0
        %3978 = vmatpush.msra.mxu0 0.0
        %3979 = vmatpush.msra.mxu0 %v3755
        %3980 = vmatpush.msra.mxu0 %v3724
        %3981 = vmatpush.msra.mxu0 %v3693
        %3982 = vmatpush.msra.mxu0 %v3662
        %3983 = vmatmul.f32.gmra.mxu0 %v3811
        %v3984 = vpop.f32.mrf.mxu0
        %v3985 = vadd.f32 %v3792, %v3984
        %3986 = vmatmul.f32.gmra.mxu0 %v3814
        %v3987 = vpop.f32.mrf.mxu0
        %v3988 = vadd.f32 %v3797, %v3987
        %3989 = vmatmul.f32.gmra.mxu0 %v3817
        %v3990 = vpop.f32.mrf.mxu0
        %v3991 = vadd.f32 %v3802, %v3990
        %3992 = vmatmul.f32.gmra.mxu0 %v3820
        %v3993 = vpop.f32.mrf.mxu0
        %v3994 = vadd.f32 %v3807, %v3993
        %3995 = vdwg.mxu0
        %3996 = vmatpush.msra.mxu0 0.0
        %3997 = vmatpush.msra.mxu0 0.0
        %3998 = vmatpush.msra.mxu0 0.0
        %3999 = vmatpush.msra.mxu0 0.0
        %4000 = vmatpush.msra.mxu0 0.0
        %4001 = vmatpush.msra.mxu0 0.0
        %4002 = vmatpush.msra.mxu0 0.0
        %4003 = vmatpush.msra.mxu0 0.0
        %4004 = vmatpush.msra.mxu0 0.0
        %4005 = vmatpush.msra.mxu0 0.0
        %4006 = vmatpush.msra.mxu0 0.0
        %4007 = vmatpush.msra.mxu0 0.0
        %4008 = vmatpush.msra.mxu0 %v3756
        %4009 = vmatpush.msra.mxu0 %v3725
        %4010 = vmatpush.msra.mxu0 %v3694
        %4011 = vmatpush.msra.mxu0 %v3663
        %4012 = vmatmul.f32.gmra.mxu0 %v3811
        %v4013 = vpop.f32.mrf.mxu0
        %v4014 = vadd.f32 %v3792, %v4013
        %4015 = vmatmul.f32.gmra.mxu0 %v3814
        %v4016 = vpop.f32.mrf.mxu0
        %v4017 = vadd.f32 %v3797, %v4016
        %4018 = vmatmul.f32.gmra.mxu0 %v3817
        %v4019 = vpop.f32.mrf.mxu0
        %v4020 = vadd.f32 %v3802, %v4019
        %4021 = vmatmul.f32.gmra.mxu0 %v3820
        %v4022 = vpop.f32.mrf.mxu0
        %v4023 = vadd.f32 %v3807, %v4022
        %4024 = vdwg.mxu0
        %4025 = vmatpush.msra.mxu0 0.0
        %4026 = vmatpush.msra.mxu0 0.0
        %4027 = vmatpush.msra.mxu0 0.0
        %4028 = vmatpush.msra.mxu0 0.0
        %4029 = vmatpush.msra.mxu0 0.0
        %4030 = vmatpush.msra.mxu0 0.0
        %4031 = vmatpush.msra.mxu0 0.0
        %4032 = vmatpush.msra.mxu0 0.0
        %4033 = vmatpush.msra.mxu0 0.0
        %4034 = vmatpush.msra.mxu0 0.0
        %4035 = vmatpush.msra.mxu0 0.0
        %4036 = vmatpush.msra.mxu0 0.0
        %4037 = vmatpush.msra.mxu0 %v3757
        %4038 = vmatpush.msra.mxu0 %v3726
        %4039 = vmatpush.msra.mxu0 %v3695
        %4040 = vmatpush.msra.mxu0 %v3664
        %4041 = vmatmul.f32.gmra.mxu0 %v3811
        %v4042 = vpop.f32.mrf.mxu0
        %v4043 = vadd.f32 %v3792, %v4042
        %4044 = vmatmul.f32.gmra.mxu0 %v3814
        %v4045 = vpop.f32.mrf.mxu0
        %v4046 = vadd.f32 %v3797, %v4045
        %4047 = vmatmul.f32.gmra.mxu0 %v3817
        %v4048 = vpop.f32.mrf.mxu0
        %v4049 = vadd.f32 %v3802, %v4048
        %4050 = vmatmul.f32.gmra.mxu0 %v3820
        %v4051 = vpop.f32.mrf.mxu0
        %v4052 = vadd.f32 %v3807, %v4051
        %4053 = vdwg.mxu0
        %4054 = vmatpush.msra.mxu0 0.0
        %4055 = vmatpush.msra.mxu0 0.0
        %4056 = vmatpush.msra.mxu0 0.0
        %4057 = vmatpush.msra.mxu0 0.0
        %4058 = vmatpush.msra.mxu0 0.0
        %4059 = vmatpush.msra.mxu0 0.0
        %4060 = vmatpush.msra.mxu0 0.0
        %4061 = vmatpush.msra.mxu0 0.0
        %4062 = vmatpush.msra.mxu0 0.0
        %4063 = vmatpush.msra.mxu0 0.0
        %4064 = vmatpush.msra.mxu0 0.0
        %4065 = vmatpush.msra.mxu0 0.0
        %4066 = vmatpush.msra.mxu0 %v3758
        %4067 = vmatpush.msra.mxu0 %v3727
        %4068 = vmatpush.msra.mxu0 %v3696
        %4069 = vmatpush.msra.mxu0 %v3665
        %4070 = vmatmul.f32.gmra.mxu0 %v3811
        %v4071 = vpop.f32.mrf.mxu0
        %v4072 = vadd.f32 %v3792, %v4071
        %4073 = vmatmul.f32.gmra.mxu0 %v3814
        %v4074 = vpop.f32.mrf.mxu0
        %v4075 = vadd.f32 %v3797, %v4074
        %4076 = vmatmul.f32.gmra.mxu0 %v3817
        %v4077 = vpop.f32.mrf.mxu0
        %v4078 = vadd.f32 %v3802, %v4077
        %4079 = vmatmul.f32.gmra.mxu0 %v3820
        %v4080 = vpop.f32.mrf.mxu0
        %v4081 = vadd.f32 %v3807, %v4080
        %4082 = vdwg.mxu0
        %4083 = vmatpush.msra.mxu0 0.0
        %4084 = vmatpush.msra.mxu0 0.0
        %4085 = vmatpush.msra.mxu0 0.0
        %4086 = vmatpush.msra.mxu0 0.0
        %4087 = vmatpush.msra.mxu0 0.0
        %4088 = vmatpush.msra.mxu0 0.0
        %4089 = vmatpush.msra.mxu0 0.0
        %4090 = vmatpush.msra.mxu0 0.0
        %4091 = vmatpush.msra.mxu0 0.0
        %4092 = vmatpush.msra.mxu0 0.0
        %4093 = vmatpush.msra.mxu0 0.0
        %4094 = vmatpush.msra.mxu0 0.0
        %4095 = vmatpush.msra.mxu0 %v3759
        %4096 = vmatpush.msra.mxu0 %v3728
        %4097 = vmatpush.msra.mxu0 %v3697
        %4098 = vmatpush.msra.mxu0 %v3666
        %4099 = vmatmul.f32.gmra.mxu0 %v3811
        %v4100 = vpop.f32.mrf.mxu0
        %v4101 = vadd.f32 %v3792, %v4100
        %4102 = vmatmul.f32.gmra.mxu0 %v3814
        %v4103 = vpop.f32.mrf.mxu0
        %v4104 = vadd.f32 %v3797, %v4103
        %4105 = vmatmul.f32.gmra.mxu0 %v3817
        %v4106 = vpop.f32.mrf.mxu0
        %v4107 = vadd.f32 %v3802, %v4106
        %4108 = vmatmul.f32.gmra.mxu0 %v3820
        %v4109 = vpop.f32.mrf.mxu0
        %v4110 = vadd.f32 %v3807, %v4109
        %4111 = vdwg.mxu0
        %4112 = vmatpush.msra.mxu0 0.0
        %4113 = vmatpush.msra.mxu0 0.0
        %4114 = vmatpush.msra.mxu0 0.0
        %4115 = vmatpush.msra.mxu0 0.0
        %4116 = vmatpush.msra.mxu0 0.0
        %4117 = vmatpush.msra.mxu0 0.0
        %4118 = vmatpush.msra.mxu0 0.0
        %4119 = vmatpush.msra.mxu0 0.0
        %4120 = vmatpush.msra.mxu0 0.0
        %4121 = vmatpush.msra.mxu0 0.0
        %4122 = vmatpush.msra.mxu0 0.0
        %4123 = vmatpush.msra.mxu0 0.0
        %4124 = vmatpush.msra.mxu0 %v3760
        %4125 = vmatpush.msra.mxu0 %v3729
        %4126 = vmatpush.msra.mxu0 %v3698
        %4127 = vmatpush.msra.mxu0 %v3667
        %4128 = vmatmul.f32.gmra.mxu0 %v3811
        %v4129 = vpop.f32.mrf.mxu0
        %v4130 = vadd.f32 %v3792, %v4129
        %4131 = vmatmul.f32.gmra.mxu0 %v3814
        %v4132 = vpop.f32.mrf.mxu0
        %v4133 = vadd.f32 %v3797, %v4132
        %4134 = vmatmul.f32.gmra.mxu0 %v3817
        %v4135 = vpop.f32.mrf.mxu0
        %v4136 = vadd.f32 %v3802, %v4135
        %4137 = vmatmul.f32.gmra.mxu0 %v3820
        %v4138 = vpop.f32.mrf.mxu0
        %v4139 = vadd.f32 %v3807, %v4138
        %4140 = vdwg.mxu0
        %4141 = vmatpush.msra.mxu0 0.0
        %4142 = vmatpush.msra.mxu0 0.0
        %4143 = vmatpush.msra.mxu0 0.0
        %4144 = vmatpush.msra.mxu0 0.0
        %4145 = vmatpush.msra.mxu0 0.0
        %4146 = vmatpush.msra.mxu0 0.0
        %4147 = vmatpush.msra.mxu0 0.0
        %4148 = vmatpush.msra.mxu0 0.0
        %4149 = vmatpush.msra.mxu0 0.0
        %4150 = vmatpush.msra.mxu0 0.0
        %4151 = vmatpush.msra.mxu0 0.0
        %4152 = vmatpush.msra.mxu0 0.0
        %4153 = vmatpush.msra.mxu0 %v3761
        %4154 = vmatpush.msra.mxu0 %v3730
        %4155 = vmatpush.msra.mxu0 %v3699
        %4156 = vmatpush.msra.mxu0 %v3668
        %4157 = vmatmul.f32.gmra.mxu0 %v3811
        %v4158 = vpop.f32.mrf.mxu0
        %v4159 = vadd.f32 %v3792, %v4158
        %4160 = vmatmul.f32.gmra.mxu0 %v3814
        %v4161 = vpop.f32.mrf.mxu0
        %v4162 = vadd.f32 %v3797, %v4161
        %4163 = vmatmul.f32.gmra.mxu0 %v3817
        %v4164 = vpop.f32.mrf.mxu0
        %v4165 = vadd.f32 %v3802, %v4164
        %4166 = vmatmul.f32.gmra.mxu0 %v3820
        %v4167 = vpop.f32.mrf.mxu0
        %v4168 = vadd.f32 %v3807, %v4167
        %4169 = vdwg.mxu0
        %4170 = vmatpush.msra.mxu0 0.0
        %4171 = vmatpush.msra.mxu0 0.0
        %4172 = vmatpush.msra.mxu0 0.0
        %4173 = vmatpush.msra.mxu0 0.0
        %4174 = vmatpush.msra.mxu0 0.0
        %4175 = vmatpush.msra.mxu0 0.0
        %4176 = vmatpush.msra.mxu0 0.0
        %4177 = vmatpush.msra.mxu0 0.0
        %4178 = vmatpush.msra.mxu0 0.0
        %4179 = vmatpush.msra.mxu0 0.0
        %4180 = vmatpush.msra.mxu0 0.0
        %4181 = vmatpush.msra.mxu0 0.0
        %4182 = vmatpush.msra.mxu0 %v3762
        %4183 = vmatpush.msra.mxu0 %v3731
        %4184 = vmatpush.msra.mxu0 %v3700
        %4185 = vmatpush.msra.mxu0 %v3669
        %4186 = vmatmul.f32.gmra.mxu0 %v3811
        %v4187 = vpop.f32.mrf.mxu0
        %v4188 = vadd.f32 %v3792, %v4187
        %4189 = vmatmul.f32.gmra.mxu0 %v3814
        %v4190 = vpop.f32.mrf.mxu0
        %v4191 = vadd.f32 %v3797, %v4190
        %4192 = vmatmul.f32.gmra.mxu0 %v3817
        %v4193 = vpop.f32.mrf.mxu0
        %v4194 = vadd.f32 %v3802, %v4193
        %4195 = vmatmul.f32.gmra.mxu0 %v3820
        %v4196 = vpop.f32.mrf.mxu0
        %v4197 = vadd.f32 %v3807, %v4196
        %4198 = vdwg.mxu0
        %4199 = vmatpush.msra.mxu0 0.0
        %4200 = vmatpush.msra.mxu0 0.0
        %4201 = vmatpush.msra.mxu0 0.0
        %4202 = vmatpush.msra.mxu0 0.0
        %4203 = vmatpush.msra.mxu0 0.0
        %4204 = vmatpush.msra.mxu0 0.0
        %4205 = vmatpush.msra.mxu0 0.0
        %4206 = vmatpush.msra.mxu0 0.0
        %4207 = vmatpush.msra.mxu0 0.0
        %4208 = vmatpush.msra.mxu0 0.0
        %4209 = vmatpush.msra.mxu0 0.0
        %4210 = vmatpush.msra.mxu0 0.0
        %4211 = vmatpush.msra.mxu0 %v3763
        %4212 = vmatpush.msra.mxu0 %v3732
        %4213 = vmatpush.msra.mxu0 %v3701
        %4214 = vmatpush.msra.mxu0 %v3670
        %4215 = vmatmul.f32.gmra.mxu0 %v3811
        %v4216 = vpop.f32.mrf.mxu0
        %v4217 = vadd.f32 %v3792, %v4216
        %4218 = vmatmul.f32.gmra.mxu0 %v3814
        %v4219 = vpop.f32.mrf.mxu0
        %v4220 = vadd.f32 %v3797, %v4219
        %4221 = vmatmul.f32.gmra.mxu0 %v3817
        %v4222 = vpop.f32.mrf.mxu0
        %v4223 = vadd.f32 %v3802, %v4222
        %4224 = vmatmul.f32.gmra.mxu0 %v3820
        %v4225 = vpop.f32.mrf.mxu0
        %v4226 = vadd.f32 %v3807, %v4225
        %4227 = vdwg.mxu0
        %4228 = vmatpush.msra.mxu0 0.0
        %4229 = vmatpush.msra.mxu0 0.0
        %4230 = vmatpush.msra.mxu0 0.0
        %4231 = vmatpush.msra.mxu0 0.0
        %4232 = vmatpush.msra.mxu0 0.0
        %4233 = vmatpush.msra.mxu0 0.0
        %4234 = vmatpush.msra.mxu0 0.0
        %4235 = vmatpush.msra.mxu0 0.0
        %4236 = vmatpush.msra.mxu0 0.0
        %4237 = vmatpush.msra.mxu0 0.0
        %4238 = vmatpush.msra.mxu0 0.0
        %4239 = vmatpush.msra.mxu0 0.0
        %4240 = vmatpush.msra.mxu0 %v3764
        %4241 = vmatpush.msra.mxu0 %v3733
        %4242 = vmatpush.msra.mxu0 %v3702
        %4243 = vmatpush.msra.mxu0 %v3671
        %4244 = vmatmul.f32.gmra.mxu0 %v3811
        %v4245 = vpop.f32.mrf.mxu0
        %v4246 = vadd.f32 %v3792, %v4245
        %4247 = vmatmul.f32.gmra.mxu0 %v3814
        %v4248 = vpop.f32.mrf.mxu0
        %v4249 = vadd.f32 %v3797, %v4248
        %4250 = vmatmul.f32.gmra.mxu0 %v3817
        %v4251 = vpop.f32.mrf.mxu0
        %v4252 = vadd.f32 %v3802, %v4251
        %4253 = vmatmul.f32.gmra.mxu0 %v3820
        %v4254 = vpop.f32.mrf.mxu0
        %v4255 = vadd.f32 %v3807, %v4254
        %4256 = vdwg.mxu0
        %4257 = vmatpush.msra.mxu0 0.0
        %4258 = vmatpush.msra.mxu0 0.0
        %4259 = vmatpush.msra.mxu0 0.0
        %4260 = vmatpush.msra.mxu0 0.0
        %4261 = vmatpush.msra.mxu0 0.0
        %4262 = vmatpush.msra.mxu0 0.0
        %4263 = vmatpush.msra.mxu0 0.0
        %4264 = vmatpush.msra.mxu0 0.0
        %4265 = vmatpush.msra.mxu0 0.0
        %4266 = vmatpush.msra.mxu0 0.0
        %4267 = vmatpush.msra.mxu0 0.0
        %4268 = vmatpush.msra.mxu0 0.0
        %4269 = vmatpush.msra.mxu0 %v3765
        %4270 = vmatpush.msra.mxu0 %v3734
        %4271 = vmatpush.msra.mxu0 %v3703
        %4272 = vmatpush.msra.mxu0 %v3672
        %4273 = vmatmul.f32.gmra.mxu0 %v3811
        %v4274 = vpop.f32.mrf.mxu0
        %v4275 = vadd.f32 %v3792, %v4274
        %4276 = vmatmul.f32.gmra.mxu0 %v3814
        %v4277 = vpop.f32.mrf.mxu0
        %v4278 = vadd.f32 %v3797, %v4277
        %4279 = vmatmul.f32.gmra.mxu0 %v3817
        %v4280 = vpop.f32.mrf.mxu0
        %v4281 = vadd.f32 %v3802, %v4280
        %4282 = vmatmul.f32.gmra.mxu0 %v3820
        %v4283 = vpop.f32.mrf.mxu0
        %v4284 = vadd.f32 %v3807, %v4283
        %4285 = vdwg.mxu0
        %4286 = vmatpush.msra.mxu0 0.0
        %4287 = vmatpush.msra.mxu0 0.0
        %4288 = vmatpush.msra.mxu0 0.0
        %4289 = vmatpush.msra.mxu0 0.0
        %4290 = vmatpush.msra.mxu0 0.0
        %4291 = vmatpush.msra.mxu0 0.0
        %4292 = vmatpush.msra.mxu0 0.0
        %4293 = vmatpush.msra.mxu0 0.0
        %4294 = vmatpush.msra.mxu0 0.0
        %4295 = vmatpush.msra.mxu0 0.0
        %4296 = vmatpush.msra.mxu0 0.0
        %4297 = vmatpush.msra.mxu0 0.0
        %4298 = vmatpush.msra.mxu0 %v3766
        %4299 = vmatpush.msra.mxu0 %v3735
        %4300 = vmatpush.msra.mxu0 %v3704
        %4301 = vmatpush.msra.mxu0 %v3673
        %4302 = vmatmul.f32.gmra.mxu0 %v3811
        %v4303 = vpop.f32.mrf.mxu0
        %v4304 = vadd.f32 %v3792, %v4303
        %4305 = vmatmul.f32.gmra.mxu0 %v3814
        %v4306 = vpop.f32.mrf.mxu0
        %v4307 = vadd.f32 %v3797, %v4306
        %4308 = vmatmul.f32.gmra.mxu0 %v3817
        %v4309 = vpop.f32.mrf.mxu0
        %v4310 = vadd.f32 %v3802, %v4309
        %4311 = vmatmul.f32.gmra.mxu0 %v3820
        %v4312 = vpop.f32.mrf.mxu0
        %v4313 = vadd.f32 %v3807, %v4312
        %4314 = vdwg.mxu0
        %4315 = vmatpush.msra.mxu0 0.0
        %4316 = vmatpush.msra.mxu0 0.0
        %4317 = vmatpush.msra.mxu0 0.0
        %4318 = vmatpush.msra.mxu0 0.0
        %4319 = vmatpush.msra.mxu0 0.0
        %4320 = vmatpush.msra.mxu0 0.0
        %4321 = vmatpush.msra.mxu0 0.0
        %4322 = vmatpush.msra.mxu0 0.0
        %4323 = vmatpush.msra.mxu0 0.0
        %4324 = vmatpush.msra.mxu0 0.0
        %4325 = vmatpush.msra.mxu0 0.0
        %4326 = vmatpush.msra.mxu0 0.0
        %4327 = vmatpush.msra.mxu0 %v3767
        %4328 = vmatpush.msra.mxu0 %v3736
        %4329 = vmatpush.msra.mxu0 %v3705
        %4330 = vmatpush.msra.mxu0 %v3674
        %4331 = vmatmul.f32.gmra.mxu0 %v3811
        %v4332 = vpop.f32.mrf.mxu0
        %v4333 = vadd.f32 %v3792, %v4332
        %4334 = vmatmul.f32.gmra.mxu0 %v3814
        %v4335 = vpop.f32.mrf.mxu0
        %v4336 = vadd.f32 %v3797, %v4335
        %4337 = vmatmul.f32.gmra.mxu0 %v3817
        %v4338 = vpop.f32.mrf.mxu0
        %v4339 = vadd.f32 %v3802, %v4338
        %4340 = vmatmul.f32.gmra.mxu0 %v3820
        %v4341 = vpop.f32.mrf.mxu0
        %v4342 = vadd.f32 %v3807, %v4341
        %4343 = vdwg.mxu0
        %4344 = vmatpush.msra.mxu0 0.0
        %4345 = vmatpush.msra.mxu0 0.0
        %4346 = vmatpush.msra.mxu0 0.0
        %4347 = vmatpush.msra.mxu0 0.0
        %4348 = vmatpush.msra.mxu0 0.0
        %4349 = vmatpush.msra.mxu0 0.0
        %4350 = vmatpush.msra.mxu0 0.0
        %4351 = vmatpush.msra.mxu0 0.0
        %4352 = vmatpush.msra.mxu0 0.0
        %4353 = vmatpush.msra.mxu0 0.0
        %4354 = vmatpush.msra.mxu0 0.0
        %4355 = vmatpush.msra.mxu0 0.0
        %4356 = vmatpush.msra.mxu0 %v3768
        %4357 = vmatpush.msra.mxu0 %v3737
        %4358 = vmatpush.msra.mxu0 %v3706
        %4359 = vmatpush.msra.mxu0 %v3675
        %4360 = vmatmul.f32.gmra.mxu0 %v3811
        %v4361 = vpop.f32.mrf.mxu0
        %v4362 = vadd.f32 %v3792, %v4361
        %4363 = vmatmul.f32.gmra.mxu0 %v3814
        %v4364 = vpop.f32.mrf.mxu0
        %v4365 = vadd.f32 %v3797, %v4364
        %4366 = vmatmul.f32.gmra.mxu0 %v3817
        %v4367 = vpop.f32.mrf.mxu0
        %v4368 = vadd.f32 %v3802, %v4367
        %4369 = vmatmul.f32.gmra.mxu0 %v3820
        %v4370 = vpop.f32.mrf.mxu0
        %v4371 = vadd.f32 %v3807, %v4370
        %4372 = vdwg.mxu0
        %4373 = vmatpush.msra.mxu0 0.0
        %4374 = vmatpush.msra.mxu0 0.0
        %4375 = vmatpush.msra.mxu0 0.0
        %4376 = vmatpush.msra.mxu0 0.0
        %4377 = vmatpush.msra.mxu0 0.0
        %4378 = vmatpush.msra.mxu0 0.0
        %4379 = vmatpush.msra.mxu0 0.0
        %4380 = vmatpush.msra.mxu0 0.0
        %4381 = vmatpush.msra.mxu0 0.0
        %4382 = vmatpush.msra.mxu0 0.0
        %4383 = vmatpush.msra.mxu0 0.0
        %4384 = vmatpush.msra.mxu0 0.0
        %4385 = vmatpush.msra.mxu0 %v3769
        %4386 = vmatpush.msra.mxu0 %v3738
        %4387 = vmatpush.msra.mxu0 %v3707
        %4388 = vmatpush.msra.mxu0 %v3676
        %4389 = vmatmul.f32.gmra.mxu0 %v3811
        %v4390 = vpop.f32.mrf.mxu0
        %v4391 = vadd.f32 %v3792, %v4390
        %4392 = vmatmul.f32.gmra.mxu0 %v3814
        %v4393 = vpop.f32.mrf.mxu0
        %v4394 = vadd.f32 %v3797, %v4393
        %4395 = vmatmul.f32.gmra.mxu0 %v3817
        %v4396 = vpop.f32.mrf.mxu0
        %v4397 = vadd.f32 %v3802, %v4396
        %4398 = vmatmul.f32.gmra.mxu0 %v3820
        %v4399 = vpop.f32.mrf.mxu0
        %v4400 = vadd.f32 %v3807, %v4399
        %4401 = vdwg.mxu0
        %4402 = vmatpush.msra.mxu0 0.0
        %4403 = vmatpush.msra.mxu0 0.0
        %4404 = vmatpush.msra.mxu0 0.0
        %4405 = vmatpush.msra.mxu0 0.0
        %4406 = vmatpush.msra.mxu0 0.0
        %4407 = vmatpush.msra.mxu0 0.0
        %4408 = vmatpush.msra.mxu0 0.0
        %4409 = vmatpush.msra.mxu0 0.0
        %4410 = vmatpush.msra.mxu0 0.0
        %4411 = vmatpush.msra.mxu0 0.0
        %4412 = vmatpush.msra.mxu0 0.0
        %4413 = vmatpush.msra.mxu0 0.0
        %4414 = vmatpush.msra.mxu0 %v3770
        %4415 = vmatpush.msra.mxu0 %v3739
        %4416 = vmatpush.msra.mxu0 %v3708
        %4417 = vmatpush.msra.mxu0 %v3677
        %4418 = vmatmul.f32.gmra.mxu0 %v3811
        %v4419 = vpop.f32.mrf.mxu0
        %v4420 = vadd.f32 %v3792, %v4419
        %4421 = vmatmul.f32.gmra.mxu0 %v3814
        %v4422 = vpop.f32.mrf.mxu0
        %v4423 = vadd.f32 %v3797, %v4422
        %4424 = vmatmul.f32.gmra.mxu0 %v3817
        %v4425 = vpop.f32.mrf.mxu0
        %v4426 = vadd.f32 %v3802, %v4425
        %4427 = vmatmul.f32.gmra.mxu0 %v3820
        %v4428 = vpop.f32.mrf.mxu0
        %v4429 = vadd.f32 %v3807, %v4428
        %4430 = vdwg.mxu0
        %4431 = vmatpush.msra.mxu0 0.0
        %4432 = vmatpush.msra.mxu0 0.0
        %4433 = vmatpush.msra.mxu0 0.0
        %4434 = vmatpush.msra.mxu0 0.0
        %4435 = vmatpush.msra.mxu0 0.0
        %4436 = vmatpush.msra.mxu0 0.0
        %4437 = vmatpush.msra.mxu0 0.0
        %4438 = vmatpush.msra.mxu0 0.0
        %4439 = vmatpush.msra.mxu0 0.0
        %4440 = vmatpush.msra.mxu0 0.0
        %4441 = vmatpush.msra.mxu0 0.0
        %4442 = vmatpush.msra.mxu0 0.0
        %4443 = vmatpush.msra.mxu0 %v3771
        %4444 = vmatpush.msra.mxu0 %v3740
        %4445 = vmatpush.msra.mxu0 %v3709
        %4446 = vmatpush.msra.mxu0 %v3678
        %4447 = vmatmul.f32.gmra.mxu0 %v3811
        %v4448 = vpop.f32.mrf.mxu0
        %v4449 = vadd.f32 %v3792, %v4448
        %4450 = vmatmul.f32.gmra.mxu0 %v3814
        %v4451 = vpop.f32.mrf.mxu0
        %v4452 = vadd.f32 %v3797, %v4451
        %4453 = vmatmul.f32.gmra.mxu0 %v3817
        %v4454 = vpop.f32.mrf.mxu0
        %v4455 = vadd.f32 %v3802, %v4454
        %4456 = vmatmul.f32.gmra.mxu0 %v3820
        %v4457 = vpop.f32.mrf.mxu0
        %v4458 = vadd.f32 %v3807, %v4457
        %4459 = vdwg.mxu0
        %4460 = vmatpush.msra.mxu0 0.0
        %4461 = vmatpush.msra.mxu0 0.0
        %4462 = vmatpush.msra.mxu0 0.0
        %4463 = vmatpush.msra.mxu0 0.0
        %4464 = vmatpush.msra.mxu0 0.0
        %4465 = vmatpush.msra.mxu0 0.0
        %4466 = vmatpush.msra.mxu0 0.0
        %4467 = vmatpush.msra.mxu0 0.0
        %4468 = vmatpush.msra.mxu0 0.0
        %4469 = vmatpush.msra.mxu0 0.0
        %4470 = vmatpush.msra.mxu0 0.0
        %4471 = vmatpush.msra.mxu0 0.0
        %4472 = vmatpush.msra.mxu0 %v3772
        %4473 = vmatpush.msra.mxu0 %v3741
        %4474 = vmatpush.msra.mxu0 %v3710
        %4475 = vmatpush.msra.mxu0 %v3679
        %4476 = vmatmul.f32.gmra.mxu0 %v3811
        %v4477 = vpop.f32.mrf.mxu0
        %v4478 = vadd.f32 %v3792, %v4477
        %4479 = vmatmul.f32.gmra.mxu0 %v3814
        %v4480 = vpop.f32.mrf.mxu0
        %v4481 = vadd.f32 %v3797, %v4480
        %4482 = vmatmul.f32.gmra.mxu0 %v3817
        %v4483 = vpop.f32.mrf.mxu0
        %v4484 = vadd.f32 %v3802, %v4483
        %4485 = vmatmul.f32.gmra.mxu0 %v3820
        %v4486 = vpop.f32.mrf.mxu0
        %v4487 = vadd.f32 %v3807, %v4486
        %4488 = vdwg.mxu0
        %4489 = vmatpush.msra.mxu0 0.0
        %4490 = vmatpush.msra.mxu0 0.0
        %4491 = vmatpush.msra.mxu0 0.0
        %4492 = vmatpush.msra.mxu0 0.0
        %4493 = vmatpush.msra.mxu0 0.0
        %4494 = vmatpush.msra.mxu0 0.0
        %4495 = vmatpush.msra.mxu0 0.0
        %4496 = vmatpush.msra.mxu0 0.0
        %4497 = vmatpush.msra.mxu0 0.0
        %4498 = vmatpush.msra.mxu0 0.0
        %4499 = vmatpush.msra.mxu0 0.0
        %4500 = vmatpush.msra.mxu0 0.0
        %4501 = vmatpush.msra.mxu0 %v3773
        %4502 = vmatpush.msra.mxu0 %v3742
        %4503 = vmatpush.msra.mxu0 %v3711
        %4504 = vmatpush.msra.mxu0 %v3680
        %4505 = vmatmul.f32.gmra.mxu0 %v3811
        %v4506 = vpop.f32.mrf.mxu0
        %v4507 = vadd.f32 %v3792, %v4506
        %4508 = vmatmul.f32.gmra.mxu0 %v3814
        %v4509 = vpop.f32.mrf.mxu0
        %v4510 = vadd.f32 %v3797, %v4509
        %4511 = vmatmul.f32.gmra.mxu0 %v3817
        %v4512 = vpop.f32.mrf.mxu0
        %v4513 = vadd.f32 %v3802, %v4512
        %4514 = vmatmul.f32.gmra.mxu0 %v3820
        %v4515 = vpop.f32.mrf.mxu0
        %v4516 = vadd.f32 %v3807, %v4515
        %4517 = vdwg.mxu0
        %4518 = vmatpush.msra.mxu0 0.0
        %4519 = vmatpush.msra.mxu0 0.0
        %4520 = vmatpush.msra.mxu0 0.0
        %4521 = vmatpush.msra.mxu0 0.0
        %4522 = vmatpush.msra.mxu0 0.0
        %4523 = vmatpush.msra.mxu0 0.0
        %4524 = vmatpush.msra.mxu0 0.0
        %4525 = vmatpush.msra.mxu0 0.0
        %4526 = vmatpush.msra.mxu0 0.0
        %4527 = vmatpush.msra.mxu0 0.0
        %4528 = vmatpush.msra.mxu0 0.0
        %4529 = vmatpush.msra.mxu0 0.0
        %4530 = vmatpush.msra.mxu0 %v3774
        %4531 = vmatpush.msra.mxu0 %v3743
        %4532 = vmatpush.msra.mxu0 %v3712
        %4533 = vmatpush.msra.mxu0 %v3681
        %4534 = vmatmul.f32.gmra.mxu0 %v3811
        %v4535 = vpop.f32.mrf.mxu0
        %v4536 = vadd.f32 %v3792, %v4535
        %4537 = vmatmul.f32.gmra.mxu0 %v3814
        %v4538 = vpop.f32.mrf.mxu0
        %v4539 = vadd.f32 %v3797, %v4538
        %4540 = vmatmul.f32.gmra.mxu0 %v3817
        %v4541 = vpop.f32.mrf.mxu0
        %v4542 = vadd.f32 %v3802, %v4541
        %4543 = vmatmul.f32.gmra.mxu0 %v3820
        %v4544 = vpop.f32.mrf.mxu0
        %v4545 = vadd.f32 %v3807, %v4544
        %4546 = vdwg.mxu0
        %4547 = vmatpush.msra.mxu0 0.0
        %4548 = vmatpush.msra.mxu0 0.0
        %4549 = vmatpush.msra.mxu0 0.0
        %4550 = vmatpush.msra.mxu0 0.0
        %4551 = vmatpush.msra.mxu0 0.0
        %4552 = vmatpush.msra.mxu0 0.0
        %4553 = vmatpush.msra.mxu0 0.0
        %4554 = vmatpush.msra.mxu0 0.0
        %4555 = vmatpush.msra.mxu0 0.0
        %4556 = vmatpush.msra.mxu0 0.0
        %4557 = vmatpush.msra.mxu0 0.0
        %4558 = vmatpush.msra.mxu0 0.0
        %4559 = vmatpush.msra.mxu0 %v3775
        %4560 = vmatpush.msra.mxu0 %v3744
        %4561 = vmatpush.msra.mxu0 %v3713
        %4562 = vmatpush.msra.mxu0 %v3682
        %4563 = vmatmul.f32.gmra.mxu0 %v3811
        %v4564 = vpop.f32.mrf.mxu0
        %v4565 = vadd.f32 %v3792, %v4564
        %4566 = vmatmul.f32.gmra.mxu0 %v3814
        %v4567 = vpop.f32.mrf.mxu0
        %v4568 = vadd.f32 %v3797, %v4567
        %4569 = vmatmul.f32.gmra.mxu0 %v3817
        %v4570 = vpop.f32.mrf.mxu0
        %v4571 = vadd.f32 %v3802, %v4570
        %4572 = vmatmul.f32.gmra.mxu0 %v3820
        %v4573 = vpop.f32.mrf.mxu0
        %v4574 = vadd.f32 %v3807, %v4573
        %4575 = vdwg.mxu0
        %4576 = vmatpush.msra.mxu0 0.0
        %4577 = vmatpush.msra.mxu0 0.0
        %4578 = vmatpush.msra.mxu0 0.0
        %4579 = vmatpush.msra.mxu0 0.0
        %4580 = vmatpush.msra.mxu0 0.0
        %4581 = vmatpush.msra.mxu0 0.0
        %4582 = vmatpush.msra.mxu0 0.0
        %4583 = vmatpush.msra.mxu0 0.0
        %4584 = vmatpush.msra.mxu0 0.0
        %4585 = vmatpush.msra.mxu0 0.0
        %4586 = vmatpush.msra.mxu0 0.0
        %4587 = vmatpush.msra.mxu0 0.0
        %4588 = vmatpush.msra.mxu0 %v3776
        %4589 = vmatpush.msra.mxu0 %v3745
        %4590 = vmatpush.msra.mxu0 %v3714
        %4591 = vmatpush.msra.mxu0 %v3683
        %4592 = vmatmul.f32.gmra.mxu0 %v3811
        %v4593 = vpop.f32.mrf.mxu0
        %v4594 = vadd.f32 %v3792, %v4593
        %4595 = vmatmul.f32.gmra.mxu0 %v3814
        %v4596 = vpop.f32.mrf.mxu0
        %v4597 = vadd.f32 %v3797, %v4596
        %4598 = vmatmul.f32.gmra.mxu0 %v3817
        %v4599 = vpop.f32.mrf.mxu0
        %v4600 = vadd.f32 %v3802, %v4599
        %4601 = vmatmul.f32.gmra.mxu0 %v3820
        %v4602 = vpop.f32.mrf.mxu0
        %v4603 = vadd.f32 %v3807, %v4602
        %4604 = vdwg.mxu0
        %4605 = vmatpush.msra.mxu0 0.0
        %4606 = vmatpush.msra.mxu0 0.0
        %4607 = vmatpush.msra.mxu0 0.0
        %4608 = vmatpush.msra.mxu0 0.0
        %4609 = vmatpush.msra.mxu0 0.0
        %4610 = vmatpush.msra.mxu0 0.0
        %4611 = vmatpush.msra.mxu0 0.0
        %4612 = vmatpush.msra.mxu0 0.0
        %4613 = vmatpush.msra.mxu0 0.0
        %4614 = vmatpush.msra.mxu0 0.0
        %4615 = vmatpush.msra.mxu0 0.0
        %4616 = vmatpush.msra.mxu0 0.0
        %4617 = vmatpush.msra.mxu0 %v3777
        %4618 = vmatpush.msra.mxu0 %v3746
        %4619 = vmatpush.msra.mxu0 %v3715
        %4620 = vmatpush.msra.mxu0 %v3684
        %4621 = vmatmul.f32.gmra.mxu0 %v3811
        %v4622 = vpop.f32.mrf.mxu0
        %v4623 = vadd.f32 %v3792, %v4622
        %4624 = vmatmul.f32.gmra.mxu0 %v3814
        %v4625 = vpop.f32.mrf.mxu0
        %v4626 = vadd.f32 %v3797, %v4625
        %4627 = vmatmul.f32.gmra.mxu0 %v3817
        %v4628 = vpop.f32.mrf.mxu0
        %v4629 = vadd.f32 %v3802, %v4628
        %4630 = vmatmul.f32.gmra.mxu0 %v3820
        %v4631 = vpop.f32.mrf.mxu0
        %v4632 = vadd.f32 %v3807, %v4631
        %4633 = vdwg.mxu0
        %4634 = vmatpush.msra.mxu0 0.0
        %4635 = vmatpush.msra.mxu0 0.0
        %4636 = vmatpush.msra.mxu0 0.0
        %4637 = vmatpush.msra.mxu0 0.0
        %4638 = vmatpush.msra.mxu0 0.0
        %4639 = vmatpush.msra.mxu0 0.0
        %4640 = vmatpush.msra.mxu0 0.0
        %4641 = vmatpush.msra.mxu0 0.0
        %4642 = vmatpush.msra.mxu0 0.0
        %4643 = vmatpush.msra.mxu0 0.0
        %4644 = vmatpush.msra.mxu0 0.0
        %4645 = vmatpush.msra.mxu0 0.0
        %4646 = vmatpush.msra.mxu0 %v3778
        %4647 = vmatpush.msra.mxu0 %v3747
        %4648 = vmatpush.msra.mxu0 %v3716
        %4649 = vmatpush.msra.mxu0 %v3685
        %4650 = vmatmul.f32.gmra.mxu0 %v3811
        %v4651 = vpop.f32.mrf.mxu0
        %v4652 = vadd.f32 %v3792, %v4651
        %4653 = vmatmul.f32.gmra.mxu0 %v3814
        %v4654 = vpop.f32.mrf.mxu0
        %v4655 = vadd.f32 %v3797, %v4654
        %4656 = vmatmul.f32.gmra.mxu0 %v3817
        %v4657 = vpop.f32.mrf.mxu0
        %v4658 = vadd.f32 %v3802, %v4657
        %4659 = vmatmul.f32.gmra.mxu0 %v3820
        %v4660 = vpop.f32.mrf.mxu0
        %v4661 = vadd.f32 %v3807, %v4660
        %4662 = vdwg.mxu0
        %4663 = vmatpush.msra.mxu0 0.0
        %4664 = vmatpush.msra.mxu0 0.0
        %4665 = vmatpush.msra.mxu0 0.0
        %4666 = vmatpush.msra.mxu0 0.0
        %4667 = vmatpush.msra.mxu0 0.0
        %4668 = vmatpush.msra.mxu0 0.0
        %4669 = vmatpush.msra.mxu0 0.0
        %4670 = vmatpush.msra.mxu0 0.0
        %4671 = vmatpush.msra.mxu0 0.0
        %4672 = vmatpush.msra.mxu0 0.0
        %4673 = vmatpush.msra.mxu0 0.0
        %4674 = vmatpush.msra.mxu0 0.0
        %4675 = vmatpush.msra.mxu0 %v3779
        %4676 = vmatpush.msra.mxu0 %v3748
        %4677 = vmatpush.msra.mxu0 %v3717
        %4678 = vmatpush.msra.mxu0 %v3686
        %4679 = vmatmul.f32.gmra.mxu0 %v3811
        %v4680 = vpop.f32.mrf.mxu0
        %v4681 = vadd.f32 %v3792, %v4680
        %4682 = vmatmul.f32.gmra.mxu0 %v3814
        %v4683 = vpop.f32.mrf.mxu0
        %v4684 = vadd.f32 %v3797, %v4683
        %4685 = vmatmul.f32.gmra.mxu0 %v3817
        %v4686 = vpop.f32.mrf.mxu0
        %v4687 = vadd.f32 %v3802, %v4686
        %4688 = vmatmul.f32.gmra.mxu0 %v3820
        %v4689 = vpop.f32.mrf.mxu0
        %v4690 = vadd.f32 %v3807, %v4689
        %4691 = vdwg.mxu0
        %4692 = vmatpush.msra.mxu0 0.0
        %4693 = vmatpush.msra.mxu0 0.0
        %4694 = vmatpush.msra.mxu0 0.0
        %4695 = vmatpush.msra.mxu0 0.0
        %4696 = vmatpush.msra.mxu0 0.0
        %4697 = vmatpush.msra.mxu0 0.0
        %4698 = vmatpush.msra.mxu0 0.0
        %4699 = vmatpush.msra.mxu0 0.0
        %4700 = vmatpush.msra.mxu0 0.0
        %4701 = vmatpush.msra.mxu0 0.0
        %4702 = vmatpush.msra.mxu0 0.0
        %4703 = vmatpush.msra.mxu0 0.0
        %4704 = vmatpush.msra.mxu0 %v3780
        %4705 = vmatpush.msra.mxu0 %v3749
        %4706 = vmatpush.msra.mxu0 %v3718
        %4707 = vmatpush.msra.mxu0 %v3687
        %4708 = vmatmul.f32.gmra.mxu0 %v3811
        %v4709 = vpop.f32.mrf.mxu0
        %v4710 = vadd.f32 %v3792, %v4709
        %4711 = vmatmul.f32.gmra.mxu0 %v3814
        %v4712 = vpop.f32.mrf.mxu0
        %v4713 = vadd.f32 %v3797, %v4712
        %4714 = vmatmul.f32.gmra.mxu0 %v3817
        %v4715 = vpop.f32.mrf.mxu0
        %v4716 = vadd.f32 %v3802, %v4715
        %4717 = vmatmul.f32.gmra.mxu0 %v3820
        %v4718 = vpop.f32.mrf.mxu0
        %v4719 = vadd.f32 %v3807, %v4718
        %4720 = vdwg.mxu0
        %v4721 = vmul.f32 %v3840, 0.15915494
        %v4722 = vmul.f32 %v3869, 0.15915494
        %v4723 = vmul.f32 %v3898, 0.15915494
        %v4724 = vmul.f32 %v3927, 0.15915494
        %v4725 = vmul.f32 %v3956, 0.15915494
        %v4726 = vmul.f32 %v3985, 0.15915494
        %v4727 = vmul.f32 %v4014, 0.15915494
        %v4728 = vmul.f32 %v4043, 0.15915494
        %v4729 = vmul.f32 %v4072, 0.15915494
        %v4730 = vmul.f32 %v4101, 0.15915494
        %v4731 = vmul.f32 %v4130, 0.15915494
        %v4732 = vmul.f32 %v4159, 0.15915494
        %v4733 = vmul.f32 %v4188, 0.15915494
        %v4734 = vmul.f32 %v4217, 0.15915494
        %v4735 = vmul.f32 %v4246, 0.15915494
        %v4736 = vmul.f32 %v4275, 0.15915494
        %v4737 = vmul.f32 %v4304, 0.15915494
        %v4738 = vmul.f32 %v4333, 0.15915494
        %v4739 = vmul.f32 %v4362, 0.15915494
        %v4740 = vmul.f32 %v4391, 0.15915494
        %v4741 = vmul.f32 %v4420, 0.15915494
        %v4742 = vmul.f32 %v4449, 0.15915494
        %v4743 = vmul.f32 %v4478, 0.15915494
        %v4744 = vmul.f32 %v4507, 0.15915494
        %v4745 = vmul.f32 %v4536, 0.15915494
        %v4746 = vmul.f32 %v4565, 0.15915494
        %v4747 = vmul.f32 %v4594, 0.15915494
        %v4748 = vmul.f32 %v4623, 0.15915494
        %v4749 = vmul.f32 %v4652, 0.15915494
        %v4750 = vmul.f32 %v4681, 0.15915494
        %v4751 = vmul.f32 %v4710, 0.15915494
        %v4752 = vmul.f32 %v3843, 0.15915494
        %v4753 = vmul.f32 %v3872, 0.15915494
        %v4754 = vmul.f32 %v3901, 0.15915494
        %v4755 = vmul.f32 %v3930, 0.15915494
        %v4756 = vmul.f32 %v3959, 0.15915494
        %v4757 = vmul.f32 %v3988, 0.15915494
        %v4758 = vmul.f32 %v4017, 0.15915494
        %v4759 = vmul.f32 %v4046, 0.15915494
        %v4760 = vmul.f32 %v4075, 0.15915494
        %v4761 = vmul.f32 %v4104, 0.15915494
        %v4762 = vmul.f32 %v4133, 0.15915494
        %v4763 = vmul.f32 %v4162, 0.15915494
        %v4764 = vmul.f32 %v4191, 0.15915494
        %v4765 = vmul.f32 %v4220, 0.15915494
        %v4766 = vmul.f32 %v4249, 0.15915494
        %v4767 = vmul.f32 %v4278, 0.15915494
        %v4768 = vmul.f32 %v4307, 0.15915494
        %v4769 = vmul.f32 %v4336, 0.15915494
        %v4770 = vmul.f32 %v4365, 0.15915494
        %v4771 = vmul.f32 %v4394, 0.15915494
        %v4772 = vmul.f32 %v4423, 0.15915494
        %v4773 = vmul.f32 %v4452, 0.15915494
        %v4774 = vmul.f32 %v4481, 0.15915494
        %v4775 = vmul.f32 %v4510, 0.15915494
        %v4776 = vmul.f32 %v4539, 0.15915494
        %v4777 = vmul.f32 %v4568, 0.15915494
        %v4778 = vmul.f32 %v4597, 0.15915494
        %v4779 = vmul.f32 %v4626, 0.15915494
        %v4780 = vmul.f32 %v4655, 0.15915494
        %v4781 = vmul.f32 %v4684, 0.15915494
        %v4782 = vmul.f32 %v4713, 0.15915494
        %v4783 = vmul.f32 %v3846, 0.15915494
        %v4784 = vmul.f32 %v3875, 0.15915494
        %v4785 = vmul.f32 %v3904, 0.15915494
        %v4786 = vmul.f32 %v3933, 0.15915494
        %v4787 = vmul.f32 %v3962, 0.15915494
        %v4788 = vmul.f32 %v3991, 0.15915494
        %v4789 = vmul.f32 %v4020, 0.15915494
        %v4790 = vmul.f32 %v4049, 0.15915494
        %v4791 = vmul.f32 %v4078, 0.15915494
        %v4792 = vmul.f32 %v4107, 0.15915494
        %v4793 = vmul.f32 %v4136, 0.15915494
        %v4794 = vmul.f32 %v4165, 0.15915494
        %v4795 = vmul.f32 %v4194, 0.15915494
        %v4796 = vmul.f32 %v4223, 0.15915494
        %v4797 = vmul.f32 %v4252, 0.15915494
        %v4798 = vmul.f32 %v4281, 0.15915494
        %v4799 = vmul.f32 %v4310, 0.15915494
        %v4800 = vmul.f32 %v4339, 0.15915494
        %v4801 = vmul.f32 %v4368, 0.15915494
        %v4802 = vmul.f32 %v4397, 0.15915494
        %v4803 = vmul.f32 %v4426, 0.15915494
        %v4804 = vmul.f32 %v4455, 0.15915494
        %v4805 = vmul.f32 %v4484, 0.15915494
        %v4806 = vmul.f32 %v4513, 0.15915494
        %v4807 = vmul.f32 %v4542, 0.15915494
        %v4808 = vmul.f32 %v4571, 0.15915494
        %v4809 = vmul.f32 %v4600, 0.15915494
        %v4810 = vmul.f32 %v4629, 0.15915494
        %v4811 = vmul.f32 %v4658, 0.15915494
        %v4812 = vmul.f32 %v4687, 0.15915494
        %v4813 = vmul.f32 %v4716, 0.15915494
        %v4814 = vmul.f32 %v3849, 0.15915494
        %v4815 = vmul.f32 %v3878, 0.15915494
        %v4816 = vmul.f32 %v3907, 0.15915494
        %v4817 = vmul.f32 %v3936, 0.15915494
        %v4818 = vmul.f32 %v3965, 0.15915494
        %v4819 = vmul.f32 %v3994, 0.15915494
        %v4820 = vmul.f32 %v4023, 0.15915494
        %v4821 = vmul.f32 %v4052, 0.15915494
        %v4822 = vmul.f32 %v4081, 0.15915494
        %v4823 = vmul.f32 %v4110, 0.15915494
        %v4824 = vmul.f32 %v4139, 0.15915494
        %v4825 = vmul.f32 %v4168, 0.15915494
        %v4826 = vmul.f32 %v4197, 0.15915494
        %v4827 = vmul.f32 %v4226, 0.15915494
        %v4828 = vmul.f32 %v4255, 0.15915494
        %v4829 = vmul.f32 %v4284, 0.15915494
        %v4830 = vmul.f32 %v4313, 0.15915494
        %v4831 = vmul.f32 %v4342, 0.15915494
        %v4832 = vmul.f32 %v4371, 0.15915494
        %v4833 = vmul.f32 %v4400, 0.15915494
        %v4834 = vmul.f32 %v4429, 0.15915494
        %v4835 = vmul.f32 %v4458, 0.15915494
        %v4836 = vmul.f32 %v4487, 0.15915494
        %v4837 = vmul.f32 %v4516, 0.15915494
        %v4838 = vmul.f32 %v4545, 0.15915494
        %v4839 = vmul.f32 %v4574, 0.15915494
        %v4840 = vmul.f32 %v4603, 0.15915494
        %v4841 = vmul.f32 %v4632, 0.15915494
        %v4842 = vmul.f32 %v4661, 0.15915494
        %v4843 = vmul.f32 %v4690, 0.15915494
        %v4844 = vmul.f32 %v4719, 0.15915494
        %v4845 = vadd.f32 %v4721, 0.5
        %v4846 = vadd.f32 %v4722, 0.5
        %v4847 = vadd.f32 %v4723, 0.5
        %v4848 = vadd.f32 %v4724, 0.5
        %v4849 = vadd.f32 %v4725, 0.5
        %v4850 = vadd.f32 %v4726, 0.5
        %v4851 = vadd.f32 %v4727, 0.5
        %v4852 = vadd.f32 %v4728, 0.5
        %v4853 = vadd.f32 %v4729, 0.5
        %v4854 = vadd.f32 %v4730, 0.5
        %v4855 = vadd.f32 %v4731, 0.5
        %v4856 = vadd.f32 %v4732, 0.5
        %v4857 = vadd.f32 %v4733, 0.5
        %v4858 = vadd.f32 %v4734, 0.5
        %v4859 = vadd.f32 %v4735, 0.5
        %v4860 = vadd.f32 %v4736, 0.5
        %v4861 = vadd.f32 %v4737, 0.5
        %v4862 = vadd.f32 %v4738, 0.5
        %v4863 = vadd.f32 %v4739, 0.5
        %v4864 = vadd.f32 %v4740, 0.5
        %v4865 = vadd.f32 %v4741, 0.5
        %v4866 = vadd.f32 %v4742, 0.5
        %v4867 = vadd.f32 %v4743, 0.5
        %v4868 = vadd.f32 %v4744, 0.5
        %v4869 = vadd.f32 %v4745, 0.5
        %v4870 = vadd.f32 %v4746, 0.5
        %v4871 = vadd.f32 %v4747, 0.5
        %v4872 = vadd.f32 %v4748, 0.5
        %v4873 = vadd.f32 %v4749, 0.5
        %v4874 = vadd.f32 %v4750, 0.5
        %v4875 = vadd.f32 %v4751, 0.5
        %v4876 = vadd.f32 %v4752, 0.5
        %v4877 = vadd.f32 %v4753, 0.5
        %v4878 = vadd.f32 %v4754, 0.5
        %v4879 = vadd.f32 %v4755, 0.5
        %v4880 = vadd.f32 %v4756, 0.5
        %v4881 = vadd.f32 %v4757, 0.5
        %v4882 = vadd.f32 %v4758, 0.5
        %v4883 = vadd.f32 %v4759, 0.5
        %v4884 = vadd.f32 %v4760, 0.5
        %v4885 = vadd.f32 %v4761, 0.5
        %v4886 = vadd.f32 %v4762, 0.5
        %v4887 = vadd.f32 %v4763, 0.5
        %v4888 = vadd.f32 %v4764, 0.5
        %v4889 = vadd.f32 %v4765, 0.5
        %v4890 = vadd.f32 %v4766, 0.5
        %v4891 = vadd.f32 %v4767, 0.5
        %v4892 = vadd.f32 %v4768, 0.5
        %v4893 = vadd.f32 %v4769, 0.5
        %v4894 = vadd.f32 %v4770, 0.5
        %v4895 = vadd.f32 %v4771, 0.5
        %v4896 = vadd.f32 %v4772, 0.5
        %v4897 = vadd.f32 %v4773, 0.5
        %v4898 = vadd.f32 %v4774, 0.5
        %v4899 = vadd.f32 %v4775, 0.5
        %v4900 = vadd.f32 %v4776, 0.5
        %v4901 = vadd.f32 %v4777, 0.5
        %v4902 = vadd.f32 %v4778, 0.5
        %v4903 = vadd.f32 %v4779, 0.5
        %v4904 = vadd.f32 %v4780, 0.5
        %v4905 = vadd.f32 %v4781, 0.5
        %v4906 = vadd.f32 %v4782, 0.5
        %v4907 = vadd.f32 %v4783, 0.5
        %v4908 = vadd.f32 %v4784, 0.5
        %v4909 = vadd.f32 %v4785, 0.5
        %v4910 = vadd.f32 %v4786, 0.5
        %v4911 = vadd.f32 %v4787, 0.5
        %v4912 = vadd.f32 %v4788, 0.5
        %v4913 = vadd.f32 %v4789, 0.5
        %v4914 = vadd.f32 %v4790, 0.5
        %v4915 = vadd.f32 %v4791, 0.5
        %v4916 = vadd.f32 %v4792, 0.5
        %v4917 = vadd.f32 %v4793, 0.5
        %v4918 = vadd.f32 %v4794, 0.5
        %v4919 = vadd.f32 %v4795, 0.5
        %v4920 = vadd.f32 %v4796, 0.5
        %v4921 = vadd.f32 %v4797, 0.5
        %v4922 = vadd.f32 %v4798, 0.5
        %v4923 = vadd.f32 %v4799, 0.5
        %v4924 = vadd.f32 %v4800, 0.5
        %v4925 = vadd.f32 %v4801, 0.5
        %v4926 = vadd.f32 %v4802, 0.5
        %v4927 = vadd.f32 %v4803, 0.5
        %v4928 = vadd.f32 %v4804, 0.5
        %v4929 = vadd.f32 %v4805, 0.5
        %v4930 = vadd.f32 %v4806, 0.5
        %v4931 = vadd.f32 %v4807, 0.5
        %v4932 = vadd.f32 %v4808, 0.5
        %v4933 = vadd.f32 %v4809, 0.5
        %v4934 = vadd.f32 %v4810, 0.5
        %v4935 = vadd.f32 %v4811, 0.5
        %v4936 = vadd.f32 %v4812, 0.5
        %v4937 = vadd.f32 %v4813, 0.5
        %v4938 = vadd.f32 %v4814, 0.5
        %v4939 = vadd.f32 %v4815, 0.5
        %v4940 = vadd.f32 %v4816, 0.5
        %v4941 = vadd.f32 %v4817, 0.5
        %v4942 = vadd.f32 %v4818, 0.5
        %v4943 = vadd.f32 %v4819, 0.5
        %v4944 = vadd.f32 %v4820, 0.5
        %v4945 = vadd.f32 %v4821, 0.5
        %v4946 = vadd.f32 %v4822, 0.5
        %v4947 = vadd.f32 %v4823, 0.5
        %v4948 = vadd.f32 %v4824, 0.5
        %v4949 = vadd.f32 %v4825, 0.5
        %v4950 = vadd.f32 %v4826, 0.5
        %v4951 = vadd.f32 %v4827, 0.5
        %v4952 = vadd.f32 %v4828, 0.5
        %v4953 = vadd.f32 %v4829, 0.5
        %v4954 = vadd.f32 %v4830, 0.5
        %v4955 = vadd.f32 %v4831, 0.5
        %v4956 = vadd.f32 %v4832, 0.5
        %v4957 = vadd.f32 %v4833, 0.5
        %v4958 = vadd.f32 %v4834, 0.5
        %v4959 = vadd.f32 %v4835, 0.5
        %v4960 = vadd.f32 %v4836, 0.5
        %v4961 = vadd.f32 %v4837, 0.5
        %v4962 = vadd.f32 %v4838, 0.5
        %v4963 = vadd.f32 %v4839, 0.5
        %v4964 = vadd.f32 %v4840, 0.5
        %v4965 = vadd.f32 %v4841, 0.5
        %v4966 = vadd.f32 %v4842, 0.5
        %v4967 = vadd.f32 %v4843, 0.5
        %v4968 = vadd.f32 %v4844, 0.5
        %v4969 = vfloor.f32 %v4845
        %v4970 = vfloor.f32 %v4846
        %v4971 = vfloor.f32 %v4847
        %v4972 = vfloor.f32 %v4848
        %v4973 = vfloor.f32 %v4849
        %v4974 = vfloor.f32 %v4850
        %v4975 = vfloor.f32 %v4851
        %v4976 = vfloor.f32 %v4852
        %v4977 = vfloor.f32 %v4853
        %v4978 = vfloor.f32 %v4854
        %v4979 = vfloor.f32 %v4855
        %v4980 = vfloor.f32 %v4856
        %v4981 = vfloor.f32 %v4857
        %v4982 = vfloor.f32 %v4858
        %v4983 = vfloor.f32 %v4859
        %v4984 = vfloor.f32 %v4860
        %v4985 = vfloor.f32 %v4861
        %v4986 = vfloor.f32 %v4862
        %v4987 = vfloor.f32 %v4863
        %v4988 = vfloor.f32 %v4864
        %v4989 = vfloor.f32 %v4865
        %v4990 = vfloor.f32 %v4866
        %v4991 = vfloor.f32 %v4867
        %v4992 = vfloor.f32 %v4868
        %v4993 = vfloor.f32 %v4869
        %v4994 = vfloor.f32 %v4870
        %v4995 = vfloor.f32 %v4871
        %v4996 = vfloor.f32 %v4872
        %v4997 = vfloor.f32 %v4873
        %v4998 = vfloor.f32 %v4874
        %v4999 = vfloor.f32 %v4875
        %v5000 = vfloor.f32 %v4876
        %v5001 = vfloor.f32 %v4877
        %v5002 = vfloor.f32 %v4878
        %v5003 = vfloor.f32 %v4879
        %v5004 = vfloor.f32 %v4880
        %v5005 = vfloor.f32 %v4881
        %v5006 = vfloor.f32 %v4882
        %v5007 = vfloor.f32 %v4883
        %v5008 = vfloor.f32 %v4884
        %v5009 = vfloor.f32 %v4885
        %v5010 = vfloor.f32 %v4886
        %v5011 = vfloor.f32 %v4887
        %v5012 = vfloor.f32 %v4888
        %v5013 = vfloor.f32 %v4889
        %v5014 = vfloor.f32 %v4890
        %v5015 = vfloor.f32 %v4891
        %v5016 = vfloor.f32 %v4892
        %v5017 = vfloor.f32 %v4893
        %v5018 = vfloor.f32 %v4894
        %v5019 = vfloor.f32 %v4895
        %v5020 = vfloor.f32 %v4896
        %v5021 = vfloor.f32 %v4897
        %v5022 = vfloor.f32 %v4898
        %v5023 = vfloor.f32 %v4899
        %v5024 = vfloor.f32 %v4900
        %v5025 = vfloor.f32 %v4901
        %v5026 = vfloor.f32 %v4902
        %v5027 = vfloor.f32 %v4903
        %v5028 = vfloor.f32 %v4904
        %v5029 = vfloor.f32 %v4905
        %v5030 = vfloor.f32 %v4906
        %v5031 = vfloor.f32 %v4907
        %v5032 = vfloor.f32 %v4908
        %v5033 = vfloor.f32 %v4909
        %v5034 = vfloor.f32 %v4910
        %v5035 = vfloor.f32 %v4911
        %v5036 = vfloor.f32 %v4912
        %v5037 = vfloor.f32 %v4913
        %v5038 = vfloor.f32 %v4914
        %v5039 = vfloor.f32 %v4915
        %v5040 = vfloor.f32 %v4916
        %v5041 = vfloor.f32 %v4917
        %v5042 = vfloor.f32 %v4918
        %v5043 = vfloor.f32 %v4919
        %v5044 = vfloor.f32 %v4920
        %v5045 = vfloor.f32 %v4921
        %v5046 = vfloor.f32 %v4922
        %v5047 = vfloor.f32 %v4923
        %v5048 = vfloor.f32 %v4924
        %v5049 = vfloor.f32 %v4925
        %v5050 = vfloor.f32 %v4926
        %v5051 = vfloor.f32 %v4927
        %v5052 = vfloor.f32 %v4928
        %v5053 = vfloor.f32 %v4929
        %v5054 = vfloor.f32 %v4930
        %v5055 = vfloor.f32 %v4931
        %v5056 = vfloor.f32 %v4932
        %v5057 = vfloor.f32 %v4933
        %v5058 = vfloor.f32 %v4934
        %v5059 = vfloor.f32 %v4935
        %v5060 = vfloor.f32 %v4936
        %v5061 = vfloor.f32 %v4937
        %v5062 = vfloor.f32 %v4938
        %v5063 = vfloor.f32 %v4939
        %v5064 = vfloor.f32 %v4940
        %v5065 = vfloor.f32 %v4941
        %v5066 = vfloor.f32 %v4942
        %v5067 = vfloor.f32 %v4943
        %v5068 = vfloor.f32 %v4944
        %v5069 = vfloor.f32 %v4945
        %v5070 = vfloor.f32 %v4946
        %v5071 = vfloor.f32 %v4947
        %v5072 = vfloor.f32 %v4948
        %v5073 = vfloor.f32 %v4949
        %v5074 = vfloor.f32 %v4950
        %v5075 = vfloor.f32 %v4951
        %v5076 = vfloor.f32 %v4952
        %v5077 = vfloor.f32 %v4953
        %v5078 = vfloor.f32 %v4954
        %v5079 = vfloor.f32 %v4955
        %v5080 = vfloor.f32 %v4956
        %v5081 = vfloor.f32 %v4957
        %v5082 = vfloor.f32 %v4958
        %v5083 = vfloor.f32 %v4959
        %v5084 = vfloor.f32 %v4960
        %v5085 = vfloor.f32 %v4961
        %v5086 = vfloor.f32 %v4962
        %v5087 = vfloor.f32 %v4963
        %v5088 = vfloor.f32 %v4964
        %v5089 = vfloor.f32 %v4965
        %v5090 = vfloor.f32 %v4966
        %v5091 = vfloor.f32 %v4967
        %v5092 = vfloor.f32 %v4968
        %v5093 = vmul.f32 %v4969, 6.2831855
        %v5094 = vmul.f32 %v4970, 6.2831855
        %v5095 = vmul.f32 %v4971, 6.2831855
        %v5096 = vmul.f32 %v4972, 6.2831855
        %v5097 = vmul.f32 %v4973, 6.2831855
        %v5098 = vmul.f32 %v4974, 6.2831855
        %v5099 = vmul.f32 %v4975, 6.2831855
        %v5100 = vmul.f32 %v4976, 6.2831855
        %v5101 = vmul.f32 %v4977, 6.2831855
        %v5102 = vmul.f32 %v4978, 6.2831855
        %v5103 = vmul.f32 %v4979, 6.2831855
        %v5104 = vmul.f32 %v4980, 6.2831855
        %v5105 = vmul.f32 %v4981, 6.2831855
        %v5106 = vmul.f32 %v4982, 6.2831855
        %v5107 = vmul.f32 %v4983, 6.2831855
        %v5108 = vmul.f32 %v4984, 6.2831855
        %v5109 = vmul.f32 %v4985, 6.2831855
        %v5110 = vmul.f32 %v4986, 6.2831855
        %v5111 = vmul.f32 %v4987, 6.2831855
        %v5112 = vmul.f32 %v4988, 6.2831855
        %v5113 = vmul.f32 %v4989, 6.2831855
        %v5114 = vmul.f32 %v4990, 6.2831855
        %v5115 = vmul.f32 %v4991, 6.2831855
        %v5116 = vmul.f32 %v4992, 6.2831855
        %v5117 = vmul.f32 %v4993, 6.2831855
        %v5118 = vmul.f32 %v4994, 6.2831855
        %v5119 = vmul.f32 %v4995, 6.2831855
        %v5120 = vmul.f32 %v4996, 6.2831855
        %v5121 = vmul.f32 %v4997, 6.2831855
        %v5122 = vmul.f32 %v4998, 6.2831855
        %v5123 = vmul.f32 %v4999, 6.2831855
        %v5124 = vmul.f32 %v5000, 6.2831855
        %v5125 = vmul.f32 %v5001, 6.2831855
        %v5126 = vmul.f32 %v5002, 6.2831855
        %v5127 = vmul.f32 %v5003, 6.2831855
        %v5128 = vmul.f32 %v5004, 6.2831855
        %v5129 = vmul.f32 %v5005, 6.2831855
        %v5130 = vmul.f32 %v5006, 6.2831855
        %v5131 = vmul.f32 %v5007, 6.2831855
        %v5132 = vmul.f32 %v5008, 6.2831855
        %v5133 = vmul.f32 %v5009, 6.2831855
        %v5134 = vmul.f32 %v5010, 6.2831855
        %v5135 = vmul.f32 %v5011, 6.2831855
        %v5136 = vmul.f32 %v5012, 6.2831855
        %v5137 = vmul.f32 %v5013, 6.2831855
        %v5138 = vmul.f32 %v5014, 6.2831855
        %v5139 = vmul.f32 %v5015, 6.2831855
        %v5140 = vmul.f32 %v5016, 6.2831855
        %v5141 = vmul.f32 %v5017, 6.2831855
        %v5142 = vmul.f32 %v5018, 6.2831855
        %v5143 = vmul.f32 %v5019, 6.2831855
        %v5144 = vmul.f32 %v5020, 6.2831855
        %v5145 = vmul.f32 %v5021, 6.2831855
        %v5146 = vmul.f32 %v5022, 6.2831855
        %v5147 = vmul.f32 %v5023, 6.2831855
        %v5148 = vmul.f32 %v5024, 6.2831855
        %v5149 = vmul.f32 %v5025, 6.2831855
        %v5150 = vmul.f32 %v5026, 6.2831855
        %v5151 = vmul.f32 %v5027, 6.2831855
        %v5152 = vmul.f32 %v5028, 6.2831855
        %v5153 = vmul.f32 %v5029, 6.2831855
        %v5154 = vmul.f32 %v5030, 6.2831855
        %v5155 = vmul.f32 %v5031, 6.2831855
        %v5156 = vmul.f32 %v5032, 6.2831855
        %v5157 = vmul.f32 %v5033, 6.2831855
        %v5158 = vmul.f32 %v5034, 6.2831855
        %v5159 = vmul.f32 %v5035, 6.2831855
        %v5160 = vmul.f32 %v5036, 6.2831855
        %v5161 = vmul.f32 %v5037, 6.2831855
        %v5162 = vmul.f32 %v5038, 6.2831855
        %v5163 = vmul.f32 %v5039, 6.2831855
        %v5164 = vmul.f32 %v5040, 6.2831855
        %v5165 = vmul.f32 %v5041, 6.2831855
        %v5166 = vmul.f32 %v5042, 6.2831855
        %v5167 = vmul.f32 %v5043, 6.2831855
        %v5168 = vmul.f32 %v5044, 6.2831855
        %v5169 = vmul.f32 %v5045, 6.2831855
        %v5170 = vmul.f32 %v5046, 6.2831855
        %v5171 = vmul.f32 %v5047, 6.2831855
        %v5172 = vmul.f32 %v5048, 6.2831855
        %v5173 = vmul.f32 %v5049, 6.2831855
        %v5174 = vmul.f32 %v5050, 6.2831855
        %v5175 = vmul.f32 %v5051, 6.2831855
        %v5176 = vmul.f32 %v5052, 6.2831855
        %v5177 = vmul.f32 %v5053, 6.2831855
        %v5178 = vmul.f32 %v5054, 6.2831855
        %v5179 = vmul.f32 %v5055, 6.2831855
        %v5180 = vmul.f32 %v5056, 6.2831855
        %v5181 = vmul.f32 %v5057, 6.2831855
        %v5182 = vmul.f32 %v5058, 6.2831855
        %v5183 = vmul.f32 %v5059, 6.2831855
        %v5184 = vmul.f32 %v5060, 6.2831855
        %v5185 = vmul.f32 %v5061, 6.2831855
        %v5186 = vmul.f32 %v5062, 6.2831855
        %v5187 = vmul.f32 %v5063, 6.2831855
        %v5188 = vmul.f32 %v5064, 6.2831855
        %v5189 = vmul.f32 %v5065, 6.2831855
        %v5190 = vmul.f32 %v5066, 6.2831855
        %v5191 = vmul.f32 %v5067, 6.2831855
        %v5192 = vmul.f32 %v5068, 6.2831855
        %v5193 = vmul.f32 %v5069, 6.2831855
        %v5194 = vmul.f32 %v5070, 6.2831855
        %v5195 = vmul.f32 %v5071, 6.2831855
        %v5196 = vmul.f32 %v5072, 6.2831855
        %v5197 = vmul.f32 %v5073, 6.2831855
        %v5198 = vmul.f32 %v5074, 6.2831855
        %v5199 = vmul.f32 %v5075, 6.2831855
        %v5200 = vmul.f32 %v5076, 6.2831855
        %v5201 = vmul.f32 %v5077, 6.2831855
        %v5202 = vmul.f32 %v5078, 6.2831855
        %v5203 = vmul.f32 %v5079, 6.2831855
        %v5204 = vmul.f32 %v5080, 6.2831855
        %v5205 = vmul.f32 %v5081, 6.2831855
        %v5206 = vmul.f32 %v5082, 6.2831855
        %v5207 = vmul.f32 %v5083, 6.2831855
        %v5208 = vmul.f32 %v5084, 6.2831855
        %v5209 = vmul.f32 %v5085, 6.2831855
        %v5210 = vmul.f32 %v5086, 6.2831855
        %v5211 = vmul.f32 %v5087, 6.2831855
        %v5212 = vmul.f32 %v5088, 6.2831855
        %v5213 = vmul.f32 %v5089, 6.2831855
        %v5214 = vmul.f32 %v5090, 6.2831855
        %v5215 = vmul.f32 %v5091, 6.2831855
        %v5216 = vmul.f32 %v5092, 6.2831855
        %v5217 = vsub.f32 %v3840, %v5093
        %v5218 = vsub.f32 %v3869, %v5094
        %v5219 = vsub.f32 %v3898, %v5095
        %v5220 = vsub.f32 %v3927, %v5096
        %v5221 = vsub.f32 %v3956, %v5097
        %v5222 = vsub.f32 %v3985, %v5098
        %v5223 = vsub.f32 %v4014, %v5099
        %v5224 = vsub.f32 %v4043, %v5100
        %v5225 = vsub.f32 %v4072, %v5101
        %v5226 = vsub.f32 %v4101, %v5102
        %v5227 = vsub.f32 %v4130, %v5103
        %v5228 = vsub.f32 %v4159, %v5104
        %v5229 = vsub.f32 %v4188, %v5105
        %v5230 = vsub.f32 %v4217, %v5106
        %v5231 = vsub.f32 %v4246, %v5107
        %v5232 = vsub.f32 %v4275, %v5108
        %v5233 = vsub.f32 %v4304, %v5109
        %v5234 = vsub.f32 %v4333, %v5110
        %v5235 = vsub.f32 %v4362, %v5111
        %v5236 = vsub.f32 %v4391, %v5112
        %v5237 = vsub.f32 %v4420, %v5113
        %v5238 = vsub.f32 %v4449, %v5114
        %v5239 = vsub.f32 %v4478, %v5115
        %v5240 = vsub.f32 %v4507, %v5116
        %v5241 = vsub.f32 %v4536, %v5117
        %v5242 = vsub.f32 %v4565, %v5118
        %v5243 = vsub.f32 %v4594, %v5119
        %v5244 = vsub.f32 %v4623, %v5120
        %v5245 = vsub.f32 %v4652, %v5121
        %v5246 = vsub.f32 %v4681, %v5122
        %v5247 = vsub.f32 %v4710, %v5123
        %v5248 = vsub.f32 %v3843, %v5124
        %v5249 = vsub.f32 %v3872, %v5125
        %v5250 = vsub.f32 %v3901, %v5126
        %v5251 = vsub.f32 %v3930, %v5127
        %v5252 = vsub.f32 %v3959, %v5128
        %v5253 = vsub.f32 %v3988, %v5129
        %v5254 = vsub.f32 %v4017, %v5130
        %v5255 = vsub.f32 %v4046, %v5131
        %v5256 = vsub.f32 %v4075, %v5132
        %v5257 = vsub.f32 %v4104, %v5133
        %v5258 = vsub.f32 %v4133, %v5134
        %v5259 = vsub.f32 %v4162, %v5135
        %v5260 = vsub.f32 %v4191, %v5136
        %v5261 = vsub.f32 %v4220, %v5137
        %v5262 = vsub.f32 %v4249, %v5138
        %v5263 = vsub.f32 %v4278, %v5139
        %v5264 = vsub.f32 %v4307, %v5140
        %v5265 = vsub.f32 %v4336, %v5141
        %v5266 = vsub.f32 %v4365, %v5142
        %v5267 = vsub.f32 %v4394, %v5143
        %v5268 = vsub.f32 %v4423, %v5144
        %v5269 = vsub.f32 %v4452, %v5145
        %v5270 = vsub.f32 %v4481, %v5146
        %v5271 = vsub.f32 %v4510, %v5147
        %v5272 = vsub.f32 %v4539, %v5148
        %v5273 = vsub.f32 %v4568, %v5149
        %v5274 = vsub.f32 %v4597, %v5150
        %v5275 = vsub.f32 %v4626, %v5151
        %v5276 = vsub.f32 %v4655, %v5152
        %v5277 = vsub.f32 %v4684, %v5153
        %v5278 = vsub.f32 %v4713, %v5154
        %v5279 = vsub.f32 %v3846, %v5155
        %v5280 = vsub.f32 %v3875, %v5156
        %v5281 = vsub.f32 %v3904, %v5157
        %v5282 = vsub.f32 %v3933, %v5158
        %v5283 = vsub.f32 %v3962, %v5159
        %v5284 = vsub.f32 %v3991, %v5160
        %v5285 = vsub.f32 %v4020, %v5161
        %v5286 = vsub.f32 %v4049, %v5162
        %v5287 = vsub.f32 %v4078, %v5163
        %v5288 = vsub.f32 %v4107, %v5164
        %v5289 = vsub.f32 %v4136, %v5165
        %v5290 = vsub.f32 %v4165, %v5166
        %v5291 = vsub.f32 %v4194, %v5167
        %v5292 = vsub.f32 %v4223, %v5168
        %v5293 = vsub.f32 %v4252, %v5169
        %v5294 = vsub.f32 %v4281, %v5170
        %v5295 = vsub.f32 %v4310, %v5171
        %v5296 = vsub.f32 %v4339, %v5172
        %v5297 = vsub.f32 %v4368, %v5173
        %v5298 = vsub.f32 %v4397, %v5174
        %v5299 = vsub.f32 %v4426, %v5175
        %v5300 = vsub.f32 %v4455, %v5176
        %v5301 = vsub.f32 %v4484, %v5177
        %v5302 = vsub.f32 %v4513, %v5178
        %v5303 = vsub.f32 %v4542, %v5179
        %v5304 = vsub.f32 %v4571, %v5180
        %v5305 = vsub.f32 %v4600, %v5181
        %v5306 = vsub.f32 %v4629, %v5182
        %v5307 = vsub.f32 %v4658, %v5183
        %v5308 = vsub.f32 %v4687, %v5184
        %v5309 = vsub.f32 %v4716, %v5185
        %v5310 = vsub.f32 %v3849, %v5186
        %v5311 = vsub.f32 %v3878, %v5187
        %v5312 = vsub.f32 %v3907, %v5188
        %v5313 = vsub.f32 %v3936, %v5189
        %v5314 = vsub.f32 %v3965, %v5190
        %v5315 = vsub.f32 %v3994, %v5191
        %v5316 = vsub.f32 %v4023, %v5192
        %v5317 = vsub.f32 %v4052, %v5193
        %v5318 = vsub.f32 %v4081, %v5194
        %v5319 = vsub.f32 %v4110, %v5195
        %v5320 = vsub.f32 %v4139, %v5196
        %v5321 = vsub.f32 %v4168, %v5197
        %v5322 = vsub.f32 %v4197, %v5198
        %v5323 = vsub.f32 %v4226, %v5199
        %v5324 = vsub.f32 %v4255, %v5200
        %v5325 = vsub.f32 %v4284, %v5201
        %v5326 = vsub.f32 %v4313, %v5202
        %v5327 = vsub.f32 %v4342, %v5203
        %v5328 = vsub.f32 %v4371, %v5204
        %v5329 = vsub.f32 %v4400, %v5205
        %v5330 = vsub.f32 %v4429, %v5206
        %v5331 = vsub.f32 %v4458, %v5207
        %v5332 = vsub.f32 %v4487, %v5208
        %v5333 = vsub.f32 %v4516, %v5209
        %v5334 = vsub.f32 %v4545, %v5210
        %v5335 = vsub.f32 %v4574, %v5211
        %v5336 = vsub.f32 %v4603, %v5212
        %v5337 = vsub.f32 %v4632, %v5213
        %v5338 = vsub.f32 %v4661, %v5214
        %v5339 = vsub.f32 %v4690, %v5215
        %v5340 = vsub.f32 %v4719, %v5216
        %v5341 = vmul.f32 %v5217, %v5217
        %v5342 = vmul.f32 %v5218, %v5218
        %v5343 = vmul.f32 %v5219, %v5219
        %v5344 = vmul.f32 %v5220, %v5220
        %v5345 = vmul.f32 %v5221, %v5221
        %v5346 = vmul.f32 %v5222, %v5222
        %v5347 = vmul.f32 %v5223, %v5223
        %v5348 = vmul.f32 %v5224, %v5224
        %v5349 = vmul.f32 %v5225, %v5225
        %v5350 = vmul.f32 %v5226, %v5226
        %v5351 = vmul.f32 %v5227, %v5227
        %v5352 = vmul.f32 %v5228, %v5228
        %v5353 = vmul.f32 %v5229, %v5229
        %v5354 = vmul.f32 %v5230, %v5230
        %v5355 = vmul.f32 %v5231, %v5231
        %v5356 = vmul.f32 %v5232, %v5232
        %v5357 = vmul.f32 %v5233, %v5233
        %v5358 = vmul.f32 %v5234, %v5234
        %v5359 = vmul.f32 %v5235, %v5235
        %v5360 = vmul.f32 %v5236, %v5236
        %v5361 = vmul.f32 %v5237, %v5237
        %v5362 = vmul.f32 %v5238, %v5238
        %v5363 = vmul.f32 %v5239, %v5239
        %v5364 = vmul.f32 %v5240, %v5240
        %v5365 = vmul.f32 %v5241, %v5241
        %v5366 = vmul.f32 %v5242, %v5242
        %v5367 = vmul.f32 %v5243, %v5243
        %v5368 = vmul.f32 %v5244, %v5244
        %v5369 = vmul.f32 %v5245, %v5245
        %v5370 = vmul.f32 %v5246, %v5246
        %v5371 = vmul.f32 %v5247, %v5247
        %v5372 = vmul.f32 %v5248, %v5248
        %v5373 = vmul.f32 %v5249, %v5249
        %v5374 = vmul.f32 %v5250, %v5250
        %v5375 = vmul.f32 %v5251, %v5251
        %v5376 = vmul.f32 %v5252, %v5252
        %v5377 = vmul.f32 %v5253, %v5253
        %v5378 = vmul.f32 %v5254, %v5254
        %v5379 = vmul.f32 %v5255, %v5255
        %v5380 = vmul.f32 %v5256, %v5256
        %v5381 = vmul.f32 %v5257, %v5257
        %v5382 = vmul.f32 %v5258, %v5258
        %v5383 = vmul.f32 %v5259, %v5259
        %v5384 = vmul.f32 %v5260, %v5260
        %v5385 = vmul.f32 %v5261, %v5261
        %v5386 = vmul.f32 %v5262, %v5262
        %v5387 = vmul.f32 %v5263, %v5263
        %v5388 = vmul.f32 %v5264, %v5264
        %v5389 = vmul.f32 %v5265, %v5265
        %v5390 = vmul.f32 %v5266, %v5266
        %v5391 = vmul.f32 %v5267, %v5267
        %v5392 = vmul.f32 %v5268, %v5268
        %v5393 = vmul.f32 %v5269, %v5269
        %v5394 = vmul.f32 %v5270, %v5270
        %v5395 = vmul.f32 %v5271, %v5271
        %v5396 = vmul.f32 %v5272, %v5272
        %v5397 = vmul.f32 %v5273, %v5273
        %v5398 = vmul.f32 %v5274, %v5274
        %v5399 = vmul.f32 %v5275, %v5275
        %v5400 = vmul.f32 %v5276, %v5276
        %v5401 = vmul.f32 %v5277, %v5277
        %v5402 = vmul.f32 %v5278, %v5278
        %v5403 = vmul.f32 %v5279, %v5279
        %v5404 = vmul.f32 %v5280, %v5280
        %v5405 = vmul.f32 %v5281, %v5281
        %v5406 = vmul.f32 %v5282, %v5282
        %v5407 = vmul.f32 %v5283, %v5283
        %v5408 = vmul.f32 %v5284, %v5284
        %v5409 = vmul.f32 %v5285, %v5285
        %v5410 = vmul.f32 %v5286, %v5286
        %v5411 = vmul.f32 %v5287, %v5287
        %v5412 = vmul.f32 %v5288, %v5288
        %v5413 = vmul.f32 %v5289, %v5289
        %v5414 = vmul.f32 %v5290, %v5290
        %v5415 = vmul.f32 %v5291, %v5291
        %v5416 = vmul.f32 %v5292, %v5292
        %v5417 = vmul.f32 %v5293, %v5293
        %v5418 = vmul.f32 %v5294, %v5294
        %v5419 = vmul.f32 %v5295, %v5295
        %v5420 = vmul.f32 %v5296, %v5296
        %v5421 = vmul.f32 %v5297, %v5297
        %v5422 = vmul.f32 %v5298, %v5298
        %v5423 = vmul.f32 %v5299, %v5299
        %v5424 = vmul.f32 %v5300, %v5300
        %v5425 = vmul.f32 %v5301, %v5301
        %v5426 = vmul.f32 %v5302, %v5302
        %v5427 = vmul.f32 %v5303, %v5303
        %v5428 = vmul.f32 %v5304, %v5304
        %v5429 = vmul.f32 %v5305, %v5305
        %v5430 = vmul.f32 %v5306, %v5306
        %v5431 = vmul.f32 %v5307, %v5307
        %v5432 = vmul.f32 %v5308, %v5308
        %v5433 = vmul.f32 %v5309, %v5309
        %v5434 = vmul.f32 %v5310, %v5310
        %v5435 = vmul.f32 %v5311, %v5311
        %v5436 = vmul.f32 %v5312, %v5312
        %v5437 = vmul.f32 %v5313, %v5313
        %v5438 = vmul.f32 %v5314, %v5314
        %v5439 = vmul.f32 %v5315, %v5315
        %v5440 = vmul.f32 %v5316, %v5316
        %v5441 = vmul.f32 %v5317, %v5317
        %v5442 = vmul.f32 %v5318, %v5318
        %v5443 = vmul.f32 %v5319, %v5319
        %v5444 = vmul.f32 %v5320, %v5320
        %v5445 = vmul.f32 %v5321, %v5321
        %v5446 = vmul.f32 %v5322, %v5322
        %v5447 = vmul.f32 %v5323, %v5323
        %v5448 = vmul.f32 %v5324, %v5324
        %v5449 = vmul.f32 %v5325, %v5325
        %v5450 = vmul.f32 %v5326, %v5326
        %v5451 = vmul.f32 %v5327, %v5327
        %v5452 = vmul.f32 %v5328, %v5328
        %v5453 = vmul.f32 %v5329, %v5329
        %v5454 = vmul.f32 %v5330, %v5330
        %v5455 = vmul.f32 %v5331, %v5331
        %v5456 = vmul.f32 %v5332, %v5332
        %v5457 = vmul.f32 %v5333, %v5333
        %v5458 = vmul.f32 %v5334, %v5334
        %v5459 = vmul.f32 %v5335, %v5335
        %v5460 = vmul.f32 %v5336, %v5336
        %v5461 = vmul.f32 %v5337, %v5337
        %v5462 = vmul.f32 %v5338, %v5338
        %v5463 = vmul.f32 %v5339, %v5339
        %v5464 = vmul.f32 %v5340, %v5340
        %v5465 = vmul.f32 %v5341, 2.1470298e-06
        %v5466 = vmul.f32 %v5342, 2.1470298e-06
        %v5467 = vmul.f32 %v5343, 2.1470298e-06
        %v5468 = vmul.f32 %v5344, 2.1470298e-06
        %v5469 = vmul.f32 %v5345, 2.1470298e-06
        %v5470 = vmul.f32 %v5346, 2.1470298e-06
        %v5471 = vmul.f32 %v5347, 2.1470298e-06
        %v5472 = vmul.f32 %v5348, 2.1470298e-06
        %v5473 = vmul.f32 %v5349, 2.1470298e-06
        %v5474 = vmul.f32 %v5350, 2.1470298e-06
        %v5475 = vmul.f32 %v5351, 2.1470298e-06
        %v5476 = vmul.f32 %v5352, 2.1470298e-06
        %v5477 = vmul.f32 %v5353, 2.1470298e-06
        %v5478 = vmul.f32 %v5354, 2.1470298e-06
        %v5479 = vmul.f32 %v5355, 2.1470298e-06
        %v5480 = vmul.f32 %v5356, 2.1470298e-06
        %v5481 = vmul.f32 %v5357, 2.1470298e-06
        %v5482 = vmul.f32 %v5358, 2.1470298e-06
        %v5483 = vmul.f32 %v5359, 2.1470298e-06
        %v5484 = vmul.f32 %v5360, 2.1470298e-06
        %v5485 = vmul.f32 %v5361, 2.1470298e-06
        %v5486 = vmul.f32 %v5362, 2.1470298e-06
        %v5487 = vmul.f32 %v5363, 2.1470298e-06
        %v5488 = vmul.f32 %v5364, 2.1470298e-06
        %v5489 = vmul.f32 %v5365, 2.1470298e-06
        %v5490 = vmul.f32 %v5366, 2.1470298e-06
        %v5491 = vmul.f32 %v5367, 2.1470298e-06
        %v5492 = vmul.f32 %v5368, 2.1470298e-06
        %v5493 = vmul.f32 %v5369, 2.1470298e-06
        %v5494 = vmul.f32 %v5370, 2.1470298e-06
        %v5495 = vmul.f32 %v5371, 2.1470298e-06
        %v5496 = vmul.f32 %v5372, 2.1470298e-06
        %v5497 = vmul.f32 %v5373, 2.1470298e-06
        %v5498 = vmul.f32 %v5374, 2.1470298e-06
        %v5499 = vmul.f32 %v5375, 2.1470298e-06
        %v5500 = vmul.f32 %v5376, 2.1470298e-06
        %v5501 = vmul.f32 %v5377, 2.1470298e-06
        %v5502 = vmul.f32 %v5378, 2.1470298e-06
        %v5503 = vmul.f32 %v5379, 2.1470298e-06
        %v5504 = vmul.f32 %v5380, 2.1470298e-06
        %v5505 = vmul.f32 %v5381, 2.1470298e-06
        %v5506 = vmul.f32 %v5382, 2.1470298e-06
        %v5507 = vmul.f32 %v5383, 2.1470298e-06
        %v5508 = vmul.f32 %v5384, 2.1470298e-06
        %v5509 = vmul.f32 %v5385, 2.1470298e-06
        %v5510 = vmul.f32 %v5386, 2.1470298e-06
        %v5511 = vmul.f32 %v5387, 2.1470298e-06
        %v5512 = vmul.f32 %v5388, 2.1470298e-06
        %v5513 = vmul.f32 %v5389, 2.1470298e-06
        %v5514 = vmul.f32 %v5390, 2.1470298e-06
        %v5515 = vmul.f32 %v5391, 2.1470298e-06
        %v5516 = vmul.f32 %v5392, 2.1470298e-06
        %v5517 = vmul.f32 %v5393, 2.1470298e-06
        %v5518 = vmul.f32 %v5394, 2.1470298e-06
        %v5519 = vmul.f32 %v5395, 2.1470298e-06
        %v5520 = vmul.f32 %v5396, 2.1470298e-06
        %v5521 = vmul.f32 %v5397, 2.1470298e-06
        %v5522 = vmul.f32 %v5398, 2.1470298e-06
        %v5523 = vmul.f32 %v5399, 2.1470298e-06
        %v5524 = vmul.f32 %v5400, 2.1470298e-06
        %v5525 = vmul.f32 %v5401, 2.1470298e-06
        %v5526 = vmul.f32 %v5402, 2.1470298e-06
        %v5527 = vmul.f32 %v5403, 2.1470298e-06
        %v5528 = vmul.f32 %v5404, 2.1470298e-06
        %v5529 = vmul.f32 %v5405, 2.1470298e-06
        %v5530 = vmul.f32 %v5406, 2.1470298e-06
        %v5531 = vmul.f32 %v5407, 2.1470298e-06
        %v5532 = vmul.f32 %v5408, 2.1470298e-06
        %v5533 = vmul.f32 %v5409, 2.1470298e-06
        %v5534 = vmul.f32 %v5410, 2.1470298e-06
        %v5535 = vmul.f32 %v5411, 2.1470298e-06
        %v5536 = vmul.f32 %v5412, 2.1470298e-06
        %v5537 = vmul.f32 %v5413, 2.1470298e-06
        %v5538 = vmul.f32 %v5414, 2.1470298e-06
        %v5539 = vmul.f32 %v5415, 2.1470298e-06
        %v5540 = vmul.f32 %v5416, 2.1470298e-06
        %v5541 = vmul.f32 %v5417, 2.1470298e-06
        %v5542 = vmul.f32 %v5418, 2.1470298e-06
        %v5543 = vmul.f32 %v5419, 2.1470298e-06
        %v5544 = vmul.f32 %v5420, 2.1470298e-06
        %v5545 = vmul.f32 %v5421, 2.1470298e-06
        %v5546 = vmul.f32 %v5422, 2.1470298e-06
        %v5547 = vmul.f32 %v5423, 2.1470298e-06
        %v5548 = vmul.f32 %v5424, 2.1470298e-06
        %v5549 = vmul.f32 %v5425, 2.1470298e-06
        %v5550 = vmul.f32 %v5426, 2.1470298e-06
        %v5551 = vmul.f32 %v5427, 2.1470298e-06
        %v5552 = vmul.f32 %v5428, 2.1470298e-06
        %v5553 = vmul.f32 %v5429, 2.1470298e-06
        %v5554 = vmul.f32 %v5430, 2.1470298e-06
        %v5555 = vmul.f32 %v5431, 2.1470298e-06
        %v5556 = vmul.f32 %v5432, 2.1470298e-06
        %v5557 = vmul.f32 %v5433, 2.1470298e-06
        %v5558 = vmul.f32 %v5434, 2.1470298e-06
        %v5559 = vmul.f32 %v5435, 2.1470298e-06
        %v5560 = vmul.f32 %v5436, 2.1470298e-06
        %v5561 = vmul.f32 %v5437, 2.1470298e-06
        %v5562 = vmul.f32 %v5438, 2.1470298e-06
        %v5563 = vmul.f32 %v5439, 2.1470298e-06
        %v5564 = vmul.f32 %v5440, 2.1470298e-06
        %v5565 = vmul.f32 %v5441, 2.1470298e-06
        %v5566 = vmul.f32 %v5442, 2.1470298e-06
        %v5567 = vmul.f32 %v5443, 2.1470298e-06
        %v5568 = vmul.f32 %v5444, 2.1470298e-06
        %v5569 = vmul.f32 %v5445, 2.1470298e-06
        %v5570 = vmul.f32 %v5446, 2.1470298e-06
        %v5571 = vmul.f32 %v5447, 2.1470298e-06
        %v5572 = vmul.f32 %v5448, 2.1470298e-06
        %v5573 = vmul.f32 %v5449, 2.1470298e-06
        %v5574 = vmul.f32 %v5450, 2.1470298e-06
        %v5575 = vmul.f32 %v5451, 2.1470298e-06
        %v5576 = vmul.f32 %v5452, 2.1470298e-06
        %v5577 = vmul.f32 %v5453, 2.1470298e-06
        %v5578 = vmul.f32 %v5454, 2.1470298e-06
        %v5579 = vmul.f32 %v5455, 2.1470298e-06
        %v5580 = vmul.f32 %v5456, 2.1470298e-06
        %v5581 = vmul.f32 %v5457, 2.1470298e-06
        %v5582 = vmul.f32 %v5458, 2.1470298e-06
        %v5583 = vmul.f32 %v5459, 2.1470298e-06
        %v5584 = vmul.f32 %v5460, 2.1470298e-06
        %v5585 = vmul.f32 %v5461, 2.1470298e-06
        %v5586 = vmul.f32 %v5462, 2.1470298e-06
        %v5587 = vmul.f32 %v5463, 2.1470298e-06
        %v5588 = vmul.f32 %v5464, 2.1470298e-06
        %v5589 = vadd.f32 %v5465, -0.00019263131
        %v5590 = vadd.f32 %v5466, -0.00019263131
        %v5591 = vadd.f32 %v5467, -0.00019263131
        %v5592 = vadd.f32 %v5468, -0.00019263131
        %v5593 = vadd.f32 %v5469, -0.00019263131
        %v5594 = vadd.f32 %v5470, -0.00019263131
        %v5595 = vadd.f32 %v5471, -0.00019263131
        %v5596 = vadd.f32 %v5472, -0.00019263131
        %v5597 = vadd.f32 %v5473, -0.00019263131
        %v5598 = vadd.f32 %v5474, -0.00019263131
        %v5599 = vadd.f32 %v5475, -0.00019263131
        %v5600 = vadd.f32 %v5476, -0.00019263131
        %v5601 = vadd.f32 %v5477, -0.00019263131
        %v5602 = vadd.f32 %v5478, -0.00019263131
        %v5603 = vadd.f32 %v5479, -0.00019263131
        %v5604 = vadd.f32 %v5480, -0.00019263131
        %v5605 = vadd.f32 %v5481, -0.00019263131
        %v5606 = vadd.f32 %v5482, -0.00019263131
        %v5607 = vadd.f32 %v5483, -0.00019263131
        %v5608 = vadd.f32 %v5484, -0.00019263131
        %v5609 = vadd.f32 %v5485, -0.00019263131
        %v5610 = vadd.f32 %v5486, -0.00019263131
        %v5611 = vadd.f32 %v5487, -0.00019263131
        %v5612 = vadd.f32 %v5488, -0.00019263131
        %v5613 = vadd.f32 %v5489, -0.00019263131
        %v5614 = vadd.f32 %v5490, -0.00019263131
        %v5615 = vadd.f32 %v5491, -0.00019263131
        %v5616 = vadd.f32 %v5492, -0.00019263131
        %v5617 = vadd.f32 %v5493, -0.00019263131
        %v5618 = vadd.f32 %v5494, -0.00019263131
        %v5619 = vadd.f32 %v5495, -0.00019263131
        %v5620 = vadd.f32 %v5496, -0.00019263131
        %v5621 = vadd.f32 %v5497, -0.00019263131
        %v5622 = vadd.f32 %v5498, -0.00019263131
        %v5623 = vadd.f32 %v5499, -0.00019263131
        %v5624 = vadd.f32 %v5500, -0.00019263131
        %v5625 = vadd.f32 %v5501, -0.00019263131
        %v5626 = vadd.f32 %v5502, -0.00019263131
        %v5627 = vadd.f32 %v5503, -0.00019263131
        %v5628 = vadd.f32 %v5504, -0.00019263131
        %v5629 = vadd.f32 %v5505, -0.00019263131
        %v5630 = vadd.f32 %v5506, -0.00019263131
        %v5631 = vadd.f32 %v5507, -0.00019263131
        %v5632 = vadd.f32 %v5508, -0.00019263131
        %v5633 = vadd.f32 %v5509, -0.00019263131
        %v5634 = vadd.f32 %v5510, -0.00019263131
        %v5635 = vadd.f32 %v5511, -0.00019263131
        %v5636 = vadd.f32 %v5512, -0.00019263131
        %v5637 = vadd.f32 %v5513, -0.00019263131
        %v5638 = vadd.f32 %v5514, -0.00019263131
        %v5639 = vadd.f32 %v5515, -0.00019263131
        %v5640 = vadd.f32 %v5516, -0.00019263131
        %v5641 = vadd.f32 %v5517, -0.00019263131
        %v5642 = vadd.f32 %v5518, -0.00019263131
        %v5643 = vadd.f32 %v5519, -0.00019263131
        %v5644 = vadd.f32 %v5520, -0.00019263131
        %v5645 = vadd.f32 %v5521, -0.00019263131
        %v5646 = vadd.f32 %v5522, -0.00019263131
        %v5647 = vadd.f32 %v5523, -0.00019263131
        %v5648 = vadd.f32 %v5524, -0.00019263131
        %v5649 = vadd.f32 %v5525, -0.00019263131
        %v5650 = vadd.f32 %v5526, -0.00019263131
        %v5651 = vadd.f32 %v5527, -0.00019263131
        %v5652 = vadd.f32 %v5528, -0.00019263131
        %v5653 = vadd.f32 %v5529, -0.00019263131
        %v5654 = vadd.f32 %v5530, -0.00019263131
        %v5655 = vadd.f32 %v5531, -0.00019263131
        %v5656 = vadd.f32 %v5532, -0.00019263131
        %v5657 = vadd.f32 %v5533, -0.00019263131
        %v5658 = vadd.f32 %v5534, -0.00019263131
        %v5659 = vadd.f32 %v5535, -0.00019263131
        %v5660 = vadd.f32 %v5536, -0.00019263131
        %v5661 = vadd.f32 %v5537, -0.00019263131
        %v5662 = vadd.f32 %v5538, -0.00019263131
        %v5663 = vadd.f32 %v5539, -0.00019263131
        %v5664 = vadd.f32 %v5540, -0.00019263131
        %v5665 = vadd.f32 %v5541, -0.00019263131
        %v5666 = vadd.f32 %v5542, -0.00019263131
        %v5667 = vadd.f32 %v5543, -0.00019263131
        %v5668 = vadd.f32 %v5544, -0.00019263131
        %v5669 = vadd.f32 %v5545, -0.00019263131
        %v5670 = vadd.f32 %v5546, -0.00019263131
        %v5671 = vadd.f32 %v5547, -0.00019263131
        %v5672 = vadd.f32 %v5548, -0.00019263131
        %v5673 = vadd.f32 %v5549, -0.00019263131
        %v5674 = vadd.f32 %v5550, -0.00019263131
        %v5675 = vadd.f32 %v5551, -0.00019263131
        %v5676 = vadd.f32 %v5552, -0.00019263131
        %v5677 = vadd.f32 %v5553, -0.00019263131
        %v5678 = vadd.f32 %v5554, -0.00019263131
        %v5679 = vadd.f32 %v5555, -0.00019263131
        %v5680 = vadd.f32 %v5556, -0.00019263131
        %v5681 = vadd.f32 %v5557, -0.00019263131
        %v5682 = vadd.f32 %v5558, -0.00019263131
        %v5683 = vadd.f32 %v5559, -0.00019263131
        %v5684 = vadd.f32 %v5560, -0.00019263131
        %v5685 = vadd.f32 %v5561, -0.00019263131
        %v5686 = vadd.f32 %v5562, -0.00019263131
        %v5687 = vadd.f32 %v5563, -0.00019263131
        %v5688 = vadd.f32 %v5564, -0.00019263131
        %v5689 = vadd.f32 %v5565, -0.00019263131
        %v5690 = vadd.f32 %v5566, -0.00019263131
        %v5691 = vadd.f32 %v5567, -0.00019263131
        %v5692 = vadd.f32 %v5568, -0.00019263131
        %v5693 = vadd.f32 %v5569, -0.00019263131
        %v5694 = vadd.f32 %v5570, -0.00019263131
        %v5695 = vadd.f32 %v5571, -0.00019263131
        %v5696 = vadd.f32 %v5572, -0.00019263131
        %v5697 = vadd.f32 %v5573, -0.00019263131
        %v5698 = vadd.f32 %v5574, -0.00019263131
        %v5699 = vadd.f32 %v5575, -0.00019263131
        %v5700 = vadd.f32 %v5576, -0.00019263131
        %v5701 = vadd.f32 %v5577, -0.00019263131
        %v5702 = vadd.f32 %v5578, -0.00019263131
        %v5703 = vadd.f32 %v5579, -0.00019263131
        %v5704 = vadd.f32 %v5580, -0.00019263131
        %v5705 = vadd.f32 %v5581, -0.00019263131
        %v5706 = vadd.f32 %v5582, -0.00019263131
        %v5707 = vadd.f32 %v5583, -0.00019263131
        %v5708 = vadd.f32 %v5584, -0.00019263131
        %v5709 = vadd.f32 %v5585, -0.00019263131
        %v5710 = vadd.f32 %v5586, -0.00019263131
        %v5711 = vadd.f32 %v5587, -0.00019263131
        %v5712 = vadd.f32 %v5588, -0.00019263131
        %v5713 = vmul.f32 %v5589, %v5341
        %v5714 = vmul.f32 %v5590, %v5342
        %v5715 = vmul.f32 %v5591, %v5343
        %v5716 = vmul.f32 %v5592, %v5344
        %v5717 = vmul.f32 %v5593, %v5345
        %v5718 = vmul.f32 %v5594, %v5346
        %v5719 = vmul.f32 %v5595, %v5347
        %v5720 = vmul.f32 %v5596, %v5348
        %v5721 = vmul.f32 %v5597, %v5349
        %v5722 = vmul.f32 %v5598, %v5350
        %v5723 = vmul.f32 %v5599, %v5351
        %v5724 = vmul.f32 %v5600, %v5352
        %v5725 = vmul.f32 %v5601, %v5353
        %v5726 = vmul.f32 %v5602, %v5354
        %v5727 = vmul.f32 %v5603, %v5355
        %v5728 = vmul.f32 %v5604, %v5356
        %v5729 = vmul.f32 %v5605, %v5357
        %v5730 = vmul.f32 %v5606, %v5358
        %v5731 = vmul.f32 %v5607, %v5359
        %v5732 = vmul.f32 %v5608, %v5360
        %v5733 = vmul.f32 %v5609, %v5361
        %v5734 = vmul.f32 %v5610, %v5362
        %v5735 = vmul.f32 %v5611, %v5363
        %v5736 = vmul.f32 %v5612, %v5364
        %v5737 = vmul.f32 %v5613, %v5365
        %v5738 = vmul.f32 %v5614, %v5366
        %v5739 = vmul.f32 %v5615, %v5367
        %v5740 = vmul.f32 %v5616, %v5368
        %v5741 = vmul.f32 %v5617, %v5369
        %v5742 = vmul.f32 %v5618, %v5370
        %v5743 = vmul.f32 %v5619, %v5371
        %v5744 = vmul.f32 %v5620, %v5372
        %v5745 = vmul.f32 %v5621, %v5373
        %v5746 = vmul.f32 %v5622, %v5374
        %v5747 = vmul.f32 %v5623, %v5375
        %v5748 = vmul.f32 %v5624, %v5376
        %v5749 = vmul.f32 %v5625, %v5377
        %v5750 = vmul.f32 %v5626, %v5378
        %v5751 = vmul.f32 %v5627, %v5379
        %v5752 = vmul.f32 %v5628, %v5380
        %v5753 = vmul.f32 %v5629, %v5381
        %v5754 = vmul.f32 %v5630, %v5382
        %v5755 = vmul.f32 %v5631, %v5383
        %v5756 = vmul.f32 %v5632, %v5384
        %v5757 = vmul.f32 %v5633, %v5385
        %v5758 = vmul.f32 %v5634, %v5386
        %v5759 = vmul.f32 %v5635, %v5387
        %v5760 = vmul.f32 %v5636, %v5388
        %v5761 = vmul.f32 %v5637, %v5389
        %v5762 = vmul.f32 %v5638, %v5390
        %v5763 = vmul.f32 %v5639, %v5391
        %v5764 = vmul.f32 %v5640, %v5392
        %v5765 = vmul.f32 %v5641, %v5393
        %v5766 = vmul.f32 %v5642, %v5394
        %v5767 = vmul.f32 %v5643, %v5395
        %v5768 = vmul.f32 %v5644, %v5396
        %v5769 = vmul.f32 %v5645, %v5397
        %v5770 = vmul.f32 %v5646, %v5398
        %v5771 = vmul.f32 %v5647, %v5399
        %v5772 = vmul.f32 %v5648, %v5400
        %v5773 = vmul.f32 %v5649, %v5401
        %v5774 = vmul.f32 %v5650, %v5402
        %v5775 = vmul.f32 %v5651, %v5403
        %v5776 = vmul.f32 %v5652, %v5404
        %v5777 = vmul.f32 %v5653, %v5405
        %v5778 = vmul.f32 %v5654, %v5406
        %v5779 = vmul.f32 %v5655, %v5407
        %v5780 = vmul.f32 %v5656, %v5408
        %v5781 = vmul.f32 %v5657, %v5409
        %v5782 = vmul.f32 %v5658, %v5410
        %v5783 = vmul.f32 %v5659, %v5411
        %v5784 = vmul.f32 %v5660, %v5412
        %v5785 = vmul.f32 %v5661, %v5413
        %v5786 = vmul.f32 %v5662, %v5414
        %v5787 = vmul.f32 %v5663, %v5415
        %v5788 = vmul.f32 %v5664, %v5416
        %v5789 = vmul.f32 %v5665, %v5417
        %v5790 = vmul.f32 %v5666, %v5418
        %v5791 = vmul.f32 %v5667, %v5419
        %v5792 = vmul.f32 %v5668, %v5420
        %v5793 = vmul.f32 %v5669, %v5421
        %v5794 = vmul.f32 %v5670, %v5422
        %v5795 = vmul.f32 %v5671, %v5423
        %v5796 = vmul.f32 %v5672, %v5424
        %v5797 = vmul.f32 %v5673, %v5425
        %v5798 = vmul.f32 %v5674, %v5426
        %v5799 = vmul.f32 %v5675, %v5427
        %v5800 = vmul.f32 %v5676, %v5428
        %v5801 = vmul.f32 %v5677, %v5429
        %v5802 = vmul.f32 %v5678, %v5430
        %v5803 = vmul.f32 %v5679, %v5431
        %v5804 = vmul.f32 %v5680, %v5432
        %v5805 = vmul.f32 %v5681, %v5433
        %v5806 = vmul.f32 %v5682, %v5434
        %v5807 = vmul.f32 %v5683, %v5435
        %v5808 = vmul.f32 %v5684, %v5436
        %v5809 = vmul.f32 %v5685, %v5437
        %v5810 = vmul.f32 %v5686, %v5438
        %v5811 = vmul.f32 %v5687, %v5439
        %v5812 = vmul.f32 %v5688, %v5440
        %v5813 = vmul.f32 %v5689, %v5441
        %v5814 = vmul.f32 %v5690, %v5442
        %v5815 = vmul.f32 %v5691, %v5443
        %v5816 = vmul.f32 %v5692, %v5444
        %v5817 = vmul.f32 %v5693, %v5445
        %v5818 = vmul.f32 %v5694, %v5446
        %v5819 = vmul.f32 %v5695, %v5447
        %v5820 = vmul.f32 %v5696, %v5448
        %v5821 = vmul.f32 %v5697, %v5449
        %v5822 = vmul.f32 %v5698, %v5450
        %v5823 = vmul.f32 %v5699, %v5451
        %v5824 = vmul.f32 %v5700, %v5452
        %v5825 = vmul.f32 %v5701, %v5453
        %v5826 = vmul.f32 %v5702, %v5454
        %v5827 = vmul.f32 %v5703, %v5455
        %v5828 = vmul.f32 %v5704, %v5456
        %v5829 = vmul.f32 %v5705, %v5457
        %v5830 = vmul.f32 %v5706, %v5458
        %v5831 = vmul.f32 %v5707, %v5459
        %v5832 = vmul.f32 %v5708, %v5460
        %v5833 = vmul.f32 %v5709, %v5461
        %v5834 = vmul.f32 %v5710, %v5462
        %v5835 = vmul.f32 %v5711, %v5463
        %v5836 = vmul.f32 %v5712, %v5464
        %v5837 = vadd.f32 %v5713, 0.008308847
        %v5838 = vadd.f32 %v5714, 0.008308847
        %v5839 = vadd.f32 %v5715, 0.008308847
        %v5840 = vadd.f32 %v5716, 0.008308847
        %v5841 = vadd.f32 %v5717, 0.008308847
        %v5842 = vadd.f32 %v5718, 0.008308847
        %v5843 = vadd.f32 %v5719, 0.008308847
        %v5844 = vadd.f32 %v5720, 0.008308847
        %v5845 = vadd.f32 %v5721, 0.008308847
        %v5846 = vadd.f32 %v5722, 0.008308847
        %v5847 = vadd.f32 %v5723, 0.008308847
        %v5848 = vadd.f32 %v5724, 0.008308847
        %v5849 = vadd.f32 %v5725, 0.008308847
        %v5850 = vadd.f32 %v5726, 0.008308847
        %v5851 = vadd.f32 %v5727, 0.008308847
        %v5852 = vadd.f32 %v5728, 0.008308847
        %v5853 = vadd.f32 %v5729, 0.008308847
        %v5854 = vadd.f32 %v5730, 0.008308847
        %v5855 = vadd.f32 %v5731, 0.008308847
        %v5856 = vadd.f32 %v5732, 0.008308847
        %v5857 = vadd.f32 %v5733, 0.008308847
        %v5858 = vadd.f32 %v5734, 0.008308847
        %v5859 = vadd.f32 %v5735, 0.008308847
        %v5860 = vadd.f32 %v5736, 0.008308847
        %v5861 = vadd.f32 %v5737, 0.008308847
        %v5862 = vadd.f32 %v5738, 0.008308847
        %v5863 = vadd.f32 %v5739, 0.008308847
        %v5864 = vadd.f32 %v5740, 0.008308847
        %v5865 = vadd.f32 %v5741, 0.008308847
        %v5866 = vadd.f32 %v5742, 0.008308847
        %v5867 = vadd.f32 %v5743, 0.008308847
        %v5868 = vadd.f32 %v5744, 0.008308847
        %v5869 = vadd.f32 %v5745, 0.008308847
        %v5870 = vadd.f32 %v5746, 0.008308847
        %v5871 = vadd.f32 %v5747, 0.008308847
        %v5872 = vadd.f32 %v5748, 0.008308847
        %v5873 = vadd.f32 %v5749, 0.008308847
        %v5874 = vadd.f32 %v5750, 0.008308847
        %v5875 = vadd.f32 %v5751, 0.008308847
        %v5876 = vadd.f32 %v5752, 0.008308847
        %v5877 = vadd.f32 %v5753, 0.008308847
        %v5878 = vadd.f32 %v5754, 0.008308847
        %v5879 = vadd.f32 %v5755, 0.008308847
        %v5880 = vadd.f32 %v5756, 0.008308847
        %v5881 = vadd.f32 %v5757, 0.008308847
        %v5882 = vadd.f32 %v5758, 0.008308847
        %v5883 = vadd.f32 %v5759, 0.008308847
        %v5884 = vadd.f32 %v5760, 0.008308847
        %v5885 = vadd.f32 %v5761, 0.008308847
        %v5886 = vadd.f32 %v5762, 0.008308847
        %v5887 = vadd.f32 %v5763, 0.008308847
        %v5888 = vadd.f32 %v5764, 0.008308847
        %v5889 = vadd.f32 %v5765, 0.008308847
        %v5890 = vadd.f32 %v5766, 0.008308847
        %v5891 = vadd.f32 %v5767, 0.008308847
        %v5892 = vadd.f32 %v5768, 0.008308847
        %v5893 = vadd.f32 %v5769, 0.008308847
        %v5894 = vadd.f32 %v5770, 0.008308847
        %v5895 = vadd.f32 %v5771, 0.008308847
        %v5896 = vadd.f32 %v5772, 0.008308847
        %v5897 = vadd.f32 %v5773, 0.008308847
        %v5898 = vadd.f32 %v5774, 0.008308847
        %v5899 = vadd.f32 %v5775, 0.008308847
        %v5900 = vadd.f32 %v5776, 0.008308847
        %v5901 = vadd.f32 %v5777, 0.008308847
        %v5902 = vadd.f32 %v5778, 0.008308847
        %v5903 = vadd.f32 %v5779, 0.008308847
        %v5904 = vadd.f32 %v5780, 0.008308847
        %v5905 = vadd.f32 %v5781, 0.008308847
        %v5906 = vadd.f32 %v5782, 0.008308847
        %v5907 = vadd.f32 %v5783, 0.008308847
        %v5908 = vadd.f32 %v5784, 0.008308847
        %v5909 = vadd.f32 %v5785, 0.008308847
        %v5910 = vadd.f32 %v5786, 0.008308847
        %v5911 = vadd.f32 %v5787, 0.008308847
        %v5912 = vadd.f32 %v5788, 0.008308847
        %v5913 = vadd.f32 %v5789, 0.008308847
        %v5914 = vadd.f32 %v5790, 0.008308847
        %v5915 = vadd.f32 %v5791, 0.008308847
        %v5916 = vadd.f32 %v5792, 0.008308847
        %v5917 = vadd.f32 %v5793, 0.008308847
        %v5918 = vadd.f32 %v5794, 0.008308847
        %v5919 = vadd.f32 %v5795, 0.008308847
        %v5920 = vadd.f32 %v5796, 0.008308847
        %v5921 = vadd.f32 %v5797, 0.008308847
        %v5922 = vadd.f32 %v5798, 0.008308847
        %v5923 = vadd.f32 %v5799, 0.008308847
        %v5924 = vadd.f32 %v5800, 0.008308847
        %v5925 = vadd.f32 %v5801, 0.008308847
        %v5926 = vadd.f32 %v5802, 0.008308847
        %v5927 = vadd.f32 %v5803, 0.008308847
        %v5928 = vadd.f32 %v5804, 0.008308847
        %v5929 = vadd.f32 %v5805, 0.008308847
        %v5930 = vadd.f32 %v5806, 0.008308847
        %v5931 = vadd.f32 %v5807, 0.008308847
        %v5932 = vadd.f32 %v5808, 0.008308847
        %v5933 = vadd.f32 %v5809, 0.008308847
        %v5934 = vadd.f32 %v5810, 0.008308847
        %v5935 = vadd.f32 %v5811, 0.008308847
        %v5936 = vadd.f32 %v5812, 0.008308847
        %v5937 = vadd.f32 %v5813, 0.008308847
        %v5938 = vadd.f32 %v5814, 0.008308847
        %v5939 = vadd.f32 %v5815, 0.008308847
        %v5940 = vadd.f32 %v5816, 0.008308847
        %v5941 = vadd.f32 %v5817, 0.008308847
        %v5942 = vadd.f32 %v5818, 0.008308847
        %v5943 = vadd.f32 %v5819, 0.008308847
        %v5944 = vadd.f32 %v5820, 0.008308847
        %v5945 = vadd.f32 %v5821, 0.008308847
        %v5946 = vadd.f32 %v5822, 0.008308847
        %v5947 = vadd.f32 %v5823, 0.008308847
        %v5948 = vadd.f32 %v5824, 0.008308847
        %v5949 = vadd.f32 %v5825, 0.008308847
        %v5950 = vadd.f32 %v5826, 0.008308847
        %v5951 = vadd.f32 %v5827, 0.008308847
        %v5952 = vadd.f32 %v5828, 0.008308847
        %v5953 = vadd.f32 %v5829, 0.008308847
        %v5954 = vadd.f32 %v5830, 0.008308847
        %v5955 = vadd.f32 %v5831, 0.008308847
        %v5956 = vadd.f32 %v5832, 0.008308847
        %v5957 = vadd.f32 %v5833, 0.008308847
        %v5958 = vadd.f32 %v5834, 0.008308847
        %v5959 = vadd.f32 %v5835, 0.008308847
        %v5960 = vadd.f32 %v5836, 0.008308847
        %v5961 = vmul.f32 %v5837, %v5341
        %v5962 = vmul.f32 %v5838, %v5342
        %v5963 = vmul.f32 %v5839, %v5343
        %v5964 = vmul.f32 %v5840, %v5344
        %v5965 = vmul.f32 %v5841, %v5345
        %v5966 = vmul.f32 %v5842, %v5346
        %v5967 = vmul.f32 %v5843, %v5347
        %v5968 = vmul.f32 %v5844, %v5348
        %v5969 = vmul.f32 %v5845, %v5349
        %v5970 = vmul.f32 %v5846, %v5350
        %v5971 = vmul.f32 %v5847, %v5351
        %v5972 = vmul.f32 %v5848, %v5352
        %v5973 = vmul.f32 %v5849, %v5353
        %v5974 = vmul.f32 %v5850, %v5354
        %v5975 = vmul.f32 %v5851, %v5355
        %v5976 = vmul.f32 %v5852, %v5356
        %v5977 = vmul.f32 %v5853, %v5357
        %v5978 = vmul.f32 %v5854, %v5358
        %v5979 = vmul.f32 %v5855, %v5359
        %v5980 = vmul.f32 %v5856, %v5360
        %v5981 = vmul.f32 %v5857, %v5361
        %v5982 = vmul.f32 %v5858, %v5362
        %v5983 = vmul.f32 %v5859, %v5363
        %v5984 = vmul.f32 %v5860, %v5364
        %v5985 = vmul.f32 %v5861, %v5365
        %v5986 = vmul.f32 %v5862, %v5366
        %v5987 = vmul.f32 %v5863, %v5367
        %v5988 = vmul.f32 %v5864, %v5368
        %v5989 = vmul.f32 %v5865, %v5369
        %v5990 = vmul.f32 %v5866, %v5370
        %v5991 = vmul.f32 %v5867, %v5371
        %v5992 = vmul.f32 %v5868, %v5372
        %v5993 = vmul.f32 %v5869, %v5373
        %v5994 = vmul.f32 %v5870, %v5374
        %v5995 = vmul.f32 %v5871, %v5375
        %v5996 = vmul.f32 %v5872, %v5376
        %v5997 = vmul.f32 %v5873, %v5377
        %v5998 = vmul.f32 %v5874, %v5378
        %v5999 = vmul.f32 %v5875, %v5379
        %v6000 = vmul.f32 %v5876, %v5380
        %v6001 = vmul.f32 %v5877, %v5381
        %v6002 = vmul.f32 %v5878, %v5382
        %v6003 = vmul.f32 %v5879, %v5383
        %v6004 = vmul.f32 %v5880, %v5384
        %v6005 = vmul.f32 %v5881, %v5385
        %v6006 = vmul.f32 %v5882, %v5386
        %v6007 = vmul.f32 %v5883, %v5387
        %v6008 = vmul.f32 %v5884, %v5388
        %v6009 = vmul.f32 %v5885, %v5389
        %v6010 = vmul.f32 %v5886, %v5390
        %v6011 = vmul.f32 %v5887, %v5391
        %v6012 = vmul.f32 %v5888, %v5392
        %v6013 = vmul.f32 %v5889, %v5393
        %v6014 = vmul.f32 %v5890, %v5394
        %v6015 = vmul.f32 %v5891, %v5395
        %v6016 = vmul.f32 %v5892, %v5396
        %v6017 = vmul.f32 %v5893, %v5397
        %v6018 = vmul.f32 %v5894, %v5398
        %v6019 = vmul.f32 %v5895, %v5399
        %v6020 = vmul.f32 %v5896, %v5400
        %v6021 = vmul.f32 %v5897, %v5401
        %v6022 = vmul.f32 %v5898, %v5402
        %v6023 = vmul.f32 %v5899, %v5403
        %v6024 = vmul.f32 %v5900, %v5404
        %v6025 = vmul.f32 %v5901, %v5405
        %v6026 = vmul.f32 %v5902, %v5406
        %v6027 = vmul.f32 %v5903, %v5407
        %v6028 = vmul.f32 %v5904, %v5408
        %v6029 = vmul.f32 %v5905, %v5409
        %v6030 = vmul.f32 %v5906, %v5410
        %v6031 = vmul.f32 %v5907, %v5411
        %v6032 = vmul.f32 %v5908, %v5412
        %v6033 = vmul.f32 %v5909, %v5413
        %v6034 = vmul.f32 %v5910, %v5414
        %v6035 = vmul.f32 %v5911, %v5415
        %v6036 = vmul.f32 %v5912, %v5416
        %v6037 = vmul.f32 %v5913, %v5417
        %v6038 = vmul.f32 %v5914, %v5418
        %v6039 = vmul.f32 %v5915, %v5419
        %v6040 = vmul.f32 %v5916, %v5420
        %v6041 = vmul.f32 %v5917, %v5421
        %v6042 = vmul.f32 %v5918, %v5422
        %v6043 = vmul.f32 %v5919, %v5423
        %v6044 = vmul.f32 %v5920, %v5424
        %v6045 = vmul.f32 %v5921, %v5425
        %v6046 = vmul.f32 %v5922, %v5426
        %v6047 = vmul.f32 %v5923, %v5427
        %v6048 = vmul.f32 %v5924, %v5428
        %v6049 = vmul.f32 %v5925, %v5429
        %v6050 = vmul.f32 %v5926, %v5430
        %v6051 = vmul.f32 %v5927, %v5431
        %v6052 = vmul.f32 %v5928, %v5432
        %v6053 = vmul.f32 %v5929, %v5433
        %v6054 = vmul.f32 %v5930, %v5434
        %v6055 = vmul.f32 %v5931, %v5435
        %v6056 = vmul.f32 %v5932, %v5436
        %v6057 = vmul.f32 %v5933, %v5437
        %v6058 = vmul.f32 %v5934, %v5438
        %v6059 = vmul.f32 %v5935, %v5439
        %v6060 = vmul.f32 %v5936, %v5440
        %v6061 = vmul.f32 %v5937, %v5441
        %v6062 = vmul.f32 %v5938, %v5442
        %v6063 = vmul.f32 %v5939, %v5443
        %v6064 = vmul.f32 %v5940, %v5444
        %v6065 = vmul.f32 %v5941, %v5445
        %v6066 = vmul.f32 %v5942, %v5446
        %v6067 = vmul.f32 %v5943, %v5447
        %v6068 = vmul.f32 %v5944, %v5448
        %v6069 = vmul.f32 %v5945, %v5449
        %v6070 = vmul.f32 %v5946, %v5450
        %v6071 = vmul.f32 %v5947, %v5451
        %v6072 = vmul.f32 %v5948, %v5452
        %v6073 = vmul.f32 %v5949, %v5453
        %v6074 = vmul.f32 %v5950, %v5454
        %v6075 = vmul.f32 %v5951, %v5455
        %v6076 = vmul.f32 %v5952, %v5456
        %v6077 = vmul.f32 %v5953, %v5457
        %v6078 = vmul.f32 %v5954, %v5458
        %v6079 = vmul.f32 %v5955, %v5459
        %v6080 = vmul.f32 %v5956, %v5460
        %v6081 = vmul.f32 %v5957, %v5461
        %v6082 = vmul.f32 %v5958, %v5462
        %v6083 = vmul.f32 %v5959, %v5463
        %v6084 = vmul.f32 %v5960, %v5464
        %v6085 = vadd.f32 %v5961, -0.16662401
        %v6086 = vadd.f32 %v5962, -0.16662401
        %v6087 = vadd.f32 %v5963, -0.16662401
        %v6088 = vadd.f32 %v5964, -0.16662401
        %v6089 = vadd.f32 %v5965, -0.16662401
        %v6090 = vadd.f32 %v5966, -0.16662401
        %v6091 = vadd.f32 %v5967, -0.16662401
        %v6092 = vadd.f32 %v5968, -0.16662401
        %v6093 = vadd.f32 %v5969, -0.16662401
        %v6094 = vadd.f32 %v5970, -0.16662401
        %v6095 = vadd.f32 %v5971, -0.16662401
        %v6096 = vadd.f32 %v5972, -0.16662401
        %v6097 = vadd.f32 %v5973, -0.16662401
        %v6098 = vadd.f32 %v5974, -0.16662401
        %v6099 = vadd.f32 %v5975, -0.16662401
        %v6100 = vadd.f32 %v5976, -0.16662401
        %v6101 = vadd.f32 %v5977, -0.16662401
        %v6102 = vadd.f32 %v5978, -0.16662401
        %v6103 = vadd.f32 %v5979, -0.16662401
        %v6104 = vadd.f32 %v5980, -0.16662401
        %v6105 = vadd.f32 %v5981, -0.16662401
        %v6106 = vadd.f32 %v5982, -0.16662401
        %v6107 = vadd.f32 %v5983, -0.16662401
        %v6108 = vadd.f32 %v5984, -0.16662401
        %v6109 = vadd.f32 %v5985, -0.16662401
        %v6110 = vadd.f32 %v5986, -0.16662401
        %v6111 = vadd.f32 %v5987, -0.16662401
        %v6112 = vadd.f32 %v5988, -0.16662401
        %v6113 = vadd.f32 %v5989, -0.16662401
        %v6114 = vadd.f32 %v5990, -0.16662401
        %v6115 = vadd.f32 %v5991, -0.16662401
        %v6116 = vadd.f32 %v5992, -0.16662401
        %v6117 = vadd.f32 %v5993, -0.16662401
        %v6118 = vadd.f32 %v5994, -0.16662401
        %v6119 = vadd.f32 %v5995, -0.16662401
        %v6120 = vadd.f32 %v5996, -0.16662401
        %v6121 = vadd.f32 %v5997, -0.16662401
        %v6122 = vadd.f32 %v5998, -0.16662401
        %v6123 = vadd.f32 %v5999, -0.16662401
        %v6124 = vadd.f32 %v6000, -0.16662401
        %v6125 = vadd.f32 %v6001, -0.16662401
        %v6126 = vadd.f32 %v6002, -0.16662401
        %v6127 = vadd.f32 %v6003, -0.16662401
        %v6128 = vadd.f32 %v6004, -0.16662401
        %v6129 = vadd.f32 %v6005, -0.16662401
        %v6130 = vadd.f32 %v6006, -0.16662401
        %v6131 = vadd.f32 %v6007, -0.16662401
        %v6132 = vadd.f32 %v6008, -0.16662401
        %v6133 = vadd.f32 %v6009, -0.16662401
        %v6134 = vadd.f32 %v6010, -0.16662401
        %v6135 = vadd.f32 %v6011, -0.16662401
        %v6136 = vadd.f32 %v6012, -0.16662401
        %v6137 = vadd.f32 %v6013, -0.16662401
        %v6138 = vadd.f32 %v6014, -0.16662401
        %v6139 = vadd.f32 %v6015, -0.16662401
        %v6140 = vadd.f32 %v6016, -0.16662401
        %v6141 = vadd.f32 %v6017, -0.16662401
        %v6142 = vadd.f32 %v6018, -0.16662401
        %v6143 = vadd.f32 %v6019, -0.16662401
        %v6144 = vadd.f32 %v6020, -0.16662401
        %v6145 = vadd.f32 %v6021, -0.16662401
        %v6146 = vadd.f32 %v6022, -0.16662401
        %v6147 = vadd.f32 %v6023, -0.16662401
        %v6148 = vadd.f32 %v6024, -0.16662401
        %v6149 = vadd.f32 %v6025, -0.16662401
        %v6150 = vadd.f32 %v6026, -0.16662401
        %v6151 = vadd.f32 %v6027, -0.16662401
        %v6152 = vadd.f32 %v6028, -0.16662401
        %v6153 = vadd.f32 %v6029, -0.16662401
        %v6154 = vadd.f32 %v6030, -0.16662401
        %v6155 = vadd.f32 %v6031, -0.16662401
        %v6156 = vadd.f32 %v6032, -0.16662401
        %v6157 = vadd.f32 %v6033, -0.16662401
        %v6158 = vadd.f32 %v6034, -0.16662401
        %v6159 = vadd.f32 %v6035, -0.16662401
        %v6160 = vadd.f32 %v6036, -0.16662401
        %v6161 = vadd.f32 %v6037, -0.16662401
        %v6162 = vadd.f32 %v6038, -0.16662401
        %v6163 = vadd.f32 %v6039, -0.16662401
        %v6164 = vadd.f32 %v6040, -0.16662401
        %v6165 = vadd.f32 %v6041, -0.16662401
        %v6166 = vadd.f32 %v6042, -0.16662401
        %v6167 = vadd.f32 %v6043, -0.16662401
        %v6168 = vadd.f32 %v6044, -0.16662401
        %v6169 = vadd.f32 %v6045, -0.16662401
        %v6170 = vadd.f32 %v6046, -0.16662401
        %v6171 = vadd.f32 %v6047, -0.16662401
        %v6172 = vadd.f32 %v6048, -0.16662401
        %v6173 = vadd.f32 %v6049, -0.16662401
        %v6174 = vadd.f32 %v6050, -0.16662401
        %v6175 = vadd.f32 %v6051, -0.16662401
        %v6176 = vadd.f32 %v6052, -0.16662401
        %v6177 = vadd.f32 %v6053, -0.16662401
        %v6178 = vadd.f32 %v6054, -0.16662401
        %v6179 = vadd.f32 %v6055, -0.16662401
        %v6180 = vadd.f32 %v6056, -0.16662401
        %v6181 = vadd.f32 %v6057, -0.16662401
        %v6182 = vadd.f32 %v6058, -0.16662401
        %v6183 = vadd.f32 %v6059, -0.16662401
        %v6184 = vadd.f32 %v6060, -0.16662401
        %v6185 = vadd.f32 %v6061, -0.16662401
        %v6186 = vadd.f32 %v6062, -0.16662401
        %v6187 = vadd.f32 %v6063, -0.16662401
        %v6188 = vadd.f32 %v6064, -0.16662401
        %v6189 = vadd.f32 %v6065, -0.16662401
        %v6190 = vadd.f32 %v6066, -0.16662401
        %v6191 = vadd.f32 %v6067, -0.16662401
        %v6192 = vadd.f32 %v6068, -0.16662401
        %v6193 = vadd.f32 %v6069, -0.16662401
        %v6194 = vadd.f32 %v6070, -0.16662401
        %v6195 = vadd.f32 %v6071, -0.16662401
        %v6196 = vadd.f32 %v6072, -0.16662401
        %v6197 = vadd.f32 %v6073, -0.16662401
        %v6198 = vadd.f32 %v6074, -0.16662401
        %v6199 = vadd.f32 %v6075, -0.16662401
        %v6200 = vadd.f32 %v6076, -0.16662401
        %v6201 = vadd.f32 %v6077, -0.16662401
        %v6202 = vadd.f32 %v6078, -0.16662401
        %v6203 = vadd.f32 %v6079, -0.16662401
        %v6204 = vadd.f32 %v6080, -0.16662401
        %v6205 = vadd.f32 %v6081, -0.16662401
        %v6206 = vadd.f32 %v6082, -0.16662401
        %v6207 = vadd.f32 %v6083, -0.16662401
        %v6208 = vadd.f32 %v6084, -0.16662401
        %v6209 = vmul.f32 %v6085, %v5341
        %v6210 = vmul.f32 %v6086, %v5342
        %v6211 = vmul.f32 %v6087, %v5343
        %v6212 = vmul.f32 %v6088, %v5344
        %v6213 = vmul.f32 %v6089, %v5345
        %v6214 = vmul.f32 %v6090, %v5346
        %v6215 = vmul.f32 %v6091, %v5347
        %v6216 = vmul.f32 %v6092, %v5348
        %v6217 = vmul.f32 %v6093, %v5349
        %v6218 = vmul.f32 %v6094, %v5350
        %v6219 = vmul.f32 %v6095, %v5351
        %v6220 = vmul.f32 %v6096, %v5352
        %v6221 = vmul.f32 %v6097, %v5353
        %v6222 = vmul.f32 %v6098, %v5354
        %v6223 = vmul.f32 %v6099, %v5355
        %v6224 = vmul.f32 %v6100, %v5356
        %v6225 = vmul.f32 %v6101, %v5357
        %v6226 = vmul.f32 %v6102, %v5358
        %v6227 = vmul.f32 %v6103, %v5359
        %v6228 = vmul.f32 %v6104, %v5360
        %v6229 = vmul.f32 %v6105, %v5361
        %v6230 = vmul.f32 %v6106, %v5362
        %v6231 = vmul.f32 %v6107, %v5363
        %v6232 = vmul.f32 %v6108, %v5364
        %v6233 = vmul.f32 %v6109, %v5365
        %v6234 = vmul.f32 %v6110, %v5366
        %v6235 = vmul.f32 %v6111, %v5367
        %v6236 = vmul.f32 %v6112, %v5368
        %v6237 = vmul.f32 %v6113, %v5369
        %v6238 = vmul.f32 %v6114, %v5370
        %v6239 = vmul.f32 %v6115, %v5371
        %v6240 = vmul.f32 %v6116, %v5372
        %v6241 = vmul.f32 %v6117, %v5373
        %v6242 = vmul.f32 %v6118, %v5374
        %v6243 = vmul.f32 %v6119, %v5375
        %v6244 = vmul.f32 %v6120, %v5376
        %v6245 = vmul.f32 %v6121, %v5377
        %v6246 = vmul.f32 %v6122, %v5378
        %v6247 = vmul.f32 %v6123, %v5379
        %v6248 = vmul.f32 %v6124, %v5380
        %v6249 = vmul.f32 %v6125, %v5381
        %v6250 = vmul.f32 %v6126, %v5382
        %v6251 = vmul.f32 %v6127, %v5383
        %v6252 = vmul.f32 %v6128, %v5384
        %v6253 = vmul.f32 %v6129, %v5385
        %v6254 = vmul.f32 %v6130, %v5386
        %v6255 = vmul.f32 %v6131, %v5387
        %v6256 = vmul.f32 %v6132, %v5388
        %v6257 = vmul.f32 %v6133, %v5389
        %v6258 = vmul.f32 %v6134, %v5390
        %v6259 = vmul.f32 %v6135, %v5391
        %v6260 = vmul.f32 %v6136, %v5392
        %v6261 = vmul.f32 %v6137, %v5393
        %v6262 = vmul.f32 %v6138, %v5394
        %v6263 = vmul.f32 %v6139, %v5395
        %v6264 = vmul.f32 %v6140, %v5396
        %v6265 = vmul.f32 %v6141, %v5397
        %v6266 = vmul.f32 %v6142, %v5398
        %v6267 = vmul.f32 %v6143, %v5399
        %v6268 = vmul.f32 %v6144, %v5400
        %v6269 = vmul.f32 %v6145, %v5401
        %v6270 = vmul.f32 %v6146, %v5402
        %v6271 = vmul.f32 %v6147, %v5403
        %v6272 = vmul.f32 %v6148, %v5404
        %v6273 = vmul.f32 %v6149, %v5405
        %v6274 = vmul.f32 %v6150, %v5406
        %v6275 = vmul.f32 %v6151, %v5407
        %v6276 = vmul.f32 %v6152, %v5408
        %v6277 = vmul.f32 %v6153, %v5409
        %v6278 = vmul.f32 %v6154, %v5410
        %v6279 = vmul.f32 %v6155, %v5411
        %v6280 = vmul.f32 %v6156, %v5412
        %v6281 = vmul.f32 %v6157, %v5413
        %v6282 = vmul.f32 %v6158, %v5414
        %v6283 = vmul.f32 %v6159, %v5415
        %v6284 = vmul.f32 %v6160, %v5416
        %v6285 = vmul.f32 %v6161, %v5417
        %v6286 = vmul.f32 %v6162, %v5418
        %v6287 = vmul.f32 %v6163, %v5419
        %v6288 = vmul.f32 %v6164, %v5420
        %v6289 = vmul.f32 %v6165, %v5421
        %v6290 = vmul.f32 %v6166, %v5422
        %v6291 = vmul.f32 %v6167, %v5423
        %v6292 = vmul.f32 %v6168, %v5424
        %v6293 = vmul.f32 %v6169, %v5425
        %v6294 = vmul.f32 %v6170, %v5426
        %v6295 = vmul.f32 %v6171, %v5427
        %v6296 = vmul.f32 %v6172, %v5428
        %v6297 = vmul.f32 %v6173, %v5429
        %v6298 = vmul.f32 %v6174, %v5430
        %v6299 = vmul.f32 %v6175, %v5431
        %v6300 = vmul.f32 %v6176, %v5432
        %v6301 = vmul.f32 %v6177, %v5433
        %v6302 = vmul.f32 %v6178, %v5434
        %v6303 = vmul.f32 %v6179, %v5435
        %v6304 = vmul.f32 %v6180, %v5436
        %v6305 = vmul.f32 %v6181, %v5437
        %v6306 = vmul.f32 %v6182, %v5438
        %v6307 = vmul.f32 %v6183, %v5439
        %v6308 = vmul.f32 %v6184, %v5440
        %v6309 = vmul.f32 %v6185, %v5441
        %v6310 = vmul.f32 %v6186, %v5442
        %v6311 = vmul.f32 %v6187, %v5443
        %v6312 = vmul.f32 %v6188, %v5444
        %v6313 = vmul.f32 %v6189, %v5445
        %v6314 = vmul.f32 %v6190, %v5446
        %v6315 = vmul.f32 %v6191, %v5447
        %v6316 = vmul.f32 %v6192, %v5448
        %v6317 = vmul.f32 %v6193, %v5449
        %v6318 = vmul.f32 %v6194, %v5450
        %v6319 = vmul.f32 %v6195, %v5451
        %v6320 = vmul.f32 %v6196, %v5452
        %v6321 = vmul.f32 %v6197, %v5453
        %v6322 = vmul.f32 %v6198, %v5454
        %v6323 = vmul.f32 %v6199, %v5455
        %v6324 = vmul.f32 %v6200, %v5456
        %v6325 = vmul.f32 %v6201, %v5457
        %v6326 = vmul.f32 %v6202, %v5458
        %v6327 = vmul.f32 %v6203, %v5459
        %v6328 = vmul.f32 %v6204, %v5460
        %v6329 = vmul.f32 %v6205, %v5461
        %v6330 = vmul.f32 %v6206, %v5462
        %v6331 = vmul.f32 %v6207, %v5463
        %v6332 = vmul.f32 %v6208, %v5464
        %v6333 = vadd.f32 %v6209, 0.99997914
        %v6334 = vadd.f32 %v6210, 0.99997914
        %v6335 = vadd.f32 %v6211, 0.99997914
        %v6336 = vadd.f32 %v6212, 0.99997914
        %v6337 = vadd.f32 %v6213, 0.99997914
        %v6338 = vadd.f32 %v6214, 0.99997914
        %v6339 = vadd.f32 %v6215, 0.99997914
        %v6340 = vadd.f32 %v6216, 0.99997914
        %v6341 = vadd.f32 %v6217, 0.99997914
        %v6342 = vadd.f32 %v6218, 0.99997914
        %v6343 = vadd.f32 %v6219, 0.99997914
        %v6344 = vadd.f32 %v6220, 0.99997914
        %v6345 = vadd.f32 %v6221, 0.99997914
        %v6346 = vadd.f32 %v6222, 0.99997914
        %v6347 = vadd.f32 %v6223, 0.99997914
        %v6348 = vadd.f32 %v6224, 0.99997914
        %v6349 = vadd.f32 %v6225, 0.99997914
        %v6350 = vadd.f32 %v6226, 0.99997914
        %v6351 = vadd.f32 %v6227, 0.99997914
        %v6352 = vadd.f32 %v6228, 0.99997914
        %v6353 = vadd.f32 %v6229, 0.99997914
        %v6354 = vadd.f32 %v6230, 0.99997914
        %v6355 = vadd.f32 %v6231, 0.99997914
        %v6356 = vadd.f32 %v6232, 0.99997914
        %v6357 = vadd.f32 %v6233, 0.99997914
        %v6358 = vadd.f32 %v6234, 0.99997914
        %v6359 = vadd.f32 %v6235, 0.99997914
        %v6360 = vadd.f32 %v6236, 0.99997914
        %v6361 = vadd.f32 %v6237, 0.99997914
        %v6362 = vadd.f32 %v6238, 0.99997914
        %v6363 = vadd.f32 %v6239, 0.99997914
        %v6364 = vadd.f32 %v6240, 0.99997914
        %v6365 = vadd.f32 %v6241, 0.99997914
        %v6366 = vadd.f32 %v6242, 0.99997914
        %v6367 = vadd.f32 %v6243, 0.99997914
        %v6368 = vadd.f32 %v6244, 0.99997914
        %v6369 = vadd.f32 %v6245, 0.99997914
        %v6370 = vadd.f32 %v6246, 0.99997914
        %v6371 = vadd.f32 %v6247, 0.99997914
        %v6372 = vadd.f32 %v6248, 0.99997914
        %v6373 = vadd.f32 %v6249, 0.99997914
        %v6374 = vadd.f32 %v6250, 0.99997914
        %v6375 = vadd.f32 %v6251, 0.99997914
        %v6376 = vadd.f32 %v6252, 0.99997914
        %v6377 = vadd.f32 %v6253, 0.99997914
        %v6378 = vadd.f32 %v6254, 0.99997914
        %v6379 = vadd.f32 %v6255, 0.99997914
        %v6380 = vadd.f32 %v6256, 0.99997914
        %v6381 = vadd.f32 %v6257, 0.99997914
        %v6382 = vadd.f32 %v6258, 0.99997914
        %v6383 = vadd.f32 %v6259, 0.99997914
        %v6384 = vadd.f32 %v6260, 0.99997914
        %v6385 = vadd.f32 %v6261, 0.99997914
        %v6386 = vadd.f32 %v6262, 0.99997914
        %v6387 = vadd.f32 %v6263, 0.99997914
        %v6388 = vadd.f32 %v6264, 0.99997914
        %v6389 = vadd.f32 %v6265, 0.99997914
        %v6390 = vadd.f32 %v6266, 0.99997914
        %v6391 = vadd.f32 %v6267, 0.99997914
        %v6392 = vadd.f32 %v6268, 0.99997914
        %v6393 = vadd.f32 %v6269, 0.99997914
        %v6394 = vadd.f32 %v6270, 0.99997914
        %v6395 = vadd.f32 %v6271, 0.99997914
        %v6396 = vadd.f32 %v6272, 0.99997914
        %v6397 = vadd.f32 %v6273, 0.99997914
        %v6398 = vadd.f32 %v6274, 0.99997914
        %v6399 = vadd.f32 %v6275, 0.99997914
        %v6400 = vadd.f32 %v6276, 0.99997914
        %v6401 = vadd.f32 %v6277, 0.99997914
        %v6402 = vadd.f32 %v6278, 0.99997914
        %v6403 = vadd.f32 %v6279, 0.99997914
        %v6404 = vadd.f32 %v6280, 0.99997914
        %v6405 = vadd.f32 %v6281, 0.99997914
        %v6406 = vadd.f32 %v6282, 0.99997914
        %v6407 = vadd.f32 %v6283, 0.99997914
        %v6408 = vadd.f32 %v6284, 0.99997914
        %v6409 = vadd.f32 %v6285, 0.99997914
        %v6410 = vadd.f32 %v6286, 0.99997914
        %v6411 = vadd.f32 %v6287, 0.99997914
        %v6412 = vadd.f32 %v6288, 0.99997914
        %v6413 = vadd.f32 %v6289, 0.99997914
        %v6414 = vadd.f32 %v6290, 0.99997914
        %v6415 = vadd.f32 %v6291, 0.99997914
        %v6416 = vadd.f32 %v6292, 0.99997914
        %v6417 = vadd.f32 %v6293, 0.99997914
        %v6418 = vadd.f32 %v6294, 0.99997914
        %v6419 = vadd.f32 %v6295, 0.99997914
        %v6420 = vadd.f32 %v6296, 0.99997914
        %v6421 = vadd.f32 %v6297, 0.99997914
        %v6422 = vadd.f32 %v6298, 0.99997914
        %v6423 = vadd.f32 %v6299, 0.99997914
        %v6424 = vadd.f32 %v6300, 0.99997914
        %v6425 = vadd.f32 %v6301, 0.99997914
        %v6426 = vadd.f32 %v6302, 0.99997914
        %v6427 = vadd.f32 %v6303, 0.99997914
        %v6428 = vadd.f32 %v6304, 0.99997914
        %v6429 = vadd.f32 %v6305, 0.99997914
        %v6430 = vadd.f32 %v6306, 0.99997914
        %v6431 = vadd.f32 %v6307, 0.99997914
        %v6432 = vadd.f32 %v6308, 0.99997914
        %v6433 = vadd.f32 %v6309, 0.99997914
        %v6434 = vadd.f32 %v6310, 0.99997914
        %v6435 = vadd.f32 %v6311, 0.99997914
        %v6436 = vadd.f32 %v6312, 0.99997914
        %v6437 = vadd.f32 %v6313, 0.99997914
        %v6438 = vadd.f32 %v6314, 0.99997914
        %v6439 = vadd.f32 %v6315, 0.99997914
        %v6440 = vadd.f32 %v6316, 0.99997914
        %v6441 = vadd.f32 %v6317, 0.99997914
        %v6442 = vadd.f32 %v6318, 0.99997914
        %v6443 = vadd.f32 %v6319, 0.99997914
        %v6444 = vadd.f32 %v6320, 0.99997914
        %v6445 = vadd.f32 %v6321, 0.99997914
        %v6446 = vadd.f32 %v6322, 0.99997914
        %v6447 = vadd.f32 %v6323, 0.99997914
        %v6448 = vadd.f32 %v6324, 0.99997914
        %v6449 = vadd.f32 %v6325, 0.99997914
        %v6450 = vadd.f32 %v6326, 0.99997914
        %v6451 = vadd.f32 %v6327, 0.99997914
        %v6452 = vadd.f32 %v6328, 0.99997914
        %v6453 = vadd.f32 %v6329, 0.99997914
        %v6454 = vadd.f32 %v6330, 0.99997914
        %v6455 = vadd.f32 %v6331, 0.99997914
        %v6456 = vadd.f32 %v6332, 0.99997914
        %v6457 = vmul.f32 %v5217, %v6333
        %v6458 = vmul.f32 %v5218, %v6334
        %v6459 = vmul.f32 %v5219, %v6335
        %v6460 = vmul.f32 %v5220, %v6336
        %v6461 = vmul.f32 %v5221, %v6337
        %v6462 = vmul.f32 %v5222, %v6338
        %v6463 = vmul.f32 %v5223, %v6339
        %v6464 = vmul.f32 %v5224, %v6340
        %v6465 = vmul.f32 %v5225, %v6341
        %v6466 = vmul.f32 %v5226, %v6342
        %v6467 = vmul.f32 %v5227, %v6343
        %v6468 = vmul.f32 %v5228, %v6344
        %v6469 = vmul.f32 %v5229, %v6345
        %v6470 = vmul.f32 %v5230, %v6346
        %v6471 = vmul.f32 %v5231, %v6347
        %v6472 = vmul.f32 %v5232, %v6348
        %v6473 = vmul.f32 %v5233, %v6349
        %v6474 = vmul.f32 %v5234, %v6350
        %v6475 = vmul.f32 %v5235, %v6351
        %v6476 = vmul.f32 %v5236, %v6352
        %v6477 = vmul.f32 %v5237, %v6353
        %v6478 = vmul.f32 %v5238, %v6354
        %v6479 = vmul.f32 %v5239, %v6355
        %v6480 = vmul.f32 %v5240, %v6356
        %v6481 = vmul.f32 %v5241, %v6357
        %v6482 = vmul.f32 %v5242, %v6358
        %v6483 = vmul.f32 %v5243, %v6359
        %v6484 = vmul.f32 %v5244, %v6360
        %v6485 = vmul.f32 %v5245, %v6361
        %v6486 = vmul.f32 %v5246, %v6362
        %v6487 = vmul.f32 %v5247, %v6363
        %v6488 = vmul.f32 %v5248, %v6364
        %v6489 = vmul.f32 %v5249, %v6365
        %v6490 = vmul.f32 %v5250, %v6366
        %v6491 = vmul.f32 %v5251, %v6367
        %v6492 = vmul.f32 %v5252, %v6368
        %v6493 = vmul.f32 %v5253, %v6369
        %v6494 = vmul.f32 %v5254, %v6370
        %v6495 = vmul.f32 %v5255, %v6371
        %v6496 = vmul.f32 %v5256, %v6372
        %v6497 = vmul.f32 %v5257, %v6373
        %v6498 = vmul.f32 %v5258, %v6374
        %v6499 = vmul.f32 %v5259, %v6375
        %v6500 = vmul.f32 %v5260, %v6376
        %v6501 = vmul.f32 %v5261, %v6377
        %v6502 = vmul.f32 %v5262, %v6378
        %v6503 = vmul.f32 %v5263, %v6379
        %v6504 = vmul.f32 %v5264, %v6380
        %v6505 = vmul.f32 %v5265, %v6381
        %v6506 = vmul.f32 %v5266, %v6382
        %v6507 = vmul.f32 %v5267, %v6383
        %v6508 = vmul.f32 %v5268, %v6384
        %v6509 = vmul.f32 %v5269, %v6385
        %v6510 = vmul.f32 %v5270, %v6386
        %v6511 = vmul.f32 %v5271, %v6387
        %v6512 = vmul.f32 %v5272, %v6388
        %v6513 = vmul.f32 %v5273, %v6389
        %v6514 = vmul.f32 %v5274, %v6390
        %v6515 = vmul.f32 %v5275, %v6391
        %v6516 = vmul.f32 %v5276, %v6392
        %v6517 = vmul.f32 %v5277, %v6393
        %v6518 = vmul.f32 %v5278, %v6394
        %v6519 = vmul.f32 %v5279, %v6395
        %v6520 = vmul.f32 %v5280, %v6396
        %v6521 = vmul.f32 %v5281, %v6397
        %v6522 = vmul.f32 %v5282, %v6398
        %v6523 = vmul.f32 %v5283, %v6399
        %v6524 = vmul.f32 %v5284, %v6400
        %v6525 = vmul.f32 %v5285, %v6401
        %v6526 = vmul.f32 %v5286, %v6402
        %v6527 = vmul.f32 %v5287, %v6403
        %v6528 = vmul.f32 %v5288, %v6404
        %v6529 = vmul.f32 %v5289, %v6405
        %v6530 = vmul.f32 %v5290, %v6406
        %v6531 = vmul.f32 %v5291, %v6407
        %v6532 = vmul.f32 %v5292, %v6408
        %v6533 = vmul.f32 %v5293, %v6409
        %v6534 = vmul.f32 %v5294, %v6410
        %v6535 = vmul.f32 %v5295, %v6411
        %v6536 = vmul.f32 %v5296, %v6412
        %v6537 = vmul.f32 %v5297, %v6413
        %v6538 = vmul.f32 %v5298, %v6414
        %v6539 = vmul.f32 %v5299, %v6415
        %v6540 = vmul.f32 %v5300, %v6416
        %v6541 = vmul.f32 %v5301, %v6417
        %v6542 = vmul.f32 %v5302, %v6418
        %v6543 = vmul.f32 %v5303, %v6419
        %v6544 = vmul.f32 %v5304, %v6420
        %v6545 = vmul.f32 %v5305, %v6421
        %v6546 = vmul.f32 %v5306, %v6422
        %v6547 = vmul.f32 %v5307, %v6423
        %v6548 = vmul.f32 %v5308, %v6424
        %v6549 = vmul.f32 %v5309, %v6425
        %v6550 = vmul.f32 %v5310, %v6426
        %v6551 = vmul.f32 %v5311, %v6427
        %v6552 = vmul.f32 %v5312, %v6428
        %v6553 = vmul.f32 %v5313, %v6429
        %v6554 = vmul.f32 %v5314, %v6430
        %v6555 = vmul.f32 %v5315, %v6431
        %v6556 = vmul.f32 %v5316, %v6432
        %v6557 = vmul.f32 %v5317, %v6433
        %v6558 = vmul.f32 %v5318, %v6434
        %v6559 = vmul.f32 %v5319, %v6435
        %v6560 = vmul.f32 %v5320, %v6436
        %v6561 = vmul.f32 %v5321, %v6437
        %v6562 = vmul.f32 %v5322, %v6438
        %v6563 = vmul.f32 %v5323, %v6439
        %v6564 = vmul.f32 %v5324, %v6440
        %v6565 = vmul.f32 %v5325, %v6441
        %v6566 = vmul.f32 %v5326, %v6442
        %v6567 = vmul.f32 %v5327, %v6443
        %v6568 = vmul.f32 %v5328, %v6444
        %v6569 = vmul.f32 %v5329, %v6445
        %v6570 = vmul.f32 %v5330, %v6446
        %v6571 = vmul.f32 %v5331, %v6447
        %v6572 = vmul.f32 %v5332, %v6448
        %v6573 = vmul.f32 %v5333, %v6449
        %v6574 = vmul.f32 %v5334, %v6450
        %v6575 = vmul.f32 %v5335, %v6451
        %v6576 = vmul.f32 %v5336, %v6452
        %v6577 = vmul.f32 %v5337, %v6453
        %v6578 = vmul.f32 %v5338, %v6454
        %v6579 = vmul.f32 %v5339, %v6455
        %v6580 = vmul.f32 %v5340, %v6456
        %v6581 = vld [vmem:[%s7] sm:$0xff]
        %v6582 = vld [vmem:[%s7 + $0x8] sm:$0xff]
        %v6583 = vld [vmem:[%s7 + $0x10] sm:$0xff]
        %v6584 = vld [vmem:[%s7 + $0x18] sm:$0xff]
        %v6585 = vld [vmem:[%s8] sm:$0xff]
        %v6586 = vld [vmem:[%s8 + $0x8] sm:$0xff]
        %v6587 = vld [vmem:[%s8 + $0x10] sm:$0xff]
        %v6588 = vld [vmem:[%s8 + $0x18] sm:$0xff]
        %6590 = vset.pattern.permute.xlu0 0
        %6591 = vperm.xlu0 %6590, %v6585
        %v6592 = vpop.permute.xlu0 %6591
        %6595 = vset.pattern.permute.xlu0 0
        %6596 = vperm.xlu0 %6595, %v6586
        %v6597 = vpop.permute.xlu0 %6596
        %6600 = vset.pattern.permute.xlu0 0
        %6601 = vperm.xlu0 %6600, %v6587
        %v6602 = vpop.permute.xlu0 %6601
        %6605 = vset.pattern.permute.xlu0 0
        %6606 = vperm.xlu0 %6605, %v6588
        %v6607 = vpop.permute.xlu0 %6606
        %v6610 = vsel %vm3809, %v6581, 0
        %v6613 = vsel %vm3809, %v6582, 0
        %v6616 = vsel %vm3809, %v6583, 0
        %v6619 = vsel %vm3809, %v6584, 0
        %6621 = vmatpush.msra.mxu0 0.0
        %6622 = vmatpush.msra.mxu0 0.0
        %6623 = vmatpush.msra.mxu0 0.0
        %6624 = vmatpush.msra.mxu0 0.0
        %6625 = vmatpush.msra.mxu0 0.0
        %6626 = vmatpush.msra.mxu0 0.0
        %6627 = vmatpush.msra.mxu0 0.0
        %6628 = vmatpush.msra.mxu0 0.0
        %6629 = vmatpush.msra.mxu0 0.0
        %6630 = vmatpush.msra.mxu0 0.0
        %6631 = vmatpush.msra.mxu0 0.0
        %6632 = vmatpush.msra.mxu0 0.0
        %6633 = vmatpush.msra.mxu0 %v6550
        %6634 = vmatpush.msra.mxu0 %v6519
        %6635 = vmatpush.msra.mxu0 %v6488
        %6636 = vmatpush.msra.mxu0 %v6457
        %6637 = vmatmul.f32.gmra.mxu0 %v6610
        %v6638 = vpop.f32.mrf.mxu0
        %v6639 = vadd.f32 %v6592, %v6638
        %6640 = vmatmul.f32.gmra.mxu0 %v6613
        %v6641 = vpop.f32.mrf.mxu0
        %v6642 = vadd.f32 %v6597, %v6641
        %6643 = vmatmul.f32.gmra.mxu0 %v6616
        %v6644 = vpop.f32.mrf.mxu0
        %v6645 = vadd.f32 %v6602, %v6644
        %6646 = vmatmul.f32.gmra.mxu0 %v6619
        %v6647 = vpop.f32.mrf.mxu0
        %v6648 = vadd.f32 %v6607, %v6647
        %6649 = vdwg.mxu0
        %6650 = vmatpush.msra.mxu0 0.0
        %6651 = vmatpush.msra.mxu0 0.0
        %6652 = vmatpush.msra.mxu0 0.0
        %6653 = vmatpush.msra.mxu0 0.0
        %6654 = vmatpush.msra.mxu0 0.0
        %6655 = vmatpush.msra.mxu0 0.0
        %6656 = vmatpush.msra.mxu0 0.0
        %6657 = vmatpush.msra.mxu0 0.0
        %6658 = vmatpush.msra.mxu0 0.0
        %6659 = vmatpush.msra.mxu0 0.0
        %6660 = vmatpush.msra.mxu0 0.0
        %6661 = vmatpush.msra.mxu0 0.0
        %6662 = vmatpush.msra.mxu0 %v6551
        %6663 = vmatpush.msra.mxu0 %v6520
        %6664 = vmatpush.msra.mxu0 %v6489
        %6665 = vmatpush.msra.mxu0 %v6458
        %6666 = vmatmul.f32.gmra.mxu0 %v6610
        %v6667 = vpop.f32.mrf.mxu0
        %v6668 = vadd.f32 %v6592, %v6667
        %6669 = vmatmul.f32.gmra.mxu0 %v6613
        %v6670 = vpop.f32.mrf.mxu0
        %v6671 = vadd.f32 %v6597, %v6670
        %6672 = vmatmul.f32.gmra.mxu0 %v6616
        %v6673 = vpop.f32.mrf.mxu0
        %v6674 = vadd.f32 %v6602, %v6673
        %6675 = vmatmul.f32.gmra.mxu0 %v6619
        %v6676 = vpop.f32.mrf.mxu0
        %v6677 = vadd.f32 %v6607, %v6676
        %6678 = vdwg.mxu0
        %6679 = vmatpush.msra.mxu0 0.0
        %6680 = vmatpush.msra.mxu0 0.0
        %6681 = vmatpush.msra.mxu0 0.0
        %6682 = vmatpush.msra.mxu0 0.0
        %6683 = vmatpush.msra.mxu0 0.0
        %6684 = vmatpush.msra.mxu0 0.0
        %6685 = vmatpush.msra.mxu0 0.0
        %6686 = vmatpush.msra.mxu0 0.0
        %6687 = vmatpush.msra.mxu0 0.0
        %6688 = vmatpush.msra.mxu0 0.0
        %6689 = vmatpush.msra.mxu0 0.0
        %6690 = vmatpush.msra.mxu0 0.0
        %6691 = vmatpush.msra.mxu0 %v6552
        %6692 = vmatpush.msra.mxu0 %v6521
        %6693 = vmatpush.msra.mxu0 %v6490
        %6694 = vmatpush.msra.mxu0 %v6459
        %6695 = vmatmul.f32.gmra.mxu0 %v6610
        %v6696 = vpop.f32.mrf.mxu0
        %v6697 = vadd.f32 %v6592, %v6696
        %6698 = vmatmul.f32.gmra.mxu0 %v6613
        %v6699 = vpop.f32.mrf.mxu0
        %v6700 = vadd.f32 %v6597, %v6699
        %6701 = vmatmul.f32.gmra.mxu0 %v6616
        %v6702 = vpop.f32.mrf.mxu0
        %v6703 = vadd.f32 %v6602, %v6702
        %6704 = vmatmul.f32.gmra.mxu0 %v6619
        %v6705 = vpop.f32.mrf.mxu0
        %v6706 = vadd.f32 %v6607, %v6705
        %6707 = vdwg.mxu0
        %6708 = vmatpush.msra.mxu0 0.0
        %6709 = vmatpush.msra.mxu0 0.0
        %6710 = vmatpush.msra.mxu0 0.0
        %6711 = vmatpush.msra.mxu0 0.0
        %6712 = vmatpush.msra.mxu0 0.0
        %6713 = vmatpush.msra.mxu0 0.0
        %6714 = vmatpush.msra.mxu0 0.0
        %6715 = vmatpush.msra.mxu0 0.0
        %6716 = vmatpush.msra.mxu0 0.0
        %6717 = vmatpush.msra.mxu0 0.0
        %6718 = vmatpush.msra.mxu0 0.0
        %6719 = vmatpush.msra.mxu0 0.0
        %6720 = vmatpush.msra.mxu0 %v6553
        %6721 = vmatpush.msra.mxu0 %v6522
        %6722 = vmatpush.msra.mxu0 %v6491
        %6723 = vmatpush.msra.mxu0 %v6460
        %6724 = vmatmul.f32.gmra.mxu0 %v6610
        %v6725 = vpop.f32.mrf.mxu0
        %v6726 = vadd.f32 %v6592, %v6725
        %6727 = vmatmul.f32.gmra.mxu0 %v6613
        %v6728 = vpop.f32.mrf.mxu0
        %v6729 = vadd.f32 %v6597, %v6728
        %6730 = vmatmul.f32.gmra.mxu0 %v6616
        %v6731 = vpop.f32.mrf.mxu0
        %v6732 = vadd.f32 %v6602, %v6731
        %6733 = vmatmul.f32.gmra.mxu0 %v6619
        %v6734 = vpop.f32.mrf.mxu0
        %v6735 = vadd.f32 %v6607, %v6734
        %6736 = vdwg.mxu0
        %6737 = vmatpush.msra.mxu0 0.0
        %6738 = vmatpush.msra.mxu0 0.0
        %6739 = vmatpush.msra.mxu0 0.0
        %6740 = vmatpush.msra.mxu0 0.0
        %6741 = vmatpush.msra.mxu0 0.0
        %6742 = vmatpush.msra.mxu0 0.0
        %6743 = vmatpush.msra.mxu0 0.0
        %6744 = vmatpush.msra.mxu0 0.0
        %6745 = vmatpush.msra.mxu0 0.0
        %6746 = vmatpush.msra.mxu0 0.0
        %6747 = vmatpush.msra.mxu0 0.0
        %6748 = vmatpush.msra.mxu0 0.0
        %6749 = vmatpush.msra.mxu0 %v6554
        %6750 = vmatpush.msra.mxu0 %v6523
        %6751 = vmatpush.msra.mxu0 %v6492
        %6752 = vmatpush.msra.mxu0 %v6461
        %6753 = vmatmul.f32.gmra.mxu0 %v6610
        %v6754 = vpop.f32.mrf.mxu0
        %v6755 = vadd.f32 %v6592, %v6754
        %6756 = vmatmul.f32.gmra.mxu0 %v6613
        %v6757 = vpop.f32.mrf.mxu0
        %v6758 = vadd.f32 %v6597, %v6757
        %6759 = vmatmul.f32.gmra.mxu0 %v6616
        %v6760 = vpop.f32.mrf.mxu0
        %v6761 = vadd.f32 %v6602, %v6760
        %6762 = vmatmul.f32.gmra.mxu0 %v6619
        %v6763 = vpop.f32.mrf.mxu0
        %v6764 = vadd.f32 %v6607, %v6763
        %6765 = vdwg.mxu0
        %6766 = vmatpush.msra.mxu0 0.0
        %6767 = vmatpush.msra.mxu0 0.0
        %6768 = vmatpush.msra.mxu0 0.0
        %6769 = vmatpush.msra.mxu0 0.0
        %6770 = vmatpush.msra.mxu0 0.0
        %6771 = vmatpush.msra.mxu0 0.0
        %6772 = vmatpush.msra.mxu0 0.0
        %6773 = vmatpush.msra.mxu0 0.0
        %6774 = vmatpush.msra.mxu0 0.0
        %6775 = vmatpush.msra.mxu0 0.0
        %6776 = vmatpush.msra.mxu0 0.0
        %6777 = vmatpush.msra.mxu0 0.0
        %6778 = vmatpush.msra.mxu0 %v6555
        %6779 = vmatpush.msra.mxu0 %v6524
        %6780 = vmatpush.msra.mxu0 %v6493
        %6781 = vmatpush.msra.mxu0 %v6462
        %6782 = vmatmul.f32.gmra.mxu0 %v6610
        %v6783 = vpop.f32.mrf.mxu0
        %v6784 = vadd.f32 %v6592, %v6783
        %6785 = vmatmul.f32.gmra.mxu0 %v6613
        %v6786 = vpop.f32.mrf.mxu0
        %v6787 = vadd.f32 %v6597, %v6786
        %6788 = vmatmul.f32.gmra.mxu0 %v6616
        %v6789 = vpop.f32.mrf.mxu0
        %v6790 = vadd.f32 %v6602, %v6789
        %6791 = vmatmul.f32.gmra.mxu0 %v6619
        %v6792 = vpop.f32.mrf.mxu0
        %v6793 = vadd.f32 %v6607, %v6792
        %6794 = vdwg.mxu0
        %6795 = vmatpush.msra.mxu0 0.0
        %6796 = vmatpush.msra.mxu0 0.0
        %6797 = vmatpush.msra.mxu0 0.0
        %6798 = vmatpush.msra.mxu0 0.0
        %6799 = vmatpush.msra.mxu0 0.0
        %6800 = vmatpush.msra.mxu0 0.0
        %6801 = vmatpush.msra.mxu0 0.0
        %6802 = vmatpush.msra.mxu0 0.0
        %6803 = vmatpush.msra.mxu0 0.0
        %6804 = vmatpush.msra.mxu0 0.0
        %6805 = vmatpush.msra.mxu0 0.0
        %6806 = vmatpush.msra.mxu0 0.0
        %6807 = vmatpush.msra.mxu0 %v6556
        %6808 = vmatpush.msra.mxu0 %v6525
        %6809 = vmatpush.msra.mxu0 %v6494
        %6810 = vmatpush.msra.mxu0 %v6463
        %6811 = vmatmul.f32.gmra.mxu0 %v6610
        %v6812 = vpop.f32.mrf.mxu0
        %v6813 = vadd.f32 %v6592, %v6812
        %6814 = vmatmul.f32.gmra.mxu0 %v6613
        %v6815 = vpop.f32.mrf.mxu0
        %v6816 = vadd.f32 %v6597, %v6815
        %6817 = vmatmul.f32.gmra.mxu0 %v6616
        %v6818 = vpop.f32.mrf.mxu0
        %v6819 = vadd.f32 %v6602, %v6818
        %6820 = vmatmul.f32.gmra.mxu0 %v6619
        %v6821 = vpop.f32.mrf.mxu0
        %v6822 = vadd.f32 %v6607, %v6821
        %6823 = vdwg.mxu0
        %6824 = vmatpush.msra.mxu0 0.0
        %6825 = vmatpush.msra.mxu0 0.0
        %6826 = vmatpush.msra.mxu0 0.0
        %6827 = vmatpush.msra.mxu0 0.0
        %6828 = vmatpush.msra.mxu0 0.0
        %6829 = vmatpush.msra.mxu0 0.0
        %6830 = vmatpush.msra.mxu0 0.0
        %6831 = vmatpush.msra.mxu0 0.0
        %6832 = vmatpush.msra.mxu0 0.0
        %6833 = vmatpush.msra.mxu0 0.0
        %6834 = vmatpush.msra.mxu0 0.0
        %6835 = vmatpush.msra.mxu0 0.0
        %6836 = vmatpush.msra.mxu0 %v6557
        %6837 = vmatpush.msra.mxu0 %v6526
        %6838 = vmatpush.msra.mxu0 %v6495
        %6839 = vmatpush.msra.mxu0 %v6464
        %6840 = vmatmul.f32.gmra.mxu0 %v6610
        %v6841 = vpop.f32.mrf.mxu0
        %v6842 = vadd.f32 %v6592, %v6841
        %6843 = vmatmul.f32.gmra.mxu0 %v6613
        %v6844 = vpop.f32.mrf.mxu0
        %v6845 = vadd.f32 %v6597, %v6844
        %6846 = vmatmul.f32.gmra.mxu0 %v6616
        %v6847 = vpop.f32.mrf.mxu0
        %v6848 = vadd.f32 %v6602, %v6847
        %6849 = vmatmul.f32.gmra.mxu0 %v6619
        %v6850 = vpop.f32.mrf.mxu0
        %v6851 = vadd.f32 %v6607, %v6850
        %6852 = vdwg.mxu0
        %6853 = vmatpush.msra.mxu0 0.0
        %6854 = vmatpush.msra.mxu0 0.0
        %6855 = vmatpush.msra.mxu0 0.0
        %6856 = vmatpush.msra.mxu0 0.0
        %6857 = vmatpush.msra.mxu0 0.0
        %6858 = vmatpush.msra.mxu0 0.0
        %6859 = vmatpush.msra.mxu0 0.0
        %6860 = vmatpush.msra.mxu0 0.0
        %6861 = vmatpush.msra.mxu0 0.0
        %6862 = vmatpush.msra.mxu0 0.0
        %6863 = vmatpush.msra.mxu0 0.0
        %6864 = vmatpush.msra.mxu0 0.0
        %6865 = vmatpush.msra.mxu0 %v6558
        %6866 = vmatpush.msra.mxu0 %v6527
        %6867 = vmatpush.msra.mxu0 %v6496
        %6868 = vmatpush.msra.mxu0 %v6465
        %6869 = vmatmul.f32.gmra.mxu0 %v6610
        %v6870 = vpop.f32.mrf.mxu0
        %v6871 = vadd.f32 %v6592, %v6870
        %6872 = vmatmul.f32.gmra.mxu0 %v6613
        %v6873 = vpop.f32.mrf.mxu0
        %v6874 = vadd.f32 %v6597, %v6873
        %6875 = vmatmul.f32.gmra.mxu0 %v6616
        %v6876 = vpop.f32.mrf.mxu0
        %v6877 = vadd.f32 %v6602, %v6876
        %6878 = vmatmul.f32.gmra.mxu0 %v6619
        %v6879 = vpop.f32.mrf.mxu0
        %v6880 = vadd.f32 %v6607, %v6879
        %6881 = vdwg.mxu0
        %6882 = vmatpush.msra.mxu0 0.0
        %6883 = vmatpush.msra.mxu0 0.0
        %6884 = vmatpush.msra.mxu0 0.0
        %6885 = vmatpush.msra.mxu0 0.0
        %6886 = vmatpush.msra.mxu0 0.0
        %6887 = vmatpush.msra.mxu0 0.0
        %6888 = vmatpush.msra.mxu0 0.0
        %6889 = vmatpush.msra.mxu0 0.0
        %6890 = vmatpush.msra.mxu0 0.0
        %6891 = vmatpush.msra.mxu0 0.0
        %6892 = vmatpush.msra.mxu0 0.0
        %6893 = vmatpush.msra.mxu0 0.0
        %6894 = vmatpush.msra.mxu0 %v6559
        %6895 = vmatpush.msra.mxu0 %v6528
        %6896 = vmatpush.msra.mxu0 %v6497
        %6897 = vmatpush.msra.mxu0 %v6466
        %6898 = vmatmul.f32.gmra.mxu0 %v6610
        %v6899 = vpop.f32.mrf.mxu0
        %v6900 = vadd.f32 %v6592, %v6899
        %6901 = vmatmul.f32.gmra.mxu0 %v6613
        %v6902 = vpop.f32.mrf.mxu0
        %v6903 = vadd.f32 %v6597, %v6902
        %6904 = vmatmul.f32.gmra.mxu0 %v6616
        %v6905 = vpop.f32.mrf.mxu0
        %v6906 = vadd.f32 %v6602, %v6905
        %6907 = vmatmul.f32.gmra.mxu0 %v6619
        %v6908 = vpop.f32.mrf.mxu0
        %v6909 = vadd.f32 %v6607, %v6908
        %6910 = vdwg.mxu0
        %6911 = vmatpush.msra.mxu0 0.0
        %6912 = vmatpush.msra.mxu0 0.0
        %6913 = vmatpush.msra.mxu0 0.0
        %6914 = vmatpush.msra.mxu0 0.0
        %6915 = vmatpush.msra.mxu0 0.0
        %6916 = vmatpush.msra.mxu0 0.0
        %6917 = vmatpush.msra.mxu0 0.0
        %6918 = vmatpush.msra.mxu0 0.0
        %6919 = vmatpush.msra.mxu0 0.0
        %6920 = vmatpush.msra.mxu0 0.0
        %6921 = vmatpush.msra.mxu0 0.0
        %6922 = vmatpush.msra.mxu0 0.0
        %6923 = vmatpush.msra.mxu0 %v6560
        %6924 = vmatpush.msra.mxu0 %v6529
        %6925 = vmatpush.msra.mxu0 %v6498
        %6926 = vmatpush.msra.mxu0 %v6467
        %6927 = vmatmul.f32.gmra.mxu0 %v6610
        %v6928 = vpop.f32.mrf.mxu0
        %v6929 = vadd.f32 %v6592, %v6928
        %6930 = vmatmul.f32.gmra.mxu0 %v6613
        %v6931 = vpop.f32.mrf.mxu0
        %v6932 = vadd.f32 %v6597, %v6931
        %6933 = vmatmul.f32.gmra.mxu0 %v6616
        %v6934 = vpop.f32.mrf.mxu0
        %v6935 = vadd.f32 %v6602, %v6934
        %6936 = vmatmul.f32.gmra.mxu0 %v6619
        %v6937 = vpop.f32.mrf.mxu0
        %v6938 = vadd.f32 %v6607, %v6937
        %6939 = vdwg.mxu0
        %6940 = vmatpush.msra.mxu0 0.0
        %6941 = vmatpush.msra.mxu0 0.0
        %6942 = vmatpush.msra.mxu0 0.0
        %6943 = vmatpush.msra.mxu0 0.0
        %6944 = vmatpush.msra.mxu0 0.0
        %6945 = vmatpush.msra.mxu0 0.0
        %6946 = vmatpush.msra.mxu0 0.0
        %6947 = vmatpush.msra.mxu0 0.0
        %6948 = vmatpush.msra.mxu0 0.0
        %6949 = vmatpush.msra.mxu0 0.0
        %6950 = vmatpush.msra.mxu0 0.0
        %6951 = vmatpush.msra.mxu0 0.0
        %6952 = vmatpush.msra.mxu0 %v6561
        %6953 = vmatpush.msra.mxu0 %v6530
        %6954 = vmatpush.msra.mxu0 %v6499
        %6955 = vmatpush.msra.mxu0 %v6468
        %6956 = vmatmul.f32.gmra.mxu0 %v6610
        %v6957 = vpop.f32.mrf.mxu0
        %v6958 = vadd.f32 %v6592, %v6957
        %6959 = vmatmul.f32.gmra.mxu0 %v6613
        %v6960 = vpop.f32.mrf.mxu0
        %v6961 = vadd.f32 %v6597, %v6960
        %6962 = vmatmul.f32.gmra.mxu0 %v6616
        %v6963 = vpop.f32.mrf.mxu0
        %v6964 = vadd.f32 %v6602, %v6963
        %6965 = vmatmul.f32.gmra.mxu0 %v6619
        %v6966 = vpop.f32.mrf.mxu0
        %v6967 = vadd.f32 %v6607, %v6966
        %6968 = vdwg.mxu0
        %6969 = vmatpush.msra.mxu0 0.0
        %6970 = vmatpush.msra.mxu0 0.0
        %6971 = vmatpush.msra.mxu0 0.0
        %6972 = vmatpush.msra.mxu0 0.0
        %6973 = vmatpush.msra.mxu0 0.0
        %6974 = vmatpush.msra.mxu0 0.0
        %6975 = vmatpush.msra.mxu0 0.0
        %6976 = vmatpush.msra.mxu0 0.0
        %6977 = vmatpush.msra.mxu0 0.0
        %6978 = vmatpush.msra.mxu0 0.0
        %6979 = vmatpush.msra.mxu0 0.0
        %6980 = vmatpush.msra.mxu0 0.0
        %6981 = vmatpush.msra.mxu0 %v6562
        %6982 = vmatpush.msra.mxu0 %v6531
        %6983 = vmatpush.msra.mxu0 %v6500
        %6984 = vmatpush.msra.mxu0 %v6469
        %6985 = vmatmul.f32.gmra.mxu0 %v6610
        %v6986 = vpop.f32.mrf.mxu0
        %v6987 = vadd.f32 %v6592, %v6986
        %6988 = vmatmul.f32.gmra.mxu0 %v6613
        %v6989 = vpop.f32.mrf.mxu0
        %v6990 = vadd.f32 %v6597, %v6989
        %6991 = vmatmul.f32.gmra.mxu0 %v6616
        %v6992 = vpop.f32.mrf.mxu0
        %v6993 = vadd.f32 %v6602, %v6992
        %6994 = vmatmul.f32.gmra.mxu0 %v6619
        %v6995 = vpop.f32.mrf.mxu0
        %v6996 = vadd.f32 %v6607, %v6995
        %6997 = vdwg.mxu0
        %6998 = vmatpush.msra.mxu0 0.0
        %6999 = vmatpush.msra.mxu0 0.0
        %7000 = vmatpush.msra.mxu0 0.0
        %7001 = vmatpush.msra.mxu0 0.0
        %7002 = vmatpush.msra.mxu0 0.0
        %7003 = vmatpush.msra.mxu0 0.0
        %7004 = vmatpush.msra.mxu0 0.0
        %7005 = vmatpush.msra.mxu0 0.0
        %7006 = vmatpush.msra.mxu0 0.0
        %7007 = vmatpush.msra.mxu0 0.0
        %7008 = vmatpush.msra.mxu0 0.0
        %7009 = vmatpush.msra.mxu0 0.0
        %7010 = vmatpush.msra.mxu0 %v6563
        %7011 = vmatpush.msra.mxu0 %v6532
        %7012 = vmatpush.msra.mxu0 %v6501
        %7013 = vmatpush.msra.mxu0 %v6470
        %7014 = vmatmul.f32.gmra.mxu0 %v6610
        %v7015 = vpop.f32.mrf.mxu0
        %v7016 = vadd.f32 %v6592, %v7015
        %7017 = vmatmul.f32.gmra.mxu0 %v6613
        %v7018 = vpop.f32.mrf.mxu0
        %v7019 = vadd.f32 %v6597, %v7018
        %7020 = vmatmul.f32.gmra.mxu0 %v6616
        %v7021 = vpop.f32.mrf.mxu0
        %v7022 = vadd.f32 %v6602, %v7021
        %7023 = vmatmul.f32.gmra.mxu0 %v6619
        %v7024 = vpop.f32.mrf.mxu0
        %v7025 = vadd.f32 %v6607, %v7024
        %7026 = vdwg.mxu0
        %7027 = vmatpush.msra.mxu0 0.0
        %7028 = vmatpush.msra.mxu0 0.0
        %7029 = vmatpush.msra.mxu0 0.0
        %7030 = vmatpush.msra.mxu0 0.0
        %7031 = vmatpush.msra.mxu0 0.0
        %7032 = vmatpush.msra.mxu0 0.0
        %7033 = vmatpush.msra.mxu0 0.0
        %7034 = vmatpush.msra.mxu0 0.0
        %7035 = vmatpush.msra.mxu0 0.0
        %7036 = vmatpush.msra.mxu0 0.0
        %7037 = vmatpush.msra.mxu0 0.0
        %7038 = vmatpush.msra.mxu0 0.0
        %7039 = vmatpush.msra.mxu0 %v6564
        %7040 = vmatpush.msra.mxu0 %v6533
        %7041 = vmatpush.msra.mxu0 %v6502
        %7042 = vmatpush.msra.mxu0 %v6471
        %7043 = vmatmul.f32.gmra.mxu0 %v6610
        %v7044 = vpop.f32.mrf.mxu0
        %v7045 = vadd.f32 %v6592, %v7044
        %7046 = vmatmul.f32.gmra.mxu0 %v6613
        %v7047 = vpop.f32.mrf.mxu0
        %v7048 = vadd.f32 %v6597, %v7047
        %7049 = vmatmul.f32.gmra.mxu0 %v6616
        %v7050 = vpop.f32.mrf.mxu0
        %v7051 = vadd.f32 %v6602, %v7050
        %7052 = vmatmul.f32.gmra.mxu0 %v6619
        %v7053 = vpop.f32.mrf.mxu0
        %v7054 = vadd.f32 %v6607, %v7053
        %7055 = vdwg.mxu0
        %7056 = vmatpush.msra.mxu0 0.0
        %7057 = vmatpush.msra.mxu0 0.0
        %7058 = vmatpush.msra.mxu0 0.0
        %7059 = vmatpush.msra.mxu0 0.0
        %7060 = vmatpush.msra.mxu0 0.0
        %7061 = vmatpush.msra.mxu0 0.0
        %7062 = vmatpush.msra.mxu0 0.0
        %7063 = vmatpush.msra.mxu0 0.0
        %7064 = vmatpush.msra.mxu0 0.0
        %7065 = vmatpush.msra.mxu0 0.0
        %7066 = vmatpush.msra.mxu0 0.0
        %7067 = vmatpush.msra.mxu0 0.0
        %7068 = vmatpush.msra.mxu0 %v6565
        %7069 = vmatpush.msra.mxu0 %v6534
        %7070 = vmatpush.msra.mxu0 %v6503
        %7071 = vmatpush.msra.mxu0 %v6472
        %7072 = vmatmul.f32.gmra.mxu0 %v6610
        %v7073 = vpop.f32.mrf.mxu0
        %v7074 = vadd.f32 %v6592, %v7073
        %7075 = vmatmul.f32.gmra.mxu0 %v6613
        %v7076 = vpop.f32.mrf.mxu0
        %v7077 = vadd.f32 %v6597, %v7076
        %7078 = vmatmul.f32.gmra.mxu0 %v6616
        %v7079 = vpop.f32.mrf.mxu0
        %v7080 = vadd.f32 %v6602, %v7079
        %7081 = vmatmul.f32.gmra.mxu0 %v6619
        %v7082 = vpop.f32.mrf.mxu0
        %v7083 = vadd.f32 %v6607, %v7082
        %7084 = vdwg.mxu0
        %7085 = vmatpush.msra.mxu0 0.0
        %7086 = vmatpush.msra.mxu0 0.0
        %7087 = vmatpush.msra.mxu0 0.0
        %7088 = vmatpush.msra.mxu0 0.0
        %7089 = vmatpush.msra.mxu0 0.0
        %7090 = vmatpush.msra.mxu0 0.0
        %7091 = vmatpush.msra.mxu0 0.0
        %7092 = vmatpush.msra.mxu0 0.0
        %7093 = vmatpush.msra.mxu0 0.0
        %7094 = vmatpush.msra.mxu0 0.0
        %7095 = vmatpush.msra.mxu0 0.0
        %7096 = vmatpush.msra.mxu0 0.0
        %7097 = vmatpush.msra.mxu0 %v6566
        %7098 = vmatpush.msra.mxu0 %v6535
        %7099 = vmatpush.msra.mxu0 %v6504
        %7100 = vmatpush.msra.mxu0 %v6473
        %7101 = vmatmul.f32.gmra.mxu0 %v6610
        %v7102 = vpop.f32.mrf.mxu0
        %v7103 = vadd.f32 %v6592, %v7102
        %7104 = vmatmul.f32.gmra.mxu0 %v6613
        %v7105 = vpop.f32.mrf.mxu0
        %v7106 = vadd.f32 %v6597, %v7105
        %7107 = vmatmul.f32.gmra.mxu0 %v6616
        %v7108 = vpop.f32.mrf.mxu0
        %v7109 = vadd.f32 %v6602, %v7108
        %7110 = vmatmul.f32.gmra.mxu0 %v6619
        %v7111 = vpop.f32.mrf.mxu0
        %v7112 = vadd.f32 %v6607, %v7111
        %7113 = vdwg.mxu0
        %7114 = vmatpush.msra.mxu0 0.0
        %7115 = vmatpush.msra.mxu0 0.0
        %7116 = vmatpush.msra.mxu0 0.0
        %7117 = vmatpush.msra.mxu0 0.0
        %7118 = vmatpush.msra.mxu0 0.0
        %7119 = vmatpush.msra.mxu0 0.0
        %7120 = vmatpush.msra.mxu0 0.0
        %7121 = vmatpush.msra.mxu0 0.0
        %7122 = vmatpush.msra.mxu0 0.0
        %7123 = vmatpush.msra.mxu0 0.0
        %7124 = vmatpush.msra.mxu0 0.0
        %7125 = vmatpush.msra.mxu0 0.0
        %7126 = vmatpush.msra.mxu0 %v6567
        %7127 = vmatpush.msra.mxu0 %v6536
        %7128 = vmatpush.msra.mxu0 %v6505
        %7129 = vmatpush.msra.mxu0 %v6474
        %7130 = vmatmul.f32.gmra.mxu0 %v6610
        %v7131 = vpop.f32.mrf.mxu0
        %v7132 = vadd.f32 %v6592, %v7131
        %7133 = vmatmul.f32.gmra.mxu0 %v6613
        %v7134 = vpop.f32.mrf.mxu0
        %v7135 = vadd.f32 %v6597, %v7134
        %7136 = vmatmul.f32.gmra.mxu0 %v6616
        %v7137 = vpop.f32.mrf.mxu0
        %v7138 = vadd.f32 %v6602, %v7137
        %7139 = vmatmul.f32.gmra.mxu0 %v6619
        %v7140 = vpop.f32.mrf.mxu0
        %v7141 = vadd.f32 %v6607, %v7140
        %7142 = vdwg.mxu0
        %7143 = vmatpush.msra.mxu0 0.0
        %7144 = vmatpush.msra.mxu0 0.0
        %7145 = vmatpush.msra.mxu0 0.0
        %7146 = vmatpush.msra.mxu0 0.0
        %7147 = vmatpush.msra.mxu0 0.0
        %7148 = vmatpush.msra.mxu0 0.0
        %7149 = vmatpush.msra.mxu0 0.0
        %7150 = vmatpush.msra.mxu0 0.0
        %7151 = vmatpush.msra.mxu0 0.0
        %7152 = vmatpush.msra.mxu0 0.0
        %7153 = vmatpush.msra.mxu0 0.0
        %7154 = vmatpush.msra.mxu0 0.0
        %7155 = vmatpush.msra.mxu0 %v6568
        %7156 = vmatpush.msra.mxu0 %v6537
        %7157 = vmatpush.msra.mxu0 %v6506
        %7158 = vmatpush.msra.mxu0 %v6475
        %7159 = vmatmul.f32.gmra.mxu0 %v6610
        %v7160 = vpop.f32.mrf.mxu0
        %v7161 = vadd.f32 %v6592, %v7160
        %7162 = vmatmul.f32.gmra.mxu0 %v6613
        %v7163 = vpop.f32.mrf.mxu0
        %v7164 = vadd.f32 %v6597, %v7163
        %7165 = vmatmul.f32.gmra.mxu0 %v6616
        %v7166 = vpop.f32.mrf.mxu0
        %v7167 = vadd.f32 %v6602, %v7166
        %7168 = vmatmul.f32.gmra.mxu0 %v6619
        %v7169 = vpop.f32.mrf.mxu0
        %v7170 = vadd.f32 %v6607, %v7169
        %7171 = vdwg.mxu0
        %7172 = vmatpush.msra.mxu0 0.0
        %7173 = vmatpush.msra.mxu0 0.0
        %7174 = vmatpush.msra.mxu0 0.0
        %7175 = vmatpush.msra.mxu0 0.0
        %7176 = vmatpush.msra.mxu0 0.0
        %7177 = vmatpush.msra.mxu0 0.0
        %7178 = vmatpush.msra.mxu0 0.0
        %7179 = vmatpush.msra.mxu0 0.0
        %7180 = vmatpush.msra.mxu0 0.0
        %7181 = vmatpush.msra.mxu0 0.0
        %7182 = vmatpush.msra.mxu0 0.0
        %7183 = vmatpush.msra.mxu0 0.0
        %7184 = vmatpush.msra.mxu0 %v6569
        %7185 = vmatpush.msra.mxu0 %v6538
        %7186 = vmatpush.msra.mxu0 %v6507
        %7187 = vmatpush.msra.mxu0 %v6476
        %7188 = vmatmul.f32.gmra.mxu0 %v6610
        %v7189 = vpop.f32.mrf.mxu0
        %v7190 = vadd.f32 %v6592, %v7189
        %7191 = vmatmul.f32.gmra.mxu0 %v6613
        %v7192 = vpop.f32.mrf.mxu0
        %v7193 = vadd.f32 %v6597, %v7192
        %7194 = vmatmul.f32.gmra.mxu0 %v6616
        %v7195 = vpop.f32.mrf.mxu0
        %v7196 = vadd.f32 %v6602, %v7195
        %7197 = vmatmul.f32.gmra.mxu0 %v6619
        %v7198 = vpop.f32.mrf.mxu0
        %v7199 = vadd.f32 %v6607, %v7198
        %7200 = vdwg.mxu0
        %7201 = vmatpush.msra.mxu0 0.0
        %7202 = vmatpush.msra.mxu0 0.0
        %7203 = vmatpush.msra.mxu0 0.0
        %7204 = vmatpush.msra.mxu0 0.0
        %7205 = vmatpush.msra.mxu0 0.0
        %7206 = vmatpush.msra.mxu0 0.0
        %7207 = vmatpush.msra.mxu0 0.0
        %7208 = vmatpush.msra.mxu0 0.0
        %7209 = vmatpush.msra.mxu0 0.0
        %7210 = vmatpush.msra.mxu0 0.0
        %7211 = vmatpush.msra.mxu0 0.0
        %7212 = vmatpush.msra.mxu0 0.0
        %7213 = vmatpush.msra.mxu0 %v6570
        %7214 = vmatpush.msra.mxu0 %v6539
        %7215 = vmatpush.msra.mxu0 %v6508
        %7216 = vmatpush.msra.mxu0 %v6477
        %7217 = vmatmul.f32.gmra.mxu0 %v6610
        %v7218 = vpop.f32.mrf.mxu0
        %v7219 = vadd.f32 %v6592, %v7218
        %7220 = vmatmul.f32.gmra.mxu0 %v6613
        %v7221 = vpop.f32.mrf.mxu0
        %v7222 = vadd.f32 %v6597, %v7221
        %7223 = vmatmul.f32.gmra.mxu0 %v6616
        %v7224 = vpop.f32.mrf.mxu0
        %v7225 = vadd.f32 %v6602, %v7224
        %7226 = vmatmul.f32.gmra.mxu0 %v6619
        %v7227 = vpop.f32.mrf.mxu0
        %v7228 = vadd.f32 %v6607, %v7227
        %7229 = vdwg.mxu0
        %7230 = vmatpush.msra.mxu0 0.0
        %7231 = vmatpush.msra.mxu0 0.0
        %7232 = vmatpush.msra.mxu0 0.0
        %7233 = vmatpush.msra.mxu0 0.0
        %7234 = vmatpush.msra.mxu0 0.0
        %7235 = vmatpush.msra.mxu0 0.0
        %7236 = vmatpush.msra.mxu0 0.0
        %7237 = vmatpush.msra.mxu0 0.0
        %7238 = vmatpush.msra.mxu0 0.0
        %7239 = vmatpush.msra.mxu0 0.0
        %7240 = vmatpush.msra.mxu0 0.0
        %7241 = vmatpush.msra.mxu0 0.0
        %7242 = vmatpush.msra.mxu0 %v6571
        %7243 = vmatpush.msra.mxu0 %v6540
        %7244 = vmatpush.msra.mxu0 %v6509
        %7245 = vmatpush.msra.mxu0 %v6478
        %7246 = vmatmul.f32.gmra.mxu0 %v6610
        %v7247 = vpop.f32.mrf.mxu0
        %v7248 = vadd.f32 %v6592, %v7247
        %7249 = vmatmul.f32.gmra.mxu0 %v6613
        %v7250 = vpop.f32.mrf.mxu0
        %v7251 = vadd.f32 %v6597, %v7250
        %7252 = vmatmul.f32.gmra.mxu0 %v6616
        %v7253 = vpop.f32.mrf.mxu0
        %v7254 = vadd.f32 %v6602, %v7253
        %7255 = vmatmul.f32.gmra.mxu0 %v6619
        %v7256 = vpop.f32.mrf.mxu0
        %v7257 = vadd.f32 %v6607, %v7256
        %7258 = vdwg.mxu0
        %7259 = vmatpush.msra.mxu0 0.0
        %7260 = vmatpush.msra.mxu0 0.0
        %7261 = vmatpush.msra.mxu0 0.0
        %7262 = vmatpush.msra.mxu0 0.0
        %7263 = vmatpush.msra.mxu0 0.0
        %7264 = vmatpush.msra.mxu0 0.0
        %7265 = vmatpush.msra.mxu0 0.0
        %7266 = vmatpush.msra.mxu0 0.0
        %7267 = vmatpush.msra.mxu0 0.0
        %7268 = vmatpush.msra.mxu0 0.0
        %7269 = vmatpush.msra.mxu0 0.0
        %7270 = vmatpush.msra.mxu0 0.0
        %7271 = vmatpush.msra.mxu0 %v6572
        %7272 = vmatpush.msra.mxu0 %v6541
        %7273 = vmatpush.msra.mxu0 %v6510
        %7274 = vmatpush.msra.mxu0 %v6479
        %7275 = vmatmul.f32.gmra.mxu0 %v6610
        %v7276 = vpop.f32.mrf.mxu0
        %v7277 = vadd.f32 %v6592, %v7276
        %7278 = vmatmul.f32.gmra.mxu0 %v6613
        %v7279 = vpop.f32.mrf.mxu0
        %v7280 = vadd.f32 %v6597, %v7279
        %7281 = vmatmul.f32.gmra.mxu0 %v6616
        %v7282 = vpop.f32.mrf.mxu0
        %v7283 = vadd.f32 %v6602, %v7282
        %7284 = vmatmul.f32.gmra.mxu0 %v6619
        %v7285 = vpop.f32.mrf.mxu0
        %v7286 = vadd.f32 %v6607, %v7285
        %7287 = vdwg.mxu0
        %7288 = vmatpush.msra.mxu0 0.0
        %7289 = vmatpush.msra.mxu0 0.0
        %7290 = vmatpush.msra.mxu0 0.0
        %7291 = vmatpush.msra.mxu0 0.0
        %7292 = vmatpush.msra.mxu0 0.0
        %7293 = vmatpush.msra.mxu0 0.0
        %7294 = vmatpush.msra.mxu0 0.0
        %7295 = vmatpush.msra.mxu0 0.0
        %7296 = vmatpush.msra.mxu0 0.0
        %7297 = vmatpush.msra.mxu0 0.0
        %7298 = vmatpush.msra.mxu0 0.0
        %7299 = vmatpush.msra.mxu0 0.0
        %7300 = vmatpush.msra.mxu0 %v6573
        %7301 = vmatpush.msra.mxu0 %v6542
        %7302 = vmatpush.msra.mxu0 %v6511
        %7303 = vmatpush.msra.mxu0 %v6480
        %7304 = vmatmul.f32.gmra.mxu0 %v6610
        %v7305 = vpop.f32.mrf.mxu0
        %v7306 = vadd.f32 %v6592, %v7305
        %7307 = vmatmul.f32.gmra.mxu0 %v6613
        %v7308 = vpop.f32.mrf.mxu0
        %v7309 = vadd.f32 %v6597, %v7308
        %7310 = vmatmul.f32.gmra.mxu0 %v6616
        %v7311 = vpop.f32.mrf.mxu0
        %v7312 = vadd.f32 %v6602, %v7311
        %7313 = vmatmul.f32.gmra.mxu0 %v6619
        %v7314 = vpop.f32.mrf.mxu0
        %v7315 = vadd.f32 %v6607, %v7314
        %7316 = vdwg.mxu0
        %7317 = vmatpush.msra.mxu0 0.0
        %7318 = vmatpush.msra.mxu0 0.0
        %7319 = vmatpush.msra.mxu0 0.0
        %7320 = vmatpush.msra.mxu0 0.0
        %7321 = vmatpush.msra.mxu0 0.0
        %7322 = vmatpush.msra.mxu0 0.0
        %7323 = vmatpush.msra.mxu0 0.0
        %7324 = vmatpush.msra.mxu0 0.0
        %7325 = vmatpush.msra.mxu0 0.0
        %7326 = vmatpush.msra.mxu0 0.0
        %7327 = vmatpush.msra.mxu0 0.0
        %7328 = vmatpush.msra.mxu0 0.0
        %7329 = vmatpush.msra.mxu0 %v6574
        %7330 = vmatpush.msra.mxu0 %v6543
        %7331 = vmatpush.msra.mxu0 %v6512
        %7332 = vmatpush.msra.mxu0 %v6481
        %7333 = vmatmul.f32.gmra.mxu0 %v6610
        %v7334 = vpop.f32.mrf.mxu0
        %v7335 = vadd.f32 %v6592, %v7334
        %7336 = vmatmul.f32.gmra.mxu0 %v6613
        %v7337 = vpop.f32.mrf.mxu0
        %v7338 = vadd.f32 %v6597, %v7337
        %7339 = vmatmul.f32.gmra.mxu0 %v6616
        %v7340 = vpop.f32.mrf.mxu0
        %v7341 = vadd.f32 %v6602, %v7340
        %7342 = vmatmul.f32.gmra.mxu0 %v6619
        %v7343 = vpop.f32.mrf.mxu0
        %v7344 = vadd.f32 %v6607, %v7343
        %7345 = vdwg.mxu0
        %7346 = vmatpush.msra.mxu0 0.0
        %7347 = vmatpush.msra.mxu0 0.0
        %7348 = vmatpush.msra.mxu0 0.0
        %7349 = vmatpush.msra.mxu0 0.0
        %7350 = vmatpush.msra.mxu0 0.0
        %7351 = vmatpush.msra.mxu0 0.0
        %7352 = vmatpush.msra.mxu0 0.0
        %7353 = vmatpush.msra.mxu0 0.0
        %7354 = vmatpush.msra.mxu0 0.0
        %7355 = vmatpush.msra.mxu0 0.0
        %7356 = vmatpush.msra.mxu0 0.0
        %7357 = vmatpush.msra.mxu0 0.0
        %7358 = vmatpush.msra.mxu0 %v6575
        %7359 = vmatpush.msra.mxu0 %v6544
        %7360 = vmatpush.msra.mxu0 %v6513
        %7361 = vmatpush.msra.mxu0 %v6482
        %7362 = vmatmul.f32.gmra.mxu0 %v6610
        %v7363 = vpop.f32.mrf.mxu0
        %v7364 = vadd.f32 %v6592, %v7363
        %7365 = vmatmul.f32.gmra.mxu0 %v6613
        %v7366 = vpop.f32.mrf.mxu0
        %v7367 = vadd.f32 %v6597, %v7366
        %7368 = vmatmul.f32.gmra.mxu0 %v6616
        %v7369 = vpop.f32.mrf.mxu0
        %v7370 = vadd.f32 %v6602, %v7369
        %7371 = vmatmul.f32.gmra.mxu0 %v6619
        %v7372 = vpop.f32.mrf.mxu0
        %v7373 = vadd.f32 %v6607, %v7372
        %7374 = vdwg.mxu0
        %7375 = vmatpush.msra.mxu0 0.0
        %7376 = vmatpush.msra.mxu0 0.0
        %7377 = vmatpush.msra.mxu0 0.0
        %7378 = vmatpush.msra.mxu0 0.0
        %7379 = vmatpush.msra.mxu0 0.0
        %7380 = vmatpush.msra.mxu0 0.0
        %7381 = vmatpush.msra.mxu0 0.0
        %7382 = vmatpush.msra.mxu0 0.0
        %7383 = vmatpush.msra.mxu0 0.0
        %7384 = vmatpush.msra.mxu0 0.0
        %7385 = vmatpush.msra.mxu0 0.0
        %7386 = vmatpush.msra.mxu0 0.0
        %7387 = vmatpush.msra.mxu0 %v6576
        %7388 = vmatpush.msra.mxu0 %v6545
        %7389 = vmatpush.msra.mxu0 %v6514
        %7390 = vmatpush.msra.mxu0 %v6483
        %7391 = vmatmul.f32.gmra.mxu0 %v6610
        %v7392 = vpop.f32.mrf.mxu0
        %v7393 = vadd.f32 %v6592, %v7392
        %7394 = vmatmul.f32.gmra.mxu0 %v6613
        %v7395 = vpop.f32.mrf.mxu0
        %v7396 = vadd.f32 %v6597, %v7395
        %7397 = vmatmul.f32.gmra.mxu0 %v6616
        %v7398 = vpop.f32.mrf.mxu0
        %v7399 = vadd.f32 %v6602, %v7398
        %7400 = vmatmul.f32.gmra.mxu0 %v6619
        %v7401 = vpop.f32.mrf.mxu0
        %v7402 = vadd.f32 %v6607, %v7401
        %7403 = vdwg.mxu0
        %7404 = vmatpush.msra.mxu0 0.0
        %7405 = vmatpush.msra.mxu0 0.0
        %7406 = vmatpush.msra.mxu0 0.0
        %7407 = vmatpush.msra.mxu0 0.0
        %7408 = vmatpush.msra.mxu0 0.0
        %7409 = vmatpush.msra.mxu0 0.0
        %7410 = vmatpush.msra.mxu0 0.0
        %7411 = vmatpush.msra.mxu0 0.0
        %7412 = vmatpush.msra.mxu0 0.0
        %7413 = vmatpush.msra.mxu0 0.0
        %7414 = vmatpush.msra.mxu0 0.0
        %7415 = vmatpush.msra.mxu0 0.0
        %7416 = vmatpush.msra.mxu0 %v6577
        %7417 = vmatpush.msra.mxu0 %v6546
        %7418 = vmatpush.msra.mxu0 %v6515
        %7419 = vmatpush.msra.mxu0 %v6484
        %7420 = vmatmul.f32.gmra.mxu0 %v6610
        %v7421 = vpop.f32.mrf.mxu0
        %v7422 = vadd.f32 %v6592, %v7421
        %7423 = vmatmul.f32.gmra.mxu0 %v6613
        %v7424 = vpop.f32.mrf.mxu0
        %v7425 = vadd.f32 %v6597, %v7424
        %7426 = vmatmul.f32.gmra.mxu0 %v6616
        %v7427 = vpop.f32.mrf.mxu0
        %v7428 = vadd.f32 %v6602, %v7427
        %7429 = vmatmul.f32.gmra.mxu0 %v6619
        %v7430 = vpop.f32.mrf.mxu0
        %v7431 = vadd.f32 %v6607, %v7430
        %7432 = vdwg.mxu0
        %7433 = vmatpush.msra.mxu0 0.0
        %7434 = vmatpush.msra.mxu0 0.0
        %7435 = vmatpush.msra.mxu0 0.0
        %7436 = vmatpush.msra.mxu0 0.0
        %7437 = vmatpush.msra.mxu0 0.0
        %7438 = vmatpush.msra.mxu0 0.0
        %7439 = vmatpush.msra.mxu0 0.0
        %7440 = vmatpush.msra.mxu0 0.0
        %7441 = vmatpush.msra.mxu0 0.0
        %7442 = vmatpush.msra.mxu0 0.0
        %7443 = vmatpush.msra.mxu0 0.0
        %7444 = vmatpush.msra.mxu0 0.0
        %7445 = vmatpush.msra.mxu0 %v6578
        %7446 = vmatpush.msra.mxu0 %v6547
        %7447 = vmatpush.msra.mxu0 %v6516
        %7448 = vmatpush.msra.mxu0 %v6485
        %7449 = vmatmul.f32.gmra.mxu0 %v6610
        %v7450 = vpop.f32.mrf.mxu0
        %v7451 = vadd.f32 %v6592, %v7450
        %7452 = vmatmul.f32.gmra.mxu0 %v6613
        %v7453 = vpop.f32.mrf.mxu0
        %v7454 = vadd.f32 %v6597, %v7453
        %7455 = vmatmul.f32.gmra.mxu0 %v6616
        %v7456 = vpop.f32.mrf.mxu0
        %v7457 = vadd.f32 %v6602, %v7456
        %7458 = vmatmul.f32.gmra.mxu0 %v6619
        %v7459 = vpop.f32.mrf.mxu0
        %v7460 = vadd.f32 %v6607, %v7459
        %7461 = vdwg.mxu0
        %7462 = vmatpush.msra.mxu0 0.0
        %7463 = vmatpush.msra.mxu0 0.0
        %7464 = vmatpush.msra.mxu0 0.0
        %7465 = vmatpush.msra.mxu0 0.0
        %7466 = vmatpush.msra.mxu0 0.0
        %7467 = vmatpush.msra.mxu0 0.0
        %7468 = vmatpush.msra.mxu0 0.0
        %7469 = vmatpush.msra.mxu0 0.0
        %7470 = vmatpush.msra.mxu0 0.0
        %7471 = vmatpush.msra.mxu0 0.0
        %7472 = vmatpush.msra.mxu0 0.0
        %7473 = vmatpush.msra.mxu0 0.0
        %7474 = vmatpush.msra.mxu0 %v6579
        %7475 = vmatpush.msra.mxu0 %v6548
        %7476 = vmatpush.msra.mxu0 %v6517
        %7477 = vmatpush.msra.mxu0 %v6486
        %7478 = vmatmul.f32.gmra.mxu0 %v6610
        %v7479 = vpop.f32.mrf.mxu0
        %v7480 = vadd.f32 %v6592, %v7479
        %7481 = vmatmul.f32.gmra.mxu0 %v6613
        %v7482 = vpop.f32.mrf.mxu0
        %v7483 = vadd.f32 %v6597, %v7482
        %7484 = vmatmul.f32.gmra.mxu0 %v6616
        %v7485 = vpop.f32.mrf.mxu0
        %v7486 = vadd.f32 %v6602, %v7485
        %7487 = vmatmul.f32.gmra.mxu0 %v6619
        %v7488 = vpop.f32.mrf.mxu0
        %v7489 = vadd.f32 %v6607, %v7488
        %7490 = vdwg.mxu0
        %7491 = vmatpush.msra.mxu0 0.0
        %7492 = vmatpush.msra.mxu0 0.0
        %7493 = vmatpush.msra.mxu0 0.0
        %7494 = vmatpush.msra.mxu0 0.0
        %7495 = vmatpush.msra.mxu0 0.0
        %7496 = vmatpush.msra.mxu0 0.0
        %7497 = vmatpush.msra.mxu0 0.0
        %7498 = vmatpush.msra.mxu0 0.0
        %7499 = vmatpush.msra.mxu0 0.0
        %7500 = vmatpush.msra.mxu0 0.0
        %7501 = vmatpush.msra.mxu0 0.0
        %7502 = vmatpush.msra.mxu0 0.0
        %7503 = vmatpush.msra.mxu0 %v6580
        %7504 = vmatpush.msra.mxu0 %v6549
        %7505 = vmatpush.msra.mxu0 %v6518
        %7506 = vmatpush.msra.mxu0 %v6487
        %7507 = vmatmul.f32.gmra.mxu0 %v6610
        %v7508 = vpop.f32.mrf.mxu0
        %v7509 = vadd.f32 %v6592, %v7508
        %7510 = vmatmul.f32.gmra.mxu0 %v6613
        %v7511 = vpop.f32.mrf.mxu0
        %v7512 = vadd.f32 %v6597, %v7511
        %7513 = vmatmul.f32.gmra.mxu0 %v6616
        %v7514 = vpop.f32.mrf.mxu0
        %v7515 = vadd.f32 %v6602, %v7514
        %7516 = vmatmul.f32.gmra.mxu0 %v6619
        %v7517 = vpop.f32.mrf.mxu0
        %v7518 = vadd.f32 %v6607, %v7517
        %7519 = vdwg.mxu0
        %v7520 = vmul.f32 %v6639, 0.15915494
        %v7521 = vmul.f32 %v6668, 0.15915494
        %v7522 = vmul.f32 %v6697, 0.15915494
        %v7523 = vmul.f32 %v6726, 0.15915494
        %v7524 = vmul.f32 %v6755, 0.15915494
        %v7525 = vmul.f32 %v6784, 0.15915494
        %v7526 = vmul.f32 %v6813, 0.15915494
        %v7527 = vmul.f32 %v6842, 0.15915494
        %v7528 = vmul.f32 %v6871, 0.15915494
        %v7529 = vmul.f32 %v6900, 0.15915494
        %v7530 = vmul.f32 %v6929, 0.15915494
        %v7531 = vmul.f32 %v6958, 0.15915494
        %v7532 = vmul.f32 %v6987, 0.15915494
        %v7533 = vmul.f32 %v7016, 0.15915494
        %v7534 = vmul.f32 %v7045, 0.15915494
        %v7535 = vmul.f32 %v7074, 0.15915494
        %v7536 = vmul.f32 %v7103, 0.15915494
        %v7537 = vmul.f32 %v7132, 0.15915494
        %v7538 = vmul.f32 %v7161, 0.15915494
        %v7539 = vmul.f32 %v7190, 0.15915494
        %v7540 = vmul.f32 %v7219, 0.15915494
        %v7541 = vmul.f32 %v7248, 0.15915494
        %v7542 = vmul.f32 %v7277, 0.15915494
        %v7543 = vmul.f32 %v7306, 0.15915494
        %v7544 = vmul.f32 %v7335, 0.15915494
        %v7545 = vmul.f32 %v7364, 0.15915494
        %v7546 = vmul.f32 %v7393, 0.15915494
        %v7547 = vmul.f32 %v7422, 0.15915494
        %v7548 = vmul.f32 %v7451, 0.15915494
        %v7549 = vmul.f32 %v7480, 0.15915494
        %v7550 = vmul.f32 %v7509, 0.15915494
        %v7551 = vmul.f32 %v6642, 0.15915494
        %v7552 = vmul.f32 %v6671, 0.15915494
        %v7553 = vmul.f32 %v6700, 0.15915494
        %v7554 = vmul.f32 %v6729, 0.15915494
        %v7555 = vmul.f32 %v6758, 0.15915494
        %v7556 = vmul.f32 %v6787, 0.15915494
        %v7557 = vmul.f32 %v6816, 0.15915494
        %v7558 = vmul.f32 %v6845, 0.15915494
        %v7559 = vmul.f32 %v6874, 0.15915494
        %v7560 = vmul.f32 %v6903, 0.15915494
        %v7561 = vmul.f32 %v6932, 0.15915494
        %v7562 = vmul.f32 %v6961, 0.15915494
        %v7563 = vmul.f32 %v6990, 0.15915494
        %v7564 = vmul.f32 %v7019, 0.15915494
        %v7565 = vmul.f32 %v7048, 0.15915494
        %v7566 = vmul.f32 %v7077, 0.15915494
        %v7567 = vmul.f32 %v7106, 0.15915494
        %v7568 = vmul.f32 %v7135, 0.15915494
        %v7569 = vmul.f32 %v7164, 0.15915494
        %v7570 = vmul.f32 %v7193, 0.15915494
        %v7571 = vmul.f32 %v7222, 0.15915494
        %v7572 = vmul.f32 %v7251, 0.15915494
        %v7573 = vmul.f32 %v7280, 0.15915494
        %v7574 = vmul.f32 %v7309, 0.15915494
        %v7575 = vmul.f32 %v7338, 0.15915494
        %v7576 = vmul.f32 %v7367, 0.15915494
        %v7577 = vmul.f32 %v7396, 0.15915494
        %v7578 = vmul.f32 %v7425, 0.15915494
        %v7579 = vmul.f32 %v7454, 0.15915494
        %v7580 = vmul.f32 %v7483, 0.15915494
        %v7581 = vmul.f32 %v7512, 0.15915494
        %v7582 = vmul.f32 %v6645, 0.15915494
        %v7583 = vmul.f32 %v6674, 0.15915494
        %v7584 = vmul.f32 %v6703, 0.15915494
        %v7585 = vmul.f32 %v6732, 0.15915494
        %v7586 = vmul.f32 %v6761, 0.15915494
        %v7587 = vmul.f32 %v6790, 0.15915494
        %v7588 = vmul.f32 %v6819, 0.15915494
        %v7589 = vmul.f32 %v6848, 0.15915494
        %v7590 = vmul.f32 %v6877, 0.15915494
        %v7591 = vmul.f32 %v6906, 0.15915494
        %v7592 = vmul.f32 %v6935, 0.15915494
        %v7593 = vmul.f32 %v6964, 0.15915494
        %v7594 = vmul.f32 %v6993, 0.15915494
        %v7595 = vmul.f32 %v7022, 0.15915494
        %v7596 = vmul.f32 %v7051, 0.15915494
        %v7597 = vmul.f32 %v7080, 0.15915494
        %v7598 = vmul.f32 %v7109, 0.15915494
        %v7599 = vmul.f32 %v7138, 0.15915494
        %v7600 = vmul.f32 %v7167, 0.15915494
        %v7601 = vmul.f32 %v7196, 0.15915494
        %v7602 = vmul.f32 %v7225, 0.15915494
        %v7603 = vmul.f32 %v7254, 0.15915494
        %v7604 = vmul.f32 %v7283, 0.15915494
        %v7605 = vmul.f32 %v7312, 0.15915494
        %v7606 = vmul.f32 %v7341, 0.15915494
        %v7607 = vmul.f32 %v7370, 0.15915494
        %v7608 = vmul.f32 %v7399, 0.15915494
        %v7609 = vmul.f32 %v7428, 0.15915494
        %v7610 = vmul.f32 %v7457, 0.15915494
        %v7611 = vmul.f32 %v7486, 0.15915494
        %v7612 = vmul.f32 %v7515, 0.15915494
        %v7613 = vmul.f32 %v6648, 0.15915494
        %v7614 = vmul.f32 %v6677, 0.15915494
        %v7615 = vmul.f32 %v6706, 0.15915494
        %v7616 = vmul.f32 %v6735, 0.15915494
        %v7617 = vmul.f32 %v6764, 0.15915494
        %v7618 = vmul.f32 %v6793, 0.15915494
        %v7619 = vmul.f32 %v6822, 0.15915494
        %v7620 = vmul.f32 %v6851, 0.15915494
        %v7621 = vmul.f32 %v6880, 0.15915494
        %v7622 = vmul.f32 %v6909, 0.15915494
        %v7623 = vmul.f32 %v6938, 0.15915494
        %v7624 = vmul.f32 %v6967, 0.15915494
        %v7625 = vmul.f32 %v6996, 0.15915494
        %v7626 = vmul.f32 %v7025, 0.15915494
        %v7627 = vmul.f32 %v7054, 0.15915494
        %v7628 = vmul.f32 %v7083, 0.15915494
        %v7629 = vmul.f32 %v7112, 0.15915494
        %v7630 = vmul.f32 %v7141, 0.15915494
        %v7631 = vmul.f32 %v7170, 0.15915494
        %v7632 = vmul.f32 %v7199, 0.15915494
        %v7633 = vmul.f32 %v7228, 0.15915494
        %v7634 = vmul.f32 %v7257, 0.15915494
        %v7635 = vmul.f32 %v7286, 0.15915494
        %v7636 = vmul.f32 %v7315, 0.15915494
        %v7637 = vmul.f32 %v7344, 0.15915494
        %v7638 = vmul.f32 %v7373, 0.15915494
        %v7639 = vmul.f32 %v7402, 0.15915494
        %v7640 = vmul.f32 %v7431, 0.15915494
        %v7641 = vmul.f32 %v7460, 0.15915494
        %v7642 = vmul.f32 %v7489, 0.15915494
        %v7643 = vmul.f32 %v7518, 0.15915494
        %v7644 = vadd.f32 %v7520, 0.5
        %v7645 = vadd.f32 %v7521, 0.5
        %v7646 = vadd.f32 %v7522, 0.5
        %v7647 = vadd.f32 %v7523, 0.5
        %v7648 = vadd.f32 %v7524, 0.5
        %v7649 = vadd.f32 %v7525, 0.5
        %v7650 = vadd.f32 %v7526, 0.5
        %v7651 = vadd.f32 %v7527, 0.5
        %v7652 = vadd.f32 %v7528, 0.5
        %v7653 = vadd.f32 %v7529, 0.5
        %v7654 = vadd.f32 %v7530, 0.5
        %v7655 = vadd.f32 %v7531, 0.5
        %v7656 = vadd.f32 %v7532, 0.5
        %v7657 = vadd.f32 %v7533, 0.5
        %v7658 = vadd.f32 %v7534, 0.5
        %v7659 = vadd.f32 %v7535, 0.5
        %v7660 = vadd.f32 %v7536, 0.5
        %v7661 = vadd.f32 %v7537, 0.5
        %v7662 = vadd.f32 %v7538, 0.5
        %v7663 = vadd.f32 %v7539, 0.5
        %v7664 = vadd.f32 %v7540, 0.5
        %v7665 = vadd.f32 %v7541, 0.5
        %v7666 = vadd.f32 %v7542, 0.5
        %v7667 = vadd.f32 %v7543, 0.5
        %v7668 = vadd.f32 %v7544, 0.5
        %v7669 = vadd.f32 %v7545, 0.5
        %v7670 = vadd.f32 %v7546, 0.5
        %v7671 = vadd.f32 %v7547, 0.5
        %v7672 = vadd.f32 %v7548, 0.5
        %v7673 = vadd.f32 %v7549, 0.5
        %v7674 = vadd.f32 %v7550, 0.5
        %v7675 = vadd.f32 %v7551, 0.5
        %v7676 = vadd.f32 %v7552, 0.5
        %v7677 = vadd.f32 %v7553, 0.5
        %v7678 = vadd.f32 %v7554, 0.5
        %v7679 = vadd.f32 %v7555, 0.5
        %v7680 = vadd.f32 %v7556, 0.5
        %v7681 = vadd.f32 %v7557, 0.5
        %v7682 = vadd.f32 %v7558, 0.5
        %v7683 = vadd.f32 %v7559, 0.5
        %v7684 = vadd.f32 %v7560, 0.5
        %v7685 = vadd.f32 %v7561, 0.5
        %v7686 = vadd.f32 %v7562, 0.5
        %v7687 = vadd.f32 %v7563, 0.5
        %v7688 = vadd.f32 %v7564, 0.5
        %v7689 = vadd.f32 %v7565, 0.5
        %v7690 = vadd.f32 %v7566, 0.5
        %v7691 = vadd.f32 %v7567, 0.5
        %v7692 = vadd.f32 %v7568, 0.5
        %v7693 = vadd.f32 %v7569, 0.5
        %v7694 = vadd.f32 %v7570, 0.5
        %v7695 = vadd.f32 %v7571, 0.5
        %v7696 = vadd.f32 %v7572, 0.5
        %v7697 = vadd.f32 %v7573, 0.5
        %v7698 = vadd.f32 %v7574, 0.5
        %v7699 = vadd.f32 %v7575, 0.5
        %v7700 = vadd.f32 %v7576, 0.5
        %v7701 = vadd.f32 %v7577, 0.5
        %v7702 = vadd.f32 %v7578, 0.5
        %v7703 = vadd.f32 %v7579, 0.5
        %v7704 = vadd.f32 %v7580, 0.5
        %v7705 = vadd.f32 %v7581, 0.5
        %v7706 = vadd.f32 %v7582, 0.5
        %v7707 = vadd.f32 %v7583, 0.5
        %v7708 = vadd.f32 %v7584, 0.5
        %v7709 = vadd.f32 %v7585, 0.5
        %v7710 = vadd.f32 %v7586, 0.5
        %v7711 = vadd.f32 %v7587, 0.5
        %v7712 = vadd.f32 %v7588, 0.5
        %v7713 = vadd.f32 %v7589, 0.5
        %v7714 = vadd.f32 %v7590, 0.5
        %v7715 = vadd.f32 %v7591, 0.5
        %v7716 = vadd.f32 %v7592, 0.5
        %v7717 = vadd.f32 %v7593, 0.5
        %v7718 = vadd.f32 %v7594, 0.5
        %v7719 = vadd.f32 %v7595, 0.5
        %v7720 = vadd.f32 %v7596, 0.5
        %v7721 = vadd.f32 %v7597, 0.5
        %v7722 = vadd.f32 %v7598, 0.5
        %v7723 = vadd.f32 %v7599, 0.5
        %v7724 = vadd.f32 %v7600, 0.5
        %v7725 = vadd.f32 %v7601, 0.5
        %v7726 = vadd.f32 %v7602, 0.5
        %v7727 = vadd.f32 %v7603, 0.5
        %v7728 = vadd.f32 %v7604, 0.5
        %v7729 = vadd.f32 %v7605, 0.5
        %v7730 = vadd.f32 %v7606, 0.5
        %v7731 = vadd.f32 %v7607, 0.5
        %v7732 = vadd.f32 %v7608, 0.5
        %v7733 = vadd.f32 %v7609, 0.5
        %v7734 = vadd.f32 %v7610, 0.5
        %v7735 = vadd.f32 %v7611, 0.5
        %v7736 = vadd.f32 %v7612, 0.5
        %v7737 = vadd.f32 %v7613, 0.5
        %v7738 = vadd.f32 %v7614, 0.5
        %v7739 = vadd.f32 %v7615, 0.5
        %v7740 = vadd.f32 %v7616, 0.5
        %v7741 = vadd.f32 %v7617, 0.5
        %v7742 = vadd.f32 %v7618, 0.5
        %v7743 = vadd.f32 %v7619, 0.5
        %v7744 = vadd.f32 %v7620, 0.5
        %v7745 = vadd.f32 %v7621, 0.5
        %v7746 = vadd.f32 %v7622, 0.5
        %v7747 = vadd.f32 %v7623, 0.5
        %v7748 = vadd.f32 %v7624, 0.5
        %v7749 = vadd.f32 %v7625, 0.5
        %v7750 = vadd.f32 %v7626, 0.5
        %v7751 = vadd.f32 %v7627, 0.5
        %v7752 = vadd.f32 %v7628, 0.5
        %v7753 = vadd.f32 %v7629, 0.5
        %v7754 = vadd.f32 %v7630, 0.5
        %v7755 = vadd.f32 %v7631, 0.5
        %v7756 = vadd.f32 %v7632, 0.5
        %v7757 = vadd.f32 %v7633, 0.5
        %v7758 = vadd.f32 %v7634, 0.5
        %v7759 = vadd.f32 %v7635, 0.5
        %v7760 = vadd.f32 %v7636, 0.5
        %v7761 = vadd.f32 %v7637, 0.5
        %v7762 = vadd.f32 %v7638, 0.5
        %v7763 = vadd.f32 %v7639, 0.5
        %v7764 = vadd.f32 %v7640, 0.5
        %v7765 = vadd.f32 %v7641, 0.5
        %v7766 = vadd.f32 %v7642, 0.5
        %v7767 = vadd.f32 %v7643, 0.5
        %v7768 = vfloor.f32 %v7644
        %v7769 = vfloor.f32 %v7645
        %v7770 = vfloor.f32 %v7646
        %v7771 = vfloor.f32 %v7647
        %v7772 = vfloor.f32 %v7648
        %v7773 = vfloor.f32 %v7649
        %v7774 = vfloor.f32 %v7650
        %v7775 = vfloor.f32 %v7651
        %v7776 = vfloor.f32 %v7652
        %v7777 = vfloor.f32 %v7653
        %v7778 = vfloor.f32 %v7654
        %v7779 = vfloor.f32 %v7655
        %v7780 = vfloor.f32 %v7656
        %v7781 = vfloor.f32 %v7657
        %v7782 = vfloor.f32 %v7658
        %v7783 = vfloor.f32 %v7659
        %v7784 = vfloor.f32 %v7660
        %v7785 = vfloor.f32 %v7661
        %v7786 = vfloor.f32 %v7662
        %v7787 = vfloor.f32 %v7663
        %v7788 = vfloor.f32 %v7664
        %v7789 = vfloor.f32 %v7665
        %v7790 = vfloor.f32 %v7666
        %v7791 = vfloor.f32 %v7667
        %v7792 = vfloor.f32 %v7668
        %v7793 = vfloor.f32 %v7669
        %v7794 = vfloor.f32 %v7670
        %v7795 = vfloor.f32 %v7671
        %v7796 = vfloor.f32 %v7672
        %v7797 = vfloor.f32 %v7673
        %v7798 = vfloor.f32 %v7674
        %v7799 = vfloor.f32 %v7675
        %v7800 = vfloor.f32 %v7676
        %v7801 = vfloor.f32 %v7677
        %v7802 = vfloor.f32 %v7678
        %v7803 = vfloor.f32 %v7679
        %v7804 = vfloor.f32 %v7680
        %v7805 = vfloor.f32 %v7681
        %v7806 = vfloor.f32 %v7682
        %v7807 = vfloor.f32 %v7683
        %v7808 = vfloor.f32 %v7684
        %v7809 = vfloor.f32 %v7685
        %v7810 = vfloor.f32 %v7686
        %v7811 = vfloor.f32 %v7687
        %v7812 = vfloor.f32 %v7688
        %v7813 = vfloor.f32 %v7689
        %v7814 = vfloor.f32 %v7690
        %v7815 = vfloor.f32 %v7691
        %v7816 = vfloor.f32 %v7692
        %v7817 = vfloor.f32 %v7693
        %v7818 = vfloor.f32 %v7694
        %v7819 = vfloor.f32 %v7695
        %v7820 = vfloor.f32 %v7696
        %v7821 = vfloor.f32 %v7697
        %v7822 = vfloor.f32 %v7698
        %v7823 = vfloor.f32 %v7699
        %v7824 = vfloor.f32 %v7700
        %v7825 = vfloor.f32 %v7701
        %v7826 = vfloor.f32 %v7702
        %v7827 = vfloor.f32 %v7703
        %v7828 = vfloor.f32 %v7704
        %v7829 = vfloor.f32 %v7705
        %v7830 = vfloor.f32 %v7706
        %v7831 = vfloor.f32 %v7707
        %v7832 = vfloor.f32 %v7708
        %v7833 = vfloor.f32 %v7709
        %v7834 = vfloor.f32 %v7710
        %v7835 = vfloor.f32 %v7711
        %v7836 = vfloor.f32 %v7712
        %v7837 = vfloor.f32 %v7713
        %v7838 = vfloor.f32 %v7714
        %v7839 = vfloor.f32 %v7715
        %v7840 = vfloor.f32 %v7716
        %v7841 = vfloor.f32 %v7717
        %v7842 = vfloor.f32 %v7718
        %v7843 = vfloor.f32 %v7719
        %v7844 = vfloor.f32 %v7720
        %v7845 = vfloor.f32 %v7721
        %v7846 = vfloor.f32 %v7722
        %v7847 = vfloor.f32 %v7723
        %v7848 = vfloor.f32 %v7724
        %v7849 = vfloor.f32 %v7725
        %v7850 = vfloor.f32 %v7726
        %v7851 = vfloor.f32 %v7727
        %v7852 = vfloor.f32 %v7728
        %v7853 = vfloor.f32 %v7729
        %v7854 = vfloor.f32 %v7730
        %v7855 = vfloor.f32 %v7731
        %v7856 = vfloor.f32 %v7732
        %v7857 = vfloor.f32 %v7733
        %v7858 = vfloor.f32 %v7734
        %v7859 = vfloor.f32 %v7735
        %v7860 = vfloor.f32 %v7736
        %v7861 = vfloor.f32 %v7737
        %v7862 = vfloor.f32 %v7738
        %v7863 = vfloor.f32 %v7739
        %v7864 = vfloor.f32 %v7740
        %v7865 = vfloor.f32 %v7741
        %v7866 = vfloor.f32 %v7742
        %v7867 = vfloor.f32 %v7743
        %v7868 = vfloor.f32 %v7744
        %v7869 = vfloor.f32 %v7745
        %v7870 = vfloor.f32 %v7746
        %v7871 = vfloor.f32 %v7747
        %v7872 = vfloor.f32 %v7748
        %v7873 = vfloor.f32 %v7749
        %v7874 = vfloor.f32 %v7750
        %v7875 = vfloor.f32 %v7751
        %v7876 = vfloor.f32 %v7752
        %v7877 = vfloor.f32 %v7753
        %v7878 = vfloor.f32 %v7754
        %v7879 = vfloor.f32 %v7755
        %v7880 = vfloor.f32 %v7756
        %v7881 = vfloor.f32 %v7757
        %v7882 = vfloor.f32 %v7758
        %v7883 = vfloor.f32 %v7759
        %v7884 = vfloor.f32 %v7760
        %v7885 = vfloor.f32 %v7761
        %v7886 = vfloor.f32 %v7762
        %v7887 = vfloor.f32 %v7763
        %v7888 = vfloor.f32 %v7764
        %v7889 = vfloor.f32 %v7765
        %v7890 = vfloor.f32 %v7766
        %v7891 = vfloor.f32 %v7767
        %v7892 = vmul.f32 %v7768, 6.2831855
        %v7893 = vmul.f32 %v7769, 6.2831855
        %v7894 = vmul.f32 %v7770, 6.2831855
        %v7895 = vmul.f32 %v7771, 6.2831855
        %v7896 = vmul.f32 %v7772, 6.2831855
        %v7897 = vmul.f32 %v7773, 6.2831855
        %v7898 = vmul.f32 %v7774, 6.2831855
        %v7899 = vmul.f32 %v7775, 6.2831855
        %v7900 = vmul.f32 %v7776, 6.2831855
        %v7901 = vmul.f32 %v7777, 6.2831855
        %v7902 = vmul.f32 %v7778, 6.2831855
        %v7903 = vmul.f32 %v7779, 6.2831855
        %v7904 = vmul.f32 %v7780, 6.2831855
        %v7905 = vmul.f32 %v7781, 6.2831855
        %v7906 = vmul.f32 %v7782, 6.2831855
        %v7907 = vmul.f32 %v7783, 6.2831855
        %v7908 = vmul.f32 %v7784, 6.2831855
        %v7909 = vmul.f32 %v7785, 6.2831855
        %v7910 = vmul.f32 %v7786, 6.2831855
        %v7911 = vmul.f32 %v7787, 6.2831855
        %v7912 = vmul.f32 %v7788, 6.2831855
        %v7913 = vmul.f32 %v7789, 6.2831855
        %v7914 = vmul.f32 %v7790, 6.2831855
        %v7915 = vmul.f32 %v7791, 6.2831855
        %v7916 = vmul.f32 %v7792, 6.2831855
        %v7917 = vmul.f32 %v7793, 6.2831855
        %v7918 = vmul.f32 %v7794, 6.2831855
        %v7919 = vmul.f32 %v7795, 6.2831855
        %v7920 = vmul.f32 %v7796, 6.2831855
        %v7921 = vmul.f32 %v7797, 6.2831855
        %v7922 = vmul.f32 %v7798, 6.2831855
        %v7923 = vmul.f32 %v7799, 6.2831855
        %v7924 = vmul.f32 %v7800, 6.2831855
        %v7925 = vmul.f32 %v7801, 6.2831855
        %v7926 = vmul.f32 %v7802, 6.2831855
        %v7927 = vmul.f32 %v7803, 6.2831855
        %v7928 = vmul.f32 %v7804, 6.2831855
        %v7929 = vmul.f32 %v7805, 6.2831855
        %v7930 = vmul.f32 %v7806, 6.2831855
        %v7931 = vmul.f32 %v7807, 6.2831855
        %v7932 = vmul.f32 %v7808, 6.2831855
        %v7933 = vmul.f32 %v7809, 6.2831855
        %v7934 = vmul.f32 %v7810, 6.2831855
        %v7935 = vmul.f32 %v7811, 6.2831855
        %v7936 = vmul.f32 %v7812, 6.2831855
        %v7937 = vmul.f32 %v7813, 6.2831855
        %v7938 = vmul.f32 %v7814, 6.2831855
        %v7939 = vmul.f32 %v7815, 6.2831855
        %v7940 = vmul.f32 %v7816, 6.2831855
        %v7941 = vmul.f32 %v7817, 6.2831855
        %v7942 = vmul.f32 %v7818, 6.2831855
        %v7943 = vmul.f32 %v7819, 6.2831855
        %v7944 = vmul.f32 %v7820, 6.2831855
        %v7945 = vmul.f32 %v7821, 6.2831855
        %v7946 = vmul.f32 %v7822, 6.2831855
        %v7947 = vmul.f32 %v7823, 6.2831855
        %v7948 = vmul.f32 %v7824, 6.2831855
        %v7949 = vmul.f32 %v7825, 6.2831855
        %v7950 = vmul.f32 %v7826, 6.2831855
        %v7951 = vmul.f32 %v7827, 6.2831855
        %v7952 = vmul.f32 %v7828, 6.2831855
        %v7953 = vmul.f32 %v7829, 6.2831855
        %v7954 = vmul.f32 %v7830, 6.2831855
        %v7955 = vmul.f32 %v7831, 6.2831855
        %v7956 = vmul.f32 %v7832, 6.2831855
        %v7957 = vmul.f32 %v7833, 6.2831855
        %v7958 = vmul.f32 %v7834, 6.2831855
        %v7959 = vmul.f32 %v7835, 6.2831855
        %v7960 = vmul.f32 %v7836, 6.2831855
        %v7961 = vmul.f32 %v7837, 6.2831855
        %v7962 = vmul.f32 %v7838, 6.2831855
        %v7963 = vmul.f32 %v7839, 6.2831855
        %v7964 = vmul.f32 %v7840, 6.2831855
        %v7965 = vmul.f32 %v7841, 6.2831855
        %v7966 = vmul.f32 %v7842, 6.2831855
        %v7967 = vmul.f32 %v7843, 6.2831855
        %v7968 = vmul.f32 %v7844, 6.2831855
        %v7969 = vmul.f32 %v7845, 6.2831855
        %v7970 = vmul.f32 %v7846, 6.2831855
        %v7971 = vmul.f32 %v7847, 6.2831855
        %v7972 = vmul.f32 %v7848, 6.2831855
        %v7973 = vmul.f32 %v7849, 6.2831855
        %v7974 = vmul.f32 %v7850, 6.2831855
        %v7975 = vmul.f32 %v7851, 6.2831855
        %v7976 = vmul.f32 %v7852, 6.2831855
        %v7977 = vmul.f32 %v7853, 6.2831855
        %v7978 = vmul.f32 %v7854, 6.2831855
        %v7979 = vmul.f32 %v7855, 6.2831855
        %v7980 = vmul.f32 %v7856, 6.2831855
        %v7981 = vmul.f32 %v7857, 6.2831855
        %v7982 = vmul.f32 %v7858, 6.2831855
        %v7983 = vmul.f32 %v7859, 6.2831855
        %v7984 = vmul.f32 %v7860, 6.2831855
        %v7985 = vmul.f32 %v7861, 6.2831855
        %v7986 = vmul.f32 %v7862, 6.2831855
        %v7987 = vmul.f32 %v7863, 6.2831855
        %v7988 = vmul.f32 %v7864, 6.2831855
        %v7989 = vmul.f32 %v7865, 6.2831855
        %v7990 = vmul.f32 %v7866, 6.2831855
        %v7991 = vmul.f32 %v7867, 6.2831855
        %v7992 = vmul.f32 %v7868, 6.2831855
        %v7993 = vmul.f32 %v7869, 6.2831855
        %v7994 = vmul.f32 %v7870, 6.2831855
        %v7995 = vmul.f32 %v7871, 6.2831855
        %v7996 = vmul.f32 %v7872, 6.2831855
        %v7997 = vmul.f32 %v7873, 6.2831855
        %v7998 = vmul.f32 %v7874, 6.2831855
        %v7999 = vmul.f32 %v7875, 6.2831855
        %v8000 = vmul.f32 %v7876, 6.2831855
        %v8001 = vmul.f32 %v7877, 6.2831855
        %v8002 = vmul.f32 %v7878, 6.2831855
        %v8003 = vmul.f32 %v7879, 6.2831855
        %v8004 = vmul.f32 %v7880, 6.2831855
        %v8005 = vmul.f32 %v7881, 6.2831855
        %v8006 = vmul.f32 %v7882, 6.2831855
        %v8007 = vmul.f32 %v7883, 6.2831855
        %v8008 = vmul.f32 %v7884, 6.2831855
        %v8009 = vmul.f32 %v7885, 6.2831855
        %v8010 = vmul.f32 %v7886, 6.2831855
        %v8011 = vmul.f32 %v7887, 6.2831855
        %v8012 = vmul.f32 %v7888, 6.2831855
        %v8013 = vmul.f32 %v7889, 6.2831855
        %v8014 = vmul.f32 %v7890, 6.2831855
        %v8015 = vmul.f32 %v7891, 6.2831855
        %v8016 = vsub.f32 %v6639, %v7892
        %v8017 = vsub.f32 %v6668, %v7893
        %v8018 = vsub.f32 %v6697, %v7894
        %v8019 = vsub.f32 %v6726, %v7895
        %v8020 = vsub.f32 %v6755, %v7896
        %v8021 = vsub.f32 %v6784, %v7897
        %v8022 = vsub.f32 %v6813, %v7898
        %v8023 = vsub.f32 %v6842, %v7899
        %v8024 = vsub.f32 %v6871, %v7900
        %v8025 = vsub.f32 %v6900, %v7901
        %v8026 = vsub.f32 %v6929, %v7902
        %v8027 = vsub.f32 %v6958, %v7903
        %v8028 = vsub.f32 %v6987, %v7904
        %v8029 = vsub.f32 %v7016, %v7905
        %v8030 = vsub.f32 %v7045, %v7906
        %v8031 = vsub.f32 %v7074, %v7907
        %v8032 = vsub.f32 %v7103, %v7908
        %v8033 = vsub.f32 %v7132, %v7909
        %v8034 = vsub.f32 %v7161, %v7910
        %v8035 = vsub.f32 %v7190, %v7911
        %v8036 = vsub.f32 %v7219, %v7912
        %v8037 = vsub.f32 %v7248, %v7913
        %v8038 = vsub.f32 %v7277, %v7914
        %v8039 = vsub.f32 %v7306, %v7915
        %v8040 = vsub.f32 %v7335, %v7916
        %v8041 = vsub.f32 %v7364, %v7917
        %v8042 = vsub.f32 %v7393, %v7918
        %v8043 = vsub.f32 %v7422, %v7919
        %v8044 = vsub.f32 %v7451, %v7920
        %v8045 = vsub.f32 %v7480, %v7921
        %v8046 = vsub.f32 %v7509, %v7922
        %v8047 = vsub.f32 %v6642, %v7923
        %v8048 = vsub.f32 %v6671, %v7924
        %v8049 = vsub.f32 %v6700, %v7925
        %v8050 = vsub.f32 %v6729, %v7926
        %v8051 = vsub.f32 %v6758, %v7927
        %v8052 = vsub.f32 %v6787, %v7928
        %v8053 = vsub.f32 %v6816, %v7929
        %v8054 = vsub.f32 %v6845, %v7930
        %v8055 = vsub.f32 %v6874, %v7931
        %v8056 = vsub.f32 %v6903, %v7932
        %v8057 = vsub.f32 %v6932, %v7933
        %v8058 = vsub.f32 %v6961, %v7934
        %v8059 = vsub.f32 %v6990, %v7935
        %v8060 = vsub.f32 %v7019, %v7936
        %v8061 = vsub.f32 %v7048, %v7937
        %v8062 = vsub.f32 %v7077, %v7938
        %v8063 = vsub.f32 %v7106, %v7939
        %v8064 = vsub.f32 %v7135, %v7940
        %v8065 = vsub.f32 %v7164, %v7941
        %v8066 = vsub.f32 %v7193, %v7942
        %v8067 = vsub.f32 %v7222, %v7943
        %v8068 = vsub.f32 %v7251, %v7944
        %v8069 = vsub.f32 %v7280, %v7945
        %v8070 = vsub.f32 %v7309, %v7946
        %v8071 = vsub.f32 %v7338, %v7947
        %v8072 = vsub.f32 %v7367, %v7948
        %v8073 = vsub.f32 %v7396, %v7949
        %v8074 = vsub.f32 %v7425, %v7950
        %v8075 = vsub.f32 %v7454, %v7951
        %v8076 = vsub.f32 %v7483, %v7952
        %v8077 = vsub.f32 %v7512, %v7953
        %v8078 = vsub.f32 %v6645, %v7954
        %v8079 = vsub.f32 %v6674, %v7955
        %v8080 = vsub.f32 %v6703, %v7956
        %v8081 = vsub.f32 %v6732, %v7957
        %v8082 = vsub.f32 %v6761, %v7958
        %v8083 = vsub.f32 %v6790, %v7959
        %v8084 = vsub.f32 %v6819, %v7960
        %v8085 = vsub.f32 %v6848, %v7961
        %v8086 = vsub.f32 %v6877, %v7962
        %v8087 = vsub.f32 %v6906, %v7963
        %v8088 = vsub.f32 %v6935, %v7964
        %v8089 = vsub.f32 %v6964, %v7965
        %v8090 = vsub.f32 %v6993, %v7966
        %v8091 = vsub.f32 %v7022, %v7967
        %v8092 = vsub.f32 %v7051, %v7968
        %v8093 = vsub.f32 %v7080, %v7969
        %v8094 = vsub.f32 %v7109, %v7970
        %v8095 = vsub.f32 %v7138, %v7971
        %v8096 = vsub.f32 %v7167, %v7972
        %v8097 = vsub.f32 %v7196, %v7973
        %v8098 = vsub.f32 %v7225, %v7974
        %v8099 = vsub.f32 %v7254, %v7975
        %v8100 = vsub.f32 %v7283, %v7976
        %v8101 = vsub.f32 %v7312, %v7977
        %v8102 = vsub.f32 %v7341, %v7978
        %v8103 = vsub.f32 %v7370, %v7979
        %v8104 = vsub.f32 %v7399, %v7980
        %v8105 = vsub.f32 %v7428, %v7981
        %v8106 = vsub.f32 %v7457, %v7982
        %v8107 = vsub.f32 %v7486, %v7983
        %v8108 = vsub.f32 %v7515, %v7984
        %v8109 = vsub.f32 %v6648, %v7985
        %v8110 = vsub.f32 %v6677, %v7986
        %v8111 = vsub.f32 %v6706, %v7987
        %v8112 = vsub.f32 %v6735, %v7988
        %v8113 = vsub.f32 %v6764, %v7989
        %v8114 = vsub.f32 %v6793, %v7990
        %v8115 = vsub.f32 %v6822, %v7991
        %v8116 = vsub.f32 %v6851, %v7992
        %v8117 = vsub.f32 %v6880, %v7993
        %v8118 = vsub.f32 %v6909, %v7994
        %v8119 = vsub.f32 %v6938, %v7995
        %v8120 = vsub.f32 %v6967, %v7996
        %v8121 = vsub.f32 %v6996, %v7997
        %v8122 = vsub.f32 %v7025, %v7998
        %v8123 = vsub.f32 %v7054, %v7999
        %v8124 = vsub.f32 %v7083, %v8000
        %v8125 = vsub.f32 %v7112, %v8001
        %v8126 = vsub.f32 %v7141, %v8002
        %v8127 = vsub.f32 %v7170, %v8003
        %v8128 = vsub.f32 %v7199, %v8004
        %v8129 = vsub.f32 %v7228, %v8005
        %v8130 = vsub.f32 %v7257, %v8006
        %v8131 = vsub.f32 %v7286, %v8007
        %v8132 = vsub.f32 %v7315, %v8008
        %v8133 = vsub.f32 %v7344, %v8009
        %v8134 = vsub.f32 %v7373, %v8010
        %v8135 = vsub.f32 %v7402, %v8011
        %v8136 = vsub.f32 %v7431, %v8012
        %v8137 = vsub.f32 %v7460, %v8013
        %v8138 = vsub.f32 %v7489, %v8014
        %v8139 = vsub.f32 %v7518, %v8015
        %v8140 = vmul.f32 %v8016, %v8016
        %v8141 = vmul.f32 %v8017, %v8017
        %v8142 = vmul.f32 %v8018, %v8018
        %v8143 = vmul.f32 %v8019, %v8019
        %v8144 = vmul.f32 %v8020, %v8020
        %v8145 = vmul.f32 %v8021, %v8021
        %v8146 = vmul.f32 %v8022, %v8022
        %v8147 = vmul.f32 %v8023, %v8023
        %v8148 = vmul.f32 %v8024, %v8024
        %v8149 = vmul.f32 %v8025, %v8025
        %v8150 = vmul.f32 %v8026, %v8026
        %v8151 = vmul.f32 %v8027, %v8027
        %v8152 = vmul.f32 %v8028, %v8028
        %v8153 = vmul.f32 %v8029, %v8029
        %v8154 = vmul.f32 %v8030, %v8030
        %v8155 = vmul.f32 %v8031, %v8031
        %v8156 = vmul.f32 %v8032, %v8032
        %v8157 = vmul.f32 %v8033, %v8033
        %v8158 = vmul.f32 %v8034, %v8034
        %v8159 = vmul.f32 %v8035, %v8035
        %v8160 = vmul.f32 %v8036, %v8036
        %v8161 = vmul.f32 %v8037, %v8037
        %v8162 = vmul.f32 %v8038, %v8038
        %v8163 = vmul.f32 %v8039, %v8039
        %v8164 = vmul.f32 %v8040, %v8040
        %v8165 = vmul.f32 %v8041, %v8041
        %v8166 = vmul.f32 %v8042, %v8042
        %v8167 = vmul.f32 %v8043, %v8043
        %v8168 = vmul.f32 %v8044, %v8044
        %v8169 = vmul.f32 %v8045, %v8045
        %v8170 = vmul.f32 %v8046, %v8046
        %v8171 = vmul.f32 %v8047, %v8047
        %v8172 = vmul.f32 %v8048, %v8048
        %v8173 = vmul.f32 %v8049, %v8049
        %v8174 = vmul.f32 %v8050, %v8050
        %v8175 = vmul.f32 %v8051, %v8051
        %v8176 = vmul.f32 %v8052, %v8052
        %v8177 = vmul.f32 %v8053, %v8053
        %v8178 = vmul.f32 %v8054, %v8054
        %v8179 = vmul.f32 %v8055, %v8055
        %v8180 = vmul.f32 %v8056, %v8056
        %v8181 = vmul.f32 %v8057, %v8057
        %v8182 = vmul.f32 %v8058, %v8058
        %v8183 = vmul.f32 %v8059, %v8059
        %v8184 = vmul.f32 %v8060, %v8060
        %v8185 = vmul.f32 %v8061, %v8061
        %v8186 = vmul.f32 %v8062, %v8062
        %v8187 = vmul.f32 %v8063, %v8063
        %v8188 = vmul.f32 %v8064, %v8064
        %v8189 = vmul.f32 %v8065, %v8065
        %v8190 = vmul.f32 %v8066, %v8066
        %v8191 = vmul.f32 %v8067, %v8067
        %v8192 = vmul.f32 %v8068, %v8068
        %v8193 = vmul.f32 %v8069, %v8069
        %v8194 = vmul.f32 %v8070, %v8070
        %v8195 = vmul.f32 %v8071, %v8071
        %v8196 = vmul.f32 %v8072, %v8072
        %v8197 = vmul.f32 %v8073, %v8073
        %v8198 = vmul.f32 %v8074, %v8074
        %v8199 = vmul.f32 %v8075, %v8075
        %v8200 = vmul.f32 %v8076, %v8076
        %v8201 = vmul.f32 %v8077, %v8077
        %v8202 = vmul.f32 %v8078, %v8078
        %v8203 = vmul.f32 %v8079, %v8079
        %v8204 = vmul.f32 %v8080, %v8080
        %v8205 = vmul.f32 %v8081, %v8081
        %v8206 = vmul.f32 %v8082, %v8082
        %v8207 = vmul.f32 %v8083, %v8083
        %v8208 = vmul.f32 %v8084, %v8084
        %v8209 = vmul.f32 %v8085, %v8085
        %v8210 = vmul.f32 %v8086, %v8086
        %v8211 = vmul.f32 %v8087, %v8087
        %v8212 = vmul.f32 %v8088, %v8088
        %v8213 = vmul.f32 %v8089, %v8089
        %v8214 = vmul.f32 %v8090, %v8090
        %v8215 = vmul.f32 %v8091, %v8091
        %v8216 = vmul.f32 %v8092, %v8092
        %v8217 = vmul.f32 %v8093, %v8093
        %v8218 = vmul.f32 %v8094, %v8094
        %v8219 = vmul.f32 %v8095, %v8095
        %v8220 = vmul.f32 %v8096, %v8096
        %v8221 = vmul.f32 %v8097, %v8097
        %v8222 = vmul.f32 %v8098, %v8098
        %v8223 = vmul.f32 %v8099, %v8099
        %v8224 = vmul.f32 %v8100, %v8100
        %v8225 = vmul.f32 %v8101, %v8101
        %v8226 = vmul.f32 %v8102, %v8102
        %v8227 = vmul.f32 %v8103, %v8103
        %v8228 = vmul.f32 %v8104, %v8104
        %v8229 = vmul.f32 %v8105, %v8105
        %v8230 = vmul.f32 %v8106, %v8106
        %v8231 = vmul.f32 %v8107, %v8107
        %v8232 = vmul.f32 %v8108, %v8108
        %v8233 = vmul.f32 %v8109, %v8109
        %v8234 = vmul.f32 %v8110, %v8110
        %v8235 = vmul.f32 %v8111, %v8111
        %v8236 = vmul.f32 %v8112, %v8112
        %v8237 = vmul.f32 %v8113, %v8113
        %v8238 = vmul.f32 %v8114, %v8114
        %v8239 = vmul.f32 %v8115, %v8115
        %v8240 = vmul.f32 %v8116, %v8116
        %v8241 = vmul.f32 %v8117, %v8117
        %v8242 = vmul.f32 %v8118, %v8118
        %v8243 = vmul.f32 %v8119, %v8119
        %v8244 = vmul.f32 %v8120, %v8120
        %v8245 = vmul.f32 %v8121, %v8121
        %v8246 = vmul.f32 %v8122, %v8122
        %v8247 = vmul.f32 %v8123, %v8123
        %v8248 = vmul.f32 %v8124, %v8124
        %v8249 = vmul.f32 %v8125, %v8125
        %v8250 = vmul.f32 %v8126, %v8126
        %v8251 = vmul.f32 %v8127, %v8127
        %v8252 = vmul.f32 %v8128, %v8128
        %v8253 = vmul.f32 %v8129, %v8129
        %v8254 = vmul.f32 %v8130, %v8130
        %v8255 = vmul.f32 %v8131, %v8131
        %v8256 = vmul.f32 %v8132, %v8132
        %v8257 = vmul.f32 %v8133, %v8133
        %v8258 = vmul.f32 %v8134, %v8134
        %v8259 = vmul.f32 %v8135, %v8135
        %v8260 = vmul.f32 %v8136, %v8136
        %v8261 = vmul.f32 %v8137, %v8137
        %v8262 = vmul.f32 %v8138, %v8138
        %v8263 = vmul.f32 %v8139, %v8139
        %v8264 = vmul.f32 %v8140, 2.1470298e-06
        %v8265 = vmul.f32 %v8141, 2.1470298e-06
        %v8266 = vmul.f32 %v8142, 2.1470298e-06
        %v8267 = vmul.f32 %v8143, 2.1470298e-06
        %v8268 = vmul.f32 %v8144, 2.1470298e-06
        %v8269 = vmul.f32 %v8145, 2.1470298e-06
        %v8270 = vmul.f32 %v8146, 2.1470298e-06
        %v8271 = vmul.f32 %v8147, 2.1470298e-06
        %v8272 = vmul.f32 %v8148, 2.1470298e-06
        %v8273 = vmul.f32 %v8149, 2.1470298e-06
        %v8274 = vmul.f32 %v8150, 2.1470298e-06
        %v8275 = vmul.f32 %v8151, 2.1470298e-06
        %v8276 = vmul.f32 %v8152, 2.1470298e-06
        %v8277 = vmul.f32 %v8153, 2.1470298e-06
        %v8278 = vmul.f32 %v8154, 2.1470298e-06
        %v8279 = vmul.f32 %v8155, 2.1470298e-06
        %v8280 = vmul.f32 %v8156, 2.1470298e-06
        %v8281 = vmul.f32 %v8157, 2.1470298e-06
        %v8282 = vmul.f32 %v8158, 2.1470298e-06
        %v8283 = vmul.f32 %v8159, 2.1470298e-06
        %v8284 = vmul.f32 %v8160, 2.1470298e-06
        %v8285 = vmul.f32 %v8161, 2.1470298e-06
        %v8286 = vmul.f32 %v8162, 2.1470298e-06
        %v8287 = vmul.f32 %v8163, 2.1470298e-06
        %v8288 = vmul.f32 %v8164, 2.1470298e-06
        %v8289 = vmul.f32 %v8165, 2.1470298e-06
        %v8290 = vmul.f32 %v8166, 2.1470298e-06
        %v8291 = vmul.f32 %v8167, 2.1470298e-06
        %v8292 = vmul.f32 %v8168, 2.1470298e-06
        %v8293 = vmul.f32 %v8169, 2.1470298e-06
        %v8294 = vmul.f32 %v8170, 2.1470298e-06
        %v8295 = vmul.f32 %v8171, 2.1470298e-06
        %v8296 = vmul.f32 %v8172, 2.1470298e-06
        %v8297 = vmul.f32 %v8173, 2.1470298e-06
        %v8298 = vmul.f32 %v8174, 2.1470298e-06
        %v8299 = vmul.f32 %v8175, 2.1470298e-06
        %v8300 = vmul.f32 %v8176, 2.1470298e-06
        %v8301 = vmul.f32 %v8177, 2.1470298e-06
        %v8302 = vmul.f32 %v8178, 2.1470298e-06
        %v8303 = vmul.f32 %v8179, 2.1470298e-06
        %v8304 = vmul.f32 %v8180, 2.1470298e-06
        %v8305 = vmul.f32 %v8181, 2.1470298e-06
        %v8306 = vmul.f32 %v8182, 2.1470298e-06
        %v8307 = vmul.f32 %v8183, 2.1470298e-06
        %v8308 = vmul.f32 %v8184, 2.1470298e-06
        %v8309 = vmul.f32 %v8185, 2.1470298e-06
        %v8310 = vmul.f32 %v8186, 2.1470298e-06
        %v8311 = vmul.f32 %v8187, 2.1470298e-06
        %v8312 = vmul.f32 %v8188, 2.1470298e-06
        %v8313 = vmul.f32 %v8189, 2.1470298e-06
        %v8314 = vmul.f32 %v8190, 2.1470298e-06
        %v8315 = vmul.f32 %v8191, 2.1470298e-06
        %v8316 = vmul.f32 %v8192, 2.1470298e-06
        %v8317 = vmul.f32 %v8193, 2.1470298e-06
        %v8318 = vmul.f32 %v8194, 2.1470298e-06
        %v8319 = vmul.f32 %v8195, 2.1470298e-06
        %v8320 = vmul.f32 %v8196, 2.1470298e-06
        %v8321 = vmul.f32 %v8197, 2.1470298e-06
        %v8322 = vmul.f32 %v8198, 2.1470298e-06
        %v8323 = vmul.f32 %v8199, 2.1470298e-06
        %v8324 = vmul.f32 %v8200, 2.1470298e-06
        %v8325 = vmul.f32 %v8201, 2.1470298e-06
        %v8326 = vmul.f32 %v8202, 2.1470298e-06
        %v8327 = vmul.f32 %v8203, 2.1470298e-06
        %v8328 = vmul.f32 %v8204, 2.1470298e-06
        %v8329 = vmul.f32 %v8205, 2.1470298e-06
        %v8330 = vmul.f32 %v8206, 2.1470298e-06
        %v8331 = vmul.f32 %v8207, 2.1470298e-06
        %v8332 = vmul.f32 %v8208, 2.1470298e-06
        %v8333 = vmul.f32 %v8209, 2.1470298e-06
        %v8334 = vmul.f32 %v8210, 2.1470298e-06
        %v8335 = vmul.f32 %v8211, 2.1470298e-06
        %v8336 = vmul.f32 %v8212, 2.1470298e-06
        %v8337 = vmul.f32 %v8213, 2.1470298e-06
        %v8338 = vmul.f32 %v8214, 2.1470298e-06
        %v8339 = vmul.f32 %v8215, 2.1470298e-06
        %v8340 = vmul.f32 %v8216, 2.1470298e-06
        %v8341 = vmul.f32 %v8217, 2.1470298e-06
        %v8342 = vmul.f32 %v8218, 2.1470298e-06
        %v8343 = vmul.f32 %v8219, 2.1470298e-06
        %v8344 = vmul.f32 %v8220, 2.1470298e-06
        %v8345 = vmul.f32 %v8221, 2.1470298e-06
        %v8346 = vmul.f32 %v8222, 2.1470298e-06
        %v8347 = vmul.f32 %v8223, 2.1470298e-06
        %v8348 = vmul.f32 %v8224, 2.1470298e-06
        %v8349 = vmul.f32 %v8225, 2.1470298e-06
        %v8350 = vmul.f32 %v8226, 2.1470298e-06
        %v8351 = vmul.f32 %v8227, 2.1470298e-06
        %v8352 = vmul.f32 %v8228, 2.1470298e-06
        %v8353 = vmul.f32 %v8229, 2.1470298e-06
        %v8354 = vmul.f32 %v8230, 2.1470298e-06
        %v8355 = vmul.f32 %v8231, 2.1470298e-06
        %v8356 = vmul.f32 %v8232, 2.1470298e-06
        %v8357 = vmul.f32 %v8233, 2.1470298e-06
        %v8358 = vmul.f32 %v8234, 2.1470298e-06
        %v8359 = vmul.f32 %v8235, 2.1470298e-06
        %v8360 = vmul.f32 %v8236, 2.1470298e-06
        %v8361 = vmul.f32 %v8237, 2.1470298e-06
        %v8362 = vmul.f32 %v8238, 2.1470298e-06
        %v8363 = vmul.f32 %v8239, 2.1470298e-06
        %v8364 = vmul.f32 %v8240, 2.1470298e-06
        %v8365 = vmul.f32 %v8241, 2.1470298e-06
        %v8366 = vmul.f32 %v8242, 2.1470298e-06
        %v8367 = vmul.f32 %v8243, 2.1470298e-06
        %v8368 = vmul.f32 %v8244, 2.1470298e-06
        %v8369 = vmul.f32 %v8245, 2.1470298e-06
        %v8370 = vmul.f32 %v8246, 2.1470298e-06
        %v8371 = vmul.f32 %v8247, 2.1470298e-06
        %v8372 = vmul.f32 %v8248, 2.1470298e-06
        %v8373 = vmul.f32 %v8249, 2.1470298e-06
        %v8374 = vmul.f32 %v8250, 2.1470298e-06
        %v8375 = vmul.f32 %v8251, 2.1470298e-06
        %v8376 = vmul.f32 %v8252, 2.1470298e-06
        %v8377 = vmul.f32 %v8253, 2.1470298e-06
        %v8378 = vmul.f32 %v8254, 2.1470298e-06
        %v8379 = vmul.f32 %v8255, 2.1470298e-06
        %v8380 = vmul.f32 %v8256, 2.1470298e-06
        %v8381 = vmul.f32 %v8257, 2.1470298e-06
        %v8382 = vmul.f32 %v8258, 2.1470298e-06
        %v8383 = vmul.f32 %v8259, 2.1470298e-06
        %v8384 = vmul.f32 %v8260, 2.1470298e-06
        %v8385 = vmul.f32 %v8261, 2.1470298e-06
        %v8386 = vmul.f32 %v8262, 2.1470298e-06
        %v8387 = vmul.f32 %v8263, 2.1470298e-06
        %v8388 = vadd.f32 %v8264, -0.00019263131
        %v8389 = vadd.f32 %v8265, -0.00019263131
        %v8390 = vadd.f32 %v8266, -0.00019263131
        %v8391 = vadd.f32 %v8267, -0.00019263131
        %v8392 = vadd.f32 %v8268, -0.00019263131
        %v8393 = vadd.f32 %v8269, -0.00019263131
        %v8394 = vadd.f32 %v8270, -0.00019263131
        %v8395 = vadd.f32 %v8271, -0.00019263131
        %v8396 = vadd.f32 %v8272, -0.00019263131
        %v8397 = vadd.f32 %v8273, -0.00019263131
        %v8398 = vadd.f32 %v8274, -0.00019263131
        %v8399 = vadd.f32 %v8275, -0.00019263131
        %v8400 = vadd.f32 %v8276, -0.00019263131
        %v8401 = vadd.f32 %v8277, -0.00019263131
        %v8402 = vadd.f32 %v8278, -0.00019263131
        %v8403 = vadd.f32 %v8279, -0.00019263131
        %v8404 = vadd.f32 %v8280, -0.00019263131
        %v8405 = vadd.f32 %v8281, -0.00019263131
        %v8406 = vadd.f32 %v8282, -0.00019263131
        %v8407 = vadd.f32 %v8283, -0.00019263131
        %v8408 = vadd.f32 %v8284, -0.00019263131
        %v8409 = vadd.f32 %v8285, -0.00019263131
        %v8410 = vadd.f32 %v8286, -0.00019263131
        %v8411 = vadd.f32 %v8287, -0.00019263131
        %v8412 = vadd.f32 %v8288, -0.00019263131
        %v8413 = vadd.f32 %v8289, -0.00019263131
        %v8414 = vadd.f32 %v8290, -0.00019263131
        %v8415 = vadd.f32 %v8291, -0.00019263131
        %v8416 = vadd.f32 %v8292, -0.00019263131
        %v8417 = vadd.f32 %v8293, -0.00019263131
        %v8418 = vadd.f32 %v8294, -0.00019263131
        %v8419 = vadd.f32 %v8295, -0.00019263131
        %v8420 = vadd.f32 %v8296, -0.00019263131
        %v8421 = vadd.f32 %v8297, -0.00019263131
        %v8422 = vadd.f32 %v8298, -0.00019263131
        %v8423 = vadd.f32 %v8299, -0.00019263131
        %v8424 = vadd.f32 %v8300, -0.00019263131
        %v8425 = vadd.f32 %v8301, -0.00019263131
        %v8426 = vadd.f32 %v8302, -0.00019263131
        %v8427 = vadd.f32 %v8303, -0.00019263131
        %v8428 = vadd.f32 %v8304, -0.00019263131
        %v8429 = vadd.f32 %v8305, -0.00019263131
        %v8430 = vadd.f32 %v8306, -0.00019263131
        %v8431 = vadd.f32 %v8307, -0.00019263131
        %v8432 = vadd.f32 %v8308, -0.00019263131
        %v8433 = vadd.f32 %v8309, -0.00019263131
        %v8434 = vadd.f32 %v8310, -0.00019263131
        %v8435 = vadd.f32 %v8311, -0.00019263131
        %v8436 = vadd.f32 %v8312, -0.00019263131
        %v8437 = vadd.f32 %v8313, -0.00019263131
        %v8438 = vadd.f32 %v8314, -0.00019263131
        %v8439 = vadd.f32 %v8315, -0.00019263131
        %v8440 = vadd.f32 %v8316, -0.00019263131
        %v8441 = vadd.f32 %v8317, -0.00019263131
        %v8442 = vadd.f32 %v8318, -0.00019263131
        %v8443 = vadd.f32 %v8319, -0.00019263131
        %v8444 = vadd.f32 %v8320, -0.00019263131
        %v8445 = vadd.f32 %v8321, -0.00019263131
        %v8446 = vadd.f32 %v8322, -0.00019263131
        %v8447 = vadd.f32 %v8323, -0.00019263131
        %v8448 = vadd.f32 %v8324, -0.00019263131
        %v8449 = vadd.f32 %v8325, -0.00019263131
        %v8450 = vadd.f32 %v8326, -0.00019263131
        %v8451 = vadd.f32 %v8327, -0.00019263131
        %v8452 = vadd.f32 %v8328, -0.00019263131
        %v8453 = vadd.f32 %v8329, -0.00019263131
        %v8454 = vadd.f32 %v8330, -0.00019263131
        %v8455 = vadd.f32 %v8331, -0.00019263131
        %v8456 = vadd.f32 %v8332, -0.00019263131
        %v8457 = vadd.f32 %v8333, -0.00019263131
        %v8458 = vadd.f32 %v8334, -0.00019263131
        %v8459 = vadd.f32 %v8335, -0.00019263131
        %v8460 = vadd.f32 %v8336, -0.00019263131
        %v8461 = vadd.f32 %v8337, -0.00019263131
        %v8462 = vadd.f32 %v8338, -0.00019263131
        %v8463 = vadd.f32 %v8339, -0.00019263131
        %v8464 = vadd.f32 %v8340, -0.00019263131
        %v8465 = vadd.f32 %v8341, -0.00019263131
        %v8466 = vadd.f32 %v8342, -0.00019263131
        %v8467 = vadd.f32 %v8343, -0.00019263131
        %v8468 = vadd.f32 %v8344, -0.00019263131
        %v8469 = vadd.f32 %v8345, -0.00019263131
        %v8470 = vadd.f32 %v8346, -0.00019263131
        %v8471 = vadd.f32 %v8347, -0.00019263131
        %v8472 = vadd.f32 %v8348, -0.00019263131
        %v8473 = vadd.f32 %v8349, -0.00019263131
        %v8474 = vadd.f32 %v8350, -0.00019263131
        %v8475 = vadd.f32 %v8351, -0.00019263131
        %v8476 = vadd.f32 %v8352, -0.00019263131
        %v8477 = vadd.f32 %v8353, -0.00019263131
        %v8478 = vadd.f32 %v8354, -0.00019263131
        %v8479 = vadd.f32 %v8355, -0.00019263131
        %v8480 = vadd.f32 %v8356, -0.00019263131
        %v8481 = vadd.f32 %v8357, -0.00019263131
        %v8482 = vadd.f32 %v8358, -0.00019263131
        %v8483 = vadd.f32 %v8359, -0.00019263131
        %v8484 = vadd.f32 %v8360, -0.00019263131
        %v8485 = vadd.f32 %v8361, -0.00019263131
        %v8486 = vadd.f32 %v8362, -0.00019263131
        %v8487 = vadd.f32 %v8363, -0.00019263131
        %v8488 = vadd.f32 %v8364, -0.00019263131
        %v8489 = vadd.f32 %v8365, -0.00019263131
        %v8490 = vadd.f32 %v8366, -0.00019263131
        %v8491 = vadd.f32 %v8367, -0.00019263131
        %v8492 = vadd.f32 %v8368, -0.00019263131
        %v8493 = vadd.f32 %v8369, -0.00019263131
        %v8494 = vadd.f32 %v8370, -0.00019263131
        %v8495 = vadd.f32 %v8371, -0.00019263131
        %v8496 = vadd.f32 %v8372, -0.00019263131
        %v8497 = vadd.f32 %v8373, -0.00019263131
        %v8498 = vadd.f32 %v8374, -0.00019263131
        %v8499 = vadd.f32 %v8375, -0.00019263131
        %v8500 = vadd.f32 %v8376, -0.00019263131
        %v8501 = vadd.f32 %v8377, -0.00019263131
        %v8502 = vadd.f32 %v8378, -0.00019263131
        %v8503 = vadd.f32 %v8379, -0.00019263131
        %v8504 = vadd.f32 %v8380, -0.00019263131
        %v8505 = vadd.f32 %v8381, -0.00019263131
        %v8506 = vadd.f32 %v8382, -0.00019263131
        %v8507 = vadd.f32 %v8383, -0.00019263131
        %v8508 = vadd.f32 %v8384, -0.00019263131
        %v8509 = vadd.f32 %v8385, -0.00019263131
        %v8510 = vadd.f32 %v8386, -0.00019263131
        %v8511 = vadd.f32 %v8387, -0.00019263131
        %v8512 = vmul.f32 %v8388, %v8140
        %v8513 = vmul.f32 %v8389, %v8141
        %v8514 = vmul.f32 %v8390, %v8142
        %v8515 = vmul.f32 %v8391, %v8143
        %v8516 = vmul.f32 %v8392, %v8144
        %v8517 = vmul.f32 %v8393, %v8145
        %v8518 = vmul.f32 %v8394, %v8146
        %v8519 = vmul.f32 %v8395, %v8147
        %v8520 = vmul.f32 %v8396, %v8148
        %v8521 = vmul.f32 %v8397, %v8149
        %v8522 = vmul.f32 %v8398, %v8150
        %v8523 = vmul.f32 %v8399, %v8151
        %v8524 = vmul.f32 %v8400, %v8152
        %v8525 = vmul.f32 %v8401, %v8153
        %v8526 = vmul.f32 %v8402, %v8154
        %v8527 = vmul.f32 %v8403, %v8155
        %v8528 = vmul.f32 %v8404, %v8156
        %v8529 = vmul.f32 %v8405, %v8157
        %v8530 = vmul.f32 %v8406, %v8158
        %v8531 = vmul.f32 %v8407, %v8159
        %v8532 = vmul.f32 %v8408, %v8160
        %v8533 = vmul.f32 %v8409, %v8161
        %v8534 = vmul.f32 %v8410, %v8162
        %v8535 = vmul.f32 %v8411, %v8163
        %v8536 = vmul.f32 %v8412, %v8164
        %v8537 = vmul.f32 %v8413, %v8165
        %v8538 = vmul.f32 %v8414, %v8166
        %v8539 = vmul.f32 %v8415, %v8167
        %v8540 = vmul.f32 %v8416, %v8168
        %v8541 = vmul.f32 %v8417, %v8169
        %v8542 = vmul.f32 %v8418, %v8170
        %v8543 = vmul.f32 %v8419, %v8171
        %v8544 = vmul.f32 %v8420, %v8172
        %v8545 = vmul.f32 %v8421, %v8173
        %v8546 = vmul.f32 %v8422, %v8174
        %v8547 = vmul.f32 %v8423, %v8175
        %v8548 = vmul.f32 %v8424, %v8176
        %v8549 = vmul.f32 %v8425, %v8177
        %v8550 = vmul.f32 %v8426, %v8178
        %v8551 = vmul.f32 %v8427, %v8179
        %v8552 = vmul.f32 %v8428, %v8180
        %v8553 = vmul.f32 %v8429, %v8181
        %v8554 = vmul.f32 %v8430, %v8182
        %v8555 = vmul.f32 %v8431, %v8183
        %v8556 = vmul.f32 %v8432, %v8184
        %v8557 = vmul.f32 %v8433, %v8185
        %v8558 = vmul.f32 %v8434, %v8186
        %v8559 = vmul.f32 %v8435, %v8187
        %v8560 = vmul.f32 %v8436, %v8188
        %v8561 = vmul.f32 %v8437, %v8189
        %v8562 = vmul.f32 %v8438, %v8190
        %v8563 = vmul.f32 %v8439, %v8191
        %v8564 = vmul.f32 %v8440, %v8192
        %v8565 = vmul.f32 %v8441, %v8193
        %v8566 = vmul.f32 %v8442, %v8194
        %v8567 = vmul.f32 %v8443, %v8195
        %v8568 = vmul.f32 %v8444, %v8196
        %v8569 = vmul.f32 %v8445, %v8197
        %v8570 = vmul.f32 %v8446, %v8198
        %v8571 = vmul.f32 %v8447, %v8199
        %v8572 = vmul.f32 %v8448, %v8200
        %v8573 = vmul.f32 %v8449, %v8201
        %v8574 = vmul.f32 %v8450, %v8202
        %v8575 = vmul.f32 %v8451, %v8203
        %v8576 = vmul.f32 %v8452, %v8204
        %v8577 = vmul.f32 %v8453, %v8205
        %v8578 = vmul.f32 %v8454, %v8206
        %v8579 = vmul.f32 %v8455, %v8207
        %v8580 = vmul.f32 %v8456, %v8208
        %v8581 = vmul.f32 %v8457, %v8209
        %v8582 = vmul.f32 %v8458, %v8210
        %v8583 = vmul.f32 %v8459, %v8211
        %v8584 = vmul.f32 %v8460, %v8212
        %v8585 = vmul.f32 %v8461, %v8213
        %v8586 = vmul.f32 %v8462, %v8214
        %v8587 = vmul.f32 %v8463, %v8215
        %v8588 = vmul.f32 %v8464, %v8216
        %v8589 = vmul.f32 %v8465, %v8217
        %v8590 = vmul.f32 %v8466, %v8218
        %v8591 = vmul.f32 %v8467, %v8219
        %v8592 = vmul.f32 %v8468, %v8220
        %v8593 = vmul.f32 %v8469, %v8221
        %v8594 = vmul.f32 %v8470, %v8222
        %v8595 = vmul.f32 %v8471, %v8223
        %v8596 = vmul.f32 %v8472, %v8224
        %v8597 = vmul.f32 %v8473, %v8225
        %v8598 = vmul.f32 %v8474, %v8226
        %v8599 = vmul.f32 %v8475, %v8227
        %v8600 = vmul.f32 %v8476, %v8228
        %v8601 = vmul.f32 %v8477, %v8229
        %v8602 = vmul.f32 %v8478, %v8230
        %v8603 = vmul.f32 %v8479, %v8231
        %v8604 = vmul.f32 %v8480, %v8232
        %v8605 = vmul.f32 %v8481, %v8233
        %v8606 = vmul.f32 %v8482, %v8234
        %v8607 = vmul.f32 %v8483, %v8235
        %v8608 = vmul.f32 %v8484, %v8236
        %v8609 = vmul.f32 %v8485, %v8237
        %v8610 = vmul.f32 %v8486, %v8238
        %v8611 = vmul.f32 %v8487, %v8239
        %v8612 = vmul.f32 %v8488, %v8240
        %v8613 = vmul.f32 %v8489, %v8241
        %v8614 = vmul.f32 %v8490, %v8242
        %v8615 = vmul.f32 %v8491, %v8243
        %v8616 = vmul.f32 %v8492, %v8244
        %v8617 = vmul.f32 %v8493, %v8245
        %v8618 = vmul.f32 %v8494, %v8246
        %v8619 = vmul.f32 %v8495, %v8247
        %v8620 = vmul.f32 %v8496, %v8248
        %v8621 = vmul.f32 %v8497, %v8249
        %v8622 = vmul.f32 %v8498, %v8250
        %v8623 = vmul.f32 %v8499, %v8251
        %v8624 = vmul.f32 %v8500, %v8252
        %v8625 = vmul.f32 %v8501, %v8253
        %v8626 = vmul.f32 %v8502, %v8254
        %v8627 = vmul.f32 %v8503, %v8255
        %v8628 = vmul.f32 %v8504, %v8256
        %v8629 = vmul.f32 %v8505, %v8257
        %v8630 = vmul.f32 %v8506, %v8258
        %v8631 = vmul.f32 %v8507, %v8259
        %v8632 = vmul.f32 %v8508, %v8260
        %v8633 = vmul.f32 %v8509, %v8261
        %v8634 = vmul.f32 %v8510, %v8262
        %v8635 = vmul.f32 %v8511, %v8263
        %v8636 = vadd.f32 %v8512, 0.008308847
        %v8637 = vadd.f32 %v8513, 0.008308847
        %v8638 = vadd.f32 %v8514, 0.008308847
        %v8639 = vadd.f32 %v8515, 0.008308847
        %v8640 = vadd.f32 %v8516, 0.008308847
        %v8641 = vadd.f32 %v8517, 0.008308847
        %v8642 = vadd.f32 %v8518, 0.008308847
        %v8643 = vadd.f32 %v8519, 0.008308847
        %v8644 = vadd.f32 %v8520, 0.008308847
        %v8645 = vadd.f32 %v8521, 0.008308847
        %v8646 = vadd.f32 %v8522, 0.008308847
        %v8647 = vadd.f32 %v8523, 0.008308847
        %v8648 = vadd.f32 %v8524, 0.008308847
        %v8649 = vadd.f32 %v8525, 0.008308847
        %v8650 = vadd.f32 %v8526, 0.008308847
        %v8651 = vadd.f32 %v8527, 0.008308847
        %v8652 = vadd.f32 %v8528, 0.008308847
        %v8653 = vadd.f32 %v8529, 0.008308847
        %v8654 = vadd.f32 %v8530, 0.008308847
        %v8655 = vadd.f32 %v8531, 0.008308847
        %v8656 = vadd.f32 %v8532, 0.008308847
        %v8657 = vadd.f32 %v8533, 0.008308847
        %v8658 = vadd.f32 %v8534, 0.008308847
        %v8659 = vadd.f32 %v8535, 0.008308847
        %v8660 = vadd.f32 %v8536, 0.008308847
        %v8661 = vadd.f32 %v8537, 0.008308847
        %v8662 = vadd.f32 %v8538, 0.008308847
        %v8663 = vadd.f32 %v8539, 0.008308847
        %v8664 = vadd.f32 %v8540, 0.008308847
        %v8665 = vadd.f32 %v8541, 0.008308847
        %v8666 = vadd.f32 %v8542, 0.008308847
        %v8667 = vadd.f32 %v8543, 0.008308847
        %v8668 = vadd.f32 %v8544, 0.008308847
        %v8669 = vadd.f32 %v8545, 0.008308847
        %v8670 = vadd.f32 %v8546, 0.008308847
        %v8671 = vadd.f32 %v8547, 0.008308847
        %v8672 = vadd.f32 %v8548, 0.008308847
        %v8673 = vadd.f32 %v8549, 0.008308847
        %v8674 = vadd.f32 %v8550, 0.008308847
        %v8675 = vadd.f32 %v8551, 0.008308847
        %v8676 = vadd.f32 %v8552, 0.008308847
        %v8677 = vadd.f32 %v8553, 0.008308847
        %v8678 = vadd.f32 %v8554, 0.008308847
        %v8679 = vadd.f32 %v8555, 0.008308847
        %v8680 = vadd.f32 %v8556, 0.008308847
        %v8681 = vadd.f32 %v8557, 0.008308847
        %v8682 = vadd.f32 %v8558, 0.008308847
        %v8683 = vadd.f32 %v8559, 0.008308847
        %v8684 = vadd.f32 %v8560, 0.008308847
        %v8685 = vadd.f32 %v8561, 0.008308847
        %v8686 = vadd.f32 %v8562, 0.008308847
        %v8687 = vadd.f32 %v8563, 0.008308847
        %v8688 = vadd.f32 %v8564, 0.008308847
        %v8689 = vadd.f32 %v8565, 0.008308847
        %v8690 = vadd.f32 %v8566, 0.008308847
        %v8691 = vadd.f32 %v8567, 0.008308847
        %v8692 = vadd.f32 %v8568, 0.008308847
        %v8693 = vadd.f32 %v8569, 0.008308847
        %v8694 = vadd.f32 %v8570, 0.008308847
        %v8695 = vadd.f32 %v8571, 0.008308847
        %v8696 = vadd.f32 %v8572, 0.008308847
        %v8697 = vadd.f32 %v8573, 0.008308847
        %v8698 = vadd.f32 %v8574, 0.008308847
        %v8699 = vadd.f32 %v8575, 0.008308847
        %v8700 = vadd.f32 %v8576, 0.008308847
        %v8701 = vadd.f32 %v8577, 0.008308847
        %v8702 = vadd.f32 %v8578, 0.008308847
        %v8703 = vadd.f32 %v8579, 0.008308847
        %v8704 = vadd.f32 %v8580, 0.008308847
        %v8705 = vadd.f32 %v8581, 0.008308847
        %v8706 = vadd.f32 %v8582, 0.008308847
        %v8707 = vadd.f32 %v8583, 0.008308847
        %v8708 = vadd.f32 %v8584, 0.008308847
        %v8709 = vadd.f32 %v8585, 0.008308847
        %v8710 = vadd.f32 %v8586, 0.008308847
        %v8711 = vadd.f32 %v8587, 0.008308847
        %v8712 = vadd.f32 %v8588, 0.008308847
        %v8713 = vadd.f32 %v8589, 0.008308847
        %v8714 = vadd.f32 %v8590, 0.008308847
        %v8715 = vadd.f32 %v8591, 0.008308847
        %v8716 = vadd.f32 %v8592, 0.008308847
        %v8717 = vadd.f32 %v8593, 0.008308847
        %v8718 = vadd.f32 %v8594, 0.008308847
        %v8719 = vadd.f32 %v8595, 0.008308847
        %v8720 = vadd.f32 %v8596, 0.008308847
        %v8721 = vadd.f32 %v8597, 0.008308847
        %v8722 = vadd.f32 %v8598, 0.008308847
        %v8723 = vadd.f32 %v8599, 0.008308847
        %v8724 = vadd.f32 %v8600, 0.008308847
        %v8725 = vadd.f32 %v8601, 0.008308847
        %v8726 = vadd.f32 %v8602, 0.008308847
        %v8727 = vadd.f32 %v8603, 0.008308847
        %v8728 = vadd.f32 %v8604, 0.008308847
        %v8729 = vadd.f32 %v8605, 0.008308847
        %v8730 = vadd.f32 %v8606, 0.008308847
        %v8731 = vadd.f32 %v8607, 0.008308847
        %v8732 = vadd.f32 %v8608, 0.008308847
        %v8733 = vadd.f32 %v8609, 0.008308847
        %v8734 = vadd.f32 %v8610, 0.008308847
        %v8735 = vadd.f32 %v8611, 0.008308847
        %v8736 = vadd.f32 %v8612, 0.008308847
        %v8737 = vadd.f32 %v8613, 0.008308847
        %v8738 = vadd.f32 %v8614, 0.008308847
        %v8739 = vadd.f32 %v8615, 0.008308847
        %v8740 = vadd.f32 %v8616, 0.008308847
        %v8741 = vadd.f32 %v8617, 0.008308847
        %v8742 = vadd.f32 %v8618, 0.008308847
        %v8743 = vadd.f32 %v8619, 0.008308847
        %v8744 = vadd.f32 %v8620, 0.008308847
        %v8745 = vadd.f32 %v8621, 0.008308847
        %v8746 = vadd.f32 %v8622, 0.008308847
        %v8747 = vadd.f32 %v8623, 0.008308847
        %v8748 = vadd.f32 %v8624, 0.008308847
        %v8749 = vadd.f32 %v8625, 0.008308847
        %v8750 = vadd.f32 %v8626, 0.008308847
        %v8751 = vadd.f32 %v8627, 0.008308847
        %v8752 = vadd.f32 %v8628, 0.008308847
        %v8753 = vadd.f32 %v8629, 0.008308847
        %v8754 = vadd.f32 %v8630, 0.008308847
        %v8755 = vadd.f32 %v8631, 0.008308847
        %v8756 = vadd.f32 %v8632, 0.008308847
        %v8757 = vadd.f32 %v8633, 0.008308847
        %v8758 = vadd.f32 %v8634, 0.008308847
        %v8759 = vadd.f32 %v8635, 0.008308847
        %v8760 = vmul.f32 %v8636, %v8140
        %v8761 = vmul.f32 %v8637, %v8141
        %v8762 = vmul.f32 %v8638, %v8142
        %v8763 = vmul.f32 %v8639, %v8143
        %v8764 = vmul.f32 %v8640, %v8144
        %v8765 = vmul.f32 %v8641, %v8145
        %v8766 = vmul.f32 %v8642, %v8146
        %v8767 = vmul.f32 %v8643, %v8147
        %v8768 = vmul.f32 %v8644, %v8148
        %v8769 = vmul.f32 %v8645, %v8149
        %v8770 = vmul.f32 %v8646, %v8150
        %v8771 = vmul.f32 %v8647, %v8151
        %v8772 = vmul.f32 %v8648, %v8152
        %v8773 = vmul.f32 %v8649, %v8153
        %v8774 = vmul.f32 %v8650, %v8154
        %v8775 = vmul.f32 %v8651, %v8155
        %v8776 = vmul.f32 %v8652, %v8156
        %v8777 = vmul.f32 %v8653, %v8157
        %v8778 = vmul.f32 %v8654, %v8158
        %v8779 = vmul.f32 %v8655, %v8159
        %v8780 = vmul.f32 %v8656, %v8160
        %v8781 = vmul.f32 %v8657, %v8161
        %v8782 = vmul.f32 %v8658, %v8162
        %v8783 = vmul.f32 %v8659, %v8163
        %v8784 = vmul.f32 %v8660, %v8164
        %v8785 = vmul.f32 %v8661, %v8165
        %v8786 = vmul.f32 %v8662, %v8166
        %v8787 = vmul.f32 %v8663, %v8167
        %v8788 = vmul.f32 %v8664, %v8168
        %v8789 = vmul.f32 %v8665, %v8169
        %v8790 = vmul.f32 %v8666, %v8170
        %v8791 = vmul.f32 %v8667, %v8171
        %v8792 = vmul.f32 %v8668, %v8172
        %v8793 = vmul.f32 %v8669, %v8173
        %v8794 = vmul.f32 %v8670, %v8174
        %v8795 = vmul.f32 %v8671, %v8175
        %v8796 = vmul.f32 %v8672, %v8176
        %v8797 = vmul.f32 %v8673, %v8177
        %v8798 = vmul.f32 %v8674, %v8178
        %v8799 = vmul.f32 %v8675, %v8179
        %v8800 = vmul.f32 %v8676, %v8180
        %v8801 = vmul.f32 %v8677, %v8181
        %v8802 = vmul.f32 %v8678, %v8182
        %v8803 = vmul.f32 %v8679, %v8183
        %v8804 = vmul.f32 %v8680, %v8184
        %v8805 = vmul.f32 %v8681, %v8185
        %v8806 = vmul.f32 %v8682, %v8186
        %v8807 = vmul.f32 %v8683, %v8187
        %v8808 = vmul.f32 %v8684, %v8188
        %v8809 = vmul.f32 %v8685, %v8189
        %v8810 = vmul.f32 %v8686, %v8190
        %v8811 = vmul.f32 %v8687, %v8191
        %v8812 = vmul.f32 %v8688, %v8192
        %v8813 = vmul.f32 %v8689, %v8193
        %v8814 = vmul.f32 %v8690, %v8194
        %v8815 = vmul.f32 %v8691, %v8195
        %v8816 = vmul.f32 %v8692, %v8196
        %v8817 = vmul.f32 %v8693, %v8197
        %v8818 = vmul.f32 %v8694, %v8198
        %v8819 = vmul.f32 %v8695, %v8199
        %v8820 = vmul.f32 %v8696, %v8200
        %v8821 = vmul.f32 %v8697, %v8201
        %v8822 = vmul.f32 %v8698, %v8202
        %v8823 = vmul.f32 %v8699, %v8203
        %v8824 = vmul.f32 %v8700, %v8204
        %v8825 = vmul.f32 %v8701, %v8205
        %v8826 = vmul.f32 %v8702, %v8206
        %v8827 = vmul.f32 %v8703, %v8207
        %v8828 = vmul.f32 %v8704, %v8208
        %v8829 = vmul.f32 %v8705, %v8209
        %v8830 = vmul.f32 %v8706, %v8210
        %v8831 = vmul.f32 %v8707, %v8211
        %v8832 = vmul.f32 %v8708, %v8212
        %v8833 = vmul.f32 %v8709, %v8213
        %v8834 = vmul.f32 %v8710, %v8214
        %v8835 = vmul.f32 %v8711, %v8215
        %v8836 = vmul.f32 %v8712, %v8216
        %v8837 = vmul.f32 %v8713, %v8217
        %v8838 = vmul.f32 %v8714, %v8218
        %v8839 = vmul.f32 %v8715, %v8219
        %v8840 = vmul.f32 %v8716, %v8220
        %v8841 = vmul.f32 %v8717, %v8221
        %v8842 = vmul.f32 %v8718, %v8222
        %v8843 = vmul.f32 %v8719, %v8223
        %v8844 = vmul.f32 %v8720, %v8224
        %v8845 = vmul.f32 %v8721, %v8225
        %v8846 = vmul.f32 %v8722, %v8226
        %v8847 = vmul.f32 %v8723, %v8227
        %v8848 = vmul.f32 %v8724, %v8228
        %v8849 = vmul.f32 %v8725, %v8229
        %v8850 = vmul.f32 %v8726, %v8230
        %v8851 = vmul.f32 %v8727, %v8231
        %v8852 = vmul.f32 %v8728, %v8232
        %v8853 = vmul.f32 %v8729, %v8233
        %v8854 = vmul.f32 %v8730, %v8234
        %v8855 = vmul.f32 %v8731, %v8235
        %v8856 = vmul.f32 %v8732, %v8236
        %v8857 = vmul.f32 %v8733, %v8237
        %v8858 = vmul.f32 %v8734, %v8238
        %v8859 = vmul.f32 %v8735, %v8239
        %v8860 = vmul.f32 %v8736, %v8240
        %v8861 = vmul.f32 %v8737, %v8241
        %v8862 = vmul.f32 %v8738, %v8242
        %v8863 = vmul.f32 %v8739, %v8243
        %v8864 = vmul.f32 %v8740, %v8244
        %v8865 = vmul.f32 %v8741, %v8245
        %v8866 = vmul.f32 %v8742, %v8246
        %v8867 = vmul.f32 %v8743, %v8247
        %v8868 = vmul.f32 %v8744, %v8248
        %v8869 = vmul.f32 %v8745, %v8249
        %v8870 = vmul.f32 %v8746, %v8250
        %v8871 = vmul.f32 %v8747, %v8251
        %v8872 = vmul.f32 %v8748, %v8252
        %v8873 = vmul.f32 %v8749, %v8253
        %v8874 = vmul.f32 %v8750, %v8254
        %v8875 = vmul.f32 %v8751, %v8255
        %v8876 = vmul.f32 %v8752, %v8256
        %v8877 = vmul.f32 %v8753, %v8257
        %v8878 = vmul.f32 %v8754, %v8258
        %v8879 = vmul.f32 %v8755, %v8259
        %v8880 = vmul.f32 %v8756, %v8260
        %v8881 = vmul.f32 %v8757, %v8261
        %v8882 = vmul.f32 %v8758, %v8262
        %v8883 = vmul.f32 %v8759, %v8263
        %v8884 = vadd.f32 %v8760, -0.16662401
        %v8885 = vadd.f32 %v8761, -0.16662401
        %v8886 = vadd.f32 %v8762, -0.16662401
        %v8887 = vadd.f32 %v8763, -0.16662401
        %v8888 = vadd.f32 %v8764, -0.16662401
        %v8889 = vadd.f32 %v8765, -0.16662401
        %v8890 = vadd.f32 %v8766, -0.16662401
        %v8891 = vadd.f32 %v8767, -0.16662401
        %v8892 = vadd.f32 %v8768, -0.16662401
        %v8893 = vadd.f32 %v8769, -0.16662401
        %v8894 = vadd.f32 %v8770, -0.16662401
        %v8895 = vadd.f32 %v8771, -0.16662401
        %v8896 = vadd.f32 %v8772, -0.16662401
        %v8897 = vadd.f32 %v8773, -0.16662401
        %v8898 = vadd.f32 %v8774, -0.16662401
        %v8899 = vadd.f32 %v8775, -0.16662401
        %v8900 = vadd.f32 %v8776, -0.16662401
        %v8901 = vadd.f32 %v8777, -0.16662401
        %v8902 = vadd.f32 %v8778, -0.16662401
        %v8903 = vadd.f32 %v8779, -0.16662401
        %v8904 = vadd.f32 %v8780, -0.16662401
        %v8905 = vadd.f32 %v8781, -0.16662401
        %v8906 = vadd.f32 %v8782, -0.16662401
        %v8907 = vadd.f32 %v8783, -0.16662401
        %v8908 = vadd.f32 %v8784, -0.16662401
        %v8909 = vadd.f32 %v8785, -0.16662401
        %v8910 = vadd.f32 %v8786, -0.16662401
        %v8911 = vadd.f32 %v8787, -0.16662401
        %v8912 = vadd.f32 %v8788, -0.16662401
        %v8913 = vadd.f32 %v8789, -0.16662401
        %v8914 = vadd.f32 %v8790, -0.16662401
        %v8915 = vadd.f32 %v8791, -0.16662401
        %v8916 = vadd.f32 %v8792, -0.16662401
        %v8917 = vadd.f32 %v8793, -0.16662401
        %v8918 = vadd.f32 %v8794, -0.16662401
        %v8919 = vadd.f32 %v8795, -0.16662401
        %v8920 = vadd.f32 %v8796, -0.16662401
        %v8921 = vadd.f32 %v8797, -0.16662401
        %v8922 = vadd.f32 %v8798, -0.16662401
        %v8923 = vadd.f32 %v8799, -0.16662401
        %v8924 = vadd.f32 %v8800, -0.16662401
        %v8925 = vadd.f32 %v8801, -0.16662401
        %v8926 = vadd.f32 %v8802, -0.16662401
        %v8927 = vadd.f32 %v8803, -0.16662401
        %v8928 = vadd.f32 %v8804, -0.16662401
        %v8929 = vadd.f32 %v8805, -0.16662401
        %v8930 = vadd.f32 %v8806, -0.16662401
        %v8931 = vadd.f32 %v8807, -0.16662401
        %v8932 = vadd.f32 %v8808, -0.16662401
        %v8933 = vadd.f32 %v8809, -0.16662401
        %v8934 = vadd.f32 %v8810, -0.16662401
        %v8935 = vadd.f32 %v8811, -0.16662401
        %v8936 = vadd.f32 %v8812, -0.16662401
        %v8937 = vadd.f32 %v8813, -0.16662401
        %v8938 = vadd.f32 %v8814, -0.16662401
        %v8939 = vadd.f32 %v8815, -0.16662401
        %v8940 = vadd.f32 %v8816, -0.16662401
        %v8941 = vadd.f32 %v8817, -0.16662401
        %v8942 = vadd.f32 %v8818, -0.16662401
        %v8943 = vadd.f32 %v8819, -0.16662401
        %v8944 = vadd.f32 %v8820, -0.16662401
        %v8945 = vadd.f32 %v8821, -0.16662401
        %v8946 = vadd.f32 %v8822, -0.16662401
        %v8947 = vadd.f32 %v8823, -0.16662401
        %v8948 = vadd.f32 %v8824, -0.16662401
        %v8949 = vadd.f32 %v8825, -0.16662401
        %v8950 = vadd.f32 %v8826, -0.16662401
        %v8951 = vadd.f32 %v8827, -0.16662401
        %v8952 = vadd.f32 %v8828, -0.16662401
        %v8953 = vadd.f32 %v8829, -0.16662401
        %v8954 = vadd.f32 %v8830, -0.16662401
        %v8955 = vadd.f32 %v8831, -0.16662401
        %v8956 = vadd.f32 %v8832, -0.16662401
        %v8957 = vadd.f32 %v8833, -0.16662401
        %v8958 = vadd.f32 %v8834, -0.16662401
        %v8959 = vadd.f32 %v8835, -0.16662401
        %v8960 = vadd.f32 %v8836, -0.16662401
        %v8961 = vadd.f32 %v8837, -0.16662401
        %v8962 = vadd.f32 %v8838, -0.16662401
        %v8963 = vadd.f32 %v8839, -0.16662401
        %v8964 = vadd.f32 %v8840, -0.16662401
        %v8965 = vadd.f32 %v8841, -0.16662401
        %v8966 = vadd.f32 %v8842, -0.16662401
        %v8967 = vadd.f32 %v8843, -0.16662401
        %v8968 = vadd.f32 %v8844, -0.16662401
        %v8969 = vadd.f32 %v8845, -0.16662401
        %v8970 = vadd.f32 %v8846, -0.16662401
        %v8971 = vadd.f32 %v8847, -0.16662401
        %v8972 = vadd.f32 %v8848, -0.16662401
        %v8973 = vadd.f32 %v8849, -0.16662401
        %v8974 = vadd.f32 %v8850, -0.16662401
        %v8975 = vadd.f32 %v8851, -0.16662401
        %v8976 = vadd.f32 %v8852, -0.16662401
        %v8977 = vadd.f32 %v8853, -0.16662401
        %v8978 = vadd.f32 %v8854, -0.16662401
        %v8979 = vadd.f32 %v8855, -0.16662401
        %v8980 = vadd.f32 %v8856, -0.16662401
        %v8981 = vadd.f32 %v8857, -0.16662401
        %v8982 = vadd.f32 %v8858, -0.16662401
        %v8983 = vadd.f32 %v8859, -0.16662401
        %v8984 = vadd.f32 %v8860, -0.16662401
        %v8985 = vadd.f32 %v8861, -0.16662401
        %v8986 = vadd.f32 %v8862, -0.16662401
        %v8987 = vadd.f32 %v8863, -0.16662401
        %v8988 = vadd.f32 %v8864, -0.16662401
        %v8989 = vadd.f32 %v8865, -0.16662401
        %v8990 = vadd.f32 %v8866, -0.16662401
        %v8991 = vadd.f32 %v8867, -0.16662401
        %v8992 = vadd.f32 %v8868, -0.16662401
        %v8993 = vadd.f32 %v8869, -0.16662401
        %v8994 = vadd.f32 %v8870, -0.16662401
        %v8995 = vadd.f32 %v8871, -0.16662401
        %v8996 = vadd.f32 %v8872, -0.16662401
        %v8997 = vadd.f32 %v8873, -0.16662401
        %v8998 = vadd.f32 %v8874, -0.16662401
        %v8999 = vadd.f32 %v8875, -0.16662401
        %v9000 = vadd.f32 %v8876, -0.16662401
        %v9001 = vadd.f32 %v8877, -0.16662401
        %v9002 = vadd.f32 %v8878, -0.16662401
        %v9003 = vadd.f32 %v8879, -0.16662401
        %v9004 = vadd.f32 %v8880, -0.16662401
        %v9005 = vadd.f32 %v8881, -0.16662401
        %v9006 = vadd.f32 %v8882, -0.16662401
        %v9007 = vadd.f32 %v8883, -0.16662401
        %v9008 = vmul.f32 %v8884, %v8140
        %v9009 = vmul.f32 %v8885, %v8141
        %v9010 = vmul.f32 %v8886, %v8142
        %v9011 = vmul.f32 %v8887, %v8143
        %v9012 = vmul.f32 %v8888, %v8144
        %v9013 = vmul.f32 %v8889, %v8145
        %v9014 = vmul.f32 %v8890, %v8146
        %v9015 = vmul.f32 %v8891, %v8147
        %v9016 = vmul.f32 %v8892, %v8148
        %v9017 = vmul.f32 %v8893, %v8149
        %v9018 = vmul.f32 %v8894, %v8150
        %v9019 = vmul.f32 %v8895, %v8151
        %v9020 = vmul.f32 %v8896, %v8152
        %v9021 = vmul.f32 %v8897, %v8153
        %v9022 = vmul.f32 %v8898, %v8154
        %v9023 = vmul.f32 %v8899, %v8155
        %v9024 = vmul.f32 %v8900, %v8156
        %v9025 = vmul.f32 %v8901, %v8157
        %v9026 = vmul.f32 %v8902, %v8158
        %v9027 = vmul.f32 %v8903, %v8159
        %v9028 = vmul.f32 %v8904, %v8160
        %v9029 = vmul.f32 %v8905, %v8161
        %v9030 = vmul.f32 %v8906, %v8162
        %v9031 = vmul.f32 %v8907, %v8163
        %v9032 = vmul.f32 %v8908, %v8164
        %v9033 = vmul.f32 %v8909, %v8165
        %v9034 = vmul.f32 %v8910, %v8166
        %v9035 = vmul.f32 %v8911, %v8167
        %v9036 = vmul.f32 %v8912, %v8168
        %v9037 = vmul.f32 %v8913, %v8169
        %v9038 = vmul.f32 %v8914, %v8170
        %v9039 = vmul.f32 %v8915, %v8171
        %v9040 = vmul.f32 %v8916, %v8172
        %v9041 = vmul.f32 %v8917, %v8173
        %v9042 = vmul.f32 %v8918, %v8174
        %v9043 = vmul.f32 %v8919, %v8175
        %v9044 = vmul.f32 %v8920, %v8176
        %v9045 = vmul.f32 %v8921, %v8177
        %v9046 = vmul.f32 %v8922, %v8178
        %v9047 = vmul.f32 %v8923, %v8179
        %v9048 = vmul.f32 %v8924, %v8180
        %v9049 = vmul.f32 %v8925, %v8181
        %v9050 = vmul.f32 %v8926, %v8182
        %v9051 = vmul.f32 %v8927, %v8183
        %v9052 = vmul.f32 %v8928, %v8184
        %v9053 = vmul.f32 %v8929, %v8185
        %v9054 = vmul.f32 %v8930, %v8186
        %v9055 = vmul.f32 %v8931, %v8187
        %v9056 = vmul.f32 %v8932, %v8188
        %v9057 = vmul.f32 %v8933, %v8189
        %v9058 = vmul.f32 %v8934, %v8190
        %v9059 = vmul.f32 %v8935, %v8191
        %v9060 = vmul.f32 %v8936, %v8192
        %v9061 = vmul.f32 %v8937, %v8193
        %v9062 = vmul.f32 %v8938, %v8194
        %v9063 = vmul.f32 %v8939, %v8195
        %v9064 = vmul.f32 %v8940, %v8196
        %v9065 = vmul.f32 %v8941, %v8197
        %v9066 = vmul.f32 %v8942, %v8198
        %v9067 = vmul.f32 %v8943, %v8199
        %v9068 = vmul.f32 %v8944, %v8200
        %v9069 = vmul.f32 %v8945, %v8201
        %v9070 = vmul.f32 %v8946, %v8202
        %v9071 = vmul.f32 %v8947, %v8203
        %v9072 = vmul.f32 %v8948, %v8204
        %v9073 = vmul.f32 %v8949, %v8205
        %v9074 = vmul.f32 %v8950, %v8206
        %v9075 = vmul.f32 %v8951, %v8207
        %v9076 = vmul.f32 %v8952, %v8208
        %v9077 = vmul.f32 %v8953, %v8209
        %v9078 = vmul.f32 %v8954, %v8210
        %v9079 = vmul.f32 %v8955, %v8211
        %v9080 = vmul.f32 %v8956, %v8212
        %v9081 = vmul.f32 %v8957, %v8213
        %v9082 = vmul.f32 %v8958, %v8214
        %v9083 = vmul.f32 %v8959, %v8215
        %v9084 = vmul.f32 %v8960, %v8216
        %v9085 = vmul.f32 %v8961, %v8217
        %v9086 = vmul.f32 %v8962, %v8218
        %v9087 = vmul.f32 %v8963, %v8219
        %v9088 = vmul.f32 %v8964, %v8220
        %v9089 = vmul.f32 %v8965, %v8221
        %v9090 = vmul.f32 %v8966, %v8222
        %v9091 = vmul.f32 %v8967, %v8223
        %v9092 = vmul.f32 %v8968, %v8224
        %v9093 = vmul.f32 %v8969, %v8225
        %v9094 = vmul.f32 %v8970, %v8226
        %v9095 = vmul.f32 %v8971, %v8227
        %v9096 = vmul.f32 %v8972, %v8228
        %v9097 = vmul.f32 %v8973, %v8229
        %v9098 = vmul.f32 %v8974, %v8230
        %v9099 = vmul.f32 %v8975, %v8231
        %v9100 = vmul.f32 %v8976, %v8232
        %v9101 = vmul.f32 %v8977, %v8233
        %v9102 = vmul.f32 %v8978, %v8234
        %v9103 = vmul.f32 %v8979, %v8235
        %v9104 = vmul.f32 %v8980, %v8236
        %v9105 = vmul.f32 %v8981, %v8237
        %v9106 = vmul.f32 %v8982, %v8238
        %v9107 = vmul.f32 %v8983, %v8239
        %v9108 = vmul.f32 %v8984, %v8240
        %v9109 = vmul.f32 %v8985, %v8241
        %v9110 = vmul.f32 %v8986, %v8242
        %v9111 = vmul.f32 %v8987, %v8243
        %v9112 = vmul.f32 %v8988, %v8244
        %v9113 = vmul.f32 %v8989, %v8245
        %v9114 = vmul.f32 %v8990, %v8246
        %v9115 = vmul.f32 %v8991, %v8247
        %v9116 = vmul.f32 %v8992, %v8248
        %v9117 = vmul.f32 %v8993, %v8249
        %v9118 = vmul.f32 %v8994, %v8250
        %v9119 = vmul.f32 %v8995, %v8251
        %v9120 = vmul.f32 %v8996, %v8252
        %v9121 = vmul.f32 %v8997, %v8253
        %v9122 = vmul.f32 %v8998, %v8254
        %v9123 = vmul.f32 %v8999, %v8255
        %v9124 = vmul.f32 %v9000, %v8256
        %v9125 = vmul.f32 %v9001, %v8257
        %v9126 = vmul.f32 %v9002, %v8258
        %v9127 = vmul.f32 %v9003, %v8259
        %v9128 = vmul.f32 %v9004, %v8260
        %v9129 = vmul.f32 %v9005, %v8261
        %v9130 = vmul.f32 %v9006, %v8262
        %v9131 = vmul.f32 %v9007, %v8263
        %v9132 = vadd.f32 %v9008, 0.99997914
        %v9133 = vadd.f32 %v9009, 0.99997914
        %v9134 = vadd.f32 %v9010, 0.99997914
        %v9135 = vadd.f32 %v9011, 0.99997914
        %v9136 = vadd.f32 %v9012, 0.99997914
        %v9137 = vadd.f32 %v9013, 0.99997914
        %v9138 = vadd.f32 %v9014, 0.99997914
        %v9139 = vadd.f32 %v9015, 0.99997914
        %v9140 = vadd.f32 %v9016, 0.99997914
        %v9141 = vadd.f32 %v9017, 0.99997914
        %v9142 = vadd.f32 %v9018, 0.99997914
        %v9143 = vadd.f32 %v9019, 0.99997914
        %v9144 = vadd.f32 %v9020, 0.99997914
        %v9145 = vadd.f32 %v9021, 0.99997914
        %v9146 = vadd.f32 %v9022, 0.99997914
        %v9147 = vadd.f32 %v9023, 0.99997914
        %v9148 = vadd.f32 %v9024, 0.99997914
        %v9149 = vadd.f32 %v9025, 0.99997914
        %v9150 = vadd.f32 %v9026, 0.99997914
        %v9151 = vadd.f32 %v9027, 0.99997914
        %v9152 = vadd.f32 %v9028, 0.99997914
        %v9153 = vadd.f32 %v9029, 0.99997914
        %v9154 = vadd.f32 %v9030, 0.99997914
        %v9155 = vadd.f32 %v9031, 0.99997914
        %v9156 = vadd.f32 %v9032, 0.99997914
        %v9157 = vadd.f32 %v9033, 0.99997914
        %v9158 = vadd.f32 %v9034, 0.99997914
        %v9159 = vadd.f32 %v9035, 0.99997914
        %v9160 = vadd.f32 %v9036, 0.99997914
        %v9161 = vadd.f32 %v9037, 0.99997914
        %v9162 = vadd.f32 %v9038, 0.99997914
        %v9163 = vadd.f32 %v9039, 0.99997914
        %v9164 = vadd.f32 %v9040, 0.99997914
        %v9165 = vadd.f32 %v9041, 0.99997914
        %v9166 = vadd.f32 %v9042, 0.99997914
        %v9167 = vadd.f32 %v9043, 0.99997914
        %v9168 = vadd.f32 %v9044, 0.99997914
        %v9169 = vadd.f32 %v9045, 0.99997914
        %v9170 = vadd.f32 %v9046, 0.99997914
        %v9171 = vadd.f32 %v9047, 0.99997914
        %v9172 = vadd.f32 %v9048, 0.99997914
        %v9173 = vadd.f32 %v9049, 0.99997914
        %v9174 = vadd.f32 %v9050, 0.99997914
        %v9175 = vadd.f32 %v9051, 0.99997914
        %v9176 = vadd.f32 %v9052, 0.99997914
        %v9177 = vadd.f32 %v9053, 0.99997914
        %v9178 = vadd.f32 %v9054, 0.99997914
        %v9179 = vadd.f32 %v9055, 0.99997914
        %v9180 = vadd.f32 %v9056, 0.99997914
        %v9181 = vadd.f32 %v9057, 0.99997914
        %v9182 = vadd.f32 %v9058, 0.99997914
        %v9183 = vadd.f32 %v9059, 0.99997914
        %v9184 = vadd.f32 %v9060, 0.99997914
        %v9185 = vadd.f32 %v9061, 0.99997914
        %v9186 = vadd.f32 %v9062, 0.99997914
        %v9187 = vadd.f32 %v9063, 0.99997914
        %v9188 = vadd.f32 %v9064, 0.99997914
        %v9189 = vadd.f32 %v9065, 0.99997914
        %v9190 = vadd.f32 %v9066, 0.99997914
        %v9191 = vadd.f32 %v9067, 0.99997914
        %v9192 = vadd.f32 %v9068, 0.99997914
        %v9193 = vadd.f32 %v9069, 0.99997914
        %v9194 = vadd.f32 %v9070, 0.99997914
        %v9195 = vadd.f32 %v9071, 0.99997914
        %v9196 = vadd.f32 %v9072, 0.99997914
        %v9197 = vadd.f32 %v9073, 0.99997914
        %v9198 = vadd.f32 %v9074, 0.99997914
        %v9199 = vadd.f32 %v9075, 0.99997914
        %v9200 = vadd.f32 %v9076, 0.99997914
        %v9201 = vadd.f32 %v9077, 0.99997914
        %v9202 = vadd.f32 %v9078, 0.99997914
        %v9203 = vadd.f32 %v9079, 0.99997914
        %v9204 = vadd.f32 %v9080, 0.99997914
        %v9205 = vadd.f32 %v9081, 0.99997914
        %v9206 = vadd.f32 %v9082, 0.99997914
        %v9207 = vadd.f32 %v9083, 0.99997914
        %v9208 = vadd.f32 %v9084, 0.99997914
        %v9209 = vadd.f32 %v9085, 0.99997914
        %v9210 = vadd.f32 %v9086, 0.99997914
        %v9211 = vadd.f32 %v9087, 0.99997914
        %v9212 = vadd.f32 %v9088, 0.99997914
        %v9213 = vadd.f32 %v9089, 0.99997914
        %v9214 = vadd.f32 %v9090, 0.99997914
        %v9215 = vadd.f32 %v9091, 0.99997914
        %v9216 = vadd.f32 %v9092, 0.99997914
        %v9217 = vadd.f32 %v9093, 0.99997914
        %v9218 = vadd.f32 %v9094, 0.99997914
        %v9219 = vadd.f32 %v9095, 0.99997914
        %v9220 = vadd.f32 %v9096, 0.99997914
        %v9221 = vadd.f32 %v9097, 0.99997914
        %v9222 = vadd.f32 %v9098, 0.99997914
        %v9223 = vadd.f32 %v9099, 0.99997914
        %v9224 = vadd.f32 %v9100, 0.99997914
        %v9225 = vadd.f32 %v9101, 0.99997914
        %v9226 = vadd.f32 %v9102, 0.99997914
        %v9227 = vadd.f32 %v9103, 0.99997914
        %v9228 = vadd.f32 %v9104, 0.99997914
        %v9229 = vadd.f32 %v9105, 0.99997914
        %v9230 = vadd.f32 %v9106, 0.99997914
        %v9231 = vadd.f32 %v9107, 0.99997914
        %v9232 = vadd.f32 %v9108, 0.99997914
        %v9233 = vadd.f32 %v9109, 0.99997914
        %v9234 = vadd.f32 %v9110, 0.99997914
        %v9235 = vadd.f32 %v9111, 0.99997914
        %v9236 = vadd.f32 %v9112, 0.99997914
        %v9237 = vadd.f32 %v9113, 0.99997914
        %v9238 = vadd.f32 %v9114, 0.99997914
        %v9239 = vadd.f32 %v9115, 0.99997914
        %v9240 = vadd.f32 %v9116, 0.99997914
        %v9241 = vadd.f32 %v9117, 0.99997914
        %v9242 = vadd.f32 %v9118, 0.99997914
        %v9243 = vadd.f32 %v9119, 0.99997914
        %v9244 = vadd.f32 %v9120, 0.99997914
        %v9245 = vadd.f32 %v9121, 0.99997914
        %v9246 = vadd.f32 %v9122, 0.99997914
        %v9247 = vadd.f32 %v9123, 0.99997914
        %v9248 = vadd.f32 %v9124, 0.99997914
        %v9249 = vadd.f32 %v9125, 0.99997914
        %v9250 = vadd.f32 %v9126, 0.99997914
        %v9251 = vadd.f32 %v9127, 0.99997914
        %v9252 = vadd.f32 %v9128, 0.99997914
        %v9253 = vadd.f32 %v9129, 0.99997914
        %v9254 = vadd.f32 %v9130, 0.99997914
        %v9255 = vadd.f32 %v9131, 0.99997914
        %v9256 = vmul.f32 %v8016, %v9132
        %v9257 = vmul.f32 %v8017, %v9133
        %v9258 = vmul.f32 %v8018, %v9134
        %v9259 = vmul.f32 %v8019, %v9135
        %v9260 = vmul.f32 %v8020, %v9136
        %v9261 = vmul.f32 %v8021, %v9137
        %v9262 = vmul.f32 %v8022, %v9138
        %v9263 = vmul.f32 %v8023, %v9139
        %v9264 = vmul.f32 %v8024, %v9140
        %v9265 = vmul.f32 %v8025, %v9141
        %v9266 = vmul.f32 %v8026, %v9142
        %v9267 = vmul.f32 %v8027, %v9143
        %v9268 = vmul.f32 %v8028, %v9144
        %v9269 = vmul.f32 %v8029, %v9145
        %v9270 = vmul.f32 %v8030, %v9146
        %v9271 = vmul.f32 %v8031, %v9147
        %v9272 = vmul.f32 %v8032, %v9148
        %v9273 = vmul.f32 %v8033, %v9149
        %v9274 = vmul.f32 %v8034, %v9150
        %v9275 = vmul.f32 %v8035, %v9151
        %v9276 = vmul.f32 %v8036, %v9152
        %v9277 = vmul.f32 %v8037, %v9153
        %v9278 = vmul.f32 %v8038, %v9154
        %v9279 = vmul.f32 %v8039, %v9155
        %v9280 = vmul.f32 %v8040, %v9156
        %v9281 = vmul.f32 %v8041, %v9157
        %v9282 = vmul.f32 %v8042, %v9158
        %v9283 = vmul.f32 %v8043, %v9159
        %v9284 = vmul.f32 %v8044, %v9160
        %v9285 = vmul.f32 %v8045, %v9161
        %v9286 = vmul.f32 %v8046, %v9162
        %v9287 = vmul.f32 %v8047, %v9163
        %v9288 = vmul.f32 %v8048, %v9164
        %v9289 = vmul.f32 %v8049, %v9165
        %v9290 = vmul.f32 %v8050, %v9166
        %v9291 = vmul.f32 %v8051, %v9167
        %v9292 = vmul.f32 %v8052, %v9168
        %v9293 = vmul.f32 %v8053, %v9169
        %v9294 = vmul.f32 %v8054, %v9170
        %v9295 = vmul.f32 %v8055, %v9171
        %v9296 = vmul.f32 %v8056, %v9172
        %v9297 = vmul.f32 %v8057, %v9173
        %v9298 = vmul.f32 %v8058, %v9174
        %v9299 = vmul.f32 %v8059, %v9175
        %v9300 = vmul.f32 %v8060, %v9176
        %v9301 = vmul.f32 %v8061, %v9177
        %v9302 = vmul.f32 %v8062, %v9178
        %v9303 = vmul.f32 %v8063, %v9179
        %v9304 = vmul.f32 %v8064, %v9180
        %v9305 = vmul.f32 %v8065, %v9181
        %v9306 = vmul.f32 %v8066, %v9182
        %v9307 = vmul.f32 %v8067, %v9183
        %v9308 = vmul.f32 %v8068, %v9184
        %v9309 = vmul.f32 %v8069, %v9185
        %v9310 = vmul.f32 %v8070, %v9186
        %v9311 = vmul.f32 %v8071, %v9187
        %v9312 = vmul.f32 %v8072, %v9188
        %v9313 = vmul.f32 %v8073, %v9189
        %v9314 = vmul.f32 %v8074, %v9190
        %v9315 = vmul.f32 %v8075, %v9191
        %v9316 = vmul.f32 %v8076, %v9192
        %v9317 = vmul.f32 %v8077, %v9193
        %v9318 = vmul.f32 %v8078, %v9194
        %v9319 = vmul.f32 %v8079, %v9195
        %v9320 = vmul.f32 %v8080, %v9196
        %v9321 = vmul.f32 %v8081, %v9197
        %v9322 = vmul.f32 %v8082, %v9198
        %v9323 = vmul.f32 %v8083, %v9199
        %v9324 = vmul.f32 %v8084, %v9200
        %v9325 = vmul.f32 %v8085, %v9201
        %v9326 = vmul.f32 %v8086, %v9202
        %v9327 = vmul.f32 %v8087, %v9203
        %v9328 = vmul.f32 %v8088, %v9204
        %v9329 = vmul.f32 %v8089, %v9205
        %v9330 = vmul.f32 %v8090, %v9206
        %v9331 = vmul.f32 %v8091, %v9207
        %v9332 = vmul.f32 %v8092, %v9208
        %v9333 = vmul.f32 %v8093, %v9209
        %v9334 = vmul.f32 %v8094, %v9210
        %v9335 = vmul.f32 %v8095, %v9211
        %v9336 = vmul.f32 %v8096, %v9212
        %v9337 = vmul.f32 %v8097, %v9213
        %v9338 = vmul.f32 %v8098, %v9214
        %v9339 = vmul.f32 %v8099, %v9215
        %v9340 = vmul.f32 %v8100, %v9216
        %v9341 = vmul.f32 %v8101, %v9217
        %v9342 = vmul.f32 %v8102, %v9218
        %v9343 = vmul.f32 %v8103, %v9219
        %v9344 = vmul.f32 %v8104, %v9220
        %v9345 = vmul.f32 %v8105, %v9221
        %v9346 = vmul.f32 %v8106, %v9222
        %v9347 = vmul.f32 %v8107, %v9223
        %v9348 = vmul.f32 %v8108, %v9224
        %v9349 = vmul.f32 %v8109, %v9225
        %v9350 = vmul.f32 %v8110, %v9226
        %v9351 = vmul.f32 %v8111, %v9227
        %v9352 = vmul.f32 %v8112, %v9228
        %v9353 = vmul.f32 %v8113, %v9229
        %v9354 = vmul.f32 %v8114, %v9230
        %v9355 = vmul.f32 %v8115, %v9231
        %v9356 = vmul.f32 %v8116, %v9232
        %v9357 = vmul.f32 %v8117, %v9233
        %v9358 = vmul.f32 %v8118, %v9234
        %v9359 = vmul.f32 %v8119, %v9235
        %v9360 = vmul.f32 %v8120, %v9236
        %v9361 = vmul.f32 %v8121, %v9237
        %v9362 = vmul.f32 %v8122, %v9238
        %v9363 = vmul.f32 %v8123, %v9239
        %v9364 = vmul.f32 %v8124, %v9240
        %v9365 = vmul.f32 %v8125, %v9241
        %v9366 = vmul.f32 %v8126, %v9242
        %v9367 = vmul.f32 %v8127, %v9243
        %v9368 = vmul.f32 %v8128, %v9244
        %v9369 = vmul.f32 %v8129, %v9245
        %v9370 = vmul.f32 %v8130, %v9246
        %v9371 = vmul.f32 %v8131, %v9247
        %v9372 = vmul.f32 %v8132, %v9248
        %v9373 = vmul.f32 %v8133, %v9249
        %v9374 = vmul.f32 %v8134, %v9250
        %v9375 = vmul.f32 %v8135, %v9251
        %v9376 = vmul.f32 %v8136, %v9252
        %v9377 = vmul.f32 %v8137, %v9253
        %v9378 = vmul.f32 %v8138, %v9254
        %v9379 = vmul.f32 %v8139, %v9255
        %v9380 = vld [vmem:[%s9] sm:$0x1]
        %v9381 = vld [vmem:[#allocation3] sm:$0x1]
        %9383 = vset.pattern.permute.xlu0 0
        %9384 = vperm.xlu0 %9383, %v9381
        %v9385 = vpop.permute.xlu0 %9384
        %v9387 = vperm.slane %v9385, 0
        %v9389 = vsel %vm3809, %v9380, 0
        %9391 = vmatpush.msra.mxu0 0.0
        %9392 = vmatpush.msra.mxu0 0.0
        %9393 = vmatpush.msra.mxu0 0.0
        %9394 = vmatpush.msra.mxu0 0.0
        %9395 = vmatpush.msra.mxu0 0.0
        %9396 = vmatpush.msra.mxu0 0.0
        %9397 = vmatpush.msra.mxu0 0.0
        %9398 = vmatpush.msra.mxu0 0.0
        %9399 = vmatpush.msra.mxu0 0.0
        %9400 = vmatpush.msra.mxu0 0.0
        %9401 = vmatpush.msra.mxu0 0.0
        %9402 = vmatpush.msra.mxu0 0.0
        %9403 = vmatpush.msra.mxu0 %v9349
        %9404 = vmatpush.msra.mxu0 %v9318
        %9405 = vmatpush.msra.mxu0 %v9287
        %9406 = vmatpush.msra.mxu0 %v9256
        %9407 = vmatmul.f32.gmra.mxu0 %v9389
        %v9408 = vpop.f32.mrf.mxu0
        %v9409 = vadd.f32 %v9387, %v9408
        %9410 = vdwg.mxu0
        %9411 = vmatpush.msra.mxu0 0.0
        %9412 = vmatpush.msra.mxu0 0.0
        %9413 = vmatpush.msra.mxu0 0.0
        %9414 = vmatpush.msra.mxu0 0.0
        %9415 = vmatpush.msra.mxu0 0.0
        %9416 = vmatpush.msra.mxu0 0.0
        %9417 = vmatpush.msra.mxu0 0.0
        %9418 = vmatpush.msra.mxu0 0.0
        %9419 = vmatpush.msra.mxu0 0.0
        %9420 = vmatpush.msra.mxu0 0.0
        %9421 = vmatpush.msra.mxu0 0.0
        %9422 = vmatpush.msra.mxu0 0.0
        %9423 = vmatpush.msra.mxu0 %v9350
        %9424 = vmatpush.msra.mxu0 %v9319
        %9425 = vmatpush.msra.mxu0 %v9288
        %9426 = vmatpush.msra.mxu0 %v9257
        %9427 = vmatmul.f32.gmra.mxu0 %v9389
        %v9428 = vpop.f32.mrf.mxu0
        %v9429 = vadd.f32 %v9387, %v9428
        %9430 = vdwg.mxu0
        %9431 = vmatpush.msra.mxu0 0.0
        %9432 = vmatpush.msra.mxu0 0.0
        %9433 = vmatpush.msra.mxu0 0.0
        %9434 = vmatpush.msra.mxu0 0.0
        %9435 = vmatpush.msra.mxu0 0.0
        %9436 = vmatpush.msra.mxu0 0.0
        %9437 = vmatpush.msra.mxu0 0.0
        %9438 = vmatpush.msra.mxu0 0.0
        %9439 = vmatpush.msra.mxu0 0.0
        %9440 = vmatpush.msra.mxu0 0.0
        %9441 = vmatpush.msra.mxu0 0.0
        %9442 = vmatpush.msra.mxu0 0.0
        %9443 = vmatpush.msra.mxu0 %v9351
        %9444 = vmatpush.msra.mxu0 %v9320
        %9445 = vmatpush.msra.mxu0 %v9289
        %9446 = vmatpush.msra.mxu0 %v9258
        %9447 = vmatmul.f32.gmra.mxu0 %v9389
        %v9448 = vpop.f32.mrf.mxu0
        %v9449 = vadd.f32 %v9387, %v9448
        %9450 = vdwg.mxu0
        %9451 = vmatpush.msra.mxu0 0.0
        %9452 = vmatpush.msra.mxu0 0.0
        %9453 = vmatpush.msra.mxu0 0.0
        %9454 = vmatpush.msra.mxu0 0.0
        %9455 = vmatpush.msra.mxu0 0.0
        %9456 = vmatpush.msra.mxu0 0.0
        %9457 = vmatpush.msra.mxu0 0.0
        %9458 = vmatpush.msra.mxu0 0.0
        %9459 = vmatpush.msra.mxu0 0.0
        %9460 = vmatpush.msra.mxu0 0.0
        %9461 = vmatpush.msra.mxu0 0.0
        %9462 = vmatpush.msra.mxu0 0.0
        %9463 = vmatpush.msra.mxu0 %v9352
        %9464 = vmatpush.msra.mxu0 %v9321
        %9465 = vmatpush.msra.mxu0 %v9290
        %9466 = vmatpush.msra.mxu0 %v9259
        %9467 = vmatmul.f32.gmra.mxu0 %v9389
        %v9468 = vpop.f32.mrf.mxu0
        %v9469 = vadd.f32 %v9387, %v9468
        %9470 = vdwg.mxu0
        %9471 = vmatpush.msra.mxu0 0.0
        %9472 = vmatpush.msra.mxu0 0.0
        %9473 = vmatpush.msra.mxu0 0.0
        %9474 = vmatpush.msra.mxu0 0.0
        %9475 = vmatpush.msra.mxu0 0.0
        %9476 = vmatpush.msra.mxu0 0.0
        %9477 = vmatpush.msra.mxu0 0.0
        %9478 = vmatpush.msra.mxu0 0.0
        %9479 = vmatpush.msra.mxu0 0.0
        %9480 = vmatpush.msra.mxu0 0.0
        %9481 = vmatpush.msra.mxu0 0.0
        %9482 = vmatpush.msra.mxu0 0.0
        %9483 = vmatpush.msra.mxu0 %v9353
        %9484 = vmatpush.msra.mxu0 %v9322
        %9485 = vmatpush.msra.mxu0 %v9291
        %9486 = vmatpush.msra.mxu0 %v9260
        %9487 = vmatmul.f32.gmra.mxu0 %v9389
        %v9488 = vpop.f32.mrf.mxu0
        %v9489 = vadd.f32 %v9387, %v9488
        %9490 = vdwg.mxu0
        %9491 = vmatpush.msra.mxu0 0.0
        %9492 = vmatpush.msra.mxu0 0.0
        %9493 = vmatpush.msra.mxu0 0.0
        %9494 = vmatpush.msra.mxu0 0.0
        %9495 = vmatpush.msra.mxu0 0.0
        %9496 = vmatpush.msra.mxu0 0.0
        %9497 = vmatpush.msra.mxu0 0.0
        %9498 = vmatpush.msra.mxu0 0.0
        %9499 = vmatpush.msra.mxu0 0.0
        %9500 = vmatpush.msra.mxu0 0.0
        %9501 = vmatpush.msra.mxu0 0.0
        %9502 = vmatpush.msra.mxu0 0.0
        %9503 = vmatpush.msra.mxu0 %v9354
        %9504 = vmatpush.msra.mxu0 %v9323
        %9505 = vmatpush.msra.mxu0 %v9292
        %9506 = vmatpush.msra.mxu0 %v9261
        %9507 = vmatmul.f32.gmra.mxu0 %v9389
        %v9508 = vpop.f32.mrf.mxu0
        %v9509 = vadd.f32 %v9387, %v9508
        %9510 = vdwg.mxu0
        %9511 = vmatpush.msra.mxu0 0.0
        %9512 = vmatpush.msra.mxu0 0.0
        %9513 = vmatpush.msra.mxu0 0.0
        %9514 = vmatpush.msra.mxu0 0.0
        %9515 = vmatpush.msra.mxu0 0.0
        %9516 = vmatpush.msra.mxu0 0.0
        %9517 = vmatpush.msra.mxu0 0.0
        %9518 = vmatpush.msra.mxu0 0.0
        %9519 = vmatpush.msra.mxu0 0.0
        %9520 = vmatpush.msra.mxu0 0.0
        %9521 = vmatpush.msra.mxu0 0.0
        %9522 = vmatpush.msra.mxu0 0.0
        %9523 = vmatpush.msra.mxu0 %v9355
        %9524 = vmatpush.msra.mxu0 %v9324
        %9525 = vmatpush.msra.mxu0 %v9293
        %9526 = vmatpush.msra.mxu0 %v9262
        %9527 = vmatmul.f32.gmra.mxu0 %v9389
        %v9528 = vpop.f32.mrf.mxu0
        %v9529 = vadd.f32 %v9387, %v9528
        %9530 = vdwg.mxu0
        %9531 = vmatpush.msra.mxu0 0.0
        %9532 = vmatpush.msra.mxu0 0.0
        %9533 = vmatpush.msra.mxu0 0.0
        %9534 = vmatpush.msra.mxu0 0.0
        %9535 = vmatpush.msra.mxu0 0.0
        %9536 = vmatpush.msra.mxu0 0.0
        %9537 = vmatpush.msra.mxu0 0.0
        %9538 = vmatpush.msra.mxu0 0.0
        %9539 = vmatpush.msra.mxu0 0.0
        %9540 = vmatpush.msra.mxu0 0.0
        %9541 = vmatpush.msra.mxu0 0.0
        %9542 = vmatpush.msra.mxu0 0.0
        %9543 = vmatpush.msra.mxu0 %v9356
        %9544 = vmatpush.msra.mxu0 %v9325
        %9545 = vmatpush.msra.mxu0 %v9294
        %9546 = vmatpush.msra.mxu0 %v9263
        %9547 = vmatmul.f32.gmra.mxu0 %v9389
        %v9548 = vpop.f32.mrf.mxu0
        %v9549 = vadd.f32 %v9387, %v9548
        %9550 = vdwg.mxu0
        %9551 = vmatpush.msra.mxu0 0.0
        %9552 = vmatpush.msra.mxu0 0.0
        %9553 = vmatpush.msra.mxu0 0.0
        %9554 = vmatpush.msra.mxu0 0.0
        %9555 = vmatpush.msra.mxu0 0.0
        %9556 = vmatpush.msra.mxu0 0.0
        %9557 = vmatpush.msra.mxu0 0.0
        %9558 = vmatpush.msra.mxu0 0.0
        %9559 = vmatpush.msra.mxu0 0.0
        %9560 = vmatpush.msra.mxu0 0.0
        %9561 = vmatpush.msra.mxu0 0.0
        %9562 = vmatpush.msra.mxu0 0.0
        %9563 = vmatpush.msra.mxu0 %v9357
        %9564 = vmatpush.msra.mxu0 %v9326
        %9565 = vmatpush.msra.mxu0 %v9295
        %9566 = vmatpush.msra.mxu0 %v9264
        %9567 = vmatmul.f32.gmra.mxu0 %v9389
        %v9568 = vpop.f32.mrf.mxu0
        %v9569 = vadd.f32 %v9387, %v9568
        %9570 = vdwg.mxu0
        %9571 = vmatpush.msra.mxu0 0.0
        %9572 = vmatpush.msra.mxu0 0.0
        %9573 = vmatpush.msra.mxu0 0.0
        %9574 = vmatpush.msra.mxu0 0.0
        %9575 = vmatpush.msra.mxu0 0.0
        %9576 = vmatpush.msra.mxu0 0.0
        %9577 = vmatpush.msra.mxu0 0.0
        %9578 = vmatpush.msra.mxu0 0.0
        %9579 = vmatpush.msra.mxu0 0.0
        %9580 = vmatpush.msra.mxu0 0.0
        %9581 = vmatpush.msra.mxu0 0.0
        %9582 = vmatpush.msra.mxu0 0.0
        %9583 = vmatpush.msra.mxu0 %v9358
        %9584 = vmatpush.msra.mxu0 %v9327
        %9585 = vmatpush.msra.mxu0 %v9296
        %9586 = vmatpush.msra.mxu0 %v9265
        %9587 = vmatmul.f32.gmra.mxu0 %v9389
        %v9588 = vpop.f32.mrf.mxu0
        %v9589 = vadd.f32 %v9387, %v9588
        %9590 = vdwg.mxu0
        %9591 = vmatpush.msra.mxu0 0.0
        %9592 = vmatpush.msra.mxu0 0.0
        %9593 = vmatpush.msra.mxu0 0.0
        %9594 = vmatpush.msra.mxu0 0.0
        %9595 = vmatpush.msra.mxu0 0.0
        %9596 = vmatpush.msra.mxu0 0.0
        %9597 = vmatpush.msra.mxu0 0.0
        %9598 = vmatpush.msra.mxu0 0.0
        %9599 = vmatpush.msra.mxu0 0.0
        %9600 = vmatpush.msra.mxu0 0.0
        %9601 = vmatpush.msra.mxu0 0.0
        %9602 = vmatpush.msra.mxu0 0.0
        %9603 = vmatpush.msra.mxu0 %v9359
        %9604 = vmatpush.msra.mxu0 %v9328
        %9605 = vmatpush.msra.mxu0 %v9297
        %9606 = vmatpush.msra.mxu0 %v9266
        %9607 = vmatmul.f32.gmra.mxu0 %v9389
        %v9608 = vpop.f32.mrf.mxu0
        %v9609 = vadd.f32 %v9387, %v9608
        %9610 = vdwg.mxu0
        %9611 = vmatpush.msra.mxu0 0.0
        %9612 = vmatpush.msra.mxu0 0.0
        %9613 = vmatpush.msra.mxu0 0.0
        %9614 = vmatpush.msra.mxu0 0.0
        %9615 = vmatpush.msra.mxu0 0.0
        %9616 = vmatpush.msra.mxu0 0.0
        %9617 = vmatpush.msra.mxu0 0.0
        %9618 = vmatpush.msra.mxu0 0.0
        %9619 = vmatpush.msra.mxu0 0.0
        %9620 = vmatpush.msra.mxu0 0.0
        %9621 = vmatpush.msra.mxu0 0.0
        %9622 = vmatpush.msra.mxu0 0.0
        %9623 = vmatpush.msra.mxu0 %v9360
        %9624 = vmatpush.msra.mxu0 %v9329
        %9625 = vmatpush.msra.mxu0 %v9298
        %9626 = vmatpush.msra.mxu0 %v9267
        %9627 = vmatmul.f32.gmra.mxu0 %v9389
        %v9628 = vpop.f32.mrf.mxu0
        %v9629 = vadd.f32 %v9387, %v9628
        %9630 = vdwg.mxu0
        %9631 = vmatpush.msra.mxu0 0.0
        %9632 = vmatpush.msra.mxu0 0.0
        %9633 = vmatpush.msra.mxu0 0.0
        %9634 = vmatpush.msra.mxu0 0.0
        %9635 = vmatpush.msra.mxu0 0.0
        %9636 = vmatpush.msra.mxu0 0.0
        %9637 = vmatpush.msra.mxu0 0.0
        %9638 = vmatpush.msra.mxu0 0.0
        %9639 = vmatpush.msra.mxu0 0.0
        %9640 = vmatpush.msra.mxu0 0.0
        %9641 = vmatpush.msra.mxu0 0.0
        %9642 = vmatpush.msra.mxu0 0.0
        %9643 = vmatpush.msra.mxu0 %v9361
        %9644 = vmatpush.msra.mxu0 %v9330
        %9645 = vmatpush.msra.mxu0 %v9299
        %9646 = vmatpush.msra.mxu0 %v9268
        %9647 = vmatmul.f32.gmra.mxu0 %v9389
        %v9648 = vpop.f32.mrf.mxu0
        %v9649 = vadd.f32 %v9387, %v9648
        %9650 = vdwg.mxu0
        %9651 = vmatpush.msra.mxu0 0.0
        %9652 = vmatpush.msra.mxu0 0.0
        %9653 = vmatpush.msra.mxu0 0.0
        %9654 = vmatpush.msra.mxu0 0.0
        %9655 = vmatpush.msra.mxu0 0.0
        %9656 = vmatpush.msra.mxu0 0.0
        %9657 = vmatpush.msra.mxu0 0.0
        %9658 = vmatpush.msra.mxu0 0.0
        %9659 = vmatpush.msra.mxu0 0.0
        %9660 = vmatpush.msra.mxu0 0.0
        %9661 = vmatpush.msra.mxu0 0.0
        %9662 = vmatpush.msra.mxu0 0.0
        %9663 = vmatpush.msra.mxu0 %v9362
        %9664 = vmatpush.msra.mxu0 %v9331
        %9665 = vmatpush.msra.mxu0 %v9300
        %9666 = vmatpush.msra.mxu0 %v9269
        %9667 = vmatmul.f32.gmra.mxu0 %v9389
        %v9668 = vpop.f32.mrf.mxu0
        %v9669 = vadd.f32 %v9387, %v9668
        %9670 = vdwg.mxu0
        %9671 = vmatpush.msra.mxu0 0.0
        %9672 = vmatpush.msra.mxu0 0.0
        %9673 = vmatpush.msra.mxu0 0.0
        %9674 = vmatpush.msra.mxu0 0.0
        %9675 = vmatpush.msra.mxu0 0.0
        %9676 = vmatpush.msra.mxu0 0.0
        %9677 = vmatpush.msra.mxu0 0.0
        %9678 = vmatpush.msra.mxu0 0.0
        %9679 = vmatpush.msra.mxu0 0.0
        %9680 = vmatpush.msra.mxu0 0.0
        %9681 = vmatpush.msra.mxu0 0.0
        %9682 = vmatpush.msra.mxu0 0.0
        %9683 = vmatpush.msra.mxu0 %v9363
        %9684 = vmatpush.msra.mxu0 %v9332
        %9685 = vmatpush.msra.mxu0 %v9301
        %9686 = vmatpush.msra.mxu0 %v9270
        %9687 = vmatmul.f32.gmra.mxu0 %v9389
        %v9688 = vpop.f32.mrf.mxu0
        %v9689 = vadd.f32 %v9387, %v9688
        %9690 = vdwg.mxu0
        %9691 = vmatpush.msra.mxu0 0.0
        %9692 = vmatpush.msra.mxu0 0.0
        %9693 = vmatpush.msra.mxu0 0.0
        %9694 = vmatpush.msra.mxu0 0.0
        %9695 = vmatpush.msra.mxu0 0.0
        %9696 = vmatpush.msra.mxu0 0.0
        %9697 = vmatpush.msra.mxu0 0.0
        %9698 = vmatpush.msra.mxu0 0.0
        %9699 = vmatpush.msra.mxu0 0.0
        %9700 = vmatpush.msra.mxu0 0.0
        %9701 = vmatpush.msra.mxu0 0.0
        %9702 = vmatpush.msra.mxu0 0.0
        %9703 = vmatpush.msra.mxu0 %v9364
        %9704 = vmatpush.msra.mxu0 %v9333
        %9705 = vmatpush.msra.mxu0 %v9302
        %9706 = vmatpush.msra.mxu0 %v9271
        %9707 = vmatmul.f32.gmra.mxu0 %v9389
        %v9708 = vpop.f32.mrf.mxu0
        %v9709 = vadd.f32 %v9387, %v9708
        %9710 = vdwg.mxu0
        %9711 = vmatpush.msra.mxu0 0.0
        %9712 = vmatpush.msra.mxu0 0.0
        %9713 = vmatpush.msra.mxu0 0.0
        %9714 = vmatpush.msra.mxu0 0.0
        %9715 = vmatpush.msra.mxu0 0.0
        %9716 = vmatpush.msra.mxu0 0.0
        %9717 = vmatpush.msra.mxu0 0.0
        %9718 = vmatpush.msra.mxu0 0.0
        %9719 = vmatpush.msra.mxu0 0.0
        %9720 = vmatpush.msra.mxu0 0.0
        %9721 = vmatpush.msra.mxu0 0.0
        %9722 = vmatpush.msra.mxu0 0.0
        %9723 = vmatpush.msra.mxu0 %v9365
        %9724 = vmatpush.msra.mxu0 %v9334
        %9725 = vmatpush.msra.mxu0 %v9303
        %9726 = vmatpush.msra.mxu0 %v9272
        %9727 = vmatmul.f32.gmra.mxu0 %v9389
        %v9728 = vpop.f32.mrf.mxu0
        %v9729 = vadd.f32 %v9387, %v9728
        %9730 = vdwg.mxu0
        %9731 = vmatpush.msra.mxu0 0.0
        %9732 = vmatpush.msra.mxu0 0.0
        %9733 = vmatpush.msra.mxu0 0.0
        %9734 = vmatpush.msra.mxu0 0.0
        %9735 = vmatpush.msra.mxu0 0.0
        %9736 = vmatpush.msra.mxu0 0.0
        %9737 = vmatpush.msra.mxu0 0.0
        %9738 = vmatpush.msra.mxu0 0.0
        %9739 = vmatpush.msra.mxu0 0.0
        %9740 = vmatpush.msra.mxu0 0.0
        %9741 = vmatpush.msra.mxu0 0.0
        %9742 = vmatpush.msra.mxu0 0.0
        %9743 = vmatpush.msra.mxu0 %v9366
        %9744 = vmatpush.msra.mxu0 %v9335
        %9745 = vmatpush.msra.mxu0 %v9304
        %9746 = vmatpush.msra.mxu0 %v9273
        %9747 = vmatmul.f32.gmra.mxu0 %v9389
        %v9748 = vpop.f32.mrf.mxu0
        %v9749 = vadd.f32 %v9387, %v9748
        %9750 = vdwg.mxu0
        %9751 = vmatpush.msra.mxu0 0.0
        %9752 = vmatpush.msra.mxu0 0.0
        %9753 = vmatpush.msra.mxu0 0.0
        %9754 = vmatpush.msra.mxu0 0.0
        %9755 = vmatpush.msra.mxu0 0.0
        %9756 = vmatpush.msra.mxu0 0.0
        %9757 = vmatpush.msra.mxu0 0.0
        %9758 = vmatpush.msra.mxu0 0.0
        %9759 = vmatpush.msra.mxu0 0.0
        %9760 = vmatpush.msra.mxu0 0.0
        %9761 = vmatpush.msra.mxu0 0.0
        %9762 = vmatpush.msra.mxu0 0.0
        %9763 = vmatpush.msra.mxu0 %v9367
        %9764 = vmatpush.msra.mxu0 %v9336
        %9765 = vmatpush.msra.mxu0 %v9305
        %9766 = vmatpush.msra.mxu0 %v9274
        %9767 = vmatmul.f32.gmra.mxu0 %v9389
        %v9768 = vpop.f32.mrf.mxu0
        %v9769 = vadd.f32 %v9387, %v9768
        %9770 = vdwg.mxu0
        %9771 = vmatpush.msra.mxu0 0.0
        %9772 = vmatpush.msra.mxu0 0.0
        %9773 = vmatpush.msra.mxu0 0.0
        %9774 = vmatpush.msra.mxu0 0.0
        %9775 = vmatpush.msra.mxu0 0.0
        %9776 = vmatpush.msra.mxu0 0.0
        %9777 = vmatpush.msra.mxu0 0.0
        %9778 = vmatpush.msra.mxu0 0.0
        %9779 = vmatpush.msra.mxu0 0.0
        %9780 = vmatpush.msra.mxu0 0.0
        %9781 = vmatpush.msra.mxu0 0.0
        %9782 = vmatpush.msra.mxu0 0.0
        %9783 = vmatpush.msra.mxu0 %v9368
        %9784 = vmatpush.msra.mxu0 %v9337
        %9785 = vmatpush.msra.mxu0 %v9306
        %9786 = vmatpush.msra.mxu0 %v9275
        %9787 = vmatmul.f32.gmra.mxu0 %v9389
        %v9788 = vpop.f32.mrf.mxu0
        %v9789 = vadd.f32 %v9387, %v9788
        %9790 = vdwg.mxu0
        %9791 = vmatpush.msra.mxu0 0.0
        %9792 = vmatpush.msra.mxu0 0.0
        %9793 = vmatpush.msra.mxu0 0.0
        %9794 = vmatpush.msra.mxu0 0.0
        %9795 = vmatpush.msra.mxu0 0.0
        %9796 = vmatpush.msra.mxu0 0.0
        %9797 = vmatpush.msra.mxu0 0.0
        %9798 = vmatpush.msra.mxu0 0.0
        %9799 = vmatpush.msra.mxu0 0.0
        %9800 = vmatpush.msra.mxu0 0.0
        %9801 = vmatpush.msra.mxu0 0.0
        %9802 = vmatpush.msra.mxu0 0.0
        %9803 = vmatpush.msra.mxu0 %v9369
        %9804 = vmatpush.msra.mxu0 %v9338
        %9805 = vmatpush.msra.mxu0 %v9307
        %9806 = vmatpush.msra.mxu0 %v9276
        %9807 = vmatmul.f32.gmra.mxu0 %v9389
        %v9808 = vpop.f32.mrf.mxu0
        %v9809 = vadd.f32 %v9387, %v9808
        %9810 = vdwg.mxu0
        %9811 = vmatpush.msra.mxu0 0.0
        %9812 = vmatpush.msra.mxu0 0.0
        %9813 = vmatpush.msra.mxu0 0.0
        %9814 = vmatpush.msra.mxu0 0.0
        %9815 = vmatpush.msra.mxu0 0.0
        %9816 = vmatpush.msra.mxu0 0.0
        %9817 = vmatpush.msra.mxu0 0.0
        %9818 = vmatpush.msra.mxu0 0.0
        %9819 = vmatpush.msra.mxu0 0.0
        %9820 = vmatpush.msra.mxu0 0.0
        %9821 = vmatpush.msra.mxu0 0.0
        %9822 = vmatpush.msra.mxu0 0.0
        %9823 = vmatpush.msra.mxu0 %v9370
        %9824 = vmatpush.msra.mxu0 %v9339
        %9825 = vmatpush.msra.mxu0 %v9308
        %9826 = vmatpush.msra.mxu0 %v9277
        %9827 = vmatmul.f32.gmra.mxu0 %v9389
        %v9828 = vpop.f32.mrf.mxu0
        %v9829 = vadd.f32 %v9387, %v9828
        %9830 = vdwg.mxu0
        %9831 = vmatpush.msra.mxu0 0.0
        %9832 = vmatpush.msra.mxu0 0.0
        %9833 = vmatpush.msra.mxu0 0.0
        %9834 = vmatpush.msra.mxu0 0.0
        %9835 = vmatpush.msra.mxu0 0.0
        %9836 = vmatpush.msra.mxu0 0.0
        %9837 = vmatpush.msra.mxu0 0.0
        %9838 = vmatpush.msra.mxu0 0.0
        %9839 = vmatpush.msra.mxu0 0.0
        %9840 = vmatpush.msra.mxu0 0.0
        %9841 = vmatpush.msra.mxu0 0.0
        %9842 = vmatpush.msra.mxu0 0.0
        %9843 = vmatpush.msra.mxu0 %v9371
        %9844 = vmatpush.msra.mxu0 %v9340
        %9845 = vmatpush.msra.mxu0 %v9309
        %9846 = vmatpush.msra.mxu0 %v9278
        %9847 = vmatmul.f32.gmra.mxu0 %v9389
        %v9848 = vpop.f32.mrf.mxu0
        %v9849 = vadd.f32 %v9387, %v9848
        %9850 = vdwg.mxu0
        %9851 = vmatpush.msra.mxu0 0.0
        %9852 = vmatpush.msra.mxu0 0.0
        %9853 = vmatpush.msra.mxu0 0.0
        %9854 = vmatpush.msra.mxu0 0.0
        %9855 = vmatpush.msra.mxu0 0.0
        %9856 = vmatpush.msra.mxu0 0.0
        %9857 = vmatpush.msra.mxu0 0.0
        %9858 = vmatpush.msra.mxu0 0.0
        %9859 = vmatpush.msra.mxu0 0.0
        %9860 = vmatpush.msra.mxu0 0.0
        %9861 = vmatpush.msra.mxu0 0.0
        %9862 = vmatpush.msra.mxu0 0.0
        %9863 = vmatpush.msra.mxu0 %v9372
        %9864 = vmatpush.msra.mxu0 %v9341
        %9865 = vmatpush.msra.mxu0 %v9310
        %9866 = vmatpush.msra.mxu0 %v9279
        %9867 = vmatmul.f32.gmra.mxu0 %v9389
        %v9868 = vpop.f32.mrf.mxu0
        %v9869 = vadd.f32 %v9387, %v9868
        %9870 = vdwg.mxu0
        %9871 = vmatpush.msra.mxu0 0.0
        %9872 = vmatpush.msra.mxu0 0.0
        %9873 = vmatpush.msra.mxu0 0.0
        %9874 = vmatpush.msra.mxu0 0.0
        %9875 = vmatpush.msra.mxu0 0.0
        %9876 = vmatpush.msra.mxu0 0.0
        %9877 = vmatpush.msra.mxu0 0.0
        %9878 = vmatpush.msra.mxu0 0.0
        %9879 = vmatpush.msra.mxu0 0.0
        %9880 = vmatpush.msra.mxu0 0.0
        %9881 = vmatpush.msra.mxu0 0.0
        %9882 = vmatpush.msra.mxu0 0.0
        %9883 = vmatpush.msra.mxu0 %v9373
        %9884 = vmatpush.msra.mxu0 %v9342
        %9885 = vmatpush.msra.mxu0 %v9311
        %9886 = vmatpush.msra.mxu0 %v9280
        %9887 = vmatmul.f32.gmra.mxu0 %v9389
        %v9888 = vpop.f32.mrf.mxu0
        %v9889 = vadd.f32 %v9387, %v9888
        %9890 = vdwg.mxu0
        %9891 = vmatpush.msra.mxu0 0.0
        %9892 = vmatpush.msra.mxu0 0.0
        %9893 = vmatpush.msra.mxu0 0.0
        %9894 = vmatpush.msra.mxu0 0.0
        %9895 = vmatpush.msra.mxu0 0.0
        %9896 = vmatpush.msra.mxu0 0.0
        %9897 = vmatpush.msra.mxu0 0.0
        %9898 = vmatpush.msra.mxu0 0.0
        %9899 = vmatpush.msra.mxu0 0.0
        %9900 = vmatpush.msra.mxu0 0.0
        %9901 = vmatpush.msra.mxu0 0.0
        %9902 = vmatpush.msra.mxu0 0.0
        %9903 = vmatpush.msra.mxu0 %v9374
        %9904 = vmatpush.msra.mxu0 %v9343
        %9905 = vmatpush.msra.mxu0 %v9312
        %9906 = vmatpush.msra.mxu0 %v9281
        %9907 = vmatmul.f32.gmra.mxu0 %v9389
        %v9908 = vpop.f32.mrf.mxu0
        %v9909 = vadd.f32 %v9387, %v9908
        %9910 = vdwg.mxu0
        %9911 = vmatpush.msra.mxu0 0.0
        %9912 = vmatpush.msra.mxu0 0.0
        %9913 = vmatpush.msra.mxu0 0.0
        %9914 = vmatpush.msra.mxu0 0.0
        %9915 = vmatpush.msra.mxu0 0.0
        %9916 = vmatpush.msra.mxu0 0.0
        %9917 = vmatpush.msra.mxu0 0.0
        %9918 = vmatpush.msra.mxu0 0.0
        %9919 = vmatpush.msra.mxu0 0.0
        %9920 = vmatpush.msra.mxu0 0.0
        %9921 = vmatpush.msra.mxu0 0.0
        %9922 = vmatpush.msra.mxu0 0.0
        %9923 = vmatpush.msra.mxu0 %v9375
        %9924 = vmatpush.msra.mxu0 %v9344
        %9925 = vmatpush.msra.mxu0 %v9313
        %9926 = vmatpush.msra.mxu0 %v9282
        %9927 = vmatmul.f32.gmra.mxu0 %v9389
        %v9928 = vpop.f32.mrf.mxu0
        %v9929 = vadd.f32 %v9387, %v9928
        %9930 = vdwg.mxu0
        %9931 = vmatpush.msra.mxu0 0.0
        %9932 = vmatpush.msra.mxu0 0.0
        %9933 = vmatpush.msra.mxu0 0.0
        %9934 = vmatpush.msra.mxu0 0.0
        %9935 = vmatpush.msra.mxu0 0.0
        %9936 = vmatpush.msra.mxu0 0.0
        %9937 = vmatpush.msra.mxu0 0.0
        %9938 = vmatpush.msra.mxu0 0.0
        %9939 = vmatpush.msra.mxu0 0.0
        %9940 = vmatpush.msra.mxu0 0.0
        %9941 = vmatpush.msra.mxu0 0.0
        %9942 = vmatpush.msra.mxu0 0.0
        %9943 = vmatpush.msra.mxu0 %v9376
        %9944 = vmatpush.msra.mxu0 %v9345
        %9945 = vmatpush.msra.mxu0 %v9314
        %9946 = vmatpush.msra.mxu0 %v9283
        %9947 = vmatmul.f32.gmra.mxu0 %v9389
        %v9948 = vpop.f32.mrf.mxu0
        %v9949 = vadd.f32 %v9387, %v9948
        %9950 = vdwg.mxu0
        %9951 = vmatpush.msra.mxu0 0.0
        %9952 = vmatpush.msra.mxu0 0.0
        %9953 = vmatpush.msra.mxu0 0.0
        %9954 = vmatpush.msra.mxu0 0.0
        %9955 = vmatpush.msra.mxu0 0.0
        %9956 = vmatpush.msra.mxu0 0.0
        %9957 = vmatpush.msra.mxu0 0.0
        %9958 = vmatpush.msra.mxu0 0.0
        %9959 = vmatpush.msra.mxu0 0.0
        %9960 = vmatpush.msra.mxu0 0.0
        %9961 = vmatpush.msra.mxu0 0.0
        %9962 = vmatpush.msra.mxu0 0.0
        %9963 = vmatpush.msra.mxu0 %v9377
        %9964 = vmatpush.msra.mxu0 %v9346
        %9965 = vmatpush.msra.mxu0 %v9315
        %9966 = vmatpush.msra.mxu0 %v9284
        %9967 = vmatmul.f32.gmra.mxu0 %v9389
        %v9968 = vpop.f32.mrf.mxu0
        %v9969 = vadd.f32 %v9387, %v9968
        %9970 = vdwg.mxu0
        %9971 = vmatpush.msra.mxu0 0.0
        %9972 = vmatpush.msra.mxu0 0.0
        %9973 = vmatpush.msra.mxu0 0.0
        %9974 = vmatpush.msra.mxu0 0.0
        %9975 = vmatpush.msra.mxu0 0.0
        %9976 = vmatpush.msra.mxu0 0.0
        %9977 = vmatpush.msra.mxu0 0.0
        %9978 = vmatpush.msra.mxu0 0.0
        %9979 = vmatpush.msra.mxu0 0.0
        %9980 = vmatpush.msra.mxu0 0.0
        %9981 = vmatpush.msra.mxu0 0.0
        %9982 = vmatpush.msra.mxu0 0.0
        %9983 = vmatpush.msra.mxu0 %v9378
        %9984 = vmatpush.msra.mxu0 %v9347
        %9985 = vmatpush.msra.mxu0 %v9316
        %9986 = vmatpush.msra.mxu0 %v9285
        %9987 = vmatmul.f32.gmra.mxu0 %v9389
        %v9988 = vpop.f32.mrf.mxu0
        %v9989 = vadd.f32 %v9387, %v9988
        %9990 = vdwg.mxu0
        %9991 = vmatpush.msra.mxu0 0.0
        %9992 = vmatpush.msra.mxu0 0.0
        %9993 = vmatpush.msra.mxu0 0.0
        %9994 = vmatpush.msra.mxu0 0.0
        %9995 = vmatpush.msra.mxu0 0.0
        %9996 = vmatpush.msra.mxu0 0.0
        %9997 = vmatpush.msra.mxu0 0.0
        %9998 = vmatpush.msra.mxu0 0.0
        %9999 = vmatpush.msra.mxu0 0.0
        %10000 = vmatpush.msra.mxu0 0.0
        %10001 = vmatpush.msra.mxu0 0.0
        %10002 = vmatpush.msra.mxu0 0.0
        %10003 = vmatpush.msra.mxu0 %v9379
        %10004 = vmatpush.msra.mxu0 %v9348
        %10005 = vmatpush.msra.mxu0 %v9317
        %10006 = vmatpush.msra.mxu0 %v9286
        %10007 = vmatmul.f32.gmra.mxu0 %v9389
        %v10008 = vpop.f32.mrf.mxu0
        %v10009 = vadd.f32 %v9387, %v10008
        %10010 = vdwg.mxu0
        %v10042 = vrot.slane %v9429, 7
        %v10043 = vrot.slane %v9449, 6
        %v10044 = vrot.slane %v9469, 5
        %v10045 = vrot.slane %v9489, 4
        %v10046 = vrot.slane %v9509, 3
        %v10047 = vrot.slane %v9529, 2
        %v10048 = vrot.slane %v9549, 1
        %v10049 = vrot.slane %v9589, 7
        %v10050 = vrot.slane %v9609, 6
        %v10051 = vrot.slane %v9629, 5
        %v10052 = vrot.slane %v9649, 4
        %v10053 = vrot.slane %v9669, 3
        %v10054 = vrot.slane %v9689, 2
        %v10055 = vrot.slane %v9709, 1
        %v10056 = vrot.slane %v9749, 7
        %v10057 = vrot.slane %v9769, 6
        %v10058 = vrot.slane %v9789, 5
        %v10059 = vrot.slane %v9809, 4
        %v10060 = vrot.slane %v9829, 3
        %v10061 = vrot.slane %v9849, 2
        %v10062 = vrot.slane %v9869, 1
        %v10063 = vrot.slane %v9909, 7
        %v10064 = vrot.slane %v9929, 6
        %v10065 = vrot.slane %v9949, 5
        %v10066 = vrot.slane %v9969, 4
        %v10067 = vrot.slane %v9989, 3
        %v10068 = vrot.slane %v10009, 2
        %vm10069 = vcmask 1040384
        %v10070 = vsel %vm10069, %v9409, %v10042
        %vm10071 = vcmask 1042434
        %v10072 = vsel %vm10071, %v10043, %v10044
        %vm10073 = vcmask 1041408
        %v10074 = vsel %vm10073, %v10070, %v10072
        %vm10075 = vcmask 1044484
        %v10076 = vsel %vm10075, %v10045, %v10046
        %vm10077 = vcmask 1046534
        %v10078 = vsel %vm10077, %v10047, %v10048
        %vm10079 = vcmask 1045508
        %v10080 = vsel %vm10079, %v10076, %v10078
        %v10081 = vsel %vm959, %v10074, %v10080
        %v10082 = vsel %vm10069, %v9569, %v10049
        %v10083 = vsel %vm10071, %v10050, %v10051
        %v10084 = vsel %vm10073, %v10082, %v10083
        %v10085 = vsel %vm10075, %v10052, %v10053
        %v10086 = vsel %vm10077, %v10054, %v10055
        %v10087 = vsel %vm10079, %v10085, %v10086
        %v10088 = vsel %vm959, %v10084, %v10087
        %v10089 = vsel %vm10069, %v9729, %v10056
        %v10090 = vsel %vm10071, %v10057, %v10058
        %v10091 = vsel %vm10073, %v10089, %v10090
        %v10092 = vsel %vm10075, %v10059, %v10060
        %v10093 = vsel %vm10077, %v10061, %v10062
        %v10094 = vsel %vm10079, %v10092, %v10093
        %v10095 = vsel %vm959, %v10091, %v10094
        %v10096 = vsel %vm10069, %v9889, %v10063
        %v10097 = vsel %vm10071, %v10064, %v10065
        %v10098 = vsel %vm10073, %v10096, %v10097
        %v10099 = vsel %vm10075, %v10066, %v10067
        %v10100 = vsel %vm10079, %v10099, %v10068
        %v10101 = vsel %vm959, %v10098, %v10100
        %10106 = vst [vmem:[%s406] sm:$0xff] %v10081
        %10107 = vst [vmem:[%s406 + $0x8] sm:$0xff] %v10088
        %10108 = vst [vmem:[%s406 + $0x10] sm:$0xff] %v10095
        %v10109 = vlaneseq
        %vm10110 = vcmp.ge.s32.totalorder %v10109, 0
        %vm10111 = vcmp.lt.s32.totalorder %v10109, 896
        %vm10112 = vmand %vm10110, %vm10111
        %10113 = vst.msk [vmem:[%s406 + $0x18] sm:$0x7f] %vm10112, %v10101
        %s10114 = sand.u32 %s274, 1
        %s10115 = scalar_lea.sflag [#allocation6], %s10114
        %s10116 = sand.u32 %s274, 1
        %s10117 = smul.addr %s10116, 31
        %s10118 = scalar_lea.vmem [#allocation7], %s10117
        // Predicated region
        $region69: #{tpu_custom_call.1} parent=63 // pred_check
          %p10119 = pneg %p284
        $region70: #{tpu_custom_call.1} parent=63 // pred_check_branch
          %10121 = sbr.rel (%p10119) target = $region72
        $region71: #{tpu_custom_call.1} parent=63 // pred_region
          %s10122 = smul.u32 31, %s30
          %10124 = vsyncadd %s10115, 0
          %s10125 = scalar_lea.hbm %s11, %s10122
          %s10127 = sshll.u32 %s10118, 4
          %s10128 = int_to_ptr.vmem [resolvable:$true] %s10127
          %s10129 = sshll.u32 %s10125, 4
          %s10130 = int_to_ptr.hbm [resolvable:$true] %s10129
          %10132 = dma.vmem_to_hbm [thread:$0]  %s10128, 496, %s10130, %s10115
        $region72: #{tpu_custom_call.1} parent=63 // pred_fallthru
          _
      $region64: #{tpu_custom_call.1} parent=5 // pred_fallthru
        _
      %p10133 = scmp.le.s32.totalorder 2, %s25
      // Predicated region
      $region73: #{tpu_custom_call.1} parent=5 // pred_check
        %p10134 = pneg %p10133
      $region74: #{tpu_custom_call.1} parent=5 // pred_check_branch
        %10136 = sbr.rel (%p10134) target = $region76
      $region75: #{tpu_custom_call.1} parent=5 // pred_region
        %s10137 = ssub.s32 %s25, 2
        // Predicated region
        $region77: #{tpu_custom_call.1} parent=75 // pred_check
          %p10138 = pneg %p290
        $region78: #{tpu_custom_call.1} parent=75 // pred_check_branch
          %10140 = sbr.rel (%p10138) target = $region80
        $region79: #{tpu_custom_call.1} parent=75 // pred_region
          %s10141 = sand.u32 %s275, 1
          %s10142 = scalar_lea.sflag [#allocation6], %s10141
          %s10143 = sand.u32 %s275, 1
          %s10144 = smul.addr %s10143, 31
          %s10145 = scalar_lea.vmem [#allocation7], %s10144
          %10147 = dma.done %s10142, 496
        $region80: #{tpu_custom_call.1} parent=75 // pred_fallthru
          _
      $region76: #{tpu_custom_call.1} parent=5 // pred_fallthru
        _
    $region6: #{tpu_custom_call.1} parent=1 // loop_footer
      %s29 = sadd.s32 1, %s25
    $region7: #{tpu_custom_call.1} parent=1 // loop_footer_branch
      %24 = sbr.rel target = $region3
    $region8: #{tpu_custom_call.1} parent=1 // loop_exit
      _
    %10148 = vsyncpa [#allocation5], 1
    %s10149 = scalar_lea.sflag [#allocation5], 1
    %10150 = vsyncpa %s10149, 1
    %10151 = vsyncpa [#allocation6], 1
    %s10152 = scalar_lea.sflag [#allocation6], 1
    %10153 = vsyncpa %s10152, 1

</llo_original>
